<compile_context>
chip_gen: v7x
topology: tpu7x:2x2x1
jax: 0.10.0
libtpu: 0.0.40
codegen_flags: <defaults>
</compile_context>

<pallas_src>
import functools

import jax
import jax.numpy as jnp
import numpy as np
from jax.experimental import pallas as pl
from jax.experimental.pallas import tpu as pltpu

BN_EPS = 1e-5
LANE = 128
VMEM_LIMIT_BYTES = 48 * 1024 * 1024  # safe on v7x (64 MiB/TC) and v5e/v6e


def _round_up(x, m):
    return (x + m - 1) // m * m


# ---------------------------------------------------------------------------
# Kernels
# ---------------------------------------------------------------------------
def _make_conv_stats_kernel(h, w, cin_p, cout_p, fuse_input_affine):
    """3x3 'same' conv for one batch element + per-step BN partial stats.

    The halo is built in a VMEM scratch; the 3 dx taps are folded into the
    contraction dim, so each dy does one (h*w, 3*cin_p) @ (3*cin_p, cout_p)
    matmul.  If `fuse_input_affine`, the previous stage's folded BatchNorm
    affine + ReLU is applied to the input tile before the conv.
    """
    m_tile = h * w

    def kernel(x_ref, w_ref, *rest):
        if fuse_input_affine:
            scale_ref, shift_ref, y_ref, stats_ref, pad_scr = rest
        else:
            y_ref, stats_ref, pad_scr = rest

        # Zero the halo border ('same' padding).  Re-zeroed every step so the
        # kernel stays correct when the parallel grid is split across cores.
        zrow = jnp.zeros((1, w + 2, cin_p), pad_scr.dtype)
        zcol = jnp.zeros((h + 2, 1, cin_p), pad_scr.dtype)
        pad_scr[0:1, :, :] = zrow
        pad_scr[h + 1:h + 2, :, :] = zrow
        pad_scr[:, 0:1, :] = zcol
        pad_scr[:, w + 1:w + 2, :] = zcol

        x = x_ref[0]                                      # (h, w, cin_p) bf16
        if fuse_input_affine:
            scale = scale_ref[...].reshape(1, 1, cin_p)
            shift = shift_ref[...].reshape(1, 1, cin_p)
            x = jnp.maximum(x.astype(jnp.float32) * scale + shift, 0.0)
        pad_scr[1:h + 1, 1:w + 1, :] = x.astype(pad_scr.dtype)

        acc = jnp.zeros((m_tile, cout_p), jnp.float32)
        for dy in range(3):
            # dx taps folded into K: patch[:, dx*cin_p + c] = pad[y+dy, x+dx, c]
            patch = jnp.concatenate(
                [pad_scr[dy:dy + h, 0:w, :],
                 pad_scr[dy:dy + h, 1:w + 1, :],
                 pad_scr[dy:dy + h, 2:w + 2, :]], axis=-1)
            patch = patch.reshape(m_tile, 3 * cin_p)       # stays bf16
            acc = acc + jnp.dot(patch, w_ref[dy],
                                preferred_element_type=jnp.float32)

        # Raw conv output stored in bf16 (halves the dominant HBM term); BN
        # statistics come from the f32 accumulator, so they remain exact.
        y_ref[0] = acc.reshape(h, w, cout_p).astype(y_ref.dtype)
        stats_ref[0, 0:1, :] = jnp.sum(acc, axis=0, keepdims=True)
        stats_ref[0, 1:2, :] = jnp.sum(acc * acc, axis=0, keepdims=True)

    return kernel


def _affine_relu_kernel(y_ref, scale_ref, shift_ref, o_ref):
    """Folded BatchNorm (per-channel affine) + ReLU on a streaming tile."""
    y = y_ref[...].astype(jnp.float32)
    o_ref[...] = jnp.maximum(y * scale_ref[...] + shift_ref[...], 0.0
                             ).astype(o_ref.dtype)


# ---------------------------------------------------------------------------
# pallas_call wrappers
# ---------------------------------------------------------------------------
def _conv_stats_call(a, w_packed, scale=None, shift=None):
    """a: (N,H,W,Cin_p) bf16 -> raw conv y (N,H,W,Cout_p) bf16, stats (N,2,Cout_p) f32."""
    n, h, w, cin_p = a.shape
    cout_p = w_packed.shape[-1]
    fuse = scale is not None

    in_specs = [
        pl.BlockSpec((1, h, w, cin_p), lambda i: (i, 0, 0, 0)),
        # Weights are small and constant-indexed; default double-buffering is
        # cheap here (pl.Buffered(1) only pays off for very large channels).
        pl.BlockSpec((3, 3 * cin_p, cout_p), lambda i: (0, 0, 0)),
    ]
    args = [a, w_packed.astype(jnp.bfloat16)]
    if fuse:
        in_specs += [pl.BlockSpec((1, cin_p), lambda i: (0, 0)),
                     pl.BlockSpec((1, cin_p), lambda i: (0, 0))]
        args += [scale, shift]

    return pl.pallas_call(
        _make_conv_stats_kernel(h, w, cin_p, cout_p, fuse),
        out_shape=(jax.ShapeDtypeStruct((n, h, w, cout_p), jnp.bfloat16),
                   jax.ShapeDtypeStruct((n, 2, cout_p), jnp.float32)),
        grid=(n,),
        in_specs=in_specs,
        out_specs=(pl.BlockSpec((1, h, w, cout_p), lambda i: (i, 0, 0, 0)),
                   pl.BlockSpec((1, 2, cout_p), lambda i: (i, 0, 0))),
        scratch_shapes=[pltpu.VMEM((h + 2, w + 2, cin_p), jnp.bfloat16)],
        compiler_params=pltpu.CompilerParams(
            dimension_semantics=("parallel",),
            vmem_limit_bytes=VMEM_LIMIT_BYTES),
    )(*args)


def _fold_bn(stats, m_total, gamma, beta):
    """Reduce per-step partial stats and fold BN into y*scale + shift."""
    s = jnp.sum(stats[:, 0, :], axis=0)
    ss = jnp.sum(stats[:, 1, :], axis=0)
    mean = s / m_total
    var = jnp.maximum(ss / m_total - mean * mean, 0.0)   # biased var (train mode)
    scale = gamma[0] * jax.lax.rsqrt(var + BN_EPS)
    shift = beta[0] - mean * scale
    return scale[None, :], shift[None, :]


def _pick_stream_tile(m, cap=4096):
    if m <= cap:
        return m
    for t in range(cap, 7, -1):
        if m % t == 0 and t % 8 == 0:
            return t
    return m   # full-extent block is always layout-legal


def _affine_relu_call(y2d, scale, shift, out_dtype):
    m, c = y2d.shape
    tm = _pick_stream_tile(m)
    return pl.pallas_call(
        _affine_relu_kernel,
        out_shape=jax.ShapeDtypeStruct((m, c), out_dtype),
        grid=(m // tm,),
        in_specs=[pl.BlockSpec((tm, c), lambda i: (i, 0)),
                  pl.BlockSpec((1, c), lambda i: (0, 0)),
                  pl.BlockSpec((1, c), lambda i: (0, 0))],
        out_specs=pl.BlockSpec((tm, c), lambda i: (i, 0)),
        compiler_params=pltpu.CompilerParams(
            dimension_semantics=("parallel",),
            vmem_limit_bytes=VMEM_LIMIT_BYTES),
    )(y2d, scale, shift)


# ---------------------------------------------------------------------------
# Parameters & forward
# ---------------------------------------------------------------------------
def _pack_conv_weight(w_oihw, cin_p, cout_p):
    """(Cout, Cin, 3, 3) -> (3, 3*cin_p, cout_p); contraction index = dx*cin_p + c."""
    cout, cin, kh, kw = w_oihw.shape
    w = jnp.transpose(w_oihw, (2, 3, 1, 0))                      # (kh, kw, cin, cout)
    w = jnp.pad(w, ((0, 0), (0, 0), (0, cin_p - cin), (0, cout_p - cout)))
    return w.reshape(kh, kw * cin_p, cout_p)


def init_double_conv_params(key, in_channels, out_channels, dimension=None,
                            kernel_size=3):
    if not dimension:
        dimension = out_channels
    assert kernel_size == 3, "only 3x3 'same' convolutions are implemented"
    cin_p = _round_up(in_channels, LANE)
    cmid_p = _round_up(dimension, LANE)
    cout_p = _round_up(out_channels, LANE)
    k1, k2 = jax.random.split(key)
    w1 = 0.1 * jax.random.normal(k1, (dimension, in_channels, 3, 3), jnp.float32)
    w2 = 0.1 * jax.random.normal(k2, (out_channels, dimension, 3, 3), jnp.float32)
    return {
        "w1": _pack_conv_weight(w1, cin_p, cmid_p),
        "g1": jnp.ones((1, cmid_p), jnp.float32),    # BN weight init (ones)
        "b1": jnp.zeros((1, cmid_p), jnp.float32),   # BN bias init (zeros)
        "w2": _pack_conv_weight(w2, cmid_p, cout_p),
        "g2": jnp.ones((1, cout_p), jnp.float32),
        "b2": jnp.zeros((1, cout_p), jnp.float32),
        # raw OIHW weights kept only for the pure-JAX reference check in main
        "w1_oihw": w1, "w2_oihw": w2,
    }


def _pad_channels(a, c_pad):
    c = a.shape[-1]
    if c == c_pad:
        return a
    return jnp.pad(a, ((0, 0),) * (a.ndim - 1) + ((0, c_pad - c),))


@functools.partial(jax.jit, static_argnums=(2,))
def double_conv_forward(x_nchw, params, out_channels):
    """x: (N, Cin, H, W) f32 -> (N, out_channels, H, W) f32 (training-mode BN)."""
    n, _, h, w = x_nchw.shape
    m_total = n * h * w

    x = jnp.transpose(x_nchw, (0, 2, 3, 1))                       # NHWC
    cin_p = params["w1"].shape[1] // 3
    a0 = _pad_channels(x, cin_p).astype(jnp.bfloat16)

    # Stage 1: conv + BN partial statistics (raw output stays pre-BN, bf16).
    y1, st1 = _conv_stats_call(a0, params["w1"])
    scale1, shift1 = _fold_bn(st1, m_total, params["g1"], params["b1"])

    # Stage 2: stage-1's BN affine + ReLU fused into the conv input load.
    y2, st2 = _conv_stats_call(y1, params["w2"], scale1, shift1)
    scale2, shift2 = _fold_bn(st2, m_total, params["g2"], params["b2"])

    # Final folded BN + ReLU (streaming, lane-dense tiles).
    cout_p = y2.shape[-1]
    out = _affine_relu_call(y2.reshape(m_total, cout_p), scale2, shift2,
                            jnp.float32)
    out = out.reshape(n, h, w, cout_p)[..., :out_channels]
    return jnp.transpose(out, (0, 3, 1, 2))                       # NCHW


# ---------------------------------------------------------------------------
# Pure-JAX reference (f32) for a sanity check
# ---------------------------------------------------------------------------
def _reference_double_conv(x_nchw, w1_oihw, w2_oihw):
    def stage(x, w):
        y = jax.lax.conv_general_dilated(
            x, w, window_strides=(1, 1), padding=((1, 1), (1, 1)),
            dimension_numbers=("NCHW", "OIHW", "NCHW"))
        mean = jnp.mean(y, axis=(0, 2, 3), keepdims=True)
        var = jnp.mean((y - mean) ** 2, axis=(0, 2, 3), keepdims=True)
        return jnp.maximum((y - mean) * jax.lax.rsqrt(var + BN_EPS), 0.0)
    return stage(stage(x_nchw, w1_oihw), w2_oihw)


if __name__ == "__main__":
    key = jax.random.PRNGKey(0)
    kx, kp = jax.random.split(key)

    batch, in_ch, out_ch, spatial = 2, 4, 8, 16
    x = jax.random.normal(kx, (batch, in_ch, spatial, spatial), jnp.float32)
    params = init_double_conv_params(kp, in_ch, out_ch)

    out = double_conv_forward(x, params, out_ch)
    jax.block_until_ready(out)

    assert out.shape == (batch, out_ch, spatial, spatial), out.shape
    assert bool(jnp.all(out >= 0.0)), "ReLU output must be non-negative"

    ref = _reference_double_conv(x, params["w1_oihw"], params["w2_oihw"])
    np.testing.assert_allclose(np.asarray(out), np.asarray(ref),
                               rtol=5e-2, atol=1e-1)
    print("KERNEL_OK")
</pallas_src>

<mosaic_0001>
module attributes {stable_mosaic.version = 11 : i64} {
  func.func @kernel(%arg0: i32, %arg1: memref<1x16x16x128xbf16, #tpu.memory_space<vmem>>, %arg2: memref<3x384x128xbf16, #tpu.memory_space<vmem>>, %arg3: memref<1x16x16x128xbf16, #tpu.memory_space<vmem>>, %arg4: memref<1x2x128xf32, #tpu.memory_space<vmem>>, %arg5: memref<18x18x128xbf16, #tpu.memory_space<vmem>>) attributes {dimension_semantics = [#tpu.dimension_semantics<parallel>], iteration_bounds = array<i64: 2>, scalar_prefetch = 0 : i64, scratch_operands = 1 : i64, tpu.core_type = #tpu.core_type<tc>, window_params = [{transform_indices = @transform_0, window_bounds = array<i64: 1, 16, 16, 128>}, {pipeline_mode = #tpu.pipeline_mode<synchronous>, transform_indices = @transform_1, window_bounds = array<i64: 3, 384, 128>}, {transform_indices = @transform_2, window_bounds = array<i64: 1, 16, 16, 128>}, {transform_indices = @transform_3, window_bounds = array<i64: 1, 2, 128>}]} {
    %cst = arith.constant 0.000000e+00 : bf16
    %0 = vector.broadcast %cst : bf16 to vector<1x18x128xbf16>
    %cst_0 = arith.constant 0.000000e+00 : bf16
    %1 = vector.broadcast %cst_0 : bf16 to vector<18x1x128xbf16>
    %c0 = arith.constant 0 : index
    %c0_1 = arith.constant 0 : index
    %c0_2 = arith.constant 0 : index
    %2 = vector.load %arg5[%c0, %c0_1, %c0_2] : memref<18x18x128xbf16, #tpu.memory_space<vmem>>, vector<1x18x128xbf16>
    tpu.vector_store %arg5[%c0, %c0_1, %c0_2], %0 {strides = array<i32>} : memref<18x18x128xbf16, #tpu.memory_space<vmem>>, vector<1x18x128xbf16>,
    %c17 = arith.constant 17 : index
    %c0_3 = arith.constant 0 : index
    %c0_4 = arith.constant 0 : index
    %3 = vector.load %arg5[%c17, %c0_3, %c0_4] : memref<18x18x128xbf16, #tpu.memory_space<vmem>>, vector<1x18x128xbf16>
    tpu.vector_store %arg5[%c17, %c0_3, %c0_4], %0 {strides = array<i32>} : memref<18x18x128xbf16, #tpu.memory_space<vmem>>, vector<1x18x128xbf16>,
    %c0_5 = arith.constant 0 : index
    %c0_6 = arith.constant 0 : index
    %c0_7 = arith.constant 0 : index
    %4 = vector.load %arg5[%c0_5, %c0_6, %c0_7] : memref<18x18x128xbf16, #tpu.memory_space<vmem>>, vector<18x1x128xbf16>
    tpu.vector_store %arg5[%c0_5, %c0_6, %c0_7], %1 {strides = array<i32>} : memref<18x18x128xbf16, #tpu.memory_space<vmem>>, vector<18x1x128xbf16>,
    %c0_8 = arith.constant 0 : index
    %c17_9 = arith.constant 17 : index
    %c0_10 = arith.constant 0 : index
    %5 = vector.load %arg5[%c0_8, %c17_9, %c0_10] : memref<18x18x128xbf16, #tpu.memory_space<vmem>>, vector<18x1x128xbf16>
    tpu.vector_store %arg5[%c0_8, %c17_9, %c0_10], %1 {strides = array<i32>} : memref<18x18x128xbf16, #tpu.memory_space<vmem>>, vector<18x1x128xbf16>,
    %c0_11 = arith.constant 0 : index
    %c0_12 = arith.constant 0 : index
    %c0_13 = arith.constant 0 : index
    %c0_14 = arith.constant 0 : index
    %6 = vector.load %arg1[%c0_11, %c0_12, %c0_13, %c0_14] : memref<1x16x16x128xbf16, #tpu.memory_space<vmem>>, vector<1x16x16x128xbf16>
    %7 = vector.shape_cast %6 : vector<1x16x16x128xbf16> to vector<16x16x128xbf16>
    %c1 = arith.constant 1 : index
    %c1_15 = arith.constant 1 : index
    %c0_16 = arith.constant 0 : index
    %8 = vector.load %arg5[%c1, %c1_15, %c0_16] : memref<18x18x128xbf16, #tpu.memory_space<vmem>>, vector<16x16x128xbf16>
    tpu.vector_store %arg5[%c1, %c1_15, %c0_16], %7 {strides = array<i32>} : memref<18x18x128xbf16, #tpu.memory_space<vmem>>, vector<16x16x128xbf16>,
    %cst_17 = arith.constant 0.000000e+00 : f32
    %9 = vector.broadcast %cst_17 : f32 to vector<256x128xf32>
    %c0_18 = arith.constant 0 : index
    %c0_19 = arith.constant 0 : index
    %c0_20 = arith.constant 0 : index
    %10 = vector.load %arg5[%c0_18, %c0_19, %c0_20] : memref<18x18x128xbf16, #tpu.memory_space<vmem>>, vector<16x16x128xbf16>
    %c0_21 = arith.constant 0 : index
    %c1_22 = arith.constant 1 : index
    %c0_23 = arith.constant 0 : index
    %11 = vector.load %arg5[%c0_21, %c1_22, %c0_23] : memref<18x18x128xbf16, #tpu.memory_space<vmem>>, vector<16x16x128xbf16>
    %c0_24 = arith.constant 0 : index
    %c2 = arith.constant 2 : index
    %c0_25 = arith.constant 0 : index
    %12 = vector.load %arg5[%c0_24, %c2, %c0_25] : memref<18x18x128xbf16, #tpu.memory_space<vmem>>, vector<16x16x128xbf16>
    %13 = tpu.concatenate %10, %11, %12 in 2 : vector<16x16x128xbf16>, vector<16x16x128xbf16>, vector<16x16x128xbf16> -> vector<16x16x384xbf16>
    %14 = vector.shape_cast %13 : vector<16x16x384xbf16> to vector<256x384xbf16>
    %c0_26 = arith.constant 0 : index
    %c0_27 = arith.constant 0 : index
    %c0_28 = arith.constant 0 : index
    %15 = vector.load %arg2[%c0_26, %c0_27, %c0_28] : memref<3x384x128xbf16, #tpu.memory_space<vmem>>, vector<1x384x128xbf16>
    %16 = vector.shape_cast %15 : vector<1x384x128xbf16> to vector<384x128xbf16>
    %cst_29 = arith.constant dense<0.000000e+00> : vector<256x128xf32>
    %17 = tpu.matmul %14, %16, %cst_29 {dimension_numbers = #tpu.dot_dimension_numbers<[1], [0], [0], [1], [0, 0, 1, 1], [], []>} : vector<256x384xbf16>, vector<384x128xbf16>, vector<256x128xf32> -> vector<256x128xf32>
    %18 = arith.addf %9, %17 : vector<256x128xf32>
    %c1_30 = arith.constant 1 : index
    %c0_31 = arith.constant 0 : index
    %c0_32 = arith.constant 0 : index
    %19 = vector.load %arg5[%c1_30, %c0_31, %c0_32] : memref<18x18x128xbf16, #tpu.memory_space<vmem>>, vector<16x16x128xbf16>
    %c1_33 = arith.constant 1 : index
    %c1_34 = arith.constant 1 : index
    %c0_35 = arith.constant 0 : index
    %20 = vector.load %arg5[%c1_33, %c1_34, %c0_35] : memref<18x18x128xbf16, #tpu.memory_space<vmem>>, vector<16x16x128xbf16>
    %c1_36 = arith.constant 1 : index
    %c2_37 = arith.constant 2 : index
    %c0_38 = arith.constant 0 : index
    %21 = vector.load %arg5[%c1_36, %c2_37, %c0_38] : memref<18x18x128xbf16, #tpu.memory_space<vmem>>, vector<16x16x128xbf16>
    %22 = tpu.concatenate %19, %20, %21 in 2 : vector<16x16x128xbf16>, vector<16x16x128xbf16>, vector<16x16x128xbf16> -> vector<16x16x384xbf16>
    %23 = vector.shape_cast %22 : vector<16x16x384xbf16> to vector<256x384xbf16>
    %c1_39 = arith.constant 1 : index
    %c0_40 = arith.constant 0 : index
    %c0_41 = arith.constant 0 : index
    %24 = vector.load %arg2[%c1_39, %c0_40, %c0_41] : memref<3x384x128xbf16, #tpu.memory_space<vmem>>, vector<1x384x128xbf16>
    %25 = vector.shape_cast %24 : vector<1x384x128xbf16> to vector<384x128xbf16>
    %cst_42 = arith.constant dense<0.000000e+00> : vector<256x128xf32>
    %26 = tpu.matmul %23, %25, %cst_42 {dimension_numbers = #tpu.dot_dimension_numbers<[1], [0], [0], [1], [0, 0, 1, 1], [], []>} : vector<256x384xbf16>, vector<384x128xbf16>, vector<256x128xf32> -> vector<256x128xf32>
    %27 = arith.addf %18, %26 : vector<256x128xf32>
    %c2_43 = arith.constant 2 : index
    %c0_44 = arith.constant 0 : index
    %c0_45 = arith.constant 0 : index
    %28 = vector.load %arg5[%c2_43, %c0_44, %c0_45] : memref<18x18x128xbf16, #tpu.memory_space<vmem>>, vector<16x16x128xbf16>
    %c2_46 = arith.constant 2 : index
    %c1_47 = arith.constant 1 : index
    %c0_48 = arith.constant 0 : index
    %29 = vector.load %arg5[%c2_46, %c1_47, %c0_48] : memref<18x18x128xbf16, #tpu.memory_space<vmem>>, vector<16x16x128xbf16>
    %c2_49 = arith.constant 2 : index
    %c2_50 = arith.constant 2 : index
    %c0_51 = arith.constant 0 : index
    %30 = vector.load %arg5[%c2_49, %c2_50, %c0_51] : memref<18x18x128xbf16, #tpu.memory_space<vmem>>, vector<16x16x128xbf16>
    %31 = tpu.concatenate %28, %29, %30 in 2 : vector<16x16x128xbf16>, vector<16x16x128xbf16>, vector<16x16x128xbf16> -> vector<16x16x384xbf16>
    %32 = vector.shape_cast %31 : vector<16x16x384xbf16> to vector<256x384xbf16>
    %c2_52 = arith.constant 2 : index
    %c0_53 = arith.constant 0 : index
    %c0_54 = arith.constant 0 : index
    %33 = vector.load %arg2[%c2_52, %c0_53, %c0_54] : memref<3x384x128xbf16, #tpu.memory_space<vmem>>, vector<1x384x128xbf16>
    %34 = vector.shape_cast %33 : vector<1x384x128xbf16> to vector<384x128xbf16>
    %cst_55 = arith.constant dense<0.000000e+00> : vector<256x128xf32>
    %35 = tpu.matmul %32, %34, %cst_55 {dimension_numbers = #tpu.dot_dimension_numbers<[1], [0], [0], [1], [0, 0, 1, 1], [], []>} : vector<256x384xbf16>, vector<384x128xbf16>, vector<256x128xf32> -> vector<256x128xf32>
    %36 = arith.addf %27, %35 : vector<256x128xf32>
    %37 = vector.shape_cast %36 : vector<256x128xf32> to vector<16x16x128xf32>
    %38 = arith.truncf %37 : vector<16x16x128xf32> to vector<16x16x128xbf16>
    %c0_56 = arith.constant 0 : index
    %c0_57 = arith.constant 0 : index
    %c0_58 = arith.constant 0 : index
    %c0_59 = arith.constant 0 : index
    %39 = vector.load %arg3[%c0_56, %c0_57, %c0_58, %c0_59] : memref<1x16x16x128xbf16, #tpu.memory_space<vmem>>, vector<1x16x16x128xbf16>
    %40 = vector.shape_cast %39 : vector<1x16x16x128xbf16> to vector<16x16x128xbf16>
    %41 = vector.shape_cast %38 : vector<16x16x128xbf16> to vector<1x16x16x128xbf16>
    tpu.vector_store %arg3[%c0_56, %c0_57, %c0_58, %c0_59], %41 {strides = array<i32>} : memref<1x16x16x128xbf16, #tpu.memory_space<vmem>>, vector<1x16x16x128xbf16>,
    %cst_60 = arith.constant dense<0.000000e+00> : vector<128xf32>
    %42 = vector.multi_reduction <add>, %36, %cst_60 [0] : vector<256x128xf32> to vector<128xf32>
    %43 = vector.shape_cast %42 : vector<128xf32> to vector<1x128xf32>
    %c0_61 = arith.constant 0 : index
    %c0_62 = arith.constant 0 : index
    %c0_63 = arith.constant 0 : index
    %44 = vector.load %arg4[%c0_61, %c0_62, %c0_63] : memref<1x2x128xf32, #tpu.memory_space<vmem>>, vector<1x1x128xf32>
    %45 = vector.shape_cast %44 : vector<1x1x128xf32> to vector<1x128xf32>
    %46 = vector.shape_cast %43 : vector<1x128xf32> to vector<1x1x128xf32>
    tpu.vector_store %arg4[%c0_61, %c0_62, %c0_63], %46 {strides = array<i32>} : memref<1x2x128xf32, #tpu.memory_space<vmem>>, vector<1x1x128xf32>,
    %47 = arith.mulf %36, %36 : vector<256x128xf32>
    %cst_64 = arith.constant dense<0.000000e+00> : vector<128xf32>
    %48 = vector.multi_reduction <add>, %47, %cst_64 [0] : vector<256x128xf32> to vector<128xf32>
    %49 = vector.shape_cast %48 : vector<128xf32> to vector<1x128xf32>
    %c0_65 = arith.constant 0 : index
    %c1_66 = arith.constant 1 : index
    %c0_67 = arith.constant 0 : index
    %50 = vector.load %arg4[%c0_65, %c1_66, %c0_67] : memref<1x2x128xf32, #tpu.memory_space<vmem>>, vector<1x1x128xf32>
    %51 = vector.shape_cast %50 : vector<1x1x128xf32> to vector<1x128xf32>
    %52 = vector.shape_cast %49 : vector<1x128xf32> to vector<1x1x128xf32>
    tpu.vector_store %arg4[%c0_65, %c1_66, %c0_67], %52 {strides = array<i32>} : memref<1x2x128xf32, #tpu.memory_space<vmem>>, vector<1x1x128xf32>,
    return
  }
  func.func @transform_0(%arg0: i32) -> (i32, i32, i32, i32) {
    %c0_i32 = arith.constant 0 : i32
    %c0_i32_0 = arith.constant 0 : i32
    %c0_i32_1 = arith.constant 0 : i32
    %c0_i32_2 = arith.constant 0 : i32
    return %arg0, %c0_i32, %c0_i32_0, %c0_i32_1 : i32, i32, i32, i32
  }
  func.func @transform_1(%arg0: i32) -> (i32, i32, i32) {
    %c0_i32 = arith.constant 0 : i32
    %c0_i32_0 = arith.constant 0 : i32
    %c0_i32_1 = arith.constant 0 : i32
    %c0_i32_2 = arith.constant 0 : i32
    return %c0_i32, %c0_i32_0, %c0_i32_1 : i32, i32, i32
  }
  func.func @transform_2(%arg0: i32) -> (i32, i32, i32, i32) {
    %c0_i32 = arith.constant 0 : i32
    %c0_i32_0 = arith.constant 0 : i32
    %c0_i32_1 = arith.constant 0 : i32
    %c0_i32_2 = arith.constant 0 : i32
    return %arg0, %c0_i32, %c0_i32_0, %c0_i32_1 : i32, i32, i32, i32
  }
  func.func @transform_3(%arg0: i32) -> (i32, i32, i32) {
    %c0_i32 = arith.constant 0 : i32
    %c0_i32_0 = arith.constant 0 : i32
    %c0_i32_1 = arith.constant 0 : i32
    return %arg0, %c0_i32, %c0_i32_0 : i32, i32, i32
  }
}

module attributes {stable_mosaic.version = 11 : i64} {
  func.func @kernel(%arg0: i32, %arg1: memref<1x16x16x128xbf16, #tpu.memory_space<vmem>>, %arg2: memref<3x384x128xbf16, #tpu.memory_space<vmem>>, %arg3: memref<1x128xf32, #tpu.memory_space<vmem>>, %arg4: memref<1x128xf32, #tpu.memory_space<vmem>>, %arg5: memref<1x16x16x128xbf16, #tpu.memory_space<vmem>>, %arg6: memref<1x2x128xf32, #tpu.memory_space<vmem>>, %arg7: memref<18x18x128xbf16, #tpu.memory_space<vmem>>) attributes {dimension_semantics = [#tpu.dimension_semantics<parallel>], iteration_bounds = array<i64: 2>, scalar_prefetch = 0 : i64, scratch_operands = 1 : i64, tpu.core_type = #tpu.core_type<tc>, window_params = [{transform_indices = @transform_0, window_bounds = array<i64: 1, 16, 16, 128>}, {pipeline_mode = #tpu.pipeline_mode<synchronous>, transform_indices = @transform_1, window_bounds = array<i64: 3, 384, 128>}, {pipeline_mode = #tpu.pipeline_mode<synchronous>, transform_indices = @transform_2, window_bounds = array<i64: 1, 128>}, {pipeline_mode = #tpu.pipeline_mode<synchronous>, transform_indices = @transform_3, window_bounds = array<i64: 1, 128>}, {transform_indices = @transform_4, window_bounds = array<i64: 1, 16, 16, 128>}, {transform_indices = @transform_5, window_bounds = array<i64: 1, 2, 128>}]} {
    %cst = arith.constant 0.000000e+00 : bf16
    %0 = vector.broadcast %cst : bf16 to vector<1x18x128xbf16>
    %cst_0 = arith.constant 0.000000e+00 : bf16
    %1 = vector.broadcast %cst_0 : bf16 to vector<18x1x128xbf16>
    %c0 = arith.constant 0 : index
    %c0_1 = arith.constant 0 : index
    %c0_2 = arith.constant 0 : index
    %2 = vector.load %arg7[%c0, %c0_1, %c0_2] : memref<18x18x128xbf16, #tpu.memory_space<vmem>>, vector<1x18x128xbf16>
    tpu.vector_store %arg7[%c0, %c0_1, %c0_2], %0 {strides = array<i32>} : memref<18x18x128xbf16, #tpu.memory_space<vmem>>, vector<1x18x128xbf16>,
    %c17 = arith.constant 17 : index
    %c0_3 = arith.constant 0 : index
    %c0_4 = arith.constant 0 : index
    %3 = vector.load %arg7[%c17, %c0_3, %c0_4] : memref<18x18x128xbf16, #tpu.memory_space<vmem>>, vector<1x18x128xbf16>
    tpu.vector_store %arg7[%c17, %c0_3, %c0_4], %0 {strides = array<i32>} : memref<18x18x128xbf16, #tpu.memory_space<vmem>>, vector<1x18x128xbf16>,
    %c0_5 = arith.constant 0 : index
    %c0_6 = arith.constant 0 : index
    %c0_7 = arith.constant 0 : index
    %4 = vector.load %arg7[%c0_5, %c0_6, %c0_7] : memref<18x18x128xbf16, #tpu.memory_space<vmem>>, vector<18x1x128xbf16>
    tpu.vector_store %arg7[%c0_5, %c0_6, %c0_7], %1 {strides = array<i32>} : memref<18x18x128xbf16, #tpu.memory_space<vmem>>, vector<18x1x128xbf16>,
    %c0_8 = arith.constant 0 : index
    %c17_9 = arith.constant 17 : index
    %c0_10 = arith.constant 0 : index
    %5 = vector.load %arg7[%c0_8, %c17_9, %c0_10] : memref<18x18x128xbf16, #tpu.memory_space<vmem>>, vector<18x1x128xbf16>
    tpu.vector_store %arg7[%c0_8, %c17_9, %c0_10], %1 {strides = array<i32>} : memref<18x18x128xbf16, #tpu.memory_space<vmem>>, vector<18x1x128xbf16>,
    %c0_11 = arith.constant 0 : index
    %c0_12 = arith.constant 0 : index
    %c0_13 = arith.constant 0 : index
    %c0_14 = arith.constant 0 : index
    %6 = vector.load %arg1[%c0_11, %c0_12, %c0_13, %c0_14] : memref<1x16x16x128xbf16, #tpu.memory_space<vmem>>, vector<1x16x16x128xbf16>
    %7 = vector.shape_cast %6 : vector<1x16x16x128xbf16> to vector<16x16x128xbf16>
    %c0_15 = arith.constant 0 : index
    %c0_16 = arith.constant 0 : index
    %8 = vector.load %arg3[%c0_15, %c0_16] : memref<1x128xf32, #tpu.memory_space<vmem>>, vector<1x128xf32>
    %9 = vector.shape_cast %8 : vector<1x128xf32> to vector<1x1x128xf32>
    %c0_17 = arith.constant 0 : index
    %c0_18 = arith.constant 0 : index
    %10 = vector.load %arg4[%c0_17, %c0_18] : memref<1x128xf32, #tpu.memory_space<vmem>>, vector<1x128xf32>
    %11 = vector.shape_cast %10 : vector<1x128xf32> to vector<1x1x128xf32>
    %12 = arith.extf %7 : vector<16x16x128xbf16> to vector<16x16x128xf32>
    %13 = vector.broadcast %9 : vector<1x1x128xf32> to vector<16x16x128xf32>
    %14 = arith.mulf %12, %13 : vector<16x16x128xf32>
    %15 = vector.broadcast %11 : vector<1x1x128xf32> to vector<16x16x128xf32>
    %16 = arith.addf %14, %15 : vector<16x16x128xf32>
    %cst_19 = arith.constant 0.000000e+00 : f32
    %17 = vector.broadcast %cst_19 : f32 to vector<16x16x128xf32>
    %18 = arith.maximumf %16, %17 : vector<16x16x128xf32>
    %19 = arith.truncf %18 : vector<16x16x128xf32> to vector<16x16x128xbf16>
    %c1 = arith.constant 1 : index
    %c1_20 = arith.constant 1 : index
    %c0_21 = arith.constant 0 : index
    %20 = vector.load %arg7[%c1, %c1_20, %c0_21] : memref<18x18x128xbf16, #tpu.memory_space<vmem>>, vector<16x16x128xbf16>
    tpu.vector_store %arg7[%c1, %c1_20, %c0_21], %19 {strides = array<i32>} : memref<18x18x128xbf16, #tpu.memory_space<vmem>>, vector<16x16x128xbf16>,
    %cst_22 = arith.constant 0.000000e+00 : f32
    %21 = vector.broadcast %cst_22 : f32 to vector<256x128xf32>
    %c0_23 = arith.constant 0 : index
    %c0_24 = arith.constant 0 : index
    %c0_25 = arith.constant 0 : index
    %22 = vector.load %arg7[%c0_23, %c0_24, %c0_25] : memref<18x18x128xbf16, #tpu.memory_space<vmem>>, vector<16x16x128xbf16>
    %c0_26 = arith.constant 0 : index
    %c1_27 = arith.constant 1 : index
    %c0_28 = arith.constant 0 : index
    %23 = vector.load %arg7[%c0_26, %c1_27, %c0_28] : memref<18x18x128xbf16, #tpu.memory_space<vmem>>, vector<16x16x128xbf16>
    %c0_29 = arith.constant 0 : index
    %c2 = arith.constant 2 : index
    %c0_30 = arith.constant 0 : index
    %24 = vector.load %arg7[%c0_29, %c2, %c0_30] : memref<18x18x128xbf16, #tpu.memory_space<vmem>>, vector<16x16x128xbf16>
    %25 = tpu.concatenate %22, %23, %24 in 2 : vector<16x16x128xbf16>, vector<16x16x128xbf16>, vector<16x16x128xbf16> -> vector<16x16x384xbf16>
    %26 = vector.shape_cast %25 : vector<16x16x384xbf16> to vector<256x384xbf16>
    %c0_31 = arith.constant 0 : index
    %c0_32 = arith.constant 0 : index
    %c0_33 = arith.constant 0 : index
    %27 = vector.load %arg2[%c0_31, %c0_32, %c0_33] : memref<3x384x128xbf16, #tpu.memory_space<vmem>>, vector<1x384x128xbf16>
    %28 = vector.shape_cast %27 : vector<1x384x128xbf16> to vector<384x128xbf16>
    %cst_34 = arith.constant dense<0.000000e+00> : vector<256x128xf32>
    %29 = tpu.matmul %26, %28, %cst_34 {dimension_numbers = #tpu.dot_dimension_numbers<[1], [0], [0], [1], [0, 0, 1, 1], [], []>} : vector<256x384xbf16>, vector<384x128xbf16>, vector<256x128xf32> -> vector<256x128xf32>
    %30 = arith.addf %21, %29 : vector<256x128xf32>
    %c1_35 = arith.constant 1 : index
    %c0_36 = arith.constant 0 : index
    %c0_37 = arith.constant 0 : index
    %31 = vector.load %arg7[%c1_35, %c0_36, %c0_37] : memref<18x18x128xbf16, #tpu.memory_space<vmem>>, vector<16x16x128xbf16>
    %c1_38 = arith.constant 1 : index
    %c1_39 = arith.constant 1 : index
    %c0_40 = arith.constant 0 : index
    %32 = vector.load %arg7[%c1_38, %c1_39, %c0_40] : memref<18x18x128xbf16, #tpu.memory_space<vmem>>, vector<16x16x128xbf16>
    %c1_41 = arith.constant 1 : index
    %c2_42 = arith.constant 2 : index
    %c0_43 = arith.constant 0 : index
    %33 = vector.load %arg7[%c1_41, %c2_42, %c0_43] : memref<18x18x128xbf16, #tpu.memory_space<vmem>>, vector<16x16x128xbf16>
    %34 = tpu.concatenate %31, %32, %33 in 2 : vector<16x16x128xbf16>, vector<16x16x128xbf16>, vector<16x16x128xbf16> -> vector<16x16x384xbf16>
    %35 = vector.shape_cast %34 : vector<16x16x384xbf16> to vector<256x384xbf16>
    %c1_44 = arith.constant 1 : index
    %c0_45 = arith.constant 0 : index
    %c0_46 = arith.constant 0 : index
    %36 = vector.load %arg2[%c1_44, %c0_45, %c0_46] : memref<3x384x128xbf16, #tpu.memory_space<vmem>>, vector<1x384x128xbf16>
    %37 = vector.shape_cast %36 : vector<1x384x128xbf16> to vector<384x128xbf16>
    %cst_47 = arith.constant dense<0.000000e+00> : vector<256x128xf32>
    %38 = tpu.matmul %35, %37, %cst_47 {dimension_numbers = #tpu.dot_dimension_numbers<[1], [0], [0], [1], [0, 0, 1, 1], [], []>} : vector<256x384xbf16>, vector<384x128xbf16>, vector<256x128xf32> -> vector<256x128xf32>
    %39 = arith.addf %30, %38 : vector<256x128xf32>
    %c2_48 = arith.constant 2 : index
    %c0_49 = arith.constant 0 : index
    %c0_50 = arith.constant 0 : index
    %40 = vector.load %arg7[%c2_48, %c0_49, %c0_50] : memref<18x18x128xbf16, #tpu.memory_space<vmem>>, vector<16x16x128xbf16>
    %c2_51 = arith.constant 2 : index
    %c1_52 = arith.constant 1 : index
    %c0_53 = arith.constant 0 : index
    %41 = vector.load %arg7[%c2_51, %c1_52, %c0_53] : memref<18x18x128xbf16, #tpu.memory_space<vmem>>, vector<16x16x128xbf16>
    %c2_54 = arith.constant 2 : index
    %c2_55 = arith.constant 2 : index
    %c0_56 = arith.constant 0 : index
    %42 = vector.load %arg7[%c2_54, %c2_55, %c0_56] : memref<18x18x128xbf16, #tpu.memory_space<vmem>>, vector<16x16x128xbf16>
    %43 = tpu.concatenate %40, %41, %42 in 2 : vector<16x16x128xbf16>, vector<16x16x128xbf16>, vector<16x16x128xbf16> -> vector<16x16x384xbf16>
    %44 = vector.shape_cast %43 : vector<16x16x384xbf16> to vector<256x384xbf16>
    %c2_57 = arith.constant 2 : index
    %c0_58 = arith.constant 0 : index
    %c0_59 = arith.constant 0 : index
    %45 = vector.load %arg2[%c2_57, %c0_58, %c0_59] : memref<3x384x128xbf16, #tpu.memory_space<vmem>>, vector<1x384x128xbf16>
    %46 = vector.shape_cast %45 : vector<1x384x128xbf16> to vector<384x128xbf16>
    %cst_60 = arith.constant dense<0.000000e+00> : vector<256x128xf32>
    %47 = tpu.matmul %44, %46, %cst_60 {dimension_numbers = #tpu.dot_dimension_numbers<[1], [0], [0], [1], [0, 0, 1, 1], [], []>} : vector<256x384xbf16>, vector<384x128xbf16>, vector<256x128xf32> -> vector<256x128xf32>
    %48 = arith.addf %39, %47 : vector<256x128xf32>
    %49 = vector.shape_cast %48 : vector<256x128xf32> to vector<16x16x128xf32>
    %50 = arith.truncf %49 : vector<16x16x128xf32> to vector<16x16x128xbf16>
    %c0_61 = arith.constant 0 : index
    %c0_62 = arith.constant 0 : index
    %c0_63 = arith.constant 0 : index
    %c0_64 = arith.constant 0 : index
    %51 = vector.load %arg5[%c0_61, %c0_62, %c0_63, %c0_64] : memref<1x16x16x128xbf16, #tpu.memory_space<vmem>>, vector<1x16x16x128xbf16>
    %52 = vector.shape_cast %51 : vector<1x16x16x128xbf16> to vector<16x16x128xbf16>
    %53 = vector.shape_cast %50 : vector<16x16x128xbf16> to vector<1x16x16x128xbf16>
    tpu.vector_store %arg5[%c0_61, %c0_62, %c0_63, %c0_64], %53 {strides = array<i32>} : memref<1x16x16x128xbf16, #tpu.memory_space<vmem>>, vector<1x16x16x128xbf16>,
    %cst_65 = arith.constant dense<0.000000e+00> : vector<128xf32>
    %54 = vector.multi_reduction <add>, %48, %cst_65 [0] : vector<256x128xf32> to vector<128xf32>
    %55 = vector.shape_cast %54 : vector<128xf32> to vector<1x128xf32>
    %c0_66 = arith.constant 0 : index
    %c0_67 = arith.constant 0 : index
    %c0_68 = arith.constant 0 : index
    %56 = vector.load %arg6[%c0_66, %c0_67, %c0_68] : memref<1x2x128xf32, #tpu.memory_space<vmem>>, vector<1x1x128xf32>
    %57 = vector.shape_cast %56 : vector<1x1x128xf32> to vector<1x128xf32>
    %58 = vector.shape_cast %55 : vector<1x128xf32> to vector<1x1x128xf32>
    tpu.vector_store %arg6[%c0_66, %c0_67, %c0_68], %58 {strides = array<i32>} : memref<1x2x128xf32, #tpu.memory_space<vmem>>, vector<1x1x128xf32>,
    %59 = arith.mulf %48, %48 : vector<256x128xf32>
    %cst_69 = arith.constant dense<0.000000e+00> : vector<128xf32>
    %60 = vector.multi_reduction <add>, %59, %cst_69 [0] : vector<256x128xf32> to vector<128xf32>
    %61 = vector.shape_cast %60 : vector<128xf32> to vector<1x128xf32>
    %c0_70 = arith.constant 0 : index
    %c1_71 = arith.constant 1 : index
    %c0_72 = arith.constant 0 : index
    %62 = vector.load %arg6[%c0_70, %c1_71, %c0_72] : memref<1x2x128xf32, #tpu.memory_space<vmem>>, vector<1x1x128xf32>
    %63 = vector.shape_cast %62 : vector<1x1x128xf32> to vector<1x128xf32>
    %64 = vector.shape_cast %61 : vector<1x128xf32> to vector<1x1x128xf32>
    tpu.vector_store %arg6[%c0_70, %c1_71, %c0_72], %64 {strides = array<i32>} : memref<1x2x128xf32, #tpu.memory_space<vmem>>, vector<1x1x128xf32>,
    return
  }
  func.func @transform_0(%arg0: i32) -> (i32, i32, i32, i32) {
    %c0_i32 = arith.constant 0 : i32
    %c0_i32_0 = arith.constant 0 : i32
    %c0_i32_1 = arith.constant 0 : i32
    %c0_i32_2 = arith.constant 0 : i32
    return %arg0, %c0_i32, %c0_i32_0, %c0_i32_1 : i32, i32, i32, i32
  }
  func.func @transform_1(%arg0: i32) -> (i32, i32, i32) {
    %c0_i32 = arith.constant 0 : i32
    %c0_i32_0 = arith.constant 0 : i32
    %c0_i32_1 = arith.constant 0 : i32
    %c0_i32_2 = arith.constant 0 : i32
    return %c0_i32, %c0_i32_0, %c0_i32_1 : i32, i32, i32
  }
  func.func @transform_2(%arg0: i32) -> (i32, i32) {
    %c0_i32 = arith.constant 0 : i32
    %c0_i32_0 = arith.constant 0 : i32
    %c0_i32_1 = arith.constant 0 : i32
    return %c0_i32, %c0_i32_0 : i32, i32
  }
  func.func @transform_3(%arg0: i32) -> (i32, i32) {
    %c0_i32 = arith.constant 0 : i32
    %c0_i32_0 = arith.constant 0 : i32
    %c0_i32_1 = arith.constant 0 : i32
    return %c0_i32, %c0_i32_0 : i32, i32
  }
  func.func @transform_4(%arg0: i32) -> (i32, i32, i32, i32) {
    %c0_i32 = arith.constant 0 : i32
    %c0_i32_0 = arith.constant 0 : i32
    %c0_i32_1 = arith.constant 0 : i32
    %c0_i32_2 = arith.constant 0 : i32
    return %arg0, %c0_i32, %c0_i32_0, %c0_i32_1 : i32, i32, i32, i32
  }
  func.func @transform_5(%arg0: i32) -> (i32, i32, i32) {
    %c0_i32 = arith.constant 0 : i32
    %c0_i32_0 = arith.constant 0 : i32
    %c0_i32_1 = arith.constant 0 : i32
    return %arg0, %c0_i32, %c0_i32_0 : i32, i32, i32
  }
}

module attributes {stable_mosaic.version = 11 : i64} {
  func.func @_affine_relu_kernel(%arg0: i32, %arg1: memref<512x128xbf16, #tpu.memory_space<vmem>>, %arg2: memref<1x128xf32, #tpu.memory_space<vmem>>, %arg3: memref<1x128xf32, #tpu.memory_space<vmem>>, %arg4: memref<512x128xf32, #tpu.memory_space<vmem>>) attributes {dimension_semantics = [#tpu.dimension_semantics<parallel>], iteration_bounds = array<i64: 1>, scalar_prefetch = 0 : i64, scratch_operands = 0 : i64, tpu.core_type = #tpu.core_type<tc>, window_params = [{transform_indices = @transform_0, window_bounds = array<i64: 512, 128>}, {pipeline_mode = #tpu.pipeline_mode<synchronous>, transform_indices = @transform_1, window_bounds = array<i64: 1, 128>}, {pipeline_mode = #tpu.pipeline_mode<synchronous>, transform_indices = @transform_2, window_bounds = array<i64: 1, 128>}, {transform_indices = @transform_3, window_bounds = array<i64: 512, 128>}]} {
    %c0 = arith.constant 0 : index
    %c0_0 = arith.constant 0 : index
    %0 = vector.load %arg1[%c0, %c0_0] : memref<512x128xbf16, #tpu.memory_space<vmem>>, vector<512x128xbf16>
    %1 = arith.extf %0 : vector<512x128xbf16> to vector<512x128xf32>
    %c0_1 = arith.constant 0 : index
    %c0_2 = arith.constant 0 : index
    %2 = vector.load %arg2[%c0_1, %c0_2] : memref<1x128xf32, #tpu.memory_space<vmem>>, vector<1x128xf32>
    %3 = vector.broadcast %2 : vector<1x128xf32> to vector<512x128xf32>
    %4 = arith.mulf %1, %3 : vector<512x128xf32>
    %c0_3 = arith.constant 0 : index
    %c0_4 = arith.constant 0 : index
    %5 = vector.load %arg3[%c0_3, %c0_4] : memref<1x128xf32, #tpu.memory_space<vmem>>, vector<1x128xf32>
    %6 = vector.broadcast %5 : vector<1x128xf32> to vector<512x128xf32>
    %7 = arith.addf %4, %6 : vector<512x128xf32>
    %cst = arith.constant 0.000000e+00 : f32
    %8 = vector.broadcast %cst : f32 to vector<512x128xf32>
    %9 = arith.maximumf %7, %8 : vector<512x128xf32>
    %c0_5 = arith.constant 0 : index
    %c0_6 = arith.constant 0 : index
    %10 = vector.load %arg4[%c0_5, %c0_6] : memref<512x128xf32, #tpu.memory_space<vmem>>, vector<512x128xf32>
    tpu.vector_store %arg4[%c0_5, %c0_6], %9 {strides = array<i32>} : memref<512x128xf32, #tpu.memory_space<vmem>>, vector<512x128xf32>,
    return
  }
  func.func @transform_0(%arg0: i32) -> (i32, i32) {
    %c0_i32 = arith.constant 0 : i32
    %c0_i32_0 = arith.constant 0 : i32
    return %arg0, %c0_i32 : i32, i32
  }
  func.func @transform_1(%arg0: i32) -> (i32, i32) {
    %c0_i32 = arith.constant 0 : i32
    %c0_i32_0 = arith.constant 0 : i32
    %c0_i32_1 = arith.constant 0 : i32
    return %c0_i32, %c0_i32_0 : i32, i32
  }
  func.func @transform_2(%arg0: i32) -> (i32, i32) {
    %c0_i32 = arith.constant 0 : i32
    %c0_i32_0 = arith.constant 0 : i32
    %c0_i32_1 = arith.constant 0 : i32
    return %c0_i32, %c0_i32_0 : i32, i32
  }
  func.func @transform_3(%arg0: i32) -> (i32, i32) {
    %c0_i32 = arith.constant 0 : i32
    %c0_i32_0 = arith.constant 0 : i32
    return %arg0, %c0_i32 : i32, i32
  }
}

</mosaic_0001>

<llo_original>
// kernel: double_conv_forward.5
$region0: #{double_conv_forward.5}
  #allocation0 [shape = 'u32[]', space=smem, size = 0x4, offset = 0x4, fixed_abs, tag = 'smem constant byte address 0x4 - core index']
  #allocation1 [shape = 'u32[144,128]{1,0:T(1,128)}', space=vmem, size = 0x12000, scoped, tag = 'internal scratch']
  %s0 = inlined_call_operand.vmem [shape: bf16[512,128], index: 0, kind: input, shape index: {}]
  %s1 = inlined_call_operand.vmem [shape: f32[1,128], index: 1, kind: input, shape index: {}]
  %s2 = inlined_call_operand.vmem [shape: f32[1,128], index: 2, kind: input, shape index: {}]
  %s3 = inlined_call_operand.vmem [shape: f32[512,128], index: 3, kind: output, shape index: {}]
  %s4 = sld [smem:[#allocation0]]
  $region22: #{double_conv_forward.5} parent=0
    _
  %s6 = ssub.s32 1, %s4
  %s7 = scalar_select 0, %s6, %s4
  // Predicated region
  $region2: #{double_conv_forward.5} parent=0 // pred_check
    _
  $region3: #{double_conv_forward.5} parent=0 // pred_check_branch
    %9 = sbr.rel (0) target = $region5
  $region4: #{double_conv_forward.5} parent=0 // pred_region
    _
  $region5: #{double_conv_forward.5} parent=0 // pred_fallthru
    _
  // Predicated region
  $region6: #{double_conv_forward.5} parent=0 // pred_check
    _
  $region7: #{double_conv_forward.5} parent=0 // pred_check_branch
    %11 = sbr.rel (0) target = $region9
  $region8: #{double_conv_forward.5} parent=0 // pred_region
    _
  $region9: #{double_conv_forward.5} parent=0 // pred_fallthru
    _
  // Predicated region
  $region10: #{double_conv_forward.5} parent=0 // pred_check
    _
  $region11: #{double_conv_forward.5} parent=0 // pred_check_branch
    %13 = sbr.rel (0) target = $region13
  $region12: #{double_conv_forward.5} parent=0 // pred_region
    _
  $region13: #{double_conv_forward.5} parent=0 // pred_fallthru
    _
  %v14 = vld [vmem:[%s0] sm:$0xf]
  %v15 = vld [vmem:[%s0 + $0x4] sm:$0xf]
  %v16 = vld [vmem:[%s0 + $0x8] sm:$0xf]
  %v17 = vld [vmem:[%s0 + $0xc] sm:$0xf]
  %v18 = vld [vmem:[%s0 + $0x10] sm:$0xf]
  %v19 = vld [vmem:[%s0 + $0x14] sm:$0xf]
  %v20 = vld [vmem:[%s0 + $0x18] sm:$0xf]
  %v21 = vld [vmem:[%s0 + $0x1c] sm:$0xf]
  %v22 = vld [vmem:[%s0 + $0x20] sm:$0xf]
  %v23 = vld [vmem:[%s0 + $0x24] sm:$0xf]
  %v24 = vld [vmem:[%s0 + $0x28] sm:$0xf]
  %v25 = vld [vmem:[%s0 + $0x2c] sm:$0xf]
  %v26 = vld [vmem:[%s0 + $0x30] sm:$0xf]
  %v27 = vld [vmem:[%s0 + $0x34] sm:$0xf]
  %v28 = vld [vmem:[%s0 + $0x38] sm:$0xf]
  %v29 = vld [vmem:[%s0 + $0x3c] sm:$0xf]
  %v30 = vld [vmem:[%s0 + $0x40] sm:$0xf]
  %v31 = vld [vmem:[%s0 + $0x44] sm:$0xf]
  %v32 = vld [vmem:[%s0 + $0x48] sm:$0xf]
  %v33 = vld [vmem:[%s0 + $0x4c] sm:$0xf]
  %v34 = vld [vmem:[%s0 + $0x50] sm:$0xf]
  %v35 = vld [vmem:[%s0 + $0x54] sm:$0xf]
  %v36 = vld [vmem:[%s0 + $0x58] sm:$0xf]
  %v37 = vld [vmem:[%s0 + $0x5c] sm:$0xf]
  %v38 = vld [vmem:[%s0 + $0x60] sm:$0xf]
  %v39 = vld [vmem:[%s0 + $0x64] sm:$0xf]
  %v40 = vld [vmem:[%s0 + $0x68] sm:$0xf]
  %v41 = vld [vmem:[%s0 + $0x6c] sm:$0xf]
  %v42 = vld [vmem:[%s0 + $0x70] sm:$0xf]
  %v43 = vld [vmem:[%s0 + $0x74] sm:$0xf]
  %v44 = vld [vmem:[%s0 + $0x78] sm:$0xf]
  %v45 = vld [vmem:[%s0 + $0x7c] sm:$0xf]
  %v46 = vld [vmem:[%s0 + $0x80] sm:$0xf]
  %v47 = vld [vmem:[%s0 + $0x84] sm:$0xf]
  %v48 = vld [vmem:[%s0 + $0x88] sm:$0xf]
  %v49 = vld [vmem:[%s0 + $0x8c] sm:$0xf]
  %v50 = vld [vmem:[%s0 + $0x90] sm:$0xf]
  %v51 = vld [vmem:[%s0 + $0x94] sm:$0xf]
  %v52 = vld [vmem:[%s0 + $0x98] sm:$0xf]
  %v53 = vld [vmem:[%s0 + $0x9c] sm:$0xf]
  %v54 = vld [vmem:[%s0 + $0xa0] sm:$0xf]
  %v55 = vld [vmem:[%s0 + $0xa4] sm:$0xf]
  %v56 = vld [vmem:[%s0 + $0xa8] sm:$0xf]
  %v57 = vld [vmem:[%s0 + $0xac] sm:$0xf]
  %v58 = vld [vmem:[%s0 + $0xb0] sm:$0xf]
  %v59 = vld [vmem:[%s0 + $0xb4] sm:$0xf]
  %v60 = vld [vmem:[%s0 + $0xb8] sm:$0xf]
  %v61 = vld [vmem:[%s0 + $0xbc] sm:$0xf]
  %v62 = vld [vmem:[%s0 + $0xc0] sm:$0xf]
  %v63 = vld [vmem:[%s0 + $0xc4] sm:$0xf]
  %v64 = vld [vmem:[%s0 + $0xc8] sm:$0xf]
  %v65 = vld [vmem:[%s0 + $0xcc] sm:$0xf]
  %v66 = vld [vmem:[%s0 + $0xd0] sm:$0xf]
  %v67 = vld [vmem:[%s0 + $0xd4] sm:$0xf]
  %v68 = vld [vmem:[%s0 + $0xd8] sm:$0xf]
  %v69 = vld [vmem:[%s0 + $0xdc] sm:$0xf]
  %v70 = vld [vmem:[%s0 + $0xe0] sm:$0xf]
  %v71 = vld [vmem:[%s0 + $0xe4] sm:$0xf]
  %v72 = vld [vmem:[%s0 + $0xe8] sm:$0xf]
  %v73 = vld [vmem:[%s0 + $0xec] sm:$0xf]
  %v74 = vld [vmem:[%s0 + $0xf0] sm:$0xf]
  %v75 = vld [vmem:[%s0 + $0xf4] sm:$0xf]
  %v76 = vld [vmem:[%s0 + $0xf8] sm:$0xf]
  %v77 = vld [vmem:[%s0 + $0xfc] sm:$0xf]
  %v78 = vunpack.c.l.bf16 %v14
  %v79 = vunpack.c.l.bf16 %v15
  %v80 = vunpack.c.l.bf16 %v16
  %v81 = vunpack.c.l.bf16 %v17
  %v82 = vunpack.c.l.bf16 %v18
  %v83 = vunpack.c.l.bf16 %v19
  %v84 = vunpack.c.l.bf16 %v20
  %v85 = vunpack.c.l.bf16 %v21
  %v86 = vunpack.c.l.bf16 %v22
  %v87 = vunpack.c.l.bf16 %v23
  %v88 = vunpack.c.l.bf16 %v24
  %v89 = vunpack.c.l.bf16 %v25
  %v90 = vunpack.c.l.bf16 %v26
  %v91 = vunpack.c.l.bf16 %v27
  %v92 = vunpack.c.l.bf16 %v28
  %v93 = vunpack.c.l.bf16 %v29
  %v94 = vunpack.c.l.bf16 %v30
  %v95 = vunpack.c.l.bf16 %v31
  %v96 = vunpack.c.l.bf16 %v32
  %v97 = vunpack.c.l.bf16 %v33
  %v98 = vunpack.c.l.bf16 %v34
  %v99 = vunpack.c.l.bf16 %v35
  %v100 = vunpack.c.l.bf16 %v36
  %v101 = vunpack.c.l.bf16 %v37
  %v102 = vunpack.c.l.bf16 %v38
  %v103 = vunpack.c.l.bf16 %v39
  %v104 = vunpack.c.l.bf16 %v40
  %v105 = vunpack.c.l.bf16 %v41
  %v106 = vunpack.c.l.bf16 %v42
  %v107 = vunpack.c.l.bf16 %v43
  %v108 = vunpack.c.l.bf16 %v44
  %v109 = vunpack.c.l.bf16 %v45
  %v110 = vunpack.c.l.bf16 %v46
  %v111 = vunpack.c.l.bf16 %v47
  %v112 = vunpack.c.l.bf16 %v48
  %v113 = vunpack.c.l.bf16 %v49
  %v114 = vunpack.c.l.bf16 %v50
  %v115 = vunpack.c.l.bf16 %v51
  %v116 = vunpack.c.l.bf16 %v52
  %v117 = vunpack.c.l.bf16 %v53
  %v118 = vunpack.c.l.bf16 %v54
  %v119 = vunpack.c.l.bf16 %v55
  %v120 = vunpack.c.l.bf16 %v56
  %v121 = vunpack.c.l.bf16 %v57
  %v122 = vunpack.c.l.bf16 %v58
  %v123 = vunpack.c.l.bf16 %v59
  %v124 = vunpack.c.l.bf16 %v60
  %v125 = vunpack.c.l.bf16 %v61
  %v126 = vunpack.c.l.bf16 %v62
  %v127 = vunpack.c.l.bf16 %v63
  %v128 = vunpack.c.l.bf16 %v64
  %v129 = vunpack.c.l.bf16 %v65
  %v130 = vunpack.c.l.bf16 %v66
  %v131 = vunpack.c.l.bf16 %v67
  %v132 = vunpack.c.l.bf16 %v68
  %v133 = vunpack.c.l.bf16 %v69
  %v134 = vunpack.c.l.bf16 %v70
  %v135 = vunpack.c.l.bf16 %v71
  %v136 = vunpack.c.l.bf16 %v72
  %v137 = vunpack.c.l.bf16 %v73
  %v138 = vunpack.c.l.bf16 %v74
  %v139 = vunpack.c.l.bf16 %v75
  %v140 = vunpack.c.l.bf16 %v76
  %v141 = vunpack.c.l.bf16 %v77
  %v142 = vld [vmem:[%s1] sm:$0x1]
  %v144 = vlaneseq
  %v145 = vshrl.u32 %v144, 7
  %v146 = vsub.s32 0, %v145
  %v147 = vrot.slane %v142, %v146
  %v149 = vmul.f32 %v78, %v147
  %v150 = vmul.f32 %v79, %v147
  %v151 = vmul.f32 %v80, %v147
  %v152 = vmul.f32 %v81, %v147
  %v153 = vmul.f32 %v82, %v147
  %v154 = vmul.f32 %v83, %v147
  %v155 = vmul.f32 %v84, %v147
  %v156 = vmul.f32 %v85, %v147
  %v157 = vmul.f32 %v86, %v147
  %v158 = vmul.f32 %v87, %v147
  %v159 = vmul.f32 %v88, %v147
  %v160 = vmul.f32 %v89, %v147
  %v161 = vmul.f32 %v90, %v147
  %v162 = vmul.f32 %v91, %v147
  %v163 = vmul.f32 %v92, %v147
  %v164 = vmul.f32 %v93, %v147
  %v165 = vmul.f32 %v94, %v147
  %v166 = vmul.f32 %v95, %v147
  %v167 = vmul.f32 %v96, %v147
  %v168 = vmul.f32 %v97, %v147
  %v169 = vmul.f32 %v98, %v147
  %v170 = vmul.f32 %v99, %v147
  %v171 = vmul.f32 %v100, %v147
  %v172 = vmul.f32 %v101, %v147
  %v173 = vmul.f32 %v102, %v147
  %v174 = vmul.f32 %v103, %v147
  %v175 = vmul.f32 %v104, %v147
  %v176 = vmul.f32 %v105, %v147
  %v177 = vmul.f32 %v106, %v147
  %v178 = vmul.f32 %v107, %v147
  %v179 = vmul.f32 %v108, %v147
  %v180 = vmul.f32 %v109, %v147
  %v181 = vmul.f32 %v110, %v147
  %v182 = vmul.f32 %v111, %v147
  %v183 = vmul.f32 %v112, %v147
  %v184 = vmul.f32 %v113, %v147
  %v185 = vmul.f32 %v114, %v147
  %v186 = vmul.f32 %v115, %v147
  %v187 = vmul.f32 %v116, %v147
  %v188 = vmul.f32 %v117, %v147
  %v189 = vmul.f32 %v118, %v147
  %v190 = vmul.f32 %v119, %v147
  %v191 = vmul.f32 %v120, %v147
  %v192 = vmul.f32 %v121, %v147
  %v193 = vmul.f32 %v122, %v147
  %v194 = vmul.f32 %v123, %v147
  %v195 = vmul.f32 %v124, %v147
  %v196 = vmul.f32 %v125, %v147
  %v197 = vmul.f32 %v126, %v147
  %v198 = vmul.f32 %v127, %v147
  %v199 = vmul.f32 %v128, %v147
  %v200 = vmul.f32 %v129, %v147
  %v201 = vmul.f32 %v130, %v147
  %v202 = vmul.f32 %v131, %v147
  %v203 = vmul.f32 %v132, %v147
  %v204 = vmul.f32 %v133, %v147
  %v205 = vmul.f32 %v134, %v147
  %v206 = vmul.f32 %v135, %v147
  %v207 = vmul.f32 %v136, %v147
  %v208 = vmul.f32 %v137, %v147
  %v209 = vmul.f32 %v138, %v147
  %v210 = vmul.f32 %v139, %v147
  %v211 = vmul.f32 %v140, %v147
  %v212 = vmul.f32 %v141, %v147
  %v213 = vld [vmem:[%s2] sm:$0x1]
  %v215 = vlaneseq
  %v216 = vshrl.u32 %v215, 7
  %v217 = vsub.s32 0, %v216
  %v218 = vrot.slane %v213, %v217
  %v220 = vadd.f32 %v149, %v218
  %v221 = vadd.f32 %v150, %v218
  %v222 = vadd.f32 %v151, %v218
  %v223 = vadd.f32 %v152, %v218
  %v224 = vadd.f32 %v153, %v218
  %v225 = vadd.f32 %v154, %v218
  %v226 = vadd.f32 %v155, %v218
  %v227 = vadd.f32 %v156, %v218
  %v228 = vadd.f32 %v157, %v218
  %v229 = vadd.f32 %v158, %v218
  %v230 = vadd.f32 %v159, %v218
  %v231 = vadd.f32 %v160, %v218
  %v232 = vadd.f32 %v161, %v218
  %v233 = vadd.f32 %v162, %v218
  %v234 = vadd.f32 %v163, %v218
  %v235 = vadd.f32 %v164, %v218
  %v236 = vadd.f32 %v165, %v218
  %v237 = vadd.f32 %v166, %v218
  %v238 = vadd.f32 %v167, %v218
  %v239 = vadd.f32 %v168, %v218
  %v240 = vadd.f32 %v169, %v218
  %v241 = vadd.f32 %v170, %v218
  %v242 = vadd.f32 %v171, %v218
  %v243 = vadd.f32 %v172, %v218
  %v244 = vadd.f32 %v173, %v218
  %v245 = vadd.f32 %v174, %v218
  %v246 = vadd.f32 %v175, %v218
  %v247 = vadd.f32 %v176, %v218
  %v248 = vadd.f32 %v177, %v218
  %v249 = vadd.f32 %v178, %v218
  %v250 = vadd.f32 %v179, %v218
  %v251 = vadd.f32 %v180, %v218
  %v252 = vadd.f32 %v181, %v218
  %v253 = vadd.f32 %v182, %v218
  %v254 = vadd.f32 %v183, %v218
  %v255 = vadd.f32 %v184, %v218
  %v256 = vadd.f32 %v185, %v218
  %v257 = vadd.f32 %v186, %v218
  %v258 = vadd.f32 %v187, %v218
  %v259 = vadd.f32 %v188, %v218
  %v260 = vadd.f32 %v189, %v218
  %v261 = vadd.f32 %v190, %v218
  %v262 = vadd.f32 %v191, %v218
  %v263 = vadd.f32 %v192, %v218
  %v264 = vadd.f32 %v193, %v218
  %v265 = vadd.f32 %v194, %v218
  %v266 = vadd.f32 %v195, %v218
  %v267 = vadd.f32 %v196, %v218
  %v268 = vadd.f32 %v197, %v218
  %v269 = vadd.f32 %v198, %v218
  %v270 = vadd.f32 %v199, %v218
  %v271 = vadd.f32 %v200, %v218
  %v272 = vadd.f32 %v201, %v218
  %v273 = vadd.f32 %v202, %v218
  %v274 = vadd.f32 %v203, %v218
  %v275 = vadd.f32 %v204, %v218
  %v276 = vadd.f32 %v205, %v218
  %v277 = vadd.f32 %v206, %v218
  %v278 = vadd.f32 %v207, %v218
  %v279 = vadd.f32 %v208, %v218
  %v280 = vadd.f32 %v209, %v218
  %v281 = vadd.f32 %v210, %v218
  %v282 = vadd.f32 %v211, %v218
  %v283 = vadd.f32 %v212, %v218
  %v284 = vmax.f32 %v220, 0.0
  %v285 = vmax.f32 %v221, 0.0
  %v286 = vmax.f32 %v222, 0.0
  %v287 = vmax.f32 %v223, 0.0
  %v288 = vmax.f32 %v224, 0.0
  %v289 = vmax.f32 %v225, 0.0
  %v290 = vmax.f32 %v226, 0.0
  %v291 = vmax.f32 %v227, 0.0
  %v292 = vmax.f32 %v228, 0.0
  %v293 = vmax.f32 %v229, 0.0
  %v294 = vmax.f32 %v230, 0.0
  %v295 = vmax.f32 %v231, 0.0
  %v296 = vmax.f32 %v232, 0.0
  %v297 = vmax.f32 %v233, 0.0
  %v298 = vmax.f32 %v234, 0.0
  %v299 = vmax.f32 %v235, 0.0
  %v300 = vmax.f32 %v236, 0.0
  %v301 = vmax.f32 %v237, 0.0
  %v302 = vmax.f32 %v238, 0.0
  %v303 = vmax.f32 %v239, 0.0
  %v304 = vmax.f32 %v240, 0.0
  %v305 = vmax.f32 %v241, 0.0
  %v306 = vmax.f32 %v242, 0.0
  %v307 = vmax.f32 %v243, 0.0
  %v308 = vmax.f32 %v244, 0.0
  %v309 = vmax.f32 %v245, 0.0
  %v310 = vmax.f32 %v246, 0.0
  %v311 = vmax.f32 %v247, 0.0
  %v312 = vmax.f32 %v248, 0.0
  %v313 = vmax.f32 %v249, 0.0
  %v314 = vmax.f32 %v250, 0.0
  %v315 = vmax.f32 %v251, 0.0
  %v316 = vmax.f32 %v252, 0.0
  %v317 = vmax.f32 %v253, 0.0
  %v318 = vmax.f32 %v254, 0.0
  %v319 = vmax.f32 %v255, 0.0
  %v320 = vmax.f32 %v256, 0.0
  %v321 = vmax.f32 %v257, 0.0
  %v322 = vmax.f32 %v258, 0.0
  %v323 = vmax.f32 %v259, 0.0
  %v324 = vmax.f32 %v260, 0.0
  %v325 = vmax.f32 %v261, 0.0
  %v326 = vmax.f32 %v262, 0.0
  %v327 = vmax.f32 %v263, 0.0
  %v328 = vmax.f32 %v264, 0.0
  %v329 = vmax.f32 %v265, 0.0
  %v330 = vmax.f32 %v266, 0.0
  %v331 = vmax.f32 %v267, 0.0
  %v332 = vmax.f32 %v268, 0.0
  %v333 = vmax.f32 %v269, 0.0
  %v334 = vmax.f32 %v270, 0.0
  %v335 = vmax.f32 %v271, 0.0
  %v336 = vmax.f32 %v272, 0.0
  %v337 = vmax.f32 %v273, 0.0
  %v338 = vmax.f32 %v274, 0.0
  %v339 = vmax.f32 %v275, 0.0
  %v340 = vmax.f32 %v276, 0.0
  %v341 = vmax.f32 %v277, 0.0
  %v342 = vmax.f32 %v278, 0.0
  %v343 = vmax.f32 %v279, 0.0
  %v344 = vmax.f32 %v280, 0.0
  %v345 = vmax.f32 %v281, 0.0
  %v346 = vmax.f32 %v282, 0.0
  %v347 = vmax.f32 %v283, 0.0
  %348 = vst [vmem:[%s3] sm:$0xff] %v284
  %349 = vst [vmem:[%s3 + $0x8] sm:$0xff] %v285
  %350 = vst [vmem:[%s3 + $0x10] sm:$0xff] %v286
  %351 = vst [vmem:[%s3 + $0x18] sm:$0xff] %v287
  %352 = vst [vmem:[%s3 + $0x20] sm:$0xff] %v288
  %353 = vst [vmem:[%s3 + $0x28] sm:$0xff] %v289
  %354 = vst [vmem:[%s3 + $0x30] sm:$0xff] %v290
  %355 = vst [vmem:[%s3 + $0x38] sm:$0xff] %v291
  %356 = vst [vmem:[%s3 + $0x40] sm:$0xff] %v292
  %357 = vst [vmem:[%s3 + $0x48] sm:$0xff] %v293
  %358 = vst [vmem:[%s3 + $0x50] sm:$0xff] %v294
  %359 = vst [vmem:[%s3 + $0x58] sm:$0xff] %v295
  %360 = vst [vmem:[%s3 + $0x60] sm:$0xff] %v296
  %361 = vst [vmem:[%s3 + $0x68] sm:$0xff] %v297
  %362 = vst [vmem:[%s3 + $0x70] sm:$0xff] %v298
  %363 = vst [vmem:[%s3 + $0x78] sm:$0xff] %v299
  %364 = vst [vmem:[%s3 + $0x80] sm:$0xff] %v300
  %365 = vst [vmem:[%s3 + $0x88] sm:$0xff] %v301
  %366 = vst [vmem:[%s3 + $0x90] sm:$0xff] %v302
  %367 = vst [vmem:[%s3 + $0x98] sm:$0xff] %v303
  %368 = vst [vmem:[%s3 + $0xa0] sm:$0xff] %v304
  %369 = vst [vmem:[%s3 + $0xa8] sm:$0xff] %v305
  %370 = vst [vmem:[%s3 + $0xb0] sm:$0xff] %v306
  %371 = vst [vmem:[%s3 + $0xb8] sm:$0xff] %v307
  %372 = vst [vmem:[%s3 + $0xc0] sm:$0xff] %v308
  %373 = vst [vmem:[%s3 + $0xc8] sm:$0xff] %v309
  %374 = vst [vmem:[%s3 + $0xd0] sm:$0xff] %v310
  %375 = vst [vmem:[%s3 + $0xd8] sm:$0xff] %v311
  %376 = vst [vmem:[%s3 + $0xe0] sm:$0xff] %v312
  %377 = vst [vmem:[%s3 + $0xe8] sm:$0xff] %v313
  %378 = vst [vmem:[%s3 + $0xf0] sm:$0xff] %v314
  %379 = vst [vmem:[%s3 + $0xf8] sm:$0xff] %v315
  %380 = vst [vmem:[%s3 + $0x100] sm:$0xff] %v316
  %381 = vst [vmem:[%s3 + $0x108] sm:$0xff] %v317
  %382 = vst [vmem:[%s3 + $0x110] sm:$0xff] %v318
  %383 = vst [vmem:[%s3 + $0x118] sm:$0xff] %v319
  %384 = vst [vmem:[%s3 + $0x120] sm:$0xff] %v320
  %385 = vst [vmem:[%s3 + $0x128] sm:$0xff] %v321
  %386 = vst [vmem:[%s3 + $0x130] sm:$0xff] %v322
  %387 = vst [vmem:[%s3 + $0x138] sm:$0xff] %v323
  %388 = vst [vmem:[%s3 + $0x140] sm:$0xff] %v324
  %389 = vst [vmem:[%s3 + $0x148] sm:$0xff] %v325
  %390 = vst [vmem:[%s3 + $0x150] sm:$0xff] %v326
  %391 = vst [vmem:[%s3 + $0x158] sm:$0xff] %v327
  %392 = vst [vmem:[%s3 + $0x160] sm:$0xff] %v328
  %393 = vst [vmem:[%s3 + $0x168] sm:$0xff] %v329
  %394 = vst [vmem:[%s3 + $0x170] sm:$0xff] %v330
  %395 = vst [vmem:[%s3 + $0x178] sm:$0xff] %v331
  %396 = vst [vmem:[%s3 + $0x180] sm:$0xff] %v332
  %397 = vst [vmem:[%s3 + $0x188] sm:$0xff] %v333
  %398 = vst [vmem:[%s3 + $0x190] sm:$0xff] %v334
  %399 = vst [vmem:[%s3 + $0x198] sm:$0xff] %v335
  %400 = vst [vmem:[%s3 + $0x1a0] sm:$0xff] %v336
  %401 = vst [vmem:[%s3 + $0x1a8] sm:$0xff] %v337
  %402 = vst [vmem:[%s3 + $0x1b0] sm:$0xff] %v338
  %403 = vst [vmem:[%s3 + $0x1b8] sm:$0xff] %v339
  %404 = vst [vmem:[%s3 + $0x1c0] sm:$0xff] %v340
  %405 = vst [vmem:[%s3 + $0x1c8] sm:$0xff] %v341
  %406 = vst [vmem:[%s3 + $0x1d0] sm:$0xff] %v342
  %407 = vst [vmem:[%s3 + $0x1d8] sm:$0xff] %v343
  %408 = vst [vmem:[%s3 + $0x1e0] sm:$0xff] %v344
  %409 = vst [vmem:[%s3 + $0x1e8] sm:$0xff] %v345
  %410 = vst [vmem:[%s3 + $0x1f0] sm:$0xff] %v346
  %411 = vst [vmem:[%s3 + $0x1f8] sm:$0xff] %v347
  // Predicated region
  $region14: #{double_conv_forward.5} parent=0 // pred_check
    _
  $region15: #{double_conv_forward.5} parent=0 // pred_check_branch
    %413 = sbr.rel (0) target = $region17
  $region16: #{double_conv_forward.5} parent=0 // pred_region
    _
  $region17: #{double_conv_forward.5} parent=0 // pred_fallthru
    _
  // Predicated region
  $region18: #{double_conv_forward.5} parent=0 // pred_check
    _
  $region19: #{double_conv_forward.5} parent=0 // pred_check_branch
    %415 = sbr.rel (0) target = $region21
  $region20: #{double_conv_forward.5} parent=0 // pred_region
    _
  $region21: #{double_conv_forward.5} parent=0 // pred_fallthru
    _

// kernel: double_conv_forward.3
$region0: #{double_conv_forward.3}
  #allocation0 [shape = 'u32[]', space=smem, size = 0x4, offset = 0x4, fixed_abs, tag = 'smem constant byte address 0x4 - core index']
  #allocation1 [shape = 'u32[144,128]{1,0:T(1,128)}', space=vmem, size = 0x12000, scoped, tag = 'internal scratch']
  #allocation2 [shape = 'bf16[18,18,128]{2,1,0:T(8,128)(2,1)}', space=vmem, size = 0x1b000, scoped, tag = 'scratch operand']
  %s0 = inlined_call_operand.vmem [shape: bf16[2,16,16,128], index: 0, kind: input, shape index: {}]
  %s1 = inlined_call_operand.vmem [shape: bf16[3,384,128], index: 1, kind: input, shape index: {}]
  %s2 = inlined_call_operand.vmem [shape: bf16[2,16,16,128], index: 2, kind: output, shape index: {0}]
  %s3 = inlined_call_operand.vmem [shape: f32[2,2,128], index: 3, kind: output, shape index: {1}]
  %4 = xla_tuple %s2, %s3
  %s5 = sld [smem:[#allocation0]]
  $region49: #{double_conv_forward.3} parent=0
    _
  %s7 = ssub.s32 1, %s5
  %s8 = scalar_select 0, %s7, %s5
  loop: start=0, step=1, limit=4
  $region2: #{double_conv_forward.3} parent=0 // loop_pre_header
    _
  $region3: #{double_conv_forward.3} parent=0 // loop_header
    %s10 = sphi 0, %s14
    %p11 = scmp.ge.s32.totalorder %s10, 4
    %s20 = sphi 0, %s22
    %s23 = sphi 0, %s20
    %s24 = sphi 0, %s23
    %s40 = sphi 0, %s24
    %s44 = sphi 0, %s44
    %s46 = sphi 0, %s44
    %s47 = sphi 0, %s46
    %s61 = sphi 0, %s47
    %s67 = sphi 0, %s69
    %s70 = sphi 0, %s67
    %s71 = sphi 0, %s70
    %s87 = sphi 0, %s71
    %s93 = sphi 0, %s95
    %s96 = sphi 0, %s93
    %s97 = sphi 0, %s96
    %s113 = sphi 0, %s97
  $region4: #{double_conv_forward.3} parent=0 // loop_header_branch
    %13 = sbr.rel (%p11) target = $region8
  $region5: #{double_conv_forward.3} parent=0 // loop_body
    %s15 = ssub.s32 %s10, 1
    %s16 = ssub.s32 %s10, 2
    %s17 = sadd.s32 %s10, 1
    %s18 = ssub.s32 %s10, %s17
    %p19 = scmp.eq.s32.totalorder %s18, 0
    %s21 = sadd.s32 %s20, 1
    %s22 = scalar_select %p19, %s20, %s21
    %p25 = pneg %p19
    %p26 = scmp.eq.s32.totalorder %s10, 1
    %p27 = por %p25, %p26
    %p28 = scmp.ne.s32.totalorder %s20, %s23
    %p29 = scmp.eq.s32.totalorder %s10, 0
    %p30 = por %p28, %p29
    %p31 = scmp.ne.s32.totalorder %s20, %s23
    %p32 = scmp.eq.s32.totalorder %s15, 1
    %p33 = por %p31, %p32
    %p34 = scmp.ne.s32.totalorder %s23, %s24
    %p35 = scmp.eq.s32.totalorder %s15, 0
    %p36 = por %p34, %p35
    %p37 = scmp.ne.s32.totalorder %s23, %s24
    %p38 = scmp.eq.s32.totalorder %s16, 1
    %p39 = por %p37, %p38
    %p41 = scmp.ne.s32.totalorder %s24, %s40
    %p42 = scmp.eq.s32.totalorder %s16, 0
    %p43 = por %p41, %p42
    %s45 = sadd.s32 %s44, 1
    %p48 = scmp.eq.s32.totalorder %s10, 1
    %p49 = scmp.ne.s32.totalorder %s44, %s46
    %p50 = scmp.eq.s32.totalorder %s10, 0
    %p51 = por %p49, %p50
    %p52 = scmp.ne.s32.totalorder %s44, %s46
    %p53 = scmp.eq.s32.totalorder %s15, 1
    %p54 = por %p52, %p53
    %p55 = scmp.ne.s32.totalorder %s46, %s47
    %p56 = scmp.eq.s32.totalorder %s15, 0
    %p57 = por %p55, %p56
    %p58 = scmp.ne.s32.totalorder %s46, %s47
    %p59 = scmp.eq.s32.totalorder %s16, 1
    %p60 = por %p58, %p59
    %p62 = scmp.ne.s32.totalorder %s47, %s61
    %p63 = scmp.eq.s32.totalorder %s16, 0
    %p64 = por %p62, %p63
    %s65 = ssub.s32 %s10, %s17
    %p66 = scmp.eq.s32.totalorder %s65, 0
    %s68 = sadd.s32 %s67, 1
    %s69 = scalar_select %p66, %s67, %s68
    %p72 = pneg %p66
    %p73 = scmp.eq.s32.totalorder %s10, 1
    %p74 = por %p72, %p73
    %p75 = scmp.ne.s32.totalorder %s67, %s70
    %p76 = scmp.eq.s32.totalorder %s10, 0
    %p77 = por %p75, %p76
    %p78 = scmp.ne.s32.totalorder %s67, %s70
    %p79 = scmp.eq.s32.totalorder %s15, 1
    %p80 = por %p78, %p79
    %p81 = scmp.ne.s32.totalorder %s70, %s71
    %p82 = scmp.eq.s32.totalorder %s15, 0
    %p83 = por %p81, %p82
    %p84 = scmp.ne.s32.totalorder %s70, %s71
    %p85 = scmp.eq.s32.totalorder %s16, 1
    %p86 = por %p84, %p85
    %p88 = scmp.ne.s32.totalorder %s71, %s87
    %p89 = scmp.eq.s32.totalorder %s16, 0
    %p90 = por %p88, %p89
    %s91 = ssub.s32 %s10, %s17
    %p92 = scmp.eq.s32.totalorder %s91, 0
    %s94 = sadd.s32 %s93, 1
    %s95 = scalar_select %p92, %s93, %s94
    %p98 = pneg %p92
    %p99 = scmp.eq.s32.totalorder %s10, 1
    %p100 = por %p98, %p99
    %p101 = scmp.ne.s32.totalorder %s93, %s96
    %p102 = scmp.eq.s32.totalorder %s10, 0
    %p103 = por %p101, %p102
    %p104 = scmp.ne.s32.totalorder %s93, %s96
    %p105 = scmp.eq.s32.totalorder %s15, 1
    %p106 = por %p104, %p105
    %p107 = scmp.ne.s32.totalorder %s96, %s97
    %p108 = scmp.eq.s32.totalorder %s15, 0
    %p109 = por %p107, %p108
    %p110 = scmp.ne.s32.totalorder %s96, %s97
    %p111 = scmp.eq.s32.totalorder %s16, 1
    %p112 = por %p110, %p111
    %p114 = scmp.ne.s32.totalorder %s97, %s113
    %p115 = scmp.eq.s32.totalorder %s16, 0
    %p116 = por %p114, %p115
    %p117 = scmp.le.s32.totalorder 1, %s10
    %p118 = scmp.lt.s32.totalorder %s10, 3
    %p119 = pnand %p117, %p118
    %p120 = pneg %p119
    // Predicated region
    $region9: #{double_conv_forward.3} parent=5 // pred_check
      _
    $region10: #{double_conv_forward.3} parent=5 // pred_check_branch
      %122 = sbr.rel (%p119) target = $region12
    $region11: #{double_conv_forward.3} parent=5 // pred_region
      %s123 = ssub.s32 %s10, 1
      // Predicated region
      $region13: #{double_conv_forward.3} parent=11 // pred_check
        %p124 = pneg %p57
      $region14: #{double_conv_forward.3} parent=11 // pred_check_branch
        %126 = sbr.rel (%p124) target = $region16
      $region15: #{double_conv_forward.3} parent=11 // pred_region
        _
      $region16: #{double_conv_forward.3} parent=11 // pred_fallthru
        _
    $region12: #{double_conv_forward.3} parent=5 // pred_fallthru
      _
    %p127 = scmp.lt.s32.totalorder %s10, 2
    // Predicated region
    $region17: #{double_conv_forward.3} parent=5 // pred_check
      %p128 = pneg %p127
    $region18: #{double_conv_forward.3} parent=5 // pred_check_branch
      %130 = sbr.rel (%p128) target = $region20
    $region19: #{double_conv_forward.3} parent=5 // pred_region
      // Predicated region
      $region21: #{double_conv_forward.3} parent=19 // pred_check
        %p131 = pneg %p30
      $region22: #{double_conv_forward.3} parent=19 // pred_check_branch
        %133 = sbr.rel (%p131) target = $region24
      $region23: #{double_conv_forward.3} parent=19 // pred_region
        %p134 = scmp.lt.s32.totalorder %s10, 1
        %s135 = scalar_select %p134, %s10, 1
        %s136 = smul.addr %s135, 32
        %s137 = smul.addr %s136, 4
        %s138 = scalar_lea.vmem %s0, %s137
      $region24: #{double_conv_forward.3} parent=19 // pred_fallthru
        _
    $region20: #{double_conv_forward.3} parent=5 // pred_fallthru
      _
    %p139 = scmp.le.s32.totalorder 1, %s10
    %p140 = scmp.lt.s32.totalorder %s10, 3
    %p141 = pnand %p139, %p140
    %p142 = pneg %p141
    // Predicated region
    $region25: #{double_conv_forward.3} parent=5 // pred_check
      _
    $region26: #{double_conv_forward.3} parent=5 // pred_check_branch
      %144 = sbr.rel (%p141) target = $region28
    $region27: #{double_conv_forward.3} parent=5 // pred_region
      %s145 = ssub.s32 %s10, 1
      %p146 = scmp.lt.s32.totalorder %s15, 1
      %s147 = scalar_select %p146, %s15, 1
      %s148 = smul.addr %s147, 32
      %s149 = smul.addr %s148, 4
      %s150 = scalar_lea.vmem %s0, %s149
      %p151 = pneg %p36
      %p152 = pneg %p33
      %p153 = pneg %p57
      %p154 = pneg %p54
      %p155 = pneg %p83
      %p156 = pneg %p80
      %p157 = scmp.lt.s32.totalorder %s15, 1
      %s158 = scalar_select %p157, %s15, 1
      %s159 = smul.addr %s158, 32
      %s160 = smul.addr %s159, 4
      %s161 = scalar_lea.vmem %s2, %s160
      %p162 = pneg %p109
      %p163 = pneg %p106
      %p164 = scmp.lt.s32.totalorder %s15, 1
      %s165 = scalar_select %p164, %s15, 1
      %s166 = smul.addr %s165, 2
      %s167 = scalar_lea.vmem %s3, %s166
      %p168 = scmp.lt.s32.totalorder %s15, 1
      %s169 = scalar_select %p168, %s15, 1
      %s170 = smul.addr %s169, 32
      %s171 = smul.addr %s170, 4
      %s172 = scalar_lea.vmem %s0, %s171
      %p173 = scmp.lt.s32.totalorder %s15, 1
      %s174 = scalar_select %p173, %s15, 1
      %s175 = smul.addr %s174, 32
      %s176 = smul.addr %s175, 4
      %s177 = scalar_lea.vmem %s2, %s176
      %p178 = scmp.lt.s32.totalorder %s15, 1
      %s179 = scalar_select %p178, %s15, 1
      %s180 = smul.addr %s179, 2
      %s181 = scalar_lea.vmem %s3, %s180
      %183 = vst [vmem:[#allocation2] sm:$0xf] 0
      %184 = vst [vmem:[#allocation2 + $0x4] sm:$0xf] 0
      %185 = vst [vmem:[#allocation2 + $0x8] sm:$0x1] 0
      %s186 = scalar_lea.vmem [#allocation2], 204
      %187 = vst [vmem:[%s186] sm:$0xf] 0
      %188 = vst [vmem:[%s186 + $0x4] sm:$0xf] 0
      %189 = vst [vmem:[%s186 + $0x8] sm:$0x1] 0
      %vm190 = vcmask 1040384
      %vm191 = vsmask.f32 256
      %vm192 = vmand %vm190, %vm191
      %v193 = vld [vmem:[#allocation2] sm:$0x1]
      %v194 = vsel %vm192, 0, %v193
      %195 = vst [vmem:[#allocation2] sm:$0x1] %v194
      %v196 = vld [vmem:[#allocation2 + $0xc] sm:$0x1]
      %v197 = vsel %vm192, 0, %v196
      %198 = vst [vmem:[#allocation2 + $0xc] sm:$0x1] %v197
      %v199 = vld [vmem:[#allocation2 + $0x18] sm:$0x1]
      %v200 = vsel %vm192, 0, %v199
      %201 = vst [vmem:[#allocation2 + $0x18] sm:$0x1] %v200
      %v202 = vld [vmem:[#allocation2 + $0x24] sm:$0x1]
      %v203 = vsel %vm192, 0, %v202
      %204 = vst [vmem:[#allocation2 + $0x24] sm:$0x1] %v203
      %v205 = vld [vmem:[#allocation2 + $0x30] sm:$0x1]
      %v206 = vsel %vm192, 0, %v205
      %207 = vst [vmem:[#allocation2 + $0x30] sm:$0x1] %v206
      %v208 = vld [vmem:[#allocation2 + $0x3c] sm:$0x1]
      %v209 = vsel %vm192, 0, %v208
      %210 = vst [vmem:[#allocation2 + $0x3c] sm:$0x1] %v209
      %v211 = vld [vmem:[#allocation2 + $0x48] sm:$0x1]
      %v212 = vsel %vm192, 0, %v211
      %213 = vst [vmem:[#allocation2 + $0x48] sm:$0x1] %v212
      %v214 = vld [vmem:[#allocation2 + $0x54] sm:$0x1]
      %v215 = vsel %vm192, 0, %v214
      %216 = vst [vmem:[#allocation2 + $0x54] sm:$0x1] %v215
      %v217 = vld [vmem:[#allocation2 + $0x60] sm:$0x1]
      %v218 = vsel %vm192, 0, %v217
      %219 = vst [vmem:[#allocation2 + $0x60] sm:$0x1] %v218
      %v220 = vld [vmem:[#allocation2 + $0x6c] sm:$0x1]
      %v221 = vsel %vm192, 0, %v220
      %222 = vst [vmem:[#allocation2 + $0x6c] sm:$0x1] %v221
      %v223 = vld [vmem:[#allocation2 + $0x78] sm:$0x1]
      %v224 = vsel %vm192, 0, %v223
      %225 = vst [vmem:[#allocation2 + $0x78] sm:$0x1] %v224
      %v226 = vld [vmem:[#allocation2 + $0x84] sm:$0x1]
      %v227 = vsel %vm192, 0, %v226
      %228 = vst [vmem:[#allocation2 + $0x84] sm:$0x1] %v227
      %v229 = vld [vmem:[#allocation2 + $0x90] sm:$0x1]
      %v230 = vsel %vm192, 0, %v229
      %231 = vst [vmem:[#allocation2 + $0x90] sm:$0x1] %v230
      %v232 = vld [vmem:[#allocation2 + $0x9c] sm:$0x1]
      %v233 = vsel %vm192, 0, %v232
      %234 = vst [vmem:[#allocation2 + $0x9c] sm:$0x1] %v233
      %v235 = vld [vmem:[#allocation2 + $0xa8] sm:$0x1]
      %v236 = vsel %vm192, 0, %v235
      %237 = vst [vmem:[#allocation2 + $0xa8] sm:$0x1] %v236
      %v238 = vld [vmem:[#allocation2 + $0xb4] sm:$0x1]
      %v239 = vsel %vm192, 0, %v238
      %240 = vst [vmem:[#allocation2 + $0xb4] sm:$0x1] %v239
      %v241 = vld [vmem:[#allocation2 + $0xc0] sm:$0x1]
      %v242 = vsel %vm192, 0, %v241
      %243 = vst [vmem:[#allocation2 + $0xc0] sm:$0x1] %v242
      %v244 = vld [vmem:[#allocation2 + $0xcc] sm:$0x1]
      %v245 = vsel %vm192, 0, %v244
      %246 = vst [vmem:[#allocation2 + $0xcc] sm:$0x1] %v245
      %vm247 = vsmask.f32 7938
      %vm248 = vmand %vm190, %vm247
      %v249 = vld [vmem:[#allocation2 + $0x8] sm:$0x1]
      %v250 = vsel %vm248, 0, %v249
      %251 = vst [vmem:[#allocation2 + $0x8] sm:$0x1] %v250
      %v252 = vld [vmem:[#allocation2 + $0x14] sm:$0x1]
      %v253 = vsel %vm248, 0, %v252
      %254 = vst [vmem:[#allocation2 + $0x14] sm:$0x1] %v253
      %v255 = vld [vmem:[#allocation2 + $0x20] sm:$0x1]
      %v256 = vsel %vm248, 0, %v255
      %257 = vst [vmem:[#allocation2 + $0x20] sm:$0x1] %v256
      %v258 = vld [vmem:[#allocation2 + $0x2c] sm:$0x1]
      %v259 = vsel %vm248, 0, %v258
      %260 = vst [vmem:[#allocation2 + $0x2c] sm:$0x1] %v259
      %v261 = vld [vmem:[#allocation2 + $0x38] sm:$0x1]
      %v262 = vsel %vm248, 0, %v261
      %263 = vst [vmem:[#allocation2 + $0x38] sm:$0x1] %v262
      %v264 = vld [vmem:[#allocation2 + $0x44] sm:$0x1]
      %v265 = vsel %vm248, 0, %v264
      %266 = vst [vmem:[#allocation2 + $0x44] sm:$0x1] %v265
      %v267 = vld [vmem:[#allocation2 + $0x50] sm:$0x1]
      %v268 = vsel %vm248, 0, %v267
      %269 = vst [vmem:[#allocation2 + $0x50] sm:$0x1] %v268
      %v270 = vld [vmem:[#allocation2 + $0x5c] sm:$0x1]
      %v271 = vsel %vm248, 0, %v270
      %272 = vst [vmem:[#allocation2 + $0x5c] sm:$0x1] %v271
      %v273 = vld [vmem:[#allocation2 + $0x68] sm:$0x1]
      %v274 = vsel %vm248, 0, %v273
      %275 = vst [vmem:[#allocation2 + $0x68] sm:$0x1] %v274
      %v276 = vld [vmem:[#allocation2 + $0x74] sm:$0x1]
      %v277 = vsel %vm248, 0, %v276
      %278 = vst [vmem:[#allocation2 + $0x74] sm:$0x1] %v277
      %v279 = vld [vmem:[#allocation2 + $0x80] sm:$0x1]
      %v280 = vsel %vm248, 0, %v279
      %281 = vst [vmem:[#allocation2 + $0x80] sm:$0x1] %v280
      %v282 = vld [vmem:[#allocation2 + $0x8c] sm:$0x1]
      %v283 = vsel %vm248, 0, %v282
      %284 = vst [vmem:[#allocation2 + $0x8c] sm:$0x1] %v283
      %v285 = vld [vmem:[#allocation2 + $0x98] sm:$0x1]
      %v286 = vsel %vm248, 0, %v285
      %287 = vst [vmem:[#allocation2 + $0x98] sm:$0x1] %v286
      %v288 = vld [vmem:[#allocation2 + $0xa4] sm:$0x1]
      %v289 = vsel %vm248, 0, %v288
      %290 = vst [vmem:[#allocation2 + $0xa4] sm:$0x1] %v289
      %v291 = vld [vmem:[#allocation2 + $0xb0] sm:$0x1]
      %v292 = vsel %vm248, 0, %v291
      %293 = vst [vmem:[#allocation2 + $0xb0] sm:$0x1] %v292
      %v294 = vld [vmem:[#allocation2 + $0xbc] sm:$0x1]
      %v295 = vsel %vm248, 0, %v294
      %296 = vst [vmem:[#allocation2 + $0xbc] sm:$0x1] %v295
      %v297 = vld [vmem:[#allocation2 + $0xc8] sm:$0x1]
      %v298 = vsel %vm248, 0, %v297
      %299 = vst [vmem:[#allocation2 + $0xc8] sm:$0x1] %v298
      %v300 = vld [vmem:[#allocation2 + $0xd4] sm:$0x1]
      %v301 = vsel %vm248, 0, %v300
      %302 = vst [vmem:[#allocation2 + $0xd4] sm:$0x1] %v301
      %v303 = vld [vmem:[%s172] sm:$0xf]
      %v304 = vld [vmem:[%s172 + $0x4] sm:$0xf]
      %v305 = vld [vmem:[%s172 + $0x8] sm:$0xf]
      %v306 = vld [vmem:[%s172 + $0xc] sm:$0xf]
      %v307 = vld [vmem:[%s172 + $0x10] sm:$0xf]
      %v308 = vld [vmem:[%s172 + $0x14] sm:$0xf]
      %v309 = vld [vmem:[%s172 + $0x18] sm:$0xf]
      %v310 = vld [vmem:[%s172 + $0x1c] sm:$0xf]
      %v311 = vld [vmem:[%s172 + $0x20] sm:$0xf]
      %v312 = vld [vmem:[%s172 + $0x24] sm:$0xf]
      %v313 = vld [vmem:[%s172 + $0x28] sm:$0xf]
      %v314 = vld [vmem:[%s172 + $0x2c] sm:$0xf]
      %v315 = vld [vmem:[%s172 + $0x30] sm:$0xf]
      %v316 = vld [vmem:[%s172 + $0x34] sm:$0xf]
      %v317 = vld [vmem:[%s172 + $0x38] sm:$0xf]
      %v318 = vld [vmem:[%s172 + $0x3c] sm:$0xf]
      %v319 = vld [vmem:[%s172 + $0x40] sm:$0xf]
      %v320 = vld [vmem:[%s172 + $0x44] sm:$0xf]
      %v321 = vld [vmem:[%s172 + $0x48] sm:$0xf]
      %v322 = vld [vmem:[%s172 + $0x4c] sm:$0xf]
      %v323 = vld [vmem:[%s172 + $0x50] sm:$0xf]
      %v324 = vld [vmem:[%s172 + $0x54] sm:$0xf]
      %v325 = vld [vmem:[%s172 + $0x58] sm:$0xf]
      %v326 = vld [vmem:[%s172 + $0x5c] sm:$0xf]
      %v327 = vld [vmem:[%s172 + $0x60] sm:$0xf]
      %v328 = vld [vmem:[%s172 + $0x64] sm:$0xf]
      %v329 = vld [vmem:[%s172 + $0x68] sm:$0xf]
      %v330 = vld [vmem:[%s172 + $0x6c] sm:$0xf]
      %v331 = vld [vmem:[%s172 + $0x70] sm:$0xf]
      %v332 = vld [vmem:[%s172 + $0x74] sm:$0xf]
      %v333 = vld [vmem:[%s172 + $0x78] sm:$0xf]
      %v334 = vld [vmem:[%s172 + $0x7c] sm:$0xf]
      %vm335 = vsmask.f32 4368
      %vm336 = vmor %vm191, %vm335
      %v338 = vshrl.u32 %v303, 16
      %v340 = vrot.slane %v338, 7
      %v341 = vshll.u32 %v303, 16
      %v343 = vor.u32 %v340, %v341
      %v344 = vrot.slane %v340, 4
      %v346 = vshrl.u32 %v304, 16
      %v348 = vrot.slane %v346, 7
      %v349 = vshll.u32 %v304, 16
      %v351 = vor.u32 %v348, %v349
      %v352 = vsel %vm336, %v344, %v351
      %v353 = vrot.slane %v348, 4
      %v355 = vshrl.u32 %v305, 16
      %v357 = vrot.slane %v355, 7
      %v358 = vshll.u32 %v305, 16
      %v360 = vor.u32 %v357, %v358
      %v361 = vrot.slane %v357, 4
      %v363 = vshrl.u32 %v306, 16
      %v365 = vrot.slane %v363, 7
      %v366 = vshll.u32 %v306, 16
      %v368 = vor.u32 %v365, %v366
      %v369 = vsel %vm336, %v361, %v368
      %v370 = vrot.slane %v365, 4
      %v372 = vshrl.u32 %v307, 16
      %v374 = vrot.slane %v372, 7
      %v375 = vshll.u32 %v307, 16
      %v377 = vor.u32 %v374, %v375
      %v378 = vrot.slane %v374, 4
      %v380 = vshrl.u32 %v308, 16
      %v382 = vrot.slane %v380, 7
      %v383 = vshll.u32 %v308, 16
      %v385 = vor.u32 %v382, %v383
      %v386 = vsel %vm336, %v378, %v385
      %v387 = vrot.slane %v382, 4
      %v389 = vshrl.u32 %v309, 16
      %v391 = vrot.slane %v389, 7
      %v392 = vshll.u32 %v309, 16
      %v394 = vor.u32 %v391, %v392
      %v395 = vrot.slane %v391, 4
      %v397 = vshrl.u32 %v310, 16
      %v399 = vrot.slane %v397, 7
      %v400 = vshll.u32 %v310, 16
      %v402 = vor.u32 %v399, %v400
      %v403 = vsel %vm336, %v395, %v402
      %v404 = vrot.slane %v399, 4
      %v406 = vshrl.u32 %v311, 16
      %v408 = vrot.slane %v406, 7
      %v409 = vshll.u32 %v311, 16
      %v411 = vor.u32 %v408, %v409
      %v412 = vrot.slane %v408, 4
      %v414 = vshrl.u32 %v312, 16
      %v416 = vrot.slane %v414, 7
      %v417 = vshll.u32 %v312, 16
      %v419 = vor.u32 %v416, %v417
      %v420 = vsel %vm336, %v412, %v419
      %v421 = vrot.slane %v416, 4
      %v423 = vshrl.u32 %v313, 16
      %v425 = vrot.slane %v423, 7
      %v426 = vshll.u32 %v313, 16
      %v428 = vor.u32 %v425, %v426
      %v429 = vrot.slane %v425, 4
      %v431 = vshrl.u32 %v314, 16
      %v433 = vrot.slane %v431, 7
      %v434 = vshll.u32 %v314, 16
      %v436 = vor.u32 %v433, %v434
      %v437 = vsel %vm336, %v429, %v436
      %v438 = vrot.slane %v433, 4
      %v440 = vshrl.u32 %v315, 16
      %v442 = vrot.slane %v440, 7
      %v443 = vshll.u32 %v315, 16
      %v445 = vor.u32 %v442, %v443
      %v446 = vrot.slane %v442, 4
      %v448 = vshrl.u32 %v316, 16
      %v450 = vrot.slane %v448, 7
      %v451 = vshll.u32 %v316, 16
      %v453 = vor.u32 %v450, %v451
      %v454 = vsel %vm336, %v446, %v453
      %v455 = vrot.slane %v450, 4
      %v457 = vshrl.u32 %v317, 16
      %v459 = vrot.slane %v457, 7
      %v460 = vshll.u32 %v317, 16
      %v462 = vor.u32 %v459, %v460
      %v463 = vrot.slane %v459, 4
      %v465 = vshrl.u32 %v318, 16
      %v467 = vrot.slane %v465, 7
      %v468 = vshll.u32 %v318, 16
      %v470 = vor.u32 %v467, %v468
      %v471 = vsel %vm336, %v463, %v470
      %v472 = vrot.slane %v467, 4
      %v474 = vshrl.u32 %v319, 16
      %v476 = vrot.slane %v474, 7
      %v477 = vshll.u32 %v319, 16
      %v479 = vor.u32 %v476, %v477
      %v480 = vrot.slane %v476, 4
      %v482 = vshrl.u32 %v320, 16
      %v484 = vrot.slane %v482, 7
      %v485 = vshll.u32 %v320, 16
      %v487 = vor.u32 %v484, %v485
      %v488 = vsel %vm336, %v480, %v487
      %v489 = vrot.slane %v484, 4
      %v491 = vshrl.u32 %v321, 16
      %v493 = vrot.slane %v491, 7
      %v494 = vshll.u32 %v321, 16
      %v496 = vor.u32 %v493, %v494
      %v497 = vrot.slane %v493, 4
      %v499 = vshrl.u32 %v322, 16
      %v501 = vrot.slane %v499, 7
      %v502 = vshll.u32 %v322, 16
      %v504 = vor.u32 %v501, %v502
      %v505 = vsel %vm336, %v497, %v504
      %v506 = vrot.slane %v501, 4
      %v508 = vshrl.u32 %v323, 16
      %v510 = vrot.slane %v508, 7
      %v511 = vshll.u32 %v323, 16
      %v513 = vor.u32 %v510, %v511
      %v514 = vrot.slane %v510, 4
      %v516 = vshrl.u32 %v324, 16
      %v518 = vrot.slane %v516, 7
      %v519 = vshll.u32 %v324, 16
      %v521 = vor.u32 %v518, %v519
      %v522 = vsel %vm336, %v514, %v521
      %v523 = vrot.slane %v518, 4
      %v525 = vshrl.u32 %v325, 16
      %v527 = vrot.slane %v525, 7
      %v528 = vshll.u32 %v325, 16
      %v530 = vor.u32 %v527, %v528
      %v531 = vrot.slane %v527, 4
      %v533 = vshrl.u32 %v326, 16
      %v535 = vrot.slane %v533, 7
      %v536 = vshll.u32 %v326, 16
      %v538 = vor.u32 %v535, %v536
      %v539 = vsel %vm336, %v531, %v538
      %v540 = vrot.slane %v535, 4
      %v542 = vshrl.u32 %v327, 16
      %v544 = vrot.slane %v542, 7
      %v545 = vshll.u32 %v327, 16
      %v547 = vor.u32 %v544, %v545
      %v548 = vrot.slane %v544, 4
      %v550 = vshrl.u32 %v328, 16
      %v552 = vrot.slane %v550, 7
      %v553 = vshll.u32 %v328, 16
      %v555 = vor.u32 %v552, %v553
      %v556 = vsel %vm336, %v548, %v555
      %v557 = vrot.slane %v552, 4
      %v559 = vshrl.u32 %v329, 16
      %v561 = vrot.slane %v559, 7
      %v562 = vshll.u32 %v329, 16
      %v564 = vor.u32 %v561, %v562
      %v565 = vrot.slane %v561, 4
      %v567 = vshrl.u32 %v330, 16
      %v569 = vrot.slane %v567, 7
      %v570 = vshll.u32 %v330, 16
      %v572 = vor.u32 %v569, %v570
      %v573 = vsel %vm336, %v565, %v572
      %v574 = vrot.slane %v569, 4
      %v576 = vshrl.u32 %v331, 16
      %v578 = vrot.slane %v576, 7
      %v579 = vshll.u32 %v331, 16
      %v581 = vor.u32 %v578, %v579
      %v582 = vrot.slane %v578, 4
      %v584 = vshrl.u32 %v332, 16
      %v586 = vrot.slane %v584, 7
      %v587 = vshll.u32 %v332, 16
      %v589 = vor.u32 %v586, %v587
      %v590 = vsel %vm336, %v582, %v589
      %v591 = vrot.slane %v586, 4
      %v593 = vshrl.u32 %v333, 16
      %v595 = vrot.slane %v593, 7
      %v596 = vshll.u32 %v333, 16
      %v598 = vor.u32 %v595, %v596
      %v599 = vrot.slane %v595, 4
      %v601 = vshrl.u32 %v334, 16
      %v603 = vrot.slane %v601, 7
      %v604 = vshll.u32 %v334, 16
      %v606 = vor.u32 %v603, %v604
      %v607 = vsel %vm336, %v599, %v606
      %v608 = vrot.slane %v603, 4
      %s657 = scalar_lea.vmem [#allocation2], 12
      %vm658 = vcmask 1043456
      %vm659 = vmand %vm658, %vm247
      %v660 = vld [vmem:[%s657] sm:$0xf]
      %v661 = vsel %vm659, %v343, %v660
      %662 = vst [vmem:[%s657] sm:$0xf] %v661
      %663 = vst [vmem:[%s657 + $0x4] sm:$0xf] %v352
      %v664 = vld [vmem:[%s657 + $0x8] sm:$0x1]
      %v665 = vsel %vm192, %v353, %v664
      %666 = vst [vmem:[%s657 + $0x8] sm:$0x1] %v665
      %v667 = vld [vmem:[%s657 + $0xc] sm:$0xf]
      %v668 = vsel %vm659, %v360, %v667
      %669 = vst [vmem:[%s657 + $0xc] sm:$0xf] %v668
      %670 = vst [vmem:[%s657 + $0x10] sm:$0xf] %v369
      %v671 = vld [vmem:[%s657 + $0x14] sm:$0x1]
      %v672 = vsel %vm192, %v370, %v671
      %673 = vst [vmem:[%s657 + $0x14] sm:$0x1] %v672
      %v674 = vld [vmem:[%s657 + $0x18] sm:$0xf]
      %v675 = vsel %vm659, %v377, %v674
      %676 = vst [vmem:[%s657 + $0x18] sm:$0xf] %v675
      %677 = vst [vmem:[%s657 + $0x1c] sm:$0xf] %v386
      %v678 = vld [vmem:[%s657 + $0x20] sm:$0x1]
      %v679 = vsel %vm192, %v387, %v678
      %680 = vst [vmem:[%s657 + $0x20] sm:$0x1] %v679
      %v681 = vld [vmem:[%s657 + $0x24] sm:$0xf]
      %v682 = vsel %vm659, %v394, %v681
      %683 = vst [vmem:[%s657 + $0x24] sm:$0xf] %v682
      %684 = vst [vmem:[%s657 + $0x28] sm:$0xf] %v403
      %v685 = vld [vmem:[%s657 + $0x2c] sm:$0x1]
      %v686 = vsel %vm192, %v404, %v685
      %687 = vst [vmem:[%s657 + $0x2c] sm:$0x1] %v686
      %v688 = vld [vmem:[%s657 + $0x30] sm:$0xf]
      %v689 = vsel %vm659, %v411, %v688
      %690 = vst [vmem:[%s657 + $0x30] sm:$0xf] %v689
      %691 = vst [vmem:[%s657 + $0x34] sm:$0xf] %v420
      %v692 = vld [vmem:[%s657 + $0x38] sm:$0x1]
      %v693 = vsel %vm192, %v421, %v692
      %694 = vst [vmem:[%s657 + $0x38] sm:$0x1] %v693
      %v695 = vld [vmem:[%s657 + $0x3c] sm:$0xf]
      %v696 = vsel %vm659, %v428, %v695
      %697 = vst [vmem:[%s657 + $0x3c] sm:$0xf] %v696
      %698 = vst [vmem:[%s657 + $0x40] sm:$0xf] %v437
      %v699 = vld [vmem:[%s657 + $0x44] sm:$0x1]
      %v700 = vsel %vm192, %v438, %v699
      %701 = vst [vmem:[%s657 + $0x44] sm:$0x1] %v700
      %v702 = vld [vmem:[%s657 + $0x48] sm:$0xf]
      %v703 = vsel %vm659, %v445, %v702
      %704 = vst [vmem:[%s657 + $0x48] sm:$0xf] %v703
      %705 = vst [vmem:[%s657 + $0x4c] sm:$0xf] %v454
      %v706 = vld [vmem:[%s657 + $0x50] sm:$0x1]
      %v707 = vsel %vm192, %v455, %v706
      %708 = vst [vmem:[%s657 + $0x50] sm:$0x1] %v707
      %v709 = vld [vmem:[%s657 + $0x54] sm:$0xf]
      %v710 = vsel %vm659, %v462, %v709
      %711 = vst [vmem:[%s657 + $0x54] sm:$0xf] %v710
      %712 = vst [vmem:[%s657 + $0x58] sm:$0xf] %v471
      %v713 = vld [vmem:[%s657 + $0x5c] sm:$0x1]
      %v714 = vsel %vm192, %v472, %v713
      %715 = vst [vmem:[%s657 + $0x5c] sm:$0x1] %v714
      %v716 = vld [vmem:[%s657 + $0x60] sm:$0xf]
      %v717 = vsel %vm659, %v479, %v716
      %718 = vst [vmem:[%s657 + $0x60] sm:$0xf] %v717
      %719 = vst [vmem:[%s657 + $0x64] sm:$0xf] %v488
      %v720 = vld [vmem:[%s657 + $0x68] sm:$0x1]
      %v721 = vsel %vm192, %v489, %v720
      %722 = vst [vmem:[%s657 + $0x68] sm:$0x1] %v721
      %v723 = vld [vmem:[%s657 + $0x6c] sm:$0xf]
      %v724 = vsel %vm659, %v496, %v723
      %725 = vst [vmem:[%s657 + $0x6c] sm:$0xf] %v724
      %726 = vst [vmem:[%s657 + $0x70] sm:$0xf] %v505
      %v727 = vld [vmem:[%s657 + $0x74] sm:$0x1]
      %v728 = vsel %vm192, %v506, %v727
      %729 = vst [vmem:[%s657 + $0x74] sm:$0x1] %v728
      %v730 = vld [vmem:[%s657 + $0x78] sm:$0xf]
      %v731 = vsel %vm659, %v513, %v730
      %732 = vst [vmem:[%s657 + $0x78] sm:$0xf] %v731
      %733 = vst [vmem:[%s657 + $0x7c] sm:$0xf] %v522
      %v734 = vld [vmem:[%s657 + $0x80] sm:$0x1]
      %v735 = vsel %vm192, %v523, %v734
      %736 = vst [vmem:[%s657 + $0x80] sm:$0x1] %v735
      %v737 = vld [vmem:[%s657 + $0x84] sm:$0xf]
      %v738 = vsel %vm659, %v530, %v737
      %739 = vst [vmem:[%s657 + $0x84] sm:$0xf] %v738
      %740 = vst [vmem:[%s657 + $0x88] sm:$0xf] %v539
      %v741 = vld [vmem:[%s657 + $0x8c] sm:$0x1]
      %v742 = vsel %vm192, %v540, %v741
      %743 = vst [vmem:[%s657 + $0x8c] sm:$0x1] %v742
      %v744 = vld [vmem:[%s657 + $0x90] sm:$0xf]
      %v745 = vsel %vm659, %v547, %v744
      %746 = vst [vmem:[%s657 + $0x90] sm:$0xf] %v745
      %747 = vst [vmem:[%s657 + $0x94] sm:$0xf] %v556
      %v748 = vld [vmem:[%s657 + $0x98] sm:$0x1]
      %v749 = vsel %vm192, %v557, %v748
      %750 = vst [vmem:[%s657 + $0x98] sm:$0x1] %v749
      %v751 = vld [vmem:[%s657 + $0x9c] sm:$0xf]
      %v752 = vsel %vm659, %v564, %v751
      %753 = vst [vmem:[%s657 + $0x9c] sm:$0xf] %v752
      %754 = vst [vmem:[%s657 + $0xa0] sm:$0xf] %v573
      %v755 = vld [vmem:[%s657 + $0xa4] sm:$0x1]
      %v756 = vsel %vm192, %v574, %v755
      %757 = vst [vmem:[%s657 + $0xa4] sm:$0x1] %v756
      %v758 = vld [vmem:[%s657 + $0xa8] sm:$0xf]
      %v759 = vsel %vm659, %v581, %v758
      %760 = vst [vmem:[%s657 + $0xa8] sm:$0xf] %v759
      %761 = vst [vmem:[%s657 + $0xac] sm:$0xf] %v590
      %v762 = vld [vmem:[%s657 + $0xb0] sm:$0x1]
      %v763 = vsel %vm192, %v591, %v762
      %764 = vst [vmem:[%s657 + $0xb0] sm:$0x1] %v763
      %v765 = vld [vmem:[%s657 + $0xb4] sm:$0xf]
      %v766 = vsel %vm659, %v598, %v765
      %767 = vst [vmem:[%s657 + $0xb4] sm:$0xf] %v766
      %768 = vst [vmem:[%s657 + $0xb8] sm:$0xf] %v607
      %v769 = vld [vmem:[%s657 + $0xbc] sm:$0x1]
      %v770 = vsel %vm192, %v608, %v769
      %771 = vst [vmem:[%s657 + $0xbc] sm:$0x1] %v770
      %v772 = vld [vmem:[#allocation2] sm:$0xf]
      %v773 = vld [vmem:[#allocation2 + $0x4] sm:$0xf]
      %v774 = vld [vmem:[#allocation2 + $0xc] sm:$0xf]
      %v775 = vld [vmem:[#allocation2 + $0x10] sm:$0xf]
      %v776 = vld [vmem:[#allocation2 + $0x18] sm:$0xf]
      %v777 = vld [vmem:[#allocation2 + $0x1c] sm:$0xf]
      %v778 = vld [vmem:[#allocation2 + $0x24] sm:$0xf]
      %v779 = vld [vmem:[#allocation2 + $0x28] sm:$0xf]
      %v780 = vld [vmem:[#allocation2 + $0x30] sm:$0xf]
      %v781 = vld [vmem:[#allocation2 + $0x34] sm:$0xf]
      %v782 = vld [vmem:[#allocation2 + $0x3c] sm:$0xf]
      %v783 = vld [vmem:[#allocation2 + $0x40] sm:$0xf]
      %v784 = vld [vmem:[#allocation2 + $0x48] sm:$0xf]
      %v785 = vld [vmem:[#allocation2 + $0x4c] sm:$0xf]
      %v786 = vld [vmem:[#allocation2 + $0x54] sm:$0xf]
      %v787 = vld [vmem:[#allocation2 + $0x58] sm:$0xf]
      %v788 = vld [vmem:[#allocation2 + $0x60] sm:$0xf]
      %v789 = vld [vmem:[#allocation2 + $0x64] sm:$0xf]
      %v790 = vld [vmem:[#allocation2 + $0x6c] sm:$0xf]
      %v791 = vld [vmem:[#allocation2 + $0x70] sm:$0xf]
      %v792 = vld [vmem:[#allocation2 + $0x78] sm:$0xf]
      %v793 = vld [vmem:[#allocation2 + $0x7c] sm:$0xf]
      %v794 = vld [vmem:[#allocation2 + $0x84] sm:$0xf]
      %v795 = vld [vmem:[#allocation2 + $0x88] sm:$0xf]
      %v796 = vld [vmem:[#allocation2 + $0x90] sm:$0xf]
      %v797 = vld [vmem:[#allocation2 + $0x94] sm:$0xf]
      %v798 = vld [vmem:[#allocation2 + $0x9c] sm:$0xf]
      %v799 = vld [vmem:[#allocation2 + $0xa0] sm:$0xf]
      %v800 = vld [vmem:[#allocation2 + $0xa8] sm:$0xf]
      %v801 = vld [vmem:[#allocation2 + $0xac] sm:$0xf]
      %v802 = vld [vmem:[#allocation2 + $0xb4] sm:$0xf]
      %v803 = vld [vmem:[#allocation2 + $0xb8] sm:$0xf]
      %v804 = vld [vmem:[#allocation2 + $0x8] sm:$0x1]
      %v805 = vld [vmem:[#allocation2 + $0x14] sm:$0x1]
      %v806 = vld [vmem:[#allocation2 + $0x20] sm:$0x1]
      %v807 = vld [vmem:[#allocation2 + $0x2c] sm:$0x1]
      %v808 = vld [vmem:[#allocation2 + $0x38] sm:$0x1]
      %v809 = vld [vmem:[#allocation2 + $0x44] sm:$0x1]
      %v810 = vld [vmem:[#allocation2 + $0x50] sm:$0x1]
      %v811 = vld [vmem:[#allocation2 + $0x5c] sm:$0x1]
      %v812 = vld [vmem:[#allocation2 + $0x68] sm:$0x1]
      %v813 = vld [vmem:[#allocation2 + $0x74] sm:$0x1]
      %v814 = vld [vmem:[#allocation2 + $0x80] sm:$0x1]
      %v815 = vld [vmem:[#allocation2 + $0x8c] sm:$0x1]
      %v816 = vld [vmem:[#allocation2 + $0x98] sm:$0x1]
      %v817 = vld [vmem:[#allocation2 + $0xa4] sm:$0x1]
      %v818 = vld [vmem:[#allocation2 + $0xb0] sm:$0x1]
      %v819 = vld [vmem:[#allocation2 + $0xbc] sm:$0x1]
      %v820 = vld [vmem:[#allocation2] sm:$0xe]
      %v821 = vld [vmem:[#allocation2 + $0xc] sm:$0xe]
      %v822 = vld [vmem:[#allocation2 + $0x18] sm:$0xe]
      %v823 = vld [vmem:[#allocation2 + $0x24] sm:$0xe]
      %v824 = vld [vmem:[#allocation2 + $0x30] sm:$0xe]
      %v825 = vld [vmem:[#allocation2 + $0x3c] sm:$0xe]
      %v826 = vld [vmem:[#allocation2 + $0x48] sm:$0xe]
      %v827 = vld [vmem:[#allocation2 + $0x54] sm:$0xe]
      %v828 = vld [vmem:[#allocation2 + $0x60] sm:$0xe]
      %v829 = vld [vmem:[#allocation2 + $0x6c] sm:$0xe]
      %v830 = vld [vmem:[#allocation2 + $0x78] sm:$0xe]
      %v831 = vld [vmem:[#allocation2 + $0x84] sm:$0xe]
      %v832 = vld [vmem:[#allocation2 + $0x90] sm:$0xe]
      %v833 = vld [vmem:[#allocation2 + $0x9c] sm:$0xe]
      %v834 = vld [vmem:[#allocation2 + $0xa8] sm:$0xe]
      %v835 = vld [vmem:[#allocation2 + $0xb4] sm:$0xe]
      %v868 = vunpack.c.l.b16 %v772
      %v869 = vunpack.c.l.b16 %v773
      %v870 = vunpack.c.l.b16 %v774
      %v871 = vunpack.c.l.b16 %v775
      %v872 = vunpack.c.l.b16 %v776
      %v873 = vunpack.c.l.b16 %v777
      %v874 = vunpack.c.l.b16 %v778
      %v875 = vunpack.c.l.b16 %v779
      %v876 = vunpack.c.l.b16 %v780
      %v877 = vunpack.c.l.b16 %v781
      %v878 = vunpack.c.l.b16 %v782
      %v879 = vunpack.c.l.b16 %v783
      %v880 = vunpack.c.l.b16 %v784
      %v881 = vunpack.c.l.b16 %v785
      %v882 = vunpack.c.l.b16 %v786
      %v883 = vunpack.c.l.b16 %v787
      %v884 = vunpack.c.l.b16 %v788
      %v885 = vunpack.c.l.b16 %v789
      %v886 = vunpack.c.l.b16 %v790
      %v887 = vunpack.c.l.b16 %v791
      %v888 = vunpack.c.l.b16 %v792
      %v889 = vunpack.c.l.b16 %v793
      %v890 = vunpack.c.l.b16 %v794
      %v891 = vunpack.c.l.b16 %v795
      %v892 = vunpack.c.l.b16 %v796
      %v893 = vunpack.c.l.b16 %v797
      %v894 = vunpack.c.l.b16 %v798
      %v895 = vunpack.c.l.b16 %v799
      %v896 = vunpack.c.l.b16 %v800
      %v897 = vunpack.c.l.b16 %v801
      %v898 = vunpack.c.l.b16 %v802
      %v899 = vunpack.c.l.b16 %v803
      %v900 = vpack.c.b16 %v869, %v868
      %v901 = vpack.c.b16 %v871, %v870
      %v902 = vpack.c.b16 %v873, %v872
      %v903 = vpack.c.b16 %v875, %v874
      %v904 = vpack.c.b16 %v877, %v876
      %v905 = vpack.c.b16 %v879, %v878
      %v906 = vpack.c.b16 %v881, %v880
      %v907 = vpack.c.b16 %v883, %v882
      %v908 = vpack.c.b16 %v885, %v884
      %v909 = vpack.c.b16 %v887, %v886
      %v910 = vpack.c.b16 %v889, %v888
      %v911 = vpack.c.b16 %v891, %v890
      %v912 = vpack.c.b16 %v893, %v892
      %v913 = vpack.c.b16 %v895, %v894
      %v914 = vpack.c.b16 %v897, %v896
      %v915 = vpack.c.b16 %v899, %v898
      %v948 = vunpack.c.l.b16 %v804
      %v949 = vunpack.c.l.b16 %v805
      %v950 = vunpack.c.l.b16 %v806
      %v951 = vunpack.c.l.b16 %v807
      %v952 = vunpack.c.l.b16 %v808
      %v953 = vunpack.c.l.b16 %v809
      %v954 = vunpack.c.l.b16 %v810
      %v955 = vunpack.c.l.b16 %v811
      %v956 = vunpack.c.l.b16 %v812
      %v957 = vunpack.c.l.b16 %v813
      %v958 = vunpack.c.l.b16 %v814
      %v959 = vunpack.c.l.b16 %v815
      %v960 = vunpack.c.l.b16 %v816
      %v961 = vunpack.c.l.b16 %v817
      %v962 = vunpack.c.l.b16 %v818
      %v963 = vunpack.c.l.b16 %v819
      %v964 = vpack.c.b16 %v948, %v948
      %v965 = vpack.c.b16 %v949, %v949
      %v966 = vpack.c.b16 %v950, %v950
      %v967 = vpack.c.b16 %v951, %v951
      %v968 = vpack.c.b16 %v952, %v952
      %v969 = vpack.c.b16 %v953, %v953
      %v970 = vpack.c.b16 %v954, %v954
      %v971 = vpack.c.b16 %v955, %v955
      %v972 = vpack.c.b16 %v956, %v956
      %v973 = vpack.c.b16 %v957, %v957
      %v974 = vpack.c.b16 %v958, %v958
      %v975 = vpack.c.b16 %v959, %v959
      %v976 = vpack.c.b16 %v960, %v960
      %v977 = vpack.c.b16 %v961, %v961
      %v978 = vpack.c.b16 %v962, %v962
      %v979 = vpack.c.b16 %v963, %v963
      %vm980 = vsmask.f32 7424
      %v982 = vshrl.u32 %v900, 16
      %v984 = vshll.u32 %v900, 16
      %v986 = vrot.slane %v984, 1
      %v987 = vor.u32 %v982, %v986
      %v989 = vshll.u32 %v964, 16
      %v991 = vrot.slane %v989, 1
      %v992 = vsel %vm980, %v987, %v991
      %v994 = vshrl.u32 %v901, 16
      %v996 = vshll.u32 %v901, 16
      %v998 = vrot.slane %v996, 1
      %v999 = vor.u32 %v994, %v998
      %v1001 = vshll.u32 %v965, 16
      %v1003 = vrot.slane %v1001, 1
      %v1004 = vsel %vm980, %v999, %v1003
      %v1006 = vshrl.u32 %v902, 16
      %v1008 = vshll.u32 %v902, 16
      %v1010 = vrot.slane %v1008, 1
      %v1011 = vor.u32 %v1006, %v1010
      %v1013 = vshll.u32 %v966, 16
      %v1015 = vrot.slane %v1013, 1
      %v1016 = vsel %vm980, %v1011, %v1015
      %v1018 = vshrl.u32 %v903, 16
      %v1020 = vshll.u32 %v903, 16
      %v1022 = vrot.slane %v1020, 1
      %v1023 = vor.u32 %v1018, %v1022
      %v1025 = vshll.u32 %v967, 16
      %v1027 = vrot.slane %v1025, 1
      %v1028 = vsel %vm980, %v1023, %v1027
      %v1030 = vshrl.u32 %v904, 16
      %v1032 = vshll.u32 %v904, 16
      %v1034 = vrot.slane %v1032, 1
      %v1035 = vor.u32 %v1030, %v1034
      %v1037 = vshll.u32 %v968, 16
      %v1039 = vrot.slane %v1037, 1
      %v1040 = vsel %vm980, %v1035, %v1039
      %v1042 = vshrl.u32 %v905, 16
      %v1044 = vshll.u32 %v905, 16
      %v1046 = vrot.slane %v1044, 1
      %v1047 = vor.u32 %v1042, %v1046
      %v1049 = vshll.u32 %v969, 16
      %v1051 = vrot.slane %v1049, 1
      %v1052 = vsel %vm980, %v1047, %v1051
      %v1054 = vshrl.u32 %v906, 16
      %v1056 = vshll.u32 %v906, 16
      %v1058 = vrot.slane %v1056, 1
      %v1059 = vor.u32 %v1054, %v1058
      %v1061 = vshll.u32 %v970, 16
      %v1063 = vrot.slane %v1061, 1
      %v1064 = vsel %vm980, %v1059, %v1063
      %v1066 = vshrl.u32 %v907, 16
      %v1068 = vshll.u32 %v907, 16
      %v1070 = vrot.slane %v1068, 1
      %v1071 = vor.u32 %v1066, %v1070
      %v1073 = vshll.u32 %v971, 16
      %v1075 = vrot.slane %v1073, 1
      %v1076 = vsel %vm980, %v1071, %v1075
      %v1078 = vshrl.u32 %v908, 16
      %v1080 = vshll.u32 %v908, 16
      %v1082 = vrot.slane %v1080, 1
      %v1083 = vor.u32 %v1078, %v1082
      %v1085 = vshll.u32 %v972, 16
      %v1087 = vrot.slane %v1085, 1
      %v1088 = vsel %vm980, %v1083, %v1087
      %v1090 = vshrl.u32 %v909, 16
      %v1092 = vshll.u32 %v909, 16
      %v1094 = vrot.slane %v1092, 1
      %v1095 = vor.u32 %v1090, %v1094
      %v1097 = vshll.u32 %v973, 16
      %v1099 = vrot.slane %v1097, 1
      %v1100 = vsel %vm980, %v1095, %v1099
      %v1102 = vshrl.u32 %v910, 16
      %v1104 = vshll.u32 %v910, 16
      %v1106 = vrot.slane %v1104, 1
      %v1107 = vor.u32 %v1102, %v1106
      %v1109 = vshll.u32 %v974, 16
      %v1111 = vrot.slane %v1109, 1
      %v1112 = vsel %vm980, %v1107, %v1111
      %v1114 = vshrl.u32 %v911, 16
      %v1116 = vshll.u32 %v911, 16
      %v1118 = vrot.slane %v1116, 1
      %v1119 = vor.u32 %v1114, %v1118
      %v1121 = vshll.u32 %v975, 16
      %v1123 = vrot.slane %v1121, 1
      %v1124 = vsel %vm980, %v1119, %v1123
      %v1126 = vshrl.u32 %v912, 16
      %v1128 = vshll.u32 %v912, 16
      %v1130 = vrot.slane %v1128, 1
      %v1131 = vor.u32 %v1126, %v1130
      %v1133 = vshll.u32 %v976, 16
      %v1135 = vrot.slane %v1133, 1
      %v1136 = vsel %vm980, %v1131, %v1135
      %v1138 = vshrl.u32 %v913, 16
      %v1140 = vshll.u32 %v913, 16
      %v1142 = vrot.slane %v1140, 1
      %v1143 = vor.u32 %v1138, %v1142
      %v1145 = vshll.u32 %v977, 16
      %v1147 = vrot.slane %v1145, 1
      %v1148 = vsel %vm980, %v1143, %v1147
      %v1150 = vshrl.u32 %v914, 16
      %v1152 = vshll.u32 %v914, 16
      %v1154 = vrot.slane %v1152, 1
      %v1155 = vor.u32 %v1150, %v1154
      %v1157 = vshll.u32 %v978, 16
      %v1159 = vrot.slane %v1157, 1
      %v1160 = vsel %vm980, %v1155, %v1159
      %v1162 = vshrl.u32 %v915, 16
      %v1164 = vshll.u32 %v915, 16
      %v1166 = vrot.slane %v1164, 1
      %v1167 = vor.u32 %v1162, %v1166
      %v1169 = vshll.u32 %v979, 16
      %v1171 = vrot.slane %v1169, 1
      %v1172 = vsel %vm980, %v1167, %v1171
      %v1205 = vunpack.c.l.b16 %v820
      %v1206 = vunpack.c.l.b16 %v821
      %v1207 = vunpack.c.l.b16 %v822
      %v1208 = vunpack.c.l.b16 %v823
      %v1209 = vunpack.c.l.b16 %v824
      %v1210 = vunpack.c.l.b16 %v825
      %v1211 = vunpack.c.l.b16 %v826
      %v1212 = vunpack.c.l.b16 %v827
      %v1213 = vunpack.c.l.b16 %v828
      %v1214 = vunpack.c.l.b16 %v829
      %v1215 = vunpack.c.l.b16 %v830
      %v1216 = vunpack.c.l.b16 %v831
      %v1217 = vunpack.c.l.b16 %v832
      %v1218 = vunpack.c.l.b16 %v833
      %v1219 = vunpack.c.l.b16 %v834
      %v1220 = vunpack.c.l.b16 %v835
      %v1221 = vpack.c.b16 %v869, %v1205
      %v1222 = vpack.c.b16 %v871, %v1206
      %v1223 = vpack.c.b16 %v873, %v1207
      %v1224 = vpack.c.b16 %v875, %v1208
      %v1225 = vpack.c.b16 %v877, %v1209
      %v1226 = vpack.c.b16 %v879, %v1210
      %v1227 = vpack.c.b16 %v881, %v1211
      %v1228 = vpack.c.b16 %v883, %v1212
      %v1229 = vpack.c.b16 %v885, %v1213
      %v1230 = vpack.c.b16 %v887, %v1214
      %v1231 = vpack.c.b16 %v889, %v1215
      %v1232 = vpack.c.b16 %v891, %v1216
      %v1233 = vpack.c.b16 %v893, %v1217
      %v1234 = vpack.c.b16 %v895, %v1218
      %v1235 = vpack.c.b16 %v897, %v1219
      %v1236 = vpack.c.b16 %v899, %v1220
      %vm1237 = vcmask 1046528
      %v1238 = vrot.slane %v1221, 1
      %v1239 = vrot.slane %v964, 1
      %v1240 = vsel %vm1237, %v1238, %v1239
      %v1241 = vrot.slane %v1222, 1
      %v1242 = vrot.slane %v965, 1
      %v1243 = vsel %vm1237, %v1241, %v1242
      %v1244 = vrot.slane %v1223, 1
      %v1245 = vrot.slane %v966, 1
      %v1246 = vsel %vm1237, %v1244, %v1245
      %v1247 = vrot.slane %v1224, 1
      %v1248 = vrot.slane %v967, 1
      %v1249 = vsel %vm1237, %v1247, %v1248
      %v1250 = vrot.slane %v1225, 1
      %v1251 = vrot.slane %v968, 1
      %v1252 = vsel %vm1237, %v1250, %v1251
      %v1253 = vrot.slane %v1226, 1
      %v1254 = vrot.slane %v969, 1
      %v1255 = vsel %vm1237, %v1253, %v1254
      %v1256 = vrot.slane %v1227, 1
      %v1257 = vrot.slane %v970, 1
      %v1258 = vsel %vm1237, %v1256, %v1257
      %v1259 = vrot.slane %v1228, 1
      %v1260 = vrot.slane %v971, 1
      %v1261 = vsel %vm1237, %v1259, %v1260
      %v1262 = vrot.slane %v1229, 1
      %v1263 = vrot.slane %v972, 1
      %v1264 = vsel %vm1237, %v1262, %v1263
      %v1265 = vrot.slane %v1230, 1
      %v1266 = vrot.slane %v973, 1
      %v1267 = vsel %vm1237, %v1265, %v1266
      %v1268 = vrot.slane %v1231, 1
      %v1269 = vrot.slane %v974, 1
      %v1270 = vsel %vm1237, %v1268, %v1269
      %v1271 = vrot.slane %v1232, 1
      %v1272 = vrot.slane %v975, 1
      %v1273 = vsel %vm1237, %v1271, %v1272
      %v1274 = vrot.slane %v1233, 1
      %v1275 = vrot.slane %v976, 1
      %v1276 = vsel %vm1237, %v1274, %v1275
      %v1277 = vrot.slane %v1234, 1
      %v1278 = vrot.slane %v977, 1
      %v1279 = vsel %vm1237, %v1277, %v1278
      %v1280 = vrot.slane %v1235, 1
      %v1281 = vrot.slane %v978, 1
      %v1282 = vsel %vm1237, %v1280, %v1281
      %v1283 = vrot.slane %v1236, 1
      %v1284 = vrot.slane %v979, 1
      %v1285 = vsel %vm1237, %v1283, %v1284
      %v1302 = vld [vmem:[%s1] sm:$0xf]
      %v1303 = vld [vmem:[%s1 + $0x4] sm:$0xf]
      %v1304 = vld [vmem:[%s1 + $0x8] sm:$0xf]
      %v1305 = vld [vmem:[%s1 + $0xc] sm:$0xf]
      %v1306 = vld [vmem:[%s1 + $0x10] sm:$0xf]
      %v1307 = vld [vmem:[%s1 + $0x14] sm:$0xf]
      %v1308 = vld [vmem:[%s1 + $0x18] sm:$0xf]
      %v1309 = vld [vmem:[%s1 + $0x1c] sm:$0xf]
      %v1310 = vld [vmem:[%s1 + $0x20] sm:$0xf]
      %v1311 = vld [vmem:[%s1 + $0x24] sm:$0xf]
      %v1312 = vld [vmem:[%s1 + $0x28] sm:$0xf]
      %v1313 = vld [vmem:[%s1 + $0x2c] sm:$0xf]
      %v1314 = vld [vmem:[%s1 + $0x30] sm:$0xf]
      %v1315 = vld [vmem:[%s1 + $0x34] sm:$0xf]
      %v1316 = vld [vmem:[%s1 + $0x38] sm:$0xf]
      %v1317 = vld [vmem:[%s1 + $0x3c] sm:$0xf]
      %v1318 = vld [vmem:[%s1 + $0x40] sm:$0xf]
      %v1319 = vld [vmem:[%s1 + $0x44] sm:$0xf]
      %v1320 = vld [vmem:[%s1 + $0x48] sm:$0xf]
      %v1321 = vld [vmem:[%s1 + $0x4c] sm:$0xf]
      %v1322 = vld [vmem:[%s1 + $0x50] sm:$0xf]
      %v1323 = vld [vmem:[%s1 + $0x54] sm:$0xf]
      %v1324 = vld [vmem:[%s1 + $0x58] sm:$0xf]
      %v1325 = vld [vmem:[%s1 + $0x5c] sm:$0xf]
      %v1326 = vld [vmem:[%s1 + $0x60] sm:$0xf]
      %v1327 = vld [vmem:[%s1 + $0x64] sm:$0xf]
      %v1328 = vld [vmem:[%s1 + $0x68] sm:$0xf]
      %v1329 = vld [vmem:[%s1 + $0x6c] sm:$0xf]
      %v1330 = vld [vmem:[%s1 + $0x70] sm:$0xf]
      %v1331 = vld [vmem:[%s1 + $0x74] sm:$0xf]
      %v1332 = vld [vmem:[%s1 + $0x78] sm:$0xf]
      %v1333 = vld [vmem:[%s1 + $0x7c] sm:$0xf]
      %v1334 = vld [vmem:[%s1 + $0x80] sm:$0xf]
      %v1335 = vld [vmem:[%s1 + $0x84] sm:$0xf]
      %v1336 = vld [vmem:[%s1 + $0x88] sm:$0xf]
      %v1337 = vld [vmem:[%s1 + $0x8c] sm:$0xf]
      %v1338 = vld [vmem:[%s1 + $0x90] sm:$0xf]
      %v1339 = vld [vmem:[%s1 + $0x94] sm:$0xf]
      %v1340 = vld [vmem:[%s1 + $0x98] sm:$0xf]
      %v1341 = vld [vmem:[%s1 + $0x9c] sm:$0xf]
      %v1342 = vld [vmem:[%s1 + $0xa0] sm:$0xf]
      %v1343 = vld [vmem:[%s1 + $0xa4] sm:$0xf]
      %v1344 = vld [vmem:[%s1 + $0xa8] sm:$0xf]
      %v1345 = vld [vmem:[%s1 + $0xac] sm:$0xf]
      %v1346 = vld [vmem:[%s1 + $0xb0] sm:$0xf]
      %v1347 = vld [vmem:[%s1 + $0xb4] sm:$0xf]
      %v1348 = vld [vmem:[%s1 + $0xb8] sm:$0xf]
      %v1349 = vld [vmem:[%s1 + $0xbc] sm:$0xf]
      %v1350 = vld [vmem:[%s657] sm:$0xf]
      %v1351 = vld [vmem:[%s657 + $0x4] sm:$0xf]
      %v1352 = vld [vmem:[%s657 + $0xc] sm:$0xf]
      %v1353 = vld [vmem:[%s657 + $0x10] sm:$0xf]
      %v1354 = vld [vmem:[%s657 + $0x18] sm:$0xf]
      %v1355 = vld [vmem:[%s657 + $0x1c] sm:$0xf]
      %v1356 = vld [vmem:[%s657 + $0x24] sm:$0xf]
      %v1357 = vld [vmem:[%s657 + $0x28] sm:$0xf]
      %v1358 = vld [vmem:[%s657 + $0x30] sm:$0xf]
      %v1359 = vld [vmem:[%s657 + $0x34] sm:$0xf]
      %v1360 = vld [vmem:[%s657 + $0x3c] sm:$0xf]
      %v1361 = vld [vmem:[%s657 + $0x40] sm:$0xf]
      %v1362 = vld [vmem:[%s657 + $0x48] sm:$0xf]
      %v1363 = vld [vmem:[%s657 + $0x4c] sm:$0xf]
      %v1364 = vld [vmem:[%s657 + $0x54] sm:$0xf]
      %v1365 = vld [vmem:[%s657 + $0x58] sm:$0xf]
      %v1366 = vld [vmem:[%s657 + $0x60] sm:$0xf]
      %v1367 = vld [vmem:[%s657 + $0x64] sm:$0xf]
      %v1368 = vld [vmem:[%s657 + $0x6c] sm:$0xf]
      %v1369 = vld [vmem:[%s657 + $0x70] sm:$0xf]
      %v1370 = vld [vmem:[%s657 + $0x78] sm:$0xf]
      %v1371 = vld [vmem:[%s657 + $0x7c] sm:$0xf]
      %v1372 = vld [vmem:[%s657 + $0x84] sm:$0xf]
      %v1373 = vld [vmem:[%s657 + $0x88] sm:$0xf]
      %v1374 = vld [vmem:[%s657 + $0x90] sm:$0xf]
      %v1375 = vld [vmem:[%s657 + $0x94] sm:$0xf]
      %v1376 = vld [vmem:[%s657 + $0x9c] sm:$0xf]
      %v1377 = vld [vmem:[%s657 + $0xa0] sm:$0xf]
      %v1378 = vld [vmem:[%s657 + $0xa8] sm:$0xf]
      %v1379 = vld [vmem:[%s657 + $0xac] sm:$0xf]
      %v1380 = vld [vmem:[%s657 + $0xb4] sm:$0xf]
      %v1381 = vld [vmem:[%s657 + $0xb8] sm:$0xf]
      %v1382 = vld [vmem:[%s657 + $0x8] sm:$0x1]
      %v1383 = vld [vmem:[%s657 + $0x14] sm:$0x1]
      %v1384 = vld [vmem:[%s657 + $0x20] sm:$0x1]
      %v1385 = vld [vmem:[%s657 + $0x2c] sm:$0x1]
      %v1386 = vld [vmem:[%s657 + $0x38] sm:$0x1]
      %v1387 = vld [vmem:[%s657 + $0x44] sm:$0x1]
      %v1388 = vld [vmem:[%s657 + $0x50] sm:$0x1]
      %v1389 = vld [vmem:[%s657 + $0x5c] sm:$0x1]
      %v1390 = vld [vmem:[%s657 + $0x68] sm:$0x1]
      %v1391 = vld [vmem:[%s657 + $0x74] sm:$0x1]
      %v1392 = vld [vmem:[%s657 + $0x80] sm:$0x1]
      %v1393 = vld [vmem:[%s657 + $0x8c] sm:$0x1]
      %v1394 = vld [vmem:[%s657 + $0x98] sm:$0x1]
      %v1395 = vld [vmem:[%s657 + $0xa4] sm:$0x1]
      %v1396 = vld [vmem:[%s657 + $0xb0] sm:$0x1]
      %v1397 = vld [vmem:[%s657 + $0xbc] sm:$0x1]
      %v1398 = vld [vmem:[%s657] sm:$0xe]
      %v1399 = vld [vmem:[%s657 + $0xc] sm:$0xe]
      %v1400 = vld [vmem:[%s657 + $0x18] sm:$0xe]
      %v1401 = vld [vmem:[%s657 + $0x24] sm:$0xe]
      %v1402 = vld [vmem:[%s657 + $0x30] sm:$0xe]
      %v1403 = vld [vmem:[%s657 + $0x3c] sm:$0xe]
      %v1404 = vld [vmem:[%s657 + $0x48] sm:$0xe]
      %v1405 = vld [vmem:[%s657 + $0x54] sm:$0xe]
      %v1406 = vld [vmem:[%s657 + $0x60] sm:$0xe]
      %v1407 = vld [vmem:[%s657 + $0x6c] sm:$0xe]
      %v1408 = vld [vmem:[%s657 + $0x78] sm:$0xe]
      %v1409 = vld [vmem:[%s657 + $0x84] sm:$0xe]
      %v1410 = vld [vmem:[%s657 + $0x90] sm:$0xe]
      %v1411 = vld [vmem:[%s657 + $0x9c] sm:$0xe]
      %v1412 = vld [vmem:[%s657 + $0xa8] sm:$0xe]
      %v1413 = vld [vmem:[%s657 + $0xb4] sm:$0xe]
      %v1446 = vunpack.c.l.b16 %v1350
      %v1447 = vunpack.c.l.b16 %v1351
      %v1448 = vunpack.c.l.b16 %v1352
      %v1449 = vunpack.c.l.b16 %v1353
      %v1450 = vunpack.c.l.b16 %v1354
      %v1451 = vunpack.c.l.b16 %v1355
      %v1452 = vunpack.c.l.b16 %v1356
      %v1453 = vunpack.c.l.b16 %v1357
      %v1454 = vunpack.c.l.b16 %v1358
      %v1455 = vunpack.c.l.b16 %v1359
      %v1456 = vunpack.c.l.b16 %v1360
      %v1457 = vunpack.c.l.b16 %v1361
      %v1458 = vunpack.c.l.b16 %v1362
      %v1459 = vunpack.c.l.b16 %v1363
      %v1460 = vunpack.c.l.b16 %v1364
      %v1461 = vunpack.c.l.b16 %v1365
      %v1462 = vunpack.c.l.b16 %v1366
      %v1463 = vunpack.c.l.b16 %v1367
      %v1464 = vunpack.c.l.b16 %v1368
      %v1465 = vunpack.c.l.b16 %v1369
      %v1466 = vunpack.c.l.b16 %v1370
      %v1467 = vunpack.c.l.b16 %v1371
      %v1468 = vunpack.c.l.b16 %v1372
      %v1469 = vunpack.c.l.b16 %v1373
      %v1470 = vunpack.c.l.b16 %v1374
      %v1471 = vunpack.c.l.b16 %v1375
      %v1472 = vunpack.c.l.b16 %v1376
      %v1473 = vunpack.c.l.b16 %v1377
      %v1474 = vunpack.c.l.b16 %v1378
      %v1475 = vunpack.c.l.b16 %v1379
      %v1476 = vunpack.c.l.b16 %v1380
      %v1477 = vunpack.c.l.b16 %v1381
      %v1478 = vpack.c.b16 %v1447, %v1446
      %v1479 = vpack.c.b16 %v1449, %v1448
      %v1480 = vpack.c.b16 %v1451, %v1450
      %v1481 = vpack.c.b16 %v1453, %v1452
      %v1482 = vpack.c.b16 %v1455, %v1454
      %v1483 = vpack.c.b16 %v1457, %v1456
      %v1484 = vpack.c.b16 %v1459, %v1458
      %v1485 = vpack.c.b16 %v1461, %v1460
      %v1486 = vpack.c.b16 %v1463, %v1462
      %v1487 = vpack.c.b16 %v1465, %v1464
      %v1488 = vpack.c.b16 %v1467, %v1466
      %v1489 = vpack.c.b16 %v1469, %v1468
      %v1490 = vpack.c.b16 %v1471, %v1470
      %v1491 = vpack.c.b16 %v1473, %v1472
      %v1492 = vpack.c.b16 %v1475, %v1474
      %v1493 = vpack.c.b16 %v1477, %v1476
      %v1526 = vunpack.c.l.b16 %v1382
      %v1527 = vunpack.c.l.b16 %v1383
      %v1528 = vunpack.c.l.b16 %v1384
      %v1529 = vunpack.c.l.b16 %v1385
      %v1530 = vunpack.c.l.b16 %v1386
      %v1531 = vunpack.c.l.b16 %v1387
      %v1532 = vunpack.c.l.b16 %v1388
      %v1533 = vunpack.c.l.b16 %v1389
      %v1534 = vunpack.c.l.b16 %v1390
      %v1535 = vunpack.c.l.b16 %v1391
      %v1536 = vunpack.c.l.b16 %v1392
      %v1537 = vunpack.c.l.b16 %v1393
      %v1538 = vunpack.c.l.b16 %v1394
      %v1539 = vunpack.c.l.b16 %v1395
      %v1540 = vunpack.c.l.b16 %v1396
      %v1541 = vunpack.c.l.b16 %v1397
      %v1542 = vpack.c.b16 %v1526, %v1526
      %v1543 = vpack.c.b16 %v1527, %v1527
      %v1544 = vpack.c.b16 %v1528, %v1528
      %v1545 = vpack.c.b16 %v1529, %v1529
      %v1546 = vpack.c.b16 %v1530, %v1530
      %v1547 = vpack.c.b16 %v1531, %v1531
      %v1548 = vpack.c.b16 %v1532, %v1532
      %v1549 = vpack.c.b16 %v1533, %v1533
      %v1550 = vpack.c.b16 %v1534, %v1534
      %v1551 = vpack.c.b16 %v1535, %v1535
      %v1552 = vpack.c.b16 %v1536, %v1536
      %v1553 = vpack.c.b16 %v1537, %v1537
      %v1554 = vpack.c.b16 %v1538, %v1538
      %v1555 = vpack.c.b16 %v1539, %v1539
      %v1556 = vpack.c.b16 %v1540, %v1540
      %v1557 = vpack.c.b16 %v1541, %v1541
      %v1559 = vshrl.u32 %v1478, 16
      %v1561 = vshll.u32 %v1478, 16
      %v1563 = vrot.slane %v1561, 1
      %v1564 = vor.u32 %v1559, %v1563
      %v1566 = vshll.u32 %v1542, 16
      %v1568 = vrot.slane %v1566, 1
      %v1569 = vsel %vm980, %v1564, %v1568
      %v1571 = vshrl.u32 %v1479, 16
      %v1573 = vshll.u32 %v1479, 16
      %v1575 = vrot.slane %v1573, 1
      %v1576 = vor.u32 %v1571, %v1575
      %v1578 = vshll.u32 %v1543, 16
      %v1580 = vrot.slane %v1578, 1
      %v1581 = vsel %vm980, %v1576, %v1580
      %v1583 = vshrl.u32 %v1480, 16
      %v1585 = vshll.u32 %v1480, 16
      %v1587 = vrot.slane %v1585, 1
      %v1588 = vor.u32 %v1583, %v1587
      %v1590 = vshll.u32 %v1544, 16
      %v1592 = vrot.slane %v1590, 1
      %v1593 = vsel %vm980, %v1588, %v1592
      %v1595 = vshrl.u32 %v1481, 16
      %v1597 = vshll.u32 %v1481, 16
      %v1599 = vrot.slane %v1597, 1
      %v1600 = vor.u32 %v1595, %v1599
      %v1602 = vshll.u32 %v1545, 16
      %v1604 = vrot.slane %v1602, 1
      %v1605 = vsel %vm980, %v1600, %v1604
      %v1607 = vshrl.u32 %v1482, 16
      %v1609 = vshll.u32 %v1482, 16
      %v1611 = vrot.slane %v1609, 1
      %v1612 = vor.u32 %v1607, %v1611
      %v1614 = vshll.u32 %v1546, 16
      %v1616 = vrot.slane %v1614, 1
      %v1617 = vsel %vm980, %v1612, %v1616
      %v1619 = vshrl.u32 %v1483, 16
      %v1621 = vshll.u32 %v1483, 16
      %v1623 = vrot.slane %v1621, 1
      %v1624 = vor.u32 %v1619, %v1623
      %v1626 = vshll.u32 %v1547, 16
      %v1628 = vrot.slane %v1626, 1
      %v1629 = vsel %vm980, %v1624, %v1628
      %v1631 = vshrl.u32 %v1484, 16
      %v1633 = vshll.u32 %v1484, 16
      %v1635 = vrot.slane %v1633, 1
      %v1636 = vor.u32 %v1631, %v1635
      %v1638 = vshll.u32 %v1548, 16
      %v1640 = vrot.slane %v1638, 1
      %v1641 = vsel %vm980, %v1636, %v1640
      %v1643 = vshrl.u32 %v1485, 16
      %v1645 = vshll.u32 %v1485, 16
      %v1647 = vrot.slane %v1645, 1
      %v1648 = vor.u32 %v1643, %v1647
      %v1650 = vshll.u32 %v1549, 16
      %v1652 = vrot.slane %v1650, 1
      %v1653 = vsel %vm980, %v1648, %v1652
      %v1655 = vshrl.u32 %v1486, 16
      %v1657 = vshll.u32 %v1486, 16
      %v1659 = vrot.slane %v1657, 1
      %v1660 = vor.u32 %v1655, %v1659
      %v1662 = vshll.u32 %v1550, 16
      %v1664 = vrot.slane %v1662, 1
      %v1665 = vsel %vm980, %v1660, %v1664
      %v1667 = vshrl.u32 %v1487, 16
      %v1669 = vshll.u32 %v1487, 16
      %v1671 = vrot.slane %v1669, 1
      %v1672 = vor.u32 %v1667, %v1671
      %v1674 = vshll.u32 %v1551, 16
      %v1676 = vrot.slane %v1674, 1
      %v1677 = vsel %vm980, %v1672, %v1676
      %v1679 = vshrl.u32 %v1488, 16
      %v1681 = vshll.u32 %v1488, 16
      %v1683 = vrot.slane %v1681, 1
      %v1684 = vor.u32 %v1679, %v1683
      %v1686 = vshll.u32 %v1552, 16
      %v1688 = vrot.slane %v1686, 1
      %v1689 = vsel %vm980, %v1684, %v1688
      %v1691 = vshrl.u32 %v1489, 16
      %v1693 = vshll.u32 %v1489, 16
      %v1695 = vrot.slane %v1693, 1
      %v1696 = vor.u32 %v1691, %v1695
      %v1698 = vshll.u32 %v1553, 16
      %v1700 = vrot.slane %v1698, 1
      %v1701 = vsel %vm980, %v1696, %v1700
      %v1703 = vshrl.u32 %v1490, 16
      %v1705 = vshll.u32 %v1490, 16
      %v1707 = vrot.slane %v1705, 1
      %v1708 = vor.u32 %v1703, %v1707
      %v1710 = vshll.u32 %v1554, 16
      %v1712 = vrot.slane %v1710, 1
      %v1713 = vsel %vm980, %v1708, %v1712
      %v1715 = vshrl.u32 %v1491, 16
      %v1717 = vshll.u32 %v1491, 16
      %v1719 = vrot.slane %v1717, 1
      %v1720 = vor.u32 %v1715, %v1719
      %v1722 = vshll.u32 %v1555, 16
      %v1724 = vrot.slane %v1722, 1
      %v1725 = vsel %vm980, %v1720, %v1724
      %v1727 = vshrl.u32 %v1492, 16
      %v1729 = vshll.u32 %v1492, 16
      %v1731 = vrot.slane %v1729, 1
      %v1732 = vor.u32 %v1727, %v1731
      %v1734 = vshll.u32 %v1556, 16
      %v1736 = vrot.slane %v1734, 1
      %v1737 = vsel %vm980, %v1732, %v1736
      %v1739 = vshrl.u32 %v1493, 16
      %v1741 = vshll.u32 %v1493, 16
      %v1743 = vrot.slane %v1741, 1
      %v1744 = vor.u32 %v1739, %v1743
      %v1746 = vshll.u32 %v1557, 16
      %v1748 = vrot.slane %v1746, 1
      %v1749 = vsel %vm980, %v1744, %v1748
      %v1782 = vunpack.c.l.b16 %v1398
      %v1783 = vunpack.c.l.b16 %v1399
      %v1784 = vunpack.c.l.b16 %v1400
      %v1785 = vunpack.c.l.b16 %v1401
      %v1786 = vunpack.c.l.b16 %v1402
      %v1787 = vunpack.c.l.b16 %v1403
      %v1788 = vunpack.c.l.b16 %v1404
      %v1789 = vunpack.c.l.b16 %v1405
      %v1790 = vunpack.c.l.b16 %v1406
      %v1791 = vunpack.c.l.b16 %v1407
      %v1792 = vunpack.c.l.b16 %v1408
      %v1793 = vunpack.c.l.b16 %v1409
      %v1794 = vunpack.c.l.b16 %v1410
      %v1795 = vunpack.c.l.b16 %v1411
      %v1796 = vunpack.c.l.b16 %v1412
      %v1797 = vunpack.c.l.b16 %v1413
      %v1798 = vpack.c.b16 %v1447, %v1782
      %v1799 = vpack.c.b16 %v1449, %v1783
      %v1800 = vpack.c.b16 %v1451, %v1784
      %v1801 = vpack.c.b16 %v1453, %v1785
      %v1802 = vpack.c.b16 %v1455, %v1786
      %v1803 = vpack.c.b16 %v1457, %v1787
      %v1804 = vpack.c.b16 %v1459, %v1788
      %v1805 = vpack.c.b16 %v1461, %v1789
      %v1806 = vpack.c.b16 %v1463, %v1790
      %v1807 = vpack.c.b16 %v1465, %v1791
      %v1808 = vpack.c.b16 %v1467, %v1792
      %v1809 = vpack.c.b16 %v1469, %v1793
      %v1810 = vpack.c.b16 %v1471, %v1794
      %v1811 = vpack.c.b16 %v1473, %v1795
      %v1812 = vpack.c.b16 %v1475, %v1796
      %v1813 = vpack.c.b16 %v1477, %v1797
      %v1814 = vrot.slane %v1798, 1
      %v1815 = vrot.slane %v1542, 1
      %v1816 = vsel %vm1237, %v1814, %v1815
      %v1817 = vrot.slane %v1799, 1
      %v1818 = vrot.slane %v1543, 1
      %v1819 = vsel %vm1237, %v1817, %v1818
      %v1820 = vrot.slane %v1800, 1
      %v1821 = vrot.slane %v1544, 1
      %v1822 = vsel %vm1237, %v1820, %v1821
      %v1823 = vrot.slane %v1801, 1
      %v1824 = vrot.slane %v1545, 1
      %v1825 = vsel %vm1237, %v1823, %v1824
      %v1826 = vrot.slane %v1802, 1
      %v1827 = vrot.slane %v1546, 1
      %v1828 = vsel %vm1237, %v1826, %v1827
      %v1829 = vrot.slane %v1803, 1
      %v1830 = vrot.slane %v1547, 1
      %v1831 = vsel %vm1237, %v1829, %v1830
      %v1832 = vrot.slane %v1804, 1
      %v1833 = vrot.slane %v1548, 1
      %v1834 = vsel %vm1237, %v1832, %v1833
      %v1835 = vrot.slane %v1805, 1
      %v1836 = vrot.slane %v1549, 1
      %v1837 = vsel %vm1237, %v1835, %v1836
      %v1838 = vrot.slane %v1806, 1
      %v1839 = vrot.slane %v1550, 1
      %v1840 = vsel %vm1237, %v1838, %v1839
      %v1841 = vrot.slane %v1807, 1
      %v1842 = vrot.slane %v1551, 1
      %v1843 = vsel %vm1237, %v1841, %v1842
      %v1844 = vrot.slane %v1808, 1
      %v1845 = vrot.slane %v1552, 1
      %v1846 = vsel %vm1237, %v1844, %v1845
      %v1847 = vrot.slane %v1809, 1
      %v1848 = vrot.slane %v1553, 1
      %v1849 = vsel %vm1237, %v1847, %v1848
      %v1850 = vrot.slane %v1810, 1
      %v1851 = vrot.slane %v1554, 1
      %v1852 = vsel %vm1237, %v1850, %v1851
      %v1853 = vrot.slane %v1811, 1
      %v1854 = vrot.slane %v1555, 1
      %v1855 = vsel %vm1237, %v1853, %v1854
      %v1856 = vrot.slane %v1812, 1
      %v1857 = vrot.slane %v1556, 1
      %v1858 = vsel %vm1237, %v1856, %v1857
      %v1859 = vrot.slane %v1813, 1
      %v1860 = vrot.slane %v1557, 1
      %v1861 = vsel %vm1237, %v1859, %v1860
      %s1878 = scalar_lea.vmem %s1, 192
      %v1879 = vld [vmem:[%s1878] sm:$0xf]
      %v1880 = vld [vmem:[%s1878 + $0x4] sm:$0xf]
      %v1881 = vld [vmem:[%s1878 + $0x8] sm:$0xf]
      %v1882 = vld [vmem:[%s1878 + $0xc] sm:$0xf]
      %v1883 = vld [vmem:[%s1878 + $0x10] sm:$0xf]
      %v1884 = vld [vmem:[%s1878 + $0x14] sm:$0xf]
      %v1885 = vld [vmem:[%s1878 + $0x18] sm:$0xf]
      %v1886 = vld [vmem:[%s1878 + $0x1c] sm:$0xf]
      %v1887 = vld [vmem:[%s1878 + $0x20] sm:$0xf]
      %v1888 = vld [vmem:[%s1878 + $0x24] sm:$0xf]
      %v1889 = vld [vmem:[%s1878 + $0x28] sm:$0xf]
      %v1890 = vld [vmem:[%s1878 + $0x2c] sm:$0xf]
      %v1891 = vld [vmem:[%s1878 + $0x30] sm:$0xf]
      %v1892 = vld [vmem:[%s1878 + $0x34] sm:$0xf]
      %v1893 = vld [vmem:[%s1878 + $0x38] sm:$0xf]
      %v1894 = vld [vmem:[%s1878 + $0x3c] sm:$0xf]
      %v1895 = vld [vmem:[%s1878 + $0x40] sm:$0xf]
      %v1896 = vld [vmem:[%s1878 + $0x44] sm:$0xf]
      %v1897 = vld [vmem:[%s1878 + $0x48] sm:$0xf]
      %v1898 = vld [vmem:[%s1878 + $0x4c] sm:$0xf]
      %v1899 = vld [vmem:[%s1878 + $0x50] sm:$0xf]
      %v1900 = vld [vmem:[%s1878 + $0x54] sm:$0xf]
      %v1901 = vld [vmem:[%s1878 + $0x58] sm:$0xf]
      %v1902 = vld [vmem:[%s1878 + $0x5c] sm:$0xf]
      %v1903 = vld [vmem:[%s1878 + $0x60] sm:$0xf]
      %v1904 = vld [vmem:[%s1878 + $0x64] sm:$0xf]
      %v1905 = vld [vmem:[%s1878 + $0x68] sm:$0xf]
      %v1906 = vld [vmem:[%s1878 + $0x6c] sm:$0xf]
      %v1907 = vld [vmem:[%s1878 + $0x70] sm:$0xf]
      %v1908 = vld [vmem:[%s1878 + $0x74] sm:$0xf]
      %v1909 = vld [vmem:[%s1878 + $0x78] sm:$0xf]
      %v1910 = vld [vmem:[%s1878 + $0x7c] sm:$0xf]
      %v1911 = vld [vmem:[%s1878 + $0x80] sm:$0xf]
      %v1912 = vld [vmem:[%s1878 + $0x84] sm:$0xf]
      %v1913 = vld [vmem:[%s1878 + $0x88] sm:$0xf]
      %v1914 = vld [vmem:[%s1878 + $0x8c] sm:$0xf]
      %v1915 = vld [vmem:[%s1878 + $0x90] sm:$0xf]
      %v1916 = vld [vmem:[%s1878 + $0x94] sm:$0xf]
      %v1917 = vld [vmem:[%s1878 + $0x98] sm:$0xf]
      %v1918 = vld [vmem:[%s1878 + $0x9c] sm:$0xf]
      %v1919 = vld [vmem:[%s1878 + $0xa0] sm:$0xf]
      %v1920 = vld [vmem:[%s1878 + $0xa4] sm:$0xf]
      %v1921 = vld [vmem:[%s1878 + $0xa8] sm:$0xf]
      %v1922 = vld [vmem:[%s1878 + $0xac] sm:$0xf]
      %v1923 = vld [vmem:[%s1878 + $0xb0] sm:$0xf]
      %v1924 = vld [vmem:[%s1878 + $0xb4] sm:$0xf]
      %v1925 = vld [vmem:[%s1878 + $0xb8] sm:$0xf]
      %v1926 = vld [vmem:[%s1878 + $0xbc] sm:$0xf]
      %v1975 = vunpack.c.l.b16 %v1879
      %v1976 = vunpack.c.l.b16 %v1880
      %v1977 = vunpack.c.l.b16 %v1881
      %v1978 = vunpack.c.l.b16 %v1882
      %v1979 = vunpack.c.l.b16 %v1883
      %v1980 = vunpack.c.l.b16 %v1884
      %v1981 = vunpack.c.l.b16 %v1885
      %v1982 = vunpack.c.l.b16 %v1886
      %v1983 = vunpack.c.l.b16 %v1887
      %v1984 = vunpack.c.l.b16 %v1888
      %v1985 = vunpack.c.l.b16 %v1889
      %v1986 = vunpack.c.l.b16 %v1890
      %v1987 = vunpack.c.l.b16 %v1891
      %v1988 = vunpack.c.l.b16 %v1892
      %v1989 = vunpack.c.l.b16 %v1893
      %v1990 = vunpack.c.l.b16 %v1894
      %v1991 = vunpack.c.l.b16 %v1895
      %v1992 = vunpack.c.l.b16 %v1896
      %v1993 = vunpack.c.l.b16 %v1897
      %v1994 = vunpack.c.l.b16 %v1898
      %v1995 = vunpack.c.l.b16 %v1899
      %v1996 = vunpack.c.l.b16 %v1900
      %v1997 = vunpack.c.l.b16 %v1901
      %v1998 = vunpack.c.l.b16 %v1902
      %v1999 = vunpack.c.l.b16 %v1903
      %v2000 = vunpack.c.l.b16 %v1904
      %v2001 = vunpack.c.l.b16 %v1905
      %v2002 = vunpack.c.l.b16 %v1906
      %v2003 = vunpack.c.l.b16 %v1907
      %v2004 = vunpack.c.l.b16 %v1908
      %v2005 = vunpack.c.l.b16 %v1909
      %v2006 = vunpack.c.l.b16 %v1910
      %v2007 = vunpack.c.l.b16 %v1911
      %v2008 = vunpack.c.l.b16 %v1912
      %v2009 = vunpack.c.l.b16 %v1913
      %v2010 = vunpack.c.l.b16 %v1914
      %v2011 = vunpack.c.l.b16 %v1915
      %v2012 = vunpack.c.l.b16 %v1916
      %v2013 = vunpack.c.l.b16 %v1917
      %v2014 = vunpack.c.l.b16 %v1918
      %v2015 = vunpack.c.l.b16 %v1919
      %v2016 = vunpack.c.l.b16 %v1920
      %v2017 = vunpack.c.l.b16 %v1921
      %v2018 = vunpack.c.l.b16 %v1922
      %v2019 = vunpack.c.l.b16 %v1923
      %v2020 = vunpack.c.l.b16 %v1924
      %v2021 = vunpack.c.l.b16 %v1925
      %v2022 = vunpack.c.l.b16 %v1926
      %v2023 = vpack.c.b16 %v1976, %v1975
      %v2024 = vpack.c.b16 %v1978, %v1977
      %v2025 = vpack.c.b16 %v1980, %v1979
      %v2026 = vpack.c.b16 %v1982, %v1981
      %v2027 = vpack.c.b16 %v1984, %v1983
      %v2028 = vpack.c.b16 %v1986, %v1985
      %v2029 = vpack.c.b16 %v1988, %v1987
      %v2030 = vpack.c.b16 %v1990, %v1989
      %v2031 = vpack.c.b16 %v1992, %v1991
      %v2032 = vpack.c.b16 %v1994, %v1993
      %v2033 = vpack.c.b16 %v1996, %v1995
      %v2034 = vpack.c.b16 %v1998, %v1997
      %v2035 = vpack.c.b16 %v2000, %v1999
      %v2036 = vpack.c.b16 %v2002, %v2001
      %v2037 = vpack.c.b16 %v2004, %v2003
      %v2038 = vpack.c.b16 %v2006, %v2005
      %v2039 = vpack.c.b16 %v2008, %v2007
      %v2040 = vpack.c.b16 %v2010, %v2009
      %v2041 = vpack.c.b16 %v2012, %v2011
      %v2042 = vpack.c.b16 %v2014, %v2013
      %v2043 = vpack.c.b16 %v2016, %v2015
      %v2044 = vpack.c.b16 %v2018, %v2017
      %v2045 = vpack.c.b16 %v2020, %v2019
      %v2046 = vpack.c.b16 %v2022, %v2021
      %2071 = vmatprep.subr.bf16.mxu0 0
      %2072 = vmatpush1.bf16.msra.mxu0 %v2023
      %2073 = vmatprep.subr.bf16.mxu0 0
      %2074 = vmatpush1.bf16.msra.mxu0 %v2024
      %2075 = vmatprep.subr.bf16.mxu0 0
      %2076 = vmatpush1.bf16.msra.mxu0 %v2025
      %2077 = vmatprep.subr.bf16.mxu0 0
      %2078 = vmatpush1.bf16.msra.mxu0 %v2026
      %2079 = vmatprep.subr.bf16.mxu0 0
      %2080 = vmatpush1.bf16.msra.mxu0 %v2027
      %2081 = vmatprep.subr.bf16.mxu0 0
      %2082 = vmatpush1.bf16.msra.mxu0 %v2028
      %2083 = vmatprep.subr.bf16.mxu0 0
      %2084 = vmatpush1.bf16.msra.mxu0 %v2029
      %2085 = vmatprep.subr.bf16.mxu0 0
      %2086 = vmatpush1.bf16.msra.mxu0 %v2030
      %2087 = vmatprep.subr.bf16.mxu0 0
      %2088 = vmatpush1.bf16.msra.mxu0 %v2031
      %2089 = vmatprep.subr.bf16.mxu0 0
      %2090 = vmatpush1.bf16.msra.mxu0 %v2032
      %2091 = vmatprep.subr.bf16.mxu0 0
      %2092 = vmatpush1.bf16.msra.mxu0 %v2033
      %2093 = vmatprep.subr.bf16.mxu0 0
      %2094 = vmatpush1.bf16.msra.mxu0 %v2034
      %2095 = vmatprep.subr.bf16.mxu0 0
      %2096 = vmatpush1.bf16.msra.mxu0 %v2035
      %2097 = vmatprep.subr.bf16.mxu0 0
      %2098 = vmatpush1.bf16.msra.mxu0 %v2036
      %2099 = vmatprep.subr.bf16.mxu0 0
      %2100 = vmatpush1.bf16.msra.mxu0 %v2037
      %2101 = vmatprep.subr.bf16.mxu0 0
      %2102 = vmatpush1.bf16.msra.mxu0 %v2038
      %2103 = vmatprep.mubr.bf16.mxu0 %v1569
      %2104 = vmatmul.mubr.bf16.gmra.mrb[0].mxu0 %v1478
      %v2105 = vpop.f32.mrb[0].mxu0
      %v2106 = vadd.f32 0.0, %v2105
      %v2107 = vpop.f32.mrb[0].mxu0
      %v2108 = vpop.f32.mrb[0].mxu0
      %v2109 = vadd.f32 0.0, %v2108
      %v2110 = vpop.f32.mrb[0].mxu0
      %2111 = vmatprep.mubr.bf16.mxu0 %v1581
      %2112 = vmatmul.mubr.bf16.gmra.mrb[0].mxu0 %v1479
      %v2113 = vpop.f32.mrb[0].mxu0
      %v2114 = vadd.f32 0.0, %v2113
      %v2115 = vpop.f32.mrb[0].mxu0
      %v2116 = vpop.f32.mrb[0].mxu0
      %v2117 = vadd.f32 0.0, %v2116
      %v2118 = vpop.f32.mrb[0].mxu0
      %2119 = vmatprep.mubr.bf16.mxu0 %v1593
      %2120 = vmatmul.mubr.bf16.gmra.mrb[0].mxu0 %v1480
      %v2121 = vpop.f32.mrb[0].mxu0
      %v2122 = vadd.f32 0.0, %v2121
      %v2123 = vpop.f32.mrb[0].mxu0
      %v2124 = vpop.f32.mrb[0].mxu0
      %v2125 = vadd.f32 0.0, %v2124
      %v2126 = vpop.f32.mrb[0].mxu0
      %2127 = vmatprep.mubr.bf16.mxu0 %v1605
      %2128 = vmatmul.mubr.bf16.gmra.mrb[0].mxu0 %v1481
      %v2129 = vpop.f32.mrb[0].mxu0
      %v2130 = vadd.f32 0.0, %v2129
      %v2131 = vpop.f32.mrb[0].mxu0
      %v2132 = vpop.f32.mrb[0].mxu0
      %v2133 = vadd.f32 0.0, %v2132
      %v2134 = vpop.f32.mrb[0].mxu0
      %2135 = vmatprep.mubr.bf16.mxu0 %v1617
      %2136 = vmatmul.mubr.bf16.gmra.mrb[0].mxu0 %v1482
      %v2137 = vpop.f32.mrb[0].mxu0
      %v2138 = vadd.f32 0.0, %v2137
      %v2139 = vpop.f32.mrb[0].mxu0
      %v2140 = vpop.f32.mrb[0].mxu0
      %v2141 = vadd.f32 0.0, %v2140
      %v2142 = vpop.f32.mrb[0].mxu0
      %2143 = vmatprep.mubr.bf16.mxu0 %v1629
      %2144 = vmatmul.mubr.bf16.gmra.mrb[0].mxu0 %v1483
      %v2145 = vpop.f32.mrb[0].mxu0
      %v2146 = vadd.f32 0.0, %v2145
      %v2147 = vpop.f32.mrb[0].mxu0
      %v2148 = vpop.f32.mrb[0].mxu0
      %v2149 = vadd.f32 0.0, %v2148
      %v2150 = vpop.f32.mrb[0].mxu0
      %2151 = vmatprep.mubr.bf16.mxu0 %v1641
      %2152 = vmatmul.mubr.bf16.gmra.mrb[0].mxu0 %v1484
      %v2153 = vpop.f32.mrb[0].mxu0
      %v2154 = vadd.f32 0.0, %v2153
      %v2155 = vpop.f32.mrb[0].mxu0
      %v2156 = vpop.f32.mrb[0].mxu0
      %v2157 = vadd.f32 0.0, %v2156
      %v2158 = vpop.f32.mrb[0].mxu0
      %2159 = vmatprep.mubr.bf16.mxu0 %v1653
      %2160 = vmatmul.mubr.bf16.gmra.mrb[0].mxu0 %v1485
      %v2161 = vpop.f32.mrb[0].mxu0
      %v2162 = vadd.f32 0.0, %v2161
      %v2163 = vpop.f32.mrb[0].mxu0
      %v2164 = vpop.f32.mrb[0].mxu0
      %v2165 = vadd.f32 0.0, %v2164
      %v2166 = vpop.f32.mrb[0].mxu0
      %2167 = vmatprep.mubr.bf16.mxu0 %v1665
      %2168 = vmatmul.mubr.bf16.gmra.mrb[0].mxu0 %v1486
      %v2169 = vpop.f32.mrb[0].mxu0
      %v2170 = vadd.f32 0.0, %v2169
      %v2171 = vpop.f32.mrb[0].mxu0
      %v2172 = vpop.f32.mrb[0].mxu0
      %v2173 = vadd.f32 0.0, %v2172
      %v2174 = vpop.f32.mrb[0].mxu0
      %2175 = vmatprep.mubr.bf16.mxu0 %v1677
      %2176 = vmatmul.mubr.bf16.gmra.mrb[0].mxu0 %v1487
      %v2177 = vpop.f32.mrb[0].mxu0
      %v2178 = vadd.f32 0.0, %v2177
      %v2179 = vpop.f32.mrb[0].mxu0
      %v2180 = vpop.f32.mrb[0].mxu0
      %v2181 = vadd.f32 0.0, %v2180
      %v2182 = vpop.f32.mrb[0].mxu0
      %2183 = vmatprep.mubr.bf16.mxu0 %v1689
      %2184 = vmatmul.mubr.bf16.gmra.mrb[0].mxu0 %v1488
      %v2185 = vpop.f32.mrb[0].mxu0
      %v2186 = vadd.f32 0.0, %v2185
      %v2187 = vpop.f32.mrb[0].mxu0
      %v2188 = vpop.f32.mrb[0].mxu0
      %v2189 = vadd.f32 0.0, %v2188
      %v2190 = vpop.f32.mrb[0].mxu0
      %2191 = vmatprep.mubr.bf16.mxu0 %v1701
      %2192 = vmatmul.mubr.bf16.gmra.mrb[0].mxu0 %v1489
      %v2193 = vpop.f32.mrb[0].mxu0
      %v2194 = vadd.f32 0.0, %v2193
      %v2195 = vpop.f32.mrb[0].mxu0
      %v2196 = vpop.f32.mrb[0].mxu0
      %v2197 = vadd.f32 0.0, %v2196
      %v2198 = vpop.f32.mrb[0].mxu0
      %2199 = vmatprep.mubr.bf16.mxu0 %v1713
      %2200 = vmatmul.mubr.bf16.gmra.mrb[0].mxu0 %v1490
      %v2201 = vpop.f32.mrb[0].mxu0
      %v2202 = vadd.f32 0.0, %v2201
      %v2203 = vpop.f32.mrb[0].mxu0
      %v2204 = vpop.f32.mrb[0].mxu0
      %v2205 = vadd.f32 0.0, %v2204
      %v2206 = vpop.f32.mrb[0].mxu0
      %2207 = vmatprep.mubr.bf16.mxu0 %v1725
      %2208 = vmatmul.mubr.bf16.gmra.mrb[0].mxu0 %v1491
      %v2209 = vpop.f32.mrb[0].mxu0
      %v2210 = vadd.f32 0.0, %v2209
      %v2211 = vpop.f32.mrb[0].mxu0
      %v2212 = vpop.f32.mrb[0].mxu0
      %v2213 = vadd.f32 0.0, %v2212
      %v2214 = vpop.f32.mrb[0].mxu0
      %2215 = vmatprep.mubr.bf16.mxu0 %v1737
      %2216 = vmatmul.mubr.bf16.gmra.mrb[0].mxu0 %v1492
      %v2217 = vpop.f32.mrb[0].mxu0
      %v2218 = vadd.f32 0.0, %v2217
      %v2219 = vpop.f32.mrb[0].mxu0
      %v2220 = vpop.f32.mrb[0].mxu0
      %v2221 = vadd.f32 0.0, %v2220
      %v2222 = vpop.f32.mrb[0].mxu0
      %2223 = vmatprep.mubr.bf16.mxu0 %v1749
      %2224 = vmatmul.mubr.bf16.gmra.mrb[0].mxu0 %v1493
      %v2225 = vpop.f32.mrb[0].mxu0
      %v2226 = vadd.f32 0.0, %v2225
      %v2227 = vpop.f32.mrb[0].mxu0
      %v2228 = vpop.f32.mrb[0].mxu0
      %v2229 = vadd.f32 0.0, %v2228
      %v2230 = vpop.f32.mrb[0].mxu0
      %2231 = vdwg.mxu0
      %2232 = vmatprep.subr.bf16.mxu0 0
      %2233 = vmatpush1.bf16.msra.mxu0 %v2039
      %2234 = vmatprep.subr.bf16.mxu0 0
      %2235 = vmatpush1.bf16.msra.mxu0 %v2040
      %2236 = vmatprep.subr.bf16.mxu0 0
      %2237 = vmatpush1.bf16.msra.mxu0 %v2041
      %2238 = vmatprep.subr.bf16.mxu0 0
      %2239 = vmatpush1.bf16.msra.mxu0 %v2042
      %2240 = vmatprep.subr.bf16.mxu0 0
      %2241 = vmatpush1.bf16.msra.mxu0 %v2043
      %2242 = vmatprep.subr.bf16.mxu0 0
      %2243 = vmatpush1.bf16.msra.mxu0 %v2044
      %2244 = vmatprep.subr.bf16.mxu0 0
      %2245 = vmatpush1.bf16.msra.mxu0 %v2045
      %2246 = vmatprep.subr.bf16.mxu0 0
      %2247 = vmatpush1.bf16.msra.mxu0 %v2046
      %2248 = vmatprep.subr.bf16.mxu0 0
      %2249 = vmatpush1.bf16.msra.mxu0 0
      %2250 = vmatprep.subr.bf16.mxu0 0
      %2251 = vmatpush1.bf16.msra.mxu0 0
      %2252 = vmatprep.subr.bf16.mxu0 0
      %2253 = vmatpush1.bf16.msra.mxu0 0
      %2254 = vmatprep.subr.bf16.mxu0 0
      %2255 = vmatpush1.bf16.msra.mxu0 0
      %2256 = vmatprep.subr.bf16.mxu0 0
      %2257 = vmatpush1.bf16.msra.mxu0 0
      %2258 = vmatprep.subr.bf16.mxu0 0
      %2259 = vmatpush1.bf16.msra.mxu0 0
      %2260 = vmatprep.subr.bf16.mxu0 0
      %2261 = vmatpush1.bf16.msra.mxu0 0
      %2262 = vmatprep.subr.bf16.mxu0 0
      %2263 = vmatpush1.bf16.msra.mxu0 0
      %2264 = vmatprep.mubr.bf16.mxu0 0
      %2265 = vmatmul.mubr.bf16.gmra.mrb[0].mxu0 %v1816
      %v2266 = vpop.f32.mrb[0].mxu0
      %v2267 = vadd.f32 %v2106, %v2266
      %v2268 = vpop.f32.mrb[0].mxu0
      %v2269 = vpop.f32.mrb[0].mxu0
      %v2270 = vadd.f32 %v2109, %v2269
      %v2271 = vpop.f32.mrb[0].mxu0
      %2272 = vmatprep.mubr.bf16.mxu0 0
      %2273 = vmatmul.mubr.bf16.gmra.mrb[0].mxu0 %v1819
      %v2274 = vpop.f32.mrb[0].mxu0
      %v2275 = vadd.f32 %v2114, %v2274
      %v2276 = vpop.f32.mrb[0].mxu0
      %v2277 = vpop.f32.mrb[0].mxu0
      %v2278 = vadd.f32 %v2117, %v2277
      %v2279 = vpop.f32.mrb[0].mxu0
      %2280 = vmatprep.mubr.bf16.mxu0 0
      %2281 = vmatmul.mubr.bf16.gmra.mrb[0].mxu0 %v1822
      %v2282 = vpop.f32.mrb[0].mxu0
      %v2283 = vadd.f32 %v2122, %v2282
      %v2284 = vpop.f32.mrb[0].mxu0
      %v2285 = vpop.f32.mrb[0].mxu0
      %v2286 = vadd.f32 %v2125, %v2285
      %v2287 = vpop.f32.mrb[0].mxu0
      %2288 = vmatprep.mubr.bf16.mxu0 0
      %2289 = vmatmul.mubr.bf16.gmra.mrb[0].mxu0 %v1825
      %v2290 = vpop.f32.mrb[0].mxu0
      %v2291 = vadd.f32 %v2130, %v2290
      %v2292 = vpop.f32.mrb[0].mxu0
      %v2293 = vpop.f32.mrb[0].mxu0
      %v2294 = vadd.f32 %v2133, %v2293
      %v2295 = vpop.f32.mrb[0].mxu0
      %2296 = vmatprep.mubr.bf16.mxu0 0
      %2297 = vmatmul.mubr.bf16.gmra.mrb[0].mxu0 %v1828
      %v2298 = vpop.f32.mrb[0].mxu0
      %v2299 = vadd.f32 %v2138, %v2298
      %v2300 = vpop.f32.mrb[0].mxu0
      %v2301 = vpop.f32.mrb[0].mxu0
      %v2302 = vadd.f32 %v2141, %v2301
      %v2303 = vpop.f32.mrb[0].mxu0
      %2304 = vmatprep.mubr.bf16.mxu0 0
      %2305 = vmatmul.mubr.bf16.gmra.mrb[0].mxu0 %v1831
      %v2306 = vpop.f32.mrb[0].mxu0
      %v2307 = vadd.f32 %v2146, %v2306
      %v2308 = vpop.f32.mrb[0].mxu0
      %v2309 = vpop.f32.mrb[0].mxu0
      %v2310 = vadd.f32 %v2149, %v2309
      %v2311 = vpop.f32.mrb[0].mxu0
      %2312 = vmatprep.mubr.bf16.mxu0 0
      %2313 = vmatmul.mubr.bf16.gmra.mrb[0].mxu0 %v1834
      %v2314 = vpop.f32.mrb[0].mxu0
      %v2315 = vadd.f32 %v2154, %v2314
      %v2316 = vpop.f32.mrb[0].mxu0
      %v2317 = vpop.f32.mrb[0].mxu0
      %v2318 = vadd.f32 %v2157, %v2317
      %v2319 = vpop.f32.mrb[0].mxu0
      %2320 = vmatprep.mubr.bf16.mxu0 0
      %2321 = vmatmul.mubr.bf16.gmra.mrb[0].mxu0 %v1837
      %v2322 = vpop.f32.mrb[0].mxu0
      %v2323 = vadd.f32 %v2162, %v2322
      %v2324 = vpop.f32.mrb[0].mxu0
      %v2325 = vpop.f32.mrb[0].mxu0
      %v2326 = vadd.f32 %v2165, %v2325
      %v2327 = vpop.f32.mrb[0].mxu0
      %2328 = vmatprep.mubr.bf16.mxu0 0
      %2329 = vmatmul.mubr.bf16.gmra.mrb[0].mxu0 %v1840
      %v2330 = vpop.f32.mrb[0].mxu0
      %v2331 = vadd.f32 %v2170, %v2330
      %v2332 = vpop.f32.mrb[0].mxu0
      %v2333 = vpop.f32.mrb[0].mxu0
      %v2334 = vadd.f32 %v2173, %v2333
      %v2335 = vpop.f32.mrb[0].mxu0
      %2336 = vmatprep.mubr.bf16.mxu0 0
      %2337 = vmatmul.mubr.bf16.gmra.mrb[0].mxu0 %v1843
      %v2338 = vpop.f32.mrb[0].mxu0
      %v2339 = vadd.f32 %v2178, %v2338
      %v2340 = vpop.f32.mrb[0].mxu0
      %v2341 = vpop.f32.mrb[0].mxu0
      %v2342 = vadd.f32 %v2181, %v2341
      %v2343 = vpop.f32.mrb[0].mxu0
      %2344 = vmatprep.mubr.bf16.mxu0 0
      %2345 = vmatmul.mubr.bf16.gmra.mrb[0].mxu0 %v1846
      %v2346 = vpop.f32.mrb[0].mxu0
      %v2347 = vadd.f32 %v2186, %v2346
      %v2348 = vpop.f32.mrb[0].mxu0
      %v2349 = vpop.f32.mrb[0].mxu0
      %v2350 = vadd.f32 %v2189, %v2349
      %v2351 = vpop.f32.mrb[0].mxu0
      %2352 = vmatprep.mubr.bf16.mxu0 0
      %2353 = vmatmul.mubr.bf16.gmra.mrb[0].mxu0 %v1849
      %v2354 = vpop.f32.mrb[0].mxu0
      %v2355 = vadd.f32 %v2194, %v2354
      %v2356 = vpop.f32.mrb[0].mxu0
      %v2357 = vpop.f32.mrb[0].mxu0
      %v2358 = vadd.f32 %v2197, %v2357
      %v2359 = vpop.f32.mrb[0].mxu0
      %2360 = vmatprep.mubr.bf16.mxu0 0
      %2361 = vmatmul.mubr.bf16.gmra.mrb[0].mxu0 %v1852
      %v2362 = vpop.f32.mrb[0].mxu0
      %v2363 = vadd.f32 %v2202, %v2362
      %v2364 = vpop.f32.mrb[0].mxu0
      %v2365 = vpop.f32.mrb[0].mxu0
      %v2366 = vadd.f32 %v2205, %v2365
      %v2367 = vpop.f32.mrb[0].mxu0
      %2368 = vmatprep.mubr.bf16.mxu0 0
      %2369 = vmatmul.mubr.bf16.gmra.mrb[0].mxu0 %v1855
      %v2370 = vpop.f32.mrb[0].mxu0
      %v2371 = vadd.f32 %v2210, %v2370
      %v2372 = vpop.f32.mrb[0].mxu0
      %v2373 = vpop.f32.mrb[0].mxu0
      %v2374 = vadd.f32 %v2213, %v2373
      %v2375 = vpop.f32.mrb[0].mxu0
      %2376 = vmatprep.mubr.bf16.mxu0 0
      %2377 = vmatmul.mubr.bf16.gmra.mrb[0].mxu0 %v1858
      %v2378 = vpop.f32.mrb[0].mxu0
      %v2379 = vadd.f32 %v2218, %v2378
      %v2380 = vpop.f32.mrb[0].mxu0
      %v2381 = vpop.f32.mrb[0].mxu0
      %v2382 = vadd.f32 %v2221, %v2381
      %v2383 = vpop.f32.mrb[0].mxu0
      %2384 = vmatprep.mubr.bf16.mxu0 0
      %2385 = vmatmul.mubr.bf16.gmra.mrb[0].mxu0 %v1861
      %v2386 = vpop.f32.mrb[0].mxu0
      %v2387 = vadd.f32 %v2226, %v2386
      %v2388 = vpop.f32.mrb[0].mxu0
      %v2389 = vpop.f32.mrb[0].mxu0
      %v2390 = vadd.f32 %v2229, %v2389
      %v2391 = vpop.f32.mrb[0].mxu0
      %2392 = vdwg.mxu0
      %v2441 = vunpack.c.l.b16 %v1302
      %v2442 = vunpack.c.l.b16 %v1303
      %v2443 = vunpack.c.l.b16 %v1304
      %v2444 = vunpack.c.l.b16 %v1305
      %v2445 = vunpack.c.l.b16 %v1306
      %v2446 = vunpack.c.l.b16 %v1307
      %v2447 = vunpack.c.l.b16 %v1308
      %v2448 = vunpack.c.l.b16 %v1309
      %v2449 = vunpack.c.l.b16 %v1310
      %v2450 = vunpack.c.l.b16 %v1311
      %v2451 = vunpack.c.l.b16 %v1312
      %v2452 = vunpack.c.l.b16 %v1313
      %v2453 = vunpack.c.l.b16 %v1314
      %v2454 = vunpack.c.l.b16 %v1315
      %v2455 = vunpack.c.l.b16 %v1316
      %v2456 = vunpack.c.l.b16 %v1317
      %v2457 = vunpack.c.l.b16 %v1318
      %v2458 = vunpack.c.l.b16 %v1319
      %v2459 = vunpack.c.l.b16 %v1320
      %v2460 = vunpack.c.l.b16 %v1321
      %v2461 = vunpack.c.l.b16 %v1322
      %v2462 = vunpack.c.l.b16 %v1323
      %v2463 = vunpack.c.l.b16 %v1324
      %v2464 = vunpack.c.l.b16 %v1325
      %v2465 = vunpack.c.l.b16 %v1326
      %v2466 = vunpack.c.l.b16 %v1327
      %v2467 = vunpack.c.l.b16 %v1328
      %v2468 = vunpack.c.l.b16 %v1329
      %v2469 = vunpack.c.l.b16 %v1330
      %v2470 = vunpack.c.l.b16 %v1331
      %v2471 = vunpack.c.l.b16 %v1332
      %v2472 = vunpack.c.l.b16 %v1333
      %v2473 = vunpack.c.l.b16 %v1334
      %v2474 = vunpack.c.l.b16 %v1335
      %v2475 = vunpack.c.l.b16 %v1336
      %v2476 = vunpack.c.l.b16 %v1337
      %v2477 = vunpack.c.l.b16 %v1338
      %v2478 = vunpack.c.l.b16 %v1339
      %v2479 = vunpack.c.l.b16 %v1340
      %v2480 = vunpack.c.l.b16 %v1341
      %v2481 = vunpack.c.l.b16 %v1342
      %v2482 = vunpack.c.l.b16 %v1343
      %v2483 = vunpack.c.l.b16 %v1344
      %v2484 = vunpack.c.l.b16 %v1345
      %v2485 = vunpack.c.l.b16 %v1346
      %v2486 = vunpack.c.l.b16 %v1347
      %v2487 = vunpack.c.l.b16 %v1348
      %v2488 = vunpack.c.l.b16 %v1349
      %v2489 = vpack.c.b16 %v2442, %v2441
      %v2490 = vpack.c.b16 %v2444, %v2443
      %v2491 = vpack.c.b16 %v2446, %v2445
      %v2492 = vpack.c.b16 %v2448, %v2447
      %v2493 = vpack.c.b16 %v2450, %v2449
      %v2494 = vpack.c.b16 %v2452, %v2451
      %v2495 = vpack.c.b16 %v2454, %v2453
      %v2496 = vpack.c.b16 %v2456, %v2455
      %v2497 = vpack.c.b16 %v2458, %v2457
      %v2498 = vpack.c.b16 %v2460, %v2459
      %v2499 = vpack.c.b16 %v2462, %v2461
      %v2500 = vpack.c.b16 %v2464, %v2463
      %v2501 = vpack.c.b16 %v2466, %v2465
      %v2502 = vpack.c.b16 %v2468, %v2467
      %v2503 = vpack.c.b16 %v2470, %v2469
      %v2504 = vpack.c.b16 %v2472, %v2471
      %v2505 = vpack.c.b16 %v2474, %v2473
      %v2506 = vpack.c.b16 %v2476, %v2475
      %v2507 = vpack.c.b16 %v2478, %v2477
      %v2508 = vpack.c.b16 %v2480, %v2479
      %v2509 = vpack.c.b16 %v2482, %v2481
      %v2510 = vpack.c.b16 %v2484, %v2483
      %v2511 = vpack.c.b16 %v2486, %v2485
      %v2512 = vpack.c.b16 %v2488, %v2487
      %2537 = vmatprep.subr.bf16.mxu0 0
      %2538 = vmatpush1.bf16.msra.mxu0 %v2489
      %2539 = vmatprep.subr.bf16.mxu0 0
      %2540 = vmatpush1.bf16.msra.mxu0 %v2490
      %2541 = vmatprep.subr.bf16.mxu0 0
      %2542 = vmatpush1.bf16.msra.mxu0 %v2491
      %2543 = vmatprep.subr.bf16.mxu0 0
      %2544 = vmatpush1.bf16.msra.mxu0 %v2492
      %2545 = vmatprep.subr.bf16.mxu0 0
      %2546 = vmatpush1.bf16.msra.mxu0 %v2493
      %2547 = vmatprep.subr.bf16.mxu0 0
      %2548 = vmatpush1.bf16.msra.mxu0 %v2494
      %2549 = vmatprep.subr.bf16.mxu0 0
      %2550 = vmatpush1.bf16.msra.mxu0 %v2495
      %2551 = vmatprep.subr.bf16.mxu0 0
      %2552 = vmatpush1.bf16.msra.mxu0 %v2496
      %2553 = vmatprep.subr.bf16.mxu0 0
      %2554 = vmatpush1.bf16.msra.mxu0 %v2497
      %2555 = vmatprep.subr.bf16.mxu0 0
      %2556 = vmatpush1.bf16.msra.mxu0 %v2498
      %2557 = vmatprep.subr.bf16.mxu0 0
      %2558 = vmatpush1.bf16.msra.mxu0 %v2499
      %2559 = vmatprep.subr.bf16.mxu0 0
      %2560 = vmatpush1.bf16.msra.mxu0 %v2500
      %2561 = vmatprep.subr.bf16.mxu0 0
      %2562 = vmatpush1.bf16.msra.mxu0 %v2501
      %2563 = vmatprep.subr.bf16.mxu0 0
      %2564 = vmatpush1.bf16.msra.mxu0 %v2502
      %2565 = vmatprep.subr.bf16.mxu0 0
      %2566 = vmatpush1.bf16.msra.mxu0 %v2503
      %2567 = vmatprep.subr.bf16.mxu0 0
      %2568 = vmatpush1.bf16.msra.mxu0 %v2504
      %2569 = vmatprep.mubr.bf16.mxu0 %v992
      %2570 = vmatmul.mubr.bf16.gmra.mrb[0].mxu0 %v900
      %v2571 = vpop.f32.mrb[0].mxu0
      %v2572 = vadd.f32 %v2267, %v2571
      %v2573 = vpop.f32.mrb[0].mxu0
      %v2574 = vpop.f32.mrb[0].mxu0
      %v2575 = vadd.f32 %v2270, %v2574
      %v2576 = vpop.f32.mrb[0].mxu0
      %2577 = vmatprep.mubr.bf16.mxu0 %v1004
      %2578 = vmatmul.mubr.bf16.gmra.mrb[0].mxu0 %v901
      %v2579 = vpop.f32.mrb[0].mxu0
      %v2580 = vadd.f32 %v2275, %v2579
      %v2581 = vpop.f32.mrb[0].mxu0
      %v2582 = vpop.f32.mrb[0].mxu0
      %v2583 = vadd.f32 %v2278, %v2582
      %v2584 = vpop.f32.mrb[0].mxu0
      %2585 = vmatprep.mubr.bf16.mxu0 %v1016
      %2586 = vmatmul.mubr.bf16.gmra.mrb[0].mxu0 %v902
      %v2587 = vpop.f32.mrb[0].mxu0
      %v2588 = vadd.f32 %v2283, %v2587
      %v2589 = vpop.f32.mrb[0].mxu0
      %v2590 = vpop.f32.mrb[0].mxu0
      %v2591 = vadd.f32 %v2286, %v2590
      %v2592 = vpop.f32.mrb[0].mxu0
      %2593 = vmatprep.mubr.bf16.mxu0 %v1028
      %2594 = vmatmul.mubr.bf16.gmra.mrb[0].mxu0 %v903
      %v2595 = vpop.f32.mrb[0].mxu0
      %v2596 = vadd.f32 %v2291, %v2595
      %v2597 = vpop.f32.mrb[0].mxu0
      %v2598 = vpop.f32.mrb[0].mxu0
      %v2599 = vadd.f32 %v2294, %v2598
      %v2600 = vpop.f32.mrb[0].mxu0
      %2601 = vmatprep.mubr.bf16.mxu0 %v1040
      %2602 = vmatmul.mubr.bf16.gmra.mrb[0].mxu0 %v904
      %v2603 = vpop.f32.mrb[0].mxu0
      %v2604 = vadd.f32 %v2299, %v2603
      %v2605 = vpop.f32.mrb[0].mxu0
      %v2606 = vpop.f32.mrb[0].mxu0
      %v2607 = vadd.f32 %v2302, %v2606
      %v2608 = vpop.f32.mrb[0].mxu0
      %2609 = vmatprep.mubr.bf16.mxu0 %v1052
      %2610 = vmatmul.mubr.bf16.gmra.mrb[0].mxu0 %v905
      %v2611 = vpop.f32.mrb[0].mxu0
      %v2612 = vadd.f32 %v2307, %v2611
      %v2613 = vpop.f32.mrb[0].mxu0
      %v2614 = vpop.f32.mrb[0].mxu0
      %v2615 = vadd.f32 %v2310, %v2614
      %v2616 = vpop.f32.mrb[0].mxu0
      %2617 = vmatprep.mubr.bf16.mxu0 %v1064
      %2618 = vmatmul.mubr.bf16.gmra.mrb[0].mxu0 %v906
      %v2619 = vpop.f32.mrb[0].mxu0
      %v2620 = vadd.f32 %v2315, %v2619
      %v2621 = vpop.f32.mrb[0].mxu0
      %v2622 = vpop.f32.mrb[0].mxu0
      %v2623 = vadd.f32 %v2318, %v2622
      %v2624 = vpop.f32.mrb[0].mxu0
      %2625 = vmatprep.mubr.bf16.mxu0 %v1076
      %2626 = vmatmul.mubr.bf16.gmra.mrb[0].mxu0 %v907
      %v2627 = vpop.f32.mrb[0].mxu0
      %v2628 = vadd.f32 %v2323, %v2627
      %v2629 = vpop.f32.mrb[0].mxu0
      %v2630 = vpop.f32.mrb[0].mxu0
      %v2631 = vadd.f32 %v2326, %v2630
      %v2632 = vpop.f32.mrb[0].mxu0
      %2633 = vmatprep.mubr.bf16.mxu0 %v1088
      %2634 = vmatmul.mubr.bf16.gmra.mrb[0].mxu0 %v908
      %v2635 = vpop.f32.mrb[0].mxu0
      %v2636 = vadd.f32 %v2331, %v2635
      %v2637 = vpop.f32.mrb[0].mxu0
      %v2638 = vpop.f32.mrb[0].mxu0
      %v2639 = vadd.f32 %v2334, %v2638
      %v2640 = vpop.f32.mrb[0].mxu0
      %2641 = vmatprep.mubr.bf16.mxu0 %v1100
      %2642 = vmatmul.mubr.bf16.gmra.mrb[0].mxu0 %v909
      %v2643 = vpop.f32.mrb[0].mxu0
      %v2644 = vadd.f32 %v2339, %v2643
      %v2645 = vpop.f32.mrb[0].mxu0
      %v2646 = vpop.f32.mrb[0].mxu0
      %v2647 = vadd.f32 %v2342, %v2646
      %v2648 = vpop.f32.mrb[0].mxu0
      %2649 = vmatprep.mubr.bf16.mxu0 %v1112
      %2650 = vmatmul.mubr.bf16.gmra.mrb[0].mxu0 %v910
      %v2651 = vpop.f32.mrb[0].mxu0
      %v2652 = vadd.f32 %v2347, %v2651
      %v2653 = vpop.f32.mrb[0].mxu0
      %v2654 = vpop.f32.mrb[0].mxu0
      %v2655 = vadd.f32 %v2350, %v2654
      %v2656 = vpop.f32.mrb[0].mxu0
      %2657 = vmatprep.mubr.bf16.mxu0 %v1124
      %2658 = vmatmul.mubr.bf16.gmra.mrb[0].mxu0 %v911
      %v2659 = vpop.f32.mrb[0].mxu0
      %v2660 = vadd.f32 %v2355, %v2659
      %v2661 = vpop.f32.mrb[0].mxu0
      %v2662 = vpop.f32.mrb[0].mxu0
      %v2663 = vadd.f32 %v2358, %v2662
      %v2664 = vpop.f32.mrb[0].mxu0
      %2665 = vmatprep.mubr.bf16.mxu0 %v1136
      %2666 = vmatmul.mubr.bf16.gmra.mrb[0].mxu0 %v912
      %v2667 = vpop.f32.mrb[0].mxu0
      %v2668 = vadd.f32 %v2363, %v2667
      %v2669 = vpop.f32.mrb[0].mxu0
      %v2670 = vpop.f32.mrb[0].mxu0
      %v2671 = vadd.f32 %v2366, %v2670
      %v2672 = vpop.f32.mrb[0].mxu0
      %2673 = vmatprep.mubr.bf16.mxu0 %v1148
      %2674 = vmatmul.mubr.bf16.gmra.mrb[0].mxu0 %v913
      %v2675 = vpop.f32.mrb[0].mxu0
      %v2676 = vadd.f32 %v2371, %v2675
      %v2677 = vpop.f32.mrb[0].mxu0
      %v2678 = vpop.f32.mrb[0].mxu0
      %v2679 = vadd.f32 %v2374, %v2678
      %v2680 = vpop.f32.mrb[0].mxu0
      %2681 = vmatprep.mubr.bf16.mxu0 %v1160
      %2682 = vmatmul.mubr.bf16.gmra.mrb[0].mxu0 %v914
      %v2683 = vpop.f32.mrb[0].mxu0
      %v2684 = vadd.f32 %v2379, %v2683
      %v2685 = vpop.f32.mrb[0].mxu0
      %v2686 = vpop.f32.mrb[0].mxu0
      %v2687 = vadd.f32 %v2382, %v2686
      %v2688 = vpop.f32.mrb[0].mxu0
      %2689 = vmatprep.mubr.bf16.mxu0 %v1172
      %2690 = vmatmul.mubr.bf16.gmra.mrb[0].mxu0 %v915
      %v2691 = vpop.f32.mrb[0].mxu0
      %v2692 = vadd.f32 %v2387, %v2691
      %v2693 = vpop.f32.mrb[0].mxu0
      %v2694 = vpop.f32.mrb[0].mxu0
      %v2695 = vadd.f32 %v2390, %v2694
      %v2696 = vpop.f32.mrb[0].mxu0
      %2697 = vdwg.mxu0
      %2698 = vmatprep.subr.bf16.mxu0 0
      %2699 = vmatpush1.bf16.msra.mxu0 %v2505
      %2700 = vmatprep.subr.bf16.mxu0 0
      %2701 = vmatpush1.bf16.msra.mxu0 %v2506
      %2702 = vmatprep.subr.bf16.mxu0 0
      %2703 = vmatpush1.bf16.msra.mxu0 %v2507
      %2704 = vmatprep.subr.bf16.mxu0 0
      %2705 = vmatpush1.bf16.msra.mxu0 %v2508
      %2706 = vmatprep.subr.bf16.mxu0 0
      %2707 = vmatpush1.bf16.msra.mxu0 %v2509
      %2708 = vmatprep.subr.bf16.mxu0 0
      %2709 = vmatpush1.bf16.msra.mxu0 %v2510
      %2710 = vmatprep.subr.bf16.mxu0 0
      %2711 = vmatpush1.bf16.msra.mxu0 %v2511
      %2712 = vmatprep.subr.bf16.mxu0 0
      %2713 = vmatpush1.bf16.msra.mxu0 %v2512
      %2714 = vmatprep.subr.bf16.mxu0 0
      %2715 = vmatpush1.bf16.msra.mxu0 0
      %2716 = vmatprep.subr.bf16.mxu0 0
      %2717 = vmatpush1.bf16.msra.mxu0 0
      %2718 = vmatprep.subr.bf16.mxu0 0
      %2719 = vmatpush1.bf16.msra.mxu0 0
      %2720 = vmatprep.subr.bf16.mxu0 0
      %2721 = vmatpush1.bf16.msra.mxu0 0
      %2722 = vmatprep.subr.bf16.mxu0 0
      %2723 = vmatpush1.bf16.msra.mxu0 0
      %2724 = vmatprep.subr.bf16.mxu0 0
      %2725 = vmatpush1.bf16.msra.mxu0 0
      %2726 = vmatprep.subr.bf16.mxu0 0
      %2727 = vmatpush1.bf16.msra.mxu0 0
      %2728 = vmatprep.subr.bf16.mxu0 0
      %2729 = vmatpush1.bf16.msra.mxu0 0
      %2730 = vmatprep.mubr.bf16.mxu0 0
      %2731 = vmatmul.mubr.bf16.gmra.mrb[0].mxu0 %v1240
      %v2732 = vpop.f32.mrb[0].mxu0
      %v2733 = vadd.f32 %v2572, %v2732
      %v2734 = vpop.f32.mrb[0].mxu0
      %v2735 = vpop.f32.mrb[0].mxu0
      %v2736 = vadd.f32 %v2575, %v2735
      %v2737 = vpop.f32.mrb[0].mxu0
      %2738 = vmatprep.mubr.bf16.mxu0 0
      %2739 = vmatmul.mubr.bf16.gmra.mrb[0].mxu0 %v1243
      %v2740 = vpop.f32.mrb[0].mxu0
      %v2741 = vadd.f32 %v2580, %v2740
      %v2742 = vpop.f32.mrb[0].mxu0
      %v2743 = vpop.f32.mrb[0].mxu0
      %v2744 = vadd.f32 %v2583, %v2743
      %v2745 = vpop.f32.mrb[0].mxu0
      %2746 = vmatprep.mubr.bf16.mxu0 0
      %2747 = vmatmul.mubr.bf16.gmra.mrb[0].mxu0 %v1246
      %v2748 = vpop.f32.mrb[0].mxu0
      %v2749 = vadd.f32 %v2588, %v2748
      %v2750 = vpop.f32.mrb[0].mxu0
      %v2751 = vpop.f32.mrb[0].mxu0
      %v2752 = vadd.f32 %v2591, %v2751
      %v2753 = vpop.f32.mrb[0].mxu0
      %2754 = vmatprep.mubr.bf16.mxu0 0
      %2755 = vmatmul.mubr.bf16.gmra.mrb[0].mxu0 %v1249
      %v2756 = vpop.f32.mrb[0].mxu0
      %v2757 = vadd.f32 %v2596, %v2756
      %v2758 = vpop.f32.mrb[0].mxu0
      %v2759 = vpop.f32.mrb[0].mxu0
      %v2760 = vadd.f32 %v2599, %v2759
      %v2761 = vpop.f32.mrb[0].mxu0
      %2762 = vmatprep.mubr.bf16.mxu0 0
      %2763 = vmatmul.mubr.bf16.gmra.mrb[0].mxu0 %v1252
      %v2764 = vpop.f32.mrb[0].mxu0
      %v2765 = vadd.f32 %v2604, %v2764
      %v2766 = vpop.f32.mrb[0].mxu0
      %v2767 = vpop.f32.mrb[0].mxu0
      %v2768 = vadd.f32 %v2607, %v2767
      %v2769 = vpop.f32.mrb[0].mxu0
      %2770 = vmatprep.mubr.bf16.mxu0 0
      %2771 = vmatmul.mubr.bf16.gmra.mrb[0].mxu0 %v1255
      %v2772 = vpop.f32.mrb[0].mxu0
      %v2773 = vadd.f32 %v2612, %v2772
      %v2774 = vpop.f32.mrb[0].mxu0
      %v2775 = vpop.f32.mrb[0].mxu0
      %v2776 = vadd.f32 %v2615, %v2775
      %v2777 = vpop.f32.mrb[0].mxu0
      %2778 = vmatprep.mubr.bf16.mxu0 0
      %2779 = vmatmul.mubr.bf16.gmra.mrb[0].mxu0 %v1258
      %v2780 = vpop.f32.mrb[0].mxu0
      %v2781 = vadd.f32 %v2620, %v2780
      %v2782 = vpop.f32.mrb[0].mxu0
      %v2783 = vpop.f32.mrb[0].mxu0
      %v2784 = vadd.f32 %v2623, %v2783
      %v2785 = vpop.f32.mrb[0].mxu0
      %2786 = vmatprep.mubr.bf16.mxu0 0
      %2787 = vmatmul.mubr.bf16.gmra.mrb[0].mxu0 %v1261
      %v2788 = vpop.f32.mrb[0].mxu0
      %v2789 = vadd.f32 %v2628, %v2788
      %v2790 = vpop.f32.mrb[0].mxu0
      %v2791 = vpop.f32.mrb[0].mxu0
      %v2792 = vadd.f32 %v2631, %v2791
      %v2793 = vpop.f32.mrb[0].mxu0
      %2794 = vmatprep.mubr.bf16.mxu0 0
      %2795 = vmatmul.mubr.bf16.gmra.mrb[0].mxu0 %v1264
      %v2796 = vpop.f32.mrb[0].mxu0
      %v2797 = vadd.f32 %v2636, %v2796
      %v2798 = vpop.f32.mrb[0].mxu0
      %v2799 = vpop.f32.mrb[0].mxu0
      %v2800 = vadd.f32 %v2639, %v2799
      %v2801 = vpop.f32.mrb[0].mxu0
      %2802 = vmatprep.mubr.bf16.mxu0 0
      %2803 = vmatmul.mubr.bf16.gmra.mrb[0].mxu0 %v1267
      %v2804 = vpop.f32.mrb[0].mxu0
      %v2805 = vadd.f32 %v2644, %v2804
      %v2806 = vpop.f32.mrb[0].mxu0
      %v2807 = vpop.f32.mrb[0].mxu0
      %v2808 = vadd.f32 %v2647, %v2807
      %v2809 = vpop.f32.mrb[0].mxu0
      %2810 = vmatprep.mubr.bf16.mxu0 0
      %2811 = vmatmul.mubr.bf16.gmra.mrb[0].mxu0 %v1270
      %v2812 = vpop.f32.mrb[0].mxu0
      %v2813 = vadd.f32 %v2652, %v2812
      %v2814 = vpop.f32.mrb[0].mxu0
      %v2815 = vpop.f32.mrb[0].mxu0
      %v2816 = vadd.f32 %v2655, %v2815
      %v2817 = vpop.f32.mrb[0].mxu0
      %2818 = vmatprep.mubr.bf16.mxu0 0
      %2819 = vmatmul.mubr.bf16.gmra.mrb[0].mxu0 %v1273
      %v2820 = vpop.f32.mrb[0].mxu0
      %v2821 = vadd.f32 %v2660, %v2820
      %v2822 = vpop.f32.mrb[0].mxu0
      %v2823 = vpop.f32.mrb[0].mxu0
      %v2824 = vadd.f32 %v2663, %v2823
      %v2825 = vpop.f32.mrb[0].mxu0
      %2826 = vmatprep.mubr.bf16.mxu0 0
      %2827 = vmatmul.mubr.bf16.gmra.mrb[0].mxu0 %v1276
      %v2828 = vpop.f32.mrb[0].mxu0
      %v2829 = vadd.f32 %v2668, %v2828
      %v2830 = vpop.f32.mrb[0].mxu0
      %v2831 = vpop.f32.mrb[0].mxu0
      %v2832 = vadd.f32 %v2671, %v2831
      %v2833 = vpop.f32.mrb[0].mxu0
      %2834 = vmatprep.mubr.bf16.mxu0 0
      %2835 = vmatmul.mubr.bf16.gmra.mrb[0].mxu0 %v1279
      %v2836 = vpop.f32.mrb[0].mxu0
      %v2837 = vadd.f32 %v2676, %v2836
      %v2838 = vpop.f32.mrb[0].mxu0
      %v2839 = vpop.f32.mrb[0].mxu0
      %v2840 = vadd.f32 %v2679, %v2839
      %v2841 = vpop.f32.mrb[0].mxu0
      %2842 = vmatprep.mubr.bf16.mxu0 0
      %2843 = vmatmul.mubr.bf16.gmra.mrb[0].mxu0 %v1282
      %v2844 = vpop.f32.mrb[0].mxu0
      %v2845 = vadd.f32 %v2684, %v2844
      %v2846 = vpop.f32.mrb[0].mxu0
      %v2847 = vpop.f32.mrb[0].mxu0
      %v2848 = vadd.f32 %v2687, %v2847
      %v2849 = vpop.f32.mrb[0].mxu0
      %2850 = vmatprep.mubr.bf16.mxu0 0
      %2851 = vmatmul.mubr.bf16.gmra.mrb[0].mxu0 %v1285
      %v2852 = vpop.f32.mrb[0].mxu0
      %v2853 = vadd.f32 %v2692, %v2852
      %v2854 = vpop.f32.mrb[0].mxu0
      %v2855 = vpop.f32.mrb[0].mxu0
      %v2856 = vadd.f32 %v2695, %v2855
      %v2857 = vpop.f32.mrb[0].mxu0
      %2858 = vdwg.mxu0
      %s2859 = scalar_lea.vmem [#allocation2], 24
      %v2860 = vld [vmem:[%s2859] sm:$0xf]
      %v2861 = vld [vmem:[%s2859 + $0x4] sm:$0xf]
      %v2862 = vld [vmem:[%s2859 + $0xc] sm:$0xf]
      %v2863 = vld [vmem:[%s2859 + $0x10] sm:$0xf]
      %v2864 = vld [vmem:[%s2859 + $0x18] sm:$0xf]
      %v2865 = vld [vmem:[%s2859 + $0x1c] sm:$0xf]
      %v2866 = vld [vmem:[%s2859 + $0x24] sm:$0xf]
      %v2867 = vld [vmem:[%s2859 + $0x28] sm:$0xf]
      %v2868 = vld [vmem:[%s2859 + $0x30] sm:$0xf]
      %v2869 = vld [vmem:[%s2859 + $0x34] sm:$0xf]
      %v2870 = vld [vmem:[%s2859 + $0x3c] sm:$0xf]
      %v2871 = vld [vmem:[%s2859 + $0x40] sm:$0xf]
      %v2872 = vld [vmem:[%s2859 + $0x48] sm:$0xf]
      %v2873 = vld [vmem:[%s2859 + $0x4c] sm:$0xf]
      %v2874 = vld [vmem:[%s2859 + $0x54] sm:$0xf]
      %v2875 = vld [vmem:[%s2859 + $0x58] sm:$0xf]
      %v2876 = vld [vmem:[%s2859 + $0x60] sm:$0xf]
      %v2877 = vld [vmem:[%s2859 + $0x64] sm:$0xf]
      %v2878 = vld [vmem:[%s2859 + $0x6c] sm:$0xf]
      %v2879 = vld [vmem:[%s2859 + $0x70] sm:$0xf]
      %v2880 = vld [vmem:[%s2859 + $0x78] sm:$0xf]
      %v2881 = vld [vmem:[%s2859 + $0x7c] sm:$0xf]
      %v2882 = vld [vmem:[%s2859 + $0x84] sm:$0xf]
      %v2883 = vld [vmem:[%s2859 + $0x88] sm:$0xf]
      %v2884 = vld [vmem:[%s2859 + $0x90] sm:$0xf]
      %v2885 = vld [vmem:[%s2859 + $0x94] sm:$0xf]
      %v2886 = vld [vmem:[%s2859 + $0x9c] sm:$0xf]
      %v2887 = vld [vmem:[%s2859 + $0xa0] sm:$0xf]
      %v2888 = vld [vmem:[%s2859 + $0xa8] sm:$0xf]
      %v2889 = vld [vmem:[%s2859 + $0xac] sm:$0xf]
      %v2890 = vld [vmem:[%s2859 + $0xb4] sm:$0xf]
      %v2891 = vld [vmem:[%s2859 + $0xb8] sm:$0xf]
      %v2892 = vld [vmem:[%s2859 + $0x8] sm:$0x1]
      %v2893 = vld [vmem:[%s2859 + $0x14] sm:$0x1]
      %v2894 = vld [vmem:[%s2859 + $0x20] sm:$0x1]
      %v2895 = vld [vmem:[%s2859 + $0x2c] sm:$0x1]
      %v2896 = vld [vmem:[%s2859 + $0x38] sm:$0x1]
      %v2897 = vld [vmem:[%s2859 + $0x44] sm:$0x1]
      %v2898 = vld [vmem:[%s2859 + $0x50] sm:$0x1]
      %v2899 = vld [vmem:[%s2859 + $0x5c] sm:$0x1]
      %v2900 = vld [vmem:[%s2859 + $0x68] sm:$0x1]
      %v2901 = vld [vmem:[%s2859 + $0x74] sm:$0x1]
      %v2902 = vld [vmem:[%s2859 + $0x80] sm:$0x1]
      %v2903 = vld [vmem:[%s2859 + $0x8c] sm:$0x1]
      %v2904 = vld [vmem:[%s2859 + $0x98] sm:$0x1]
      %v2905 = vld [vmem:[%s2859 + $0xa4] sm:$0x1]
      %v2906 = vld [vmem:[%s2859 + $0xb0] sm:$0x1]
      %v2907 = vld [vmem:[%s2859 + $0xbc] sm:$0x1]
      %v2908 = vld [vmem:[%s2859] sm:$0xe]
      %v2909 = vld [vmem:[%s2859 + $0xc] sm:$0xe]
      %v2910 = vld [vmem:[%s2859 + $0x18] sm:$0xe]
      %v2911 = vld [vmem:[%s2859 + $0x24] sm:$0xe]
      %v2912 = vld [vmem:[%s2859 + $0x30] sm:$0xe]
      %v2913 = vld [vmem:[%s2859 + $0x3c] sm:$0xe]
      %v2914 = vld [vmem:[%s2859 + $0x48] sm:$0xe]
      %v2915 = vld [vmem:[%s2859 + $0x54] sm:$0xe]
      %v2916 = vld [vmem:[%s2859 + $0x60] sm:$0xe]
      %v2917 = vld [vmem:[%s2859 + $0x6c] sm:$0xe]
      %v2918 = vld [vmem:[%s2859 + $0x78] sm:$0xe]
      %v2919 = vld [vmem:[%s2859 + $0x84] sm:$0xe]
      %v2920 = vld [vmem:[%s2859 + $0x90] sm:$0xe]
      %v2921 = vld [vmem:[%s2859 + $0x9c] sm:$0xe]
      %v2922 = vld [vmem:[%s2859 + $0xa8] sm:$0xe]
      %v2923 = vld [vmem:[%s2859 + $0xb4] sm:$0xe]
      %v2956 = vunpack.c.l.b16 %v2860
      %v2957 = vunpack.c.l.b16 %v2861
      %v2958 = vunpack.c.l.b16 %v2862
      %v2959 = vunpack.c.l.b16 %v2863
      %v2960 = vunpack.c.l.b16 %v2864
      %v2961 = vunpack.c.l.b16 %v2865
      %v2962 = vunpack.c.l.b16 %v2866
      %v2963 = vunpack.c.l.b16 %v2867
      %v2964 = vunpack.c.l.b16 %v2868
      %v2965 = vunpack.c.l.b16 %v2869
      %v2966 = vunpack.c.l.b16 %v2870
      %v2967 = vunpack.c.l.b16 %v2871
      %v2968 = vunpack.c.l.b16 %v2872
      %v2969 = vunpack.c.l.b16 %v2873
      %v2970 = vunpack.c.l.b16 %v2874
      %v2971 = vunpack.c.l.b16 %v2875
      %v2972 = vunpack.c.l.b16 %v2876
      %v2973 = vunpack.c.l.b16 %v2877
      %v2974 = vunpack.c.l.b16 %v2878
      %v2975 = vunpack.c.l.b16 %v2879
      %v2976 = vunpack.c.l.b16 %v2880
      %v2977 = vunpack.c.l.b16 %v2881
      %v2978 = vunpack.c.l.b16 %v2882
      %v2979 = vunpack.c.l.b16 %v2883
      %v2980 = vunpack.c.l.b16 %v2884
      %v2981 = vunpack.c.l.b16 %v2885
      %v2982 = vunpack.c.l.b16 %v2886
      %v2983 = vunpack.c.l.b16 %v2887
      %v2984 = vunpack.c.l.b16 %v2888
      %v2985 = vunpack.c.l.b16 %v2889
      %v2986 = vunpack.c.l.b16 %v2890
      %v2987 = vunpack.c.l.b16 %v2891
      %v2988 = vpack.c.b16 %v2957, %v2956
      %v2989 = vpack.c.b16 %v2959, %v2958
      %v2990 = vpack.c.b16 %v2961, %v2960
      %v2991 = vpack.c.b16 %v2963, %v2962
      %v2992 = vpack.c.b16 %v2965, %v2964
      %v2993 = vpack.c.b16 %v2967, %v2966
      %v2994 = vpack.c.b16 %v2969, %v2968
      %v2995 = vpack.c.b16 %v2971, %v2970
      %v2996 = vpack.c.b16 %v2973, %v2972
      %v2997 = vpack.c.b16 %v2975, %v2974
      %v2998 = vpack.c.b16 %v2977, %v2976
      %v2999 = vpack.c.b16 %v2979, %v2978
      %v3000 = vpack.c.b16 %v2981, %v2980
      %v3001 = vpack.c.b16 %v2983, %v2982
      %v3002 = vpack.c.b16 %v2985, %v2984
      %v3003 = vpack.c.b16 %v2987, %v2986
      %v3036 = vunpack.c.l.b16 %v2892
      %v3037 = vunpack.c.l.b16 %v2893
      %v3038 = vunpack.c.l.b16 %v2894
      %v3039 = vunpack.c.l.b16 %v2895
      %v3040 = vunpack.c.l.b16 %v2896
      %v3041 = vunpack.c.l.b16 %v2897
      %v3042 = vunpack.c.l.b16 %v2898
      %v3043 = vunpack.c.l.b16 %v2899
      %v3044 = vunpack.c.l.b16 %v2900
      %v3045 = vunpack.c.l.b16 %v2901
      %v3046 = vunpack.c.l.b16 %v2902
      %v3047 = vunpack.c.l.b16 %v2903
      %v3048 = vunpack.c.l.b16 %v2904
      %v3049 = vunpack.c.l.b16 %v2905
      %v3050 = vunpack.c.l.b16 %v2906
      %v3051 = vunpack.c.l.b16 %v2907
      %v3052 = vpack.c.b16 %v3036, %v3036
      %v3053 = vpack.c.b16 %v3037, %v3037
      %v3054 = vpack.c.b16 %v3038, %v3038
      %v3055 = vpack.c.b16 %v3039, %v3039
      %v3056 = vpack.c.b16 %v3040, %v3040
      %v3057 = vpack.c.b16 %v3041, %v3041
      %v3058 = vpack.c.b16 %v3042, %v3042
      %v3059 = vpack.c.b16 %v3043, %v3043
      %v3060 = vpack.c.b16 %v3044, %v3044
      %v3061 = vpack.c.b16 %v3045, %v3045
      %v3062 = vpack.c.b16 %v3046, %v3046
      %v3063 = vpack.c.b16 %v3047, %v3047
      %v3064 = vpack.c.b16 %v3048, %v3048
      %v3065 = vpack.c.b16 %v3049, %v3049
      %v3066 = vpack.c.b16 %v3050, %v3050
      %v3067 = vpack.c.b16 %v3051, %v3051
      %v3069 = vshrl.u32 %v2988, 16
      %v3071 = vshll.u32 %v2988, 16
      %v3073 = vrot.slane %v3071, 1
      %v3074 = vor.u32 %v3069, %v3073
      %v3076 = vshll.u32 %v3052, 16
      %v3078 = vrot.slane %v3076, 1
      %v3079 = vsel %vm980, %v3074, %v3078
      %v3081 = vshrl.u32 %v2989, 16
      %v3083 = vshll.u32 %v2989, 16
      %v3085 = vrot.slane %v3083, 1
      %v3086 = vor.u32 %v3081, %v3085
      %v3088 = vshll.u32 %v3053, 16
      %v3090 = vrot.slane %v3088, 1
      %v3091 = vsel %vm980, %v3086, %v3090
      %v3093 = vshrl.u32 %v2990, 16
      %v3095 = vshll.u32 %v2990, 16
      %v3097 = vrot.slane %v3095, 1
      %v3098 = vor.u32 %v3093, %v3097
      %v3100 = vshll.u32 %v3054, 16
      %v3102 = vrot.slane %v3100, 1
      %v3103 = vsel %vm980, %v3098, %v3102
      %v3105 = vshrl.u32 %v2991, 16
      %v3107 = vshll.u32 %v2991, 16
      %v3109 = vrot.slane %v3107, 1
      %v3110 = vor.u32 %v3105, %v3109
      %v3112 = vshll.u32 %v3055, 16
      %v3114 = vrot.slane %v3112, 1
      %v3115 = vsel %vm980, %v3110, %v3114
      %v3117 = vshrl.u32 %v2992, 16
      %v3119 = vshll.u32 %v2992, 16
      %v3121 = vrot.slane %v3119, 1
      %v3122 = vor.u32 %v3117, %v3121
      %v3124 = vshll.u32 %v3056, 16
      %v3126 = vrot.slane %v3124, 1
      %v3127 = vsel %vm980, %v3122, %v3126
      %v3129 = vshrl.u32 %v2993, 16
      %v3131 = vshll.u32 %v2993, 16
      %v3133 = vrot.slane %v3131, 1
      %v3134 = vor.u32 %v3129, %v3133
      %v3136 = vshll.u32 %v3057, 16
      %v3138 = vrot.slane %v3136, 1
      %v3139 = vsel %vm980, %v3134, %v3138
      %v3141 = vshrl.u32 %v2994, 16
      %v3143 = vshll.u32 %v2994, 16
      %v3145 = vrot.slane %v3143, 1
      %v3146 = vor.u32 %v3141, %v3145
      %v3148 = vshll.u32 %v3058, 16
      %v3150 = vrot.slane %v3148, 1
      %v3151 = vsel %vm980, %v3146, %v3150
      %v3153 = vshrl.u32 %v2995, 16
      %v3155 = vshll.u32 %v2995, 16
      %v3157 = vrot.slane %v3155, 1
      %v3158 = vor.u32 %v3153, %v3157
      %v3160 = vshll.u32 %v3059, 16
      %v3162 = vrot.slane %v3160, 1
      %v3163 = vsel %vm980, %v3158, %v3162
      %v3165 = vshrl.u32 %v2996, 16
      %v3167 = vshll.u32 %v2996, 16
      %v3169 = vrot.slane %v3167, 1
      %v3170 = vor.u32 %v3165, %v3169
      %v3172 = vshll.u32 %v3060, 16
      %v3174 = vrot.slane %v3172, 1
      %v3175 = vsel %vm980, %v3170, %v3174
      %v3177 = vshrl.u32 %v2997, 16
      %v3179 = vshll.u32 %v2997, 16
      %v3181 = vrot.slane %v3179, 1
      %v3182 = vor.u32 %v3177, %v3181
      %v3184 = vshll.u32 %v3061, 16
      %v3186 = vrot.slane %v3184, 1
      %v3187 = vsel %vm980, %v3182, %v3186
      %v3189 = vshrl.u32 %v2998, 16
      %v3191 = vshll.u32 %v2998, 16
      %v3193 = vrot.slane %v3191, 1
      %v3194 = vor.u32 %v3189, %v3193
      %v3196 = vshll.u32 %v3062, 16
      %v3198 = vrot.slane %v3196, 1
      %v3199 = vsel %vm980, %v3194, %v3198
      %v3201 = vshrl.u32 %v2999, 16
      %v3203 = vshll.u32 %v2999, 16
      %v3205 = vrot.slane %v3203, 1
      %v3206 = vor.u32 %v3201, %v3205
      %v3208 = vshll.u32 %v3063, 16
      %v3210 = vrot.slane %v3208, 1
      %v3211 = vsel %vm980, %v3206, %v3210
      %v3213 = vshrl.u32 %v3000, 16
      %v3215 = vshll.u32 %v3000, 16
      %v3217 = vrot.slane %v3215, 1
      %v3218 = vor.u32 %v3213, %v3217
      %v3220 = vshll.u32 %v3064, 16
      %v3222 = vrot.slane %v3220, 1
      %v3223 = vsel %vm980, %v3218, %v3222
      %v3225 = vshrl.u32 %v3001, 16
      %v3227 = vshll.u32 %v3001, 16
      %v3229 = vrot.slane %v3227, 1
      %v3230 = vor.u32 %v3225, %v3229
      %v3232 = vshll.u32 %v3065, 16
      %v3234 = vrot.slane %v3232, 1
      %v3235 = vsel %vm980, %v3230, %v3234
      %v3237 = vshrl.u32 %v3002, 16
      %v3239 = vshll.u32 %v3002, 16
      %v3241 = vrot.slane %v3239, 1
      %v3242 = vor.u32 %v3237, %v3241
      %v3244 = vshll.u32 %v3066, 16
      %v3246 = vrot.slane %v3244, 1
      %v3247 = vsel %vm980, %v3242, %v3246
      %v3249 = vshrl.u32 %v3003, 16
      %v3251 = vshll.u32 %v3003, 16
      %v3253 = vrot.slane %v3251, 1
      %v3254 = vor.u32 %v3249, %v3253
      %v3256 = vshll.u32 %v3067, 16
      %v3258 = vrot.slane %v3256, 1
      %v3259 = vsel %vm980, %v3254, %v3258
      %v3292 = vunpack.c.l.b16 %v2908
      %v3293 = vunpack.c.l.b16 %v2909
      %v3294 = vunpack.c.l.b16 %v2910
      %v3295 = vunpack.c.l.b16 %v2911
      %v3296 = vunpack.c.l.b16 %v2912
      %v3297 = vunpack.c.l.b16 %v2913
      %v3298 = vunpack.c.l.b16 %v2914
      %v3299 = vunpack.c.l.b16 %v2915
      %v3300 = vunpack.c.l.b16 %v2916
      %v3301 = vunpack.c.l.b16 %v2917
      %v3302 = vunpack.c.l.b16 %v2918
      %v3303 = vunpack.c.l.b16 %v2919
      %v3304 = vunpack.c.l.b16 %v2920
      %v3305 = vunpack.c.l.b16 %v2921
      %v3306 = vunpack.c.l.b16 %v2922
      %v3307 = vunpack.c.l.b16 %v2923
      %v3308 = vpack.c.b16 %v2957, %v3292
      %v3309 = vpack.c.b16 %v2959, %v3293
      %v3310 = vpack.c.b16 %v2961, %v3294
      %v3311 = vpack.c.b16 %v2963, %v3295
      %v3312 = vpack.c.b16 %v2965, %v3296
      %v3313 = vpack.c.b16 %v2967, %v3297
      %v3314 = vpack.c.b16 %v2969, %v3298
      %v3315 = vpack.c.b16 %v2971, %v3299
      %v3316 = vpack.c.b16 %v2973, %v3300
      %v3317 = vpack.c.b16 %v2975, %v3301
      %v3318 = vpack.c.b16 %v2977, %v3302
      %v3319 = vpack.c.b16 %v2979, %v3303
      %v3320 = vpack.c.b16 %v2981, %v3304
      %v3321 = vpack.c.b16 %v2983, %v3305
      %v3322 = vpack.c.b16 %v2985, %v3306
      %v3323 = vpack.c.b16 %v2987, %v3307
      %v3324 = vrot.slane %v3308, 1
      %v3325 = vrot.slane %v3052, 1
      %v3326 = vsel %vm1237, %v3324, %v3325
      %v3327 = vrot.slane %v3309, 1
      %v3328 = vrot.slane %v3053, 1
      %v3329 = vsel %vm1237, %v3327, %v3328
      %v3330 = vrot.slane %v3310, 1
      %v3331 = vrot.slane %v3054, 1
      %v3332 = vsel %vm1237, %v3330, %v3331
      %v3333 = vrot.slane %v3311, 1
      %v3334 = vrot.slane %v3055, 1
      %v3335 = vsel %vm1237, %v3333, %v3334
      %v3336 = vrot.slane %v3312, 1
      %v3337 = vrot.slane %v3056, 1
      %v3338 = vsel %vm1237, %v3336, %v3337
      %v3339 = vrot.slane %v3313, 1
      %v3340 = vrot.slane %v3057, 1
      %v3341 = vsel %vm1237, %v3339, %v3340
      %v3342 = vrot.slane %v3314, 1
      %v3343 = vrot.slane %v3058, 1
      %v3344 = vsel %vm1237, %v3342, %v3343
      %v3345 = vrot.slane %v3315, 1
      %v3346 = vrot.slane %v3059, 1
      %v3347 = vsel %vm1237, %v3345, %v3346
      %v3348 = vrot.slane %v3316, 1
      %v3349 = vrot.slane %v3060, 1
      %v3350 = vsel %vm1237, %v3348, %v3349
      %v3351 = vrot.slane %v3317, 1
      %v3352 = vrot.slane %v3061, 1
      %v3353 = vsel %vm1237, %v3351, %v3352
      %v3354 = vrot.slane %v3318, 1
      %v3355 = vrot.slane %v3062, 1
      %v3356 = vsel %vm1237, %v3354, %v3355
      %v3357 = vrot.slane %v3319, 1
      %v3358 = vrot.slane %v3063, 1
      %v3359 = vsel %vm1237, %v3357, %v3358
      %v3360 = vrot.slane %v3320, 1
      %v3361 = vrot.slane %v3064, 1
      %v3362 = vsel %vm1237, %v3360, %v3361
      %v3363 = vrot.slane %v3321, 1
      %v3364 = vrot.slane %v3065, 1
      %v3365 = vsel %vm1237, %v3363, %v3364
      %v3366 = vrot.slane %v3322, 1
      %v3367 = vrot.slane %v3066, 1
      %v3368 = vsel %vm1237, %v3366, %v3367
      %v3369 = vrot.slane %v3323, 1
      %v3370 = vrot.slane %v3067, 1
      %v3371 = vsel %vm1237, %v3369, %v3370
      %s3388 = scalar_lea.vmem %s1, 384
      %v3389 = vld [vmem:[%s3388] sm:$0xf]
      %v3390 = vld [vmem:[%s3388 + $0x4] sm:$0xf]
      %v3391 = vld [vmem:[%s3388 + $0x8] sm:$0xf]
      %v3392 = vld [vmem:[%s3388 + $0xc] sm:$0xf]
      %v3393 = vld [vmem:[%s3388 + $0x10] sm:$0xf]
      %v3394 = vld [vmem:[%s3388 + $0x14] sm:$0xf]
      %v3395 = vld [vmem:[%s3388 + $0x18] sm:$0xf]
      %v3396 = vld [vmem:[%s3388 + $0x1c] sm:$0xf]
      %v3397 = vld [vmem:[%s3388 + $0x20] sm:$0xf]
      %v3398 = vld [vmem:[%s3388 + $0x24] sm:$0xf]
      %v3399 = vld [vmem:[%s3388 + $0x28] sm:$0xf]
      %v3400 = vld [vmem:[%s3388 + $0x2c] sm:$0xf]
      %v3401 = vld [vmem:[%s3388 + $0x30] sm:$0xf]
      %v3402 = vld [vmem:[%s3388 + $0x34] sm:$0xf]
      %v3403 = vld [vmem:[%s3388 + $0x38] sm:$0xf]
      %v3404 = vld [vmem:[%s3388 + $0x3c] sm:$0xf]
      %v3405 = vld [vmem:[%s3388 + $0x40] sm:$0xf]
      %v3406 = vld [vmem:[%s3388 + $0x44] sm:$0xf]
      %v3407 = vld [vmem:[%s3388 + $0x48] sm:$0xf]
      %v3408 = vld [vmem:[%s3388 + $0x4c] sm:$0xf]
      %v3409 = vld [vmem:[%s3388 + $0x50] sm:$0xf]
      %v3410 = vld [vmem:[%s3388 + $0x54] sm:$0xf]
      %v3411 = vld [vmem:[%s3388 + $0x58] sm:$0xf]
      %v3412 = vld [vmem:[%s3388 + $0x5c] sm:$0xf]
      %v3413 = vld [vmem:[%s3388 + $0x60] sm:$0xf]
      %v3414 = vld [vmem:[%s3388 + $0x64] sm:$0xf]
      %v3415 = vld [vmem:[%s3388 + $0x68] sm:$0xf]
      %v3416 = vld [vmem:[%s3388 + $0x6c] sm:$0xf]
      %v3417 = vld [vmem:[%s3388 + $0x70] sm:$0xf]
      %v3418 = vld [vmem:[%s3388 + $0x74] sm:$0xf]
      %v3419 = vld [vmem:[%s3388 + $0x78] sm:$0xf]
      %v3420 = vld [vmem:[%s3388 + $0x7c] sm:$0xf]
      %v3421 = vld [vmem:[%s3388 + $0x80] sm:$0xf]
      %v3422 = vld [vmem:[%s3388 + $0x84] sm:$0xf]
      %v3423 = vld [vmem:[%s3388 + $0x88] sm:$0xf]
      %v3424 = vld [vmem:[%s3388 + $0x8c] sm:$0xf]
      %v3425 = vld [vmem:[%s3388 + $0x90] sm:$0xf]
      %v3426 = vld [vmem:[%s3388 + $0x94] sm:$0xf]
      %v3427 = vld [vmem:[%s3388 + $0x98] sm:$0xf]
      %v3428 = vld [vmem:[%s3388 + $0x9c] sm:$0xf]
      %v3429 = vld [vmem:[%s3388 + $0xa0] sm:$0xf]
      %v3430 = vld [vmem:[%s3388 + $0xa4] sm:$0xf]
      %v3431 = vld [vmem:[%s3388 + $0xa8] sm:$0xf]
      %v3432 = vld [vmem:[%s3388 + $0xac] sm:$0xf]
      %v3433 = vld [vmem:[%s3388 + $0xb0] sm:$0xf]
      %v3434 = vld [vmem:[%s3388 + $0xb4] sm:$0xf]
      %v3435 = vld [vmem:[%s3388 + $0xb8] sm:$0xf]
      %v3436 = vld [vmem:[%s3388 + $0xbc] sm:$0xf]
      %v3485 = vunpack.c.l.b16 %v3389
      %v3486 = vunpack.c.l.b16 %v3390
      %v3487 = vunpack.c.l.b16 %v3391
      %v3488 = vunpack.c.l.b16 %v3392
      %v3489 = vunpack.c.l.b16 %v3393
      %v3490 = vunpack.c.l.b16 %v3394
      %v3491 = vunpack.c.l.b16 %v3395
      %v3492 = vunpack.c.l.b16 %v3396
      %v3493 = vunpack.c.l.b16 %v3397
      %v3494 = vunpack.c.l.b16 %v3398
      %v3495 = vunpack.c.l.b16 %v3399
      %v3496 = vunpack.c.l.b16 %v3400
      %v3497 = vunpack.c.l.b16 %v3401
      %v3498 = vunpack.c.l.b16 %v3402
      %v3499 = vunpack.c.l.b16 %v3403
      %v3500 = vunpack.c.l.b16 %v3404
      %v3501 = vunpack.c.l.b16 %v3405
      %v3502 = vunpack.c.l.b16 %v3406
      %v3503 = vunpack.c.l.b16 %v3407
      %v3504 = vunpack.c.l.b16 %v3408
      %v3505 = vunpack.c.l.b16 %v3409
      %v3506 = vunpack.c.l.b16 %v3410
      %v3507 = vunpack.c.l.b16 %v3411
      %v3508 = vunpack.c.l.b16 %v3412
      %v3509 = vunpack.c.l.b16 %v3413
      %v3510 = vunpack.c.l.b16 %v3414
      %v3511 = vunpack.c.l.b16 %v3415
      %v3512 = vunpack.c.l.b16 %v3416
      %v3513 = vunpack.c.l.b16 %v3417
      %v3514 = vunpack.c.l.b16 %v3418
      %v3515 = vunpack.c.l.b16 %v3419
      %v3516 = vunpack.c.l.b16 %v3420
      %v3517 = vunpack.c.l.b16 %v3421
      %v3518 = vunpack.c.l.b16 %v3422
      %v3519 = vunpack.c.l.b16 %v3423
      %v3520 = vunpack.c.l.b16 %v3424
      %v3521 = vunpack.c.l.b16 %v3425
      %v3522 = vunpack.c.l.b16 %v3426
      %v3523 = vunpack.c.l.b16 %v3427
      %v3524 = vunpack.c.l.b16 %v3428
      %v3525 = vunpack.c.l.b16 %v3429
      %v3526 = vunpack.c.l.b16 %v3430
      %v3527 = vunpack.c.l.b16 %v3431
      %v3528 = vunpack.c.l.b16 %v3432
      %v3529 = vunpack.c.l.b16 %v3433
      %v3530 = vunpack.c.l.b16 %v3434
      %v3531 = vunpack.c.l.b16 %v3435
      %v3532 = vunpack.c.l.b16 %v3436
      %v3533 = vpack.c.b16 %v3486, %v3485
      %v3534 = vpack.c.b16 %v3488, %v3487
      %v3535 = vpack.c.b16 %v3490, %v3489
      %v3536 = vpack.c.b16 %v3492, %v3491
      %v3537 = vpack.c.b16 %v3494, %v3493
      %v3538 = vpack.c.b16 %v3496, %v3495
      %v3539 = vpack.c.b16 %v3498, %v3497
      %v3540 = vpack.c.b16 %v3500, %v3499
      %v3541 = vpack.c.b16 %v3502, %v3501
      %v3542 = vpack.c.b16 %v3504, %v3503
      %v3543 = vpack.c.b16 %v3506, %v3505
      %v3544 = vpack.c.b16 %v3508, %v3507
      %v3545 = vpack.c.b16 %v3510, %v3509
      %v3546 = vpack.c.b16 %v3512, %v3511
      %v3547 = vpack.c.b16 %v3514, %v3513
      %v3548 = vpack.c.b16 %v3516, %v3515
      %v3549 = vpack.c.b16 %v3518, %v3517
      %v3550 = vpack.c.b16 %v3520, %v3519
      %v3551 = vpack.c.b16 %v3522, %v3521
      %v3552 = vpack.c.b16 %v3524, %v3523
      %v3553 = vpack.c.b16 %v3526, %v3525
      %v3554 = vpack.c.b16 %v3528, %v3527
      %v3555 = vpack.c.b16 %v3530, %v3529
      %v3556 = vpack.c.b16 %v3532, %v3531
      %3581 = vmatprep.subr.bf16.mxu0 0
      %3582 = vmatpush1.bf16.msra.mxu0 %v3533
      %3583 = vmatprep.subr.bf16.mxu0 0
      %3584 = vmatpush1.bf16.msra.mxu0 %v3534
      %3585 = vmatprep.subr.bf16.mxu0 0
      %3586 = vmatpush1.bf16.msra.mxu0 %v3535
      %3587 = vmatprep.subr.bf16.mxu0 0
      %3588 = vmatpush1.bf16.msra.mxu0 %v3536
      %3589 = vmatprep.subr.bf16.mxu0 0
      %3590 = vmatpush1.bf16.msra.mxu0 %v3537
      %3591 = vmatprep.subr.bf16.mxu0 0
      %3592 = vmatpush1.bf16.msra.mxu0 %v3538
      %3593 = vmatprep.subr.bf16.mxu0 0
      %3594 = vmatpush1.bf16.msra.mxu0 %v3539
      %3595 = vmatprep.subr.bf16.mxu0 0
      %3596 = vmatpush1.bf16.msra.mxu0 %v3540
      %3597 = vmatprep.subr.bf16.mxu0 0
      %3598 = vmatpush1.bf16.msra.mxu0 %v3541
      %3599 = vmatprep.subr.bf16.mxu0 0
      %3600 = vmatpush1.bf16.msra.mxu0 %v3542
      %3601 = vmatprep.subr.bf16.mxu0 0
      %3602 = vmatpush1.bf16.msra.mxu0 %v3543
      %3603 = vmatprep.subr.bf16.mxu0 0
      %3604 = vmatpush1.bf16.msra.mxu0 %v3544
      %3605 = vmatprep.subr.bf16.mxu0 0
      %3606 = vmatpush1.bf16.msra.mxu0 %v3545
      %3607 = vmatprep.subr.bf16.mxu0 0
      %3608 = vmatpush1.bf16.msra.mxu0 %v3546
      %3609 = vmatprep.subr.bf16.mxu0 0
      %3610 = vmatpush1.bf16.msra.mxu0 %v3547
      %3611 = vmatprep.subr.bf16.mxu0 0
      %3612 = vmatpush1.bf16.msra.mxu0 %v3548
      %3613 = vmatprep.mubr.bf16.mxu0 %v3079
      %3614 = vmatmul.mubr.bf16.gmra.mrb[0].mxu0 %v2988
      %v3615 = vpop.f32.mrb[0].mxu0
      %v3616 = vadd.f32 0.0, %v3615
      %v3617 = vpop.f32.mrb[0].mxu0
      %v3618 = vpop.f32.mrb[0].mxu0
      %v3619 = vadd.f32 0.0, %v3618
      %v3620 = vpop.f32.mrb[0].mxu0
      %3621 = vmatprep.mubr.bf16.mxu0 %v3091
      %3622 = vmatmul.mubr.bf16.gmra.mrb[0].mxu0 %v2989
      %v3623 = vpop.f32.mrb[0].mxu0
      %v3624 = vadd.f32 0.0, %v3623
      %v3625 = vpop.f32.mrb[0].mxu0
      %v3626 = vpop.f32.mrb[0].mxu0
      %v3627 = vadd.f32 0.0, %v3626
      %v3628 = vpop.f32.mrb[0].mxu0
      %3629 = vmatprep.mubr.bf16.mxu0 %v3103
      %3630 = vmatmul.mubr.bf16.gmra.mrb[0].mxu0 %v2990
      %v3631 = vpop.f32.mrb[0].mxu0
      %v3632 = vadd.f32 0.0, %v3631
      %v3633 = vpop.f32.mrb[0].mxu0
      %v3634 = vpop.f32.mrb[0].mxu0
      %v3635 = vadd.f32 0.0, %v3634
      %v3636 = vpop.f32.mrb[0].mxu0
      %3637 = vmatprep.mubr.bf16.mxu0 %v3115
      %3638 = vmatmul.mubr.bf16.gmra.mrb[0].mxu0 %v2991
      %v3639 = vpop.f32.mrb[0].mxu0
      %v3640 = vadd.f32 0.0, %v3639
      %v3641 = vpop.f32.mrb[0].mxu0
      %v3642 = vpop.f32.mrb[0].mxu0
      %v3643 = vadd.f32 0.0, %v3642
      %v3644 = vpop.f32.mrb[0].mxu0
      %3645 = vmatprep.mubr.bf16.mxu0 %v3127
      %3646 = vmatmul.mubr.bf16.gmra.mrb[0].mxu0 %v2992
      %v3647 = vpop.f32.mrb[0].mxu0
      %v3648 = vadd.f32 0.0, %v3647
      %v3649 = vpop.f32.mrb[0].mxu0
      %v3650 = vpop.f32.mrb[0].mxu0
      %v3651 = vadd.f32 0.0, %v3650
      %v3652 = vpop.f32.mrb[0].mxu0
      %3653 = vmatprep.mubr.bf16.mxu0 %v3139
      %3654 = vmatmul.mubr.bf16.gmra.mrb[0].mxu0 %v2993
      %v3655 = vpop.f32.mrb[0].mxu0
      %v3656 = vadd.f32 0.0, %v3655
      %v3657 = vpop.f32.mrb[0].mxu0
      %v3658 = vpop.f32.mrb[0].mxu0
      %v3659 = vadd.f32 0.0, %v3658
      %v3660 = vpop.f32.mrb[0].mxu0
      %3661 = vmatprep.mubr.bf16.mxu0 %v3151
      %3662 = vmatmul.mubr.bf16.gmra.mrb[0].mxu0 %v2994
      %v3663 = vpop.f32.mrb[0].mxu0
      %v3664 = vadd.f32 0.0, %v3663
      %v3665 = vpop.f32.mrb[0].mxu0
      %v3666 = vpop.f32.mrb[0].mxu0
      %v3667 = vadd.f32 0.0, %v3666
      %v3668 = vpop.f32.mrb[0].mxu0
      %3669 = vmatprep.mubr.bf16.mxu0 %v3163
      %3670 = vmatmul.mubr.bf16.gmra.mrb[0].mxu0 %v2995
      %v3671 = vpop.f32.mrb[0].mxu0
      %v3672 = vadd.f32 0.0, %v3671
      %v3673 = vpop.f32.mrb[0].mxu0
      %v3674 = vpop.f32.mrb[0].mxu0
      %v3675 = vadd.f32 0.0, %v3674
      %v3676 = vpop.f32.mrb[0].mxu0
      %3677 = vmatprep.mubr.bf16.mxu0 %v3175
      %3678 = vmatmul.mubr.bf16.gmra.mrb[0].mxu0 %v2996
      %v3679 = vpop.f32.mrb[0].mxu0
      %v3680 = vadd.f32 0.0, %v3679
      %v3681 = vpop.f32.mrb[0].mxu0
      %v3682 = vpop.f32.mrb[0].mxu0
      %v3683 = vadd.f32 0.0, %v3682
      %v3684 = vpop.f32.mrb[0].mxu0
      %3685 = vmatprep.mubr.bf16.mxu0 %v3187
      %3686 = vmatmul.mubr.bf16.gmra.mrb[0].mxu0 %v2997
      %v3687 = vpop.f32.mrb[0].mxu0
      %v3688 = vadd.f32 0.0, %v3687
      %v3689 = vpop.f32.mrb[0].mxu0
      %v3690 = vpop.f32.mrb[0].mxu0
      %v3691 = vadd.f32 0.0, %v3690
      %v3692 = vpop.f32.mrb[0].mxu0
      %3693 = vmatprep.mubr.bf16.mxu0 %v3199
      %3694 = vmatmul.mubr.bf16.gmra.mrb[0].mxu0 %v2998
      %v3695 = vpop.f32.mrb[0].mxu0
      %v3696 = vadd.f32 0.0, %v3695
      %v3697 = vpop.f32.mrb[0].mxu0
      %v3698 = vpop.f32.mrb[0].mxu0
      %v3699 = vadd.f32 0.0, %v3698
      %v3700 = vpop.f32.mrb[0].mxu0
      %3701 = vmatprep.mubr.bf16.mxu0 %v3211
      %3702 = vmatmul.mubr.bf16.gmra.mrb[0].mxu0 %v2999
      %v3703 = vpop.f32.mrb[0].mxu0
      %v3704 = vadd.f32 0.0, %v3703
      %v3705 = vpop.f32.mrb[0].mxu0
      %v3706 = vpop.f32.mrb[0].mxu0
      %v3707 = vadd.f32 0.0, %v3706
      %v3708 = vpop.f32.mrb[0].mxu0
      %3709 = vmatprep.mubr.bf16.mxu0 %v3223
      %3710 = vmatmul.mubr.bf16.gmra.mrb[0].mxu0 %v3000
      %v3711 = vpop.f32.mrb[0].mxu0
      %v3712 = vadd.f32 0.0, %v3711
      %v3713 = vpop.f32.mrb[0].mxu0
      %v3714 = vpop.f32.mrb[0].mxu0
      %v3715 = vadd.f32 0.0, %v3714
      %v3716 = vpop.f32.mrb[0].mxu0
      %3717 = vmatprep.mubr.bf16.mxu0 %v3235
      %3718 = vmatmul.mubr.bf16.gmra.mrb[0].mxu0 %v3001
      %v3719 = vpop.f32.mrb[0].mxu0
      %v3720 = vadd.f32 0.0, %v3719
      %v3721 = vpop.f32.mrb[0].mxu0
      %v3722 = vpop.f32.mrb[0].mxu0
      %v3723 = vadd.f32 0.0, %v3722
      %v3724 = vpop.f32.mrb[0].mxu0
      %3725 = vmatprep.mubr.bf16.mxu0 %v3247
      %3726 = vmatmul.mubr.bf16.gmra.mrb[0].mxu0 %v3002
      %v3727 = vpop.f32.mrb[0].mxu0
      %v3728 = vadd.f32 0.0, %v3727
      %v3729 = vpop.f32.mrb[0].mxu0
      %v3730 = vpop.f32.mrb[0].mxu0
      %v3731 = vadd.f32 0.0, %v3730
      %v3732 = vpop.f32.mrb[0].mxu0
      %3733 = vmatprep.mubr.bf16.mxu0 %v3259
      %3734 = vmatmul.mubr.bf16.gmra.mrb[0].mxu0 %v3003
      %v3735 = vpop.f32.mrb[0].mxu0
      %v3736 = vadd.f32 0.0, %v3735
      %v3737 = vpop.f32.mrb[0].mxu0
      %v3738 = vpop.f32.mrb[0].mxu0
      %v3739 = vadd.f32 0.0, %v3738
      %v3740 = vpop.f32.mrb[0].mxu0
      %3741 = vdwg.mxu0
      %3742 = vmatprep.subr.bf16.mxu0 0
      %3743 = vmatpush1.bf16.msra.mxu0 %v3549
      %3744 = vmatprep.subr.bf16.mxu0 0
      %3745 = vmatpush1.bf16.msra.mxu0 %v3550
      %3746 = vmatprep.subr.bf16.mxu0 0
      %3747 = vmatpush1.bf16.msra.mxu0 %v3551
      %3748 = vmatprep.subr.bf16.mxu0 0
      %3749 = vmatpush1.bf16.msra.mxu0 %v3552
      %3750 = vmatprep.subr.bf16.mxu0 0
      %3751 = vmatpush1.bf16.msra.mxu0 %v3553
      %3752 = vmatprep.subr.bf16.mxu0 0
      %3753 = vmatpush1.bf16.msra.mxu0 %v3554
      %3754 = vmatprep.subr.bf16.mxu0 0
      %3755 = vmatpush1.bf16.msra.mxu0 %v3555
      %3756 = vmatprep.subr.bf16.mxu0 0
      %3757 = vmatpush1.bf16.msra.mxu0 %v3556
      %3758 = vmatprep.subr.bf16.mxu0 0
      %3759 = vmatpush1.bf16.msra.mxu0 0
      %3760 = vmatprep.subr.bf16.mxu0 0
      %3761 = vmatpush1.bf16.msra.mxu0 0
      %3762 = vmatprep.subr.bf16.mxu0 0
      %3763 = vmatpush1.bf16.msra.mxu0 0
      %3764 = vmatprep.subr.bf16.mxu0 0
      %3765 = vmatpush1.bf16.msra.mxu0 0
      %3766 = vmatprep.subr.bf16.mxu0 0
      %3767 = vmatpush1.bf16.msra.mxu0 0
      %3768 = vmatprep.subr.bf16.mxu0 0
      %3769 = vmatpush1.bf16.msra.mxu0 0
      %3770 = vmatprep.subr.bf16.mxu0 0
      %3771 = vmatpush1.bf16.msra.mxu0 0
      %3772 = vmatprep.subr.bf16.mxu0 0
      %3773 = vmatpush1.bf16.msra.mxu0 0
      %3774 = vmatprep.mubr.bf16.mxu0 0
      %3775 = vmatmul.mubr.bf16.gmra.mrb[0].mxu0 %v3326
      %v3776 = vpop.f32.mrb[0].mxu0
      %v3777 = vadd.f32 %v3616, %v3776
      %v3778 = vpop.f32.mrb[0].mxu0
      %v3779 = vpop.f32.mrb[0].mxu0
      %v3780 = vadd.f32 %v3619, %v3779
      %v3781 = vpop.f32.mrb[0].mxu0
      %3782 = vmatprep.mubr.bf16.mxu0 0
      %3783 = vmatmul.mubr.bf16.gmra.mrb[0].mxu0 %v3329
      %v3784 = vpop.f32.mrb[0].mxu0
      %v3785 = vadd.f32 %v3624, %v3784
      %v3786 = vpop.f32.mrb[0].mxu0
      %v3787 = vpop.f32.mrb[0].mxu0
      %v3788 = vadd.f32 %v3627, %v3787
      %v3789 = vpop.f32.mrb[0].mxu0
      %3790 = vmatprep.mubr.bf16.mxu0 0
      %3791 = vmatmul.mubr.bf16.gmra.mrb[0].mxu0 %v3332
      %v3792 = vpop.f32.mrb[0].mxu0
      %v3793 = vadd.f32 %v3632, %v3792
      %v3794 = vpop.f32.mrb[0].mxu0
      %v3795 = vpop.f32.mrb[0].mxu0
      %v3796 = vadd.f32 %v3635, %v3795
      %v3797 = vpop.f32.mrb[0].mxu0
      %3798 = vmatprep.mubr.bf16.mxu0 0
      %3799 = vmatmul.mubr.bf16.gmra.mrb[0].mxu0 %v3335
      %v3800 = vpop.f32.mrb[0].mxu0
      %v3801 = vadd.f32 %v3640, %v3800
      %v3802 = vpop.f32.mrb[0].mxu0
      %v3803 = vpop.f32.mrb[0].mxu0
      %v3804 = vadd.f32 %v3643, %v3803
      %v3805 = vpop.f32.mrb[0].mxu0
      %3806 = vmatprep.mubr.bf16.mxu0 0
      %3807 = vmatmul.mubr.bf16.gmra.mrb[0].mxu0 %v3338
      %v3808 = vpop.f32.mrb[0].mxu0
      %v3809 = vadd.f32 %v3648, %v3808
      %v3810 = vpop.f32.mrb[0].mxu0
      %v3811 = vpop.f32.mrb[0].mxu0
      %v3812 = vadd.f32 %v3651, %v3811
      %v3813 = vpop.f32.mrb[0].mxu0
      %3814 = vmatprep.mubr.bf16.mxu0 0
      %3815 = vmatmul.mubr.bf16.gmra.mrb[0].mxu0 %v3341
      %v3816 = vpop.f32.mrb[0].mxu0
      %v3817 = vadd.f32 %v3656, %v3816
      %v3818 = vpop.f32.mrb[0].mxu0
      %v3819 = vpop.f32.mrb[0].mxu0
      %v3820 = vadd.f32 %v3659, %v3819
      %v3821 = vpop.f32.mrb[0].mxu0
      %3822 = vmatprep.mubr.bf16.mxu0 0
      %3823 = vmatmul.mubr.bf16.gmra.mrb[0].mxu0 %v3344
      %v3824 = vpop.f32.mrb[0].mxu0
      %v3825 = vadd.f32 %v3664, %v3824
      %v3826 = vpop.f32.mrb[0].mxu0
      %v3827 = vpop.f32.mrb[0].mxu0
      %v3828 = vadd.f32 %v3667, %v3827
      %v3829 = vpop.f32.mrb[0].mxu0
      %3830 = vmatprep.mubr.bf16.mxu0 0
      %3831 = vmatmul.mubr.bf16.gmra.mrb[0].mxu0 %v3347
      %v3832 = vpop.f32.mrb[0].mxu0
      %v3833 = vadd.f32 %v3672, %v3832
      %v3834 = vpop.f32.mrb[0].mxu0
      %v3835 = vpop.f32.mrb[0].mxu0
      %v3836 = vadd.f32 %v3675, %v3835
      %v3837 = vpop.f32.mrb[0].mxu0
      %3838 = vmatprep.mubr.bf16.mxu0 0
      %3839 = vmatmul.mubr.bf16.gmra.mrb[0].mxu0 %v3350
      %v3840 = vpop.f32.mrb[0].mxu0
      %v3841 = vadd.f32 %v3680, %v3840
      %v3842 = vpop.f32.mrb[0].mxu0
      %v3843 = vpop.f32.mrb[0].mxu0
      %v3844 = vadd.f32 %v3683, %v3843
      %v3845 = vpop.f32.mrb[0].mxu0
      %3846 = vmatprep.mubr.bf16.mxu0 0
      %3847 = vmatmul.mubr.bf16.gmra.mrb[0].mxu0 %v3353
      %v3848 = vpop.f32.mrb[0].mxu0
      %v3849 = vadd.f32 %v3688, %v3848
      %v3850 = vpop.f32.mrb[0].mxu0
      %v3851 = vpop.f32.mrb[0].mxu0
      %v3852 = vadd.f32 %v3691, %v3851
      %v3853 = vpop.f32.mrb[0].mxu0
      %3854 = vmatprep.mubr.bf16.mxu0 0
      %3855 = vmatmul.mubr.bf16.gmra.mrb[0].mxu0 %v3356
      %v3856 = vpop.f32.mrb[0].mxu0
      %v3857 = vadd.f32 %v3696, %v3856
      %v3858 = vpop.f32.mrb[0].mxu0
      %v3859 = vpop.f32.mrb[0].mxu0
      %v3860 = vadd.f32 %v3699, %v3859
      %v3861 = vpop.f32.mrb[0].mxu0
      %3862 = vmatprep.mubr.bf16.mxu0 0
      %3863 = vmatmul.mubr.bf16.gmra.mrb[0].mxu0 %v3359
      %v3864 = vpop.f32.mrb[0].mxu0
      %v3865 = vadd.f32 %v3704, %v3864
      %v3866 = vpop.f32.mrb[0].mxu0
      %v3867 = vpop.f32.mrb[0].mxu0
      %v3868 = vadd.f32 %v3707, %v3867
      %v3869 = vpop.f32.mrb[0].mxu0
      %3870 = vmatprep.mubr.bf16.mxu0 0
      %3871 = vmatmul.mubr.bf16.gmra.mrb[0].mxu0 %v3362
      %v3872 = vpop.f32.mrb[0].mxu0
      %v3873 = vadd.f32 %v3712, %v3872
      %v3874 = vpop.f32.mrb[0].mxu0
      %v3875 = vpop.f32.mrb[0].mxu0
      %v3876 = vadd.f32 %v3715, %v3875
      %v3877 = vpop.f32.mrb[0].mxu0
      %3878 = vmatprep.mubr.bf16.mxu0 0
      %3879 = vmatmul.mubr.bf16.gmra.mrb[0].mxu0 %v3365
      %v3880 = vpop.f32.mrb[0].mxu0
      %v3881 = vadd.f32 %v3720, %v3880
      %v3882 = vpop.f32.mrb[0].mxu0
      %v3883 = vpop.f32.mrb[0].mxu0
      %v3884 = vadd.f32 %v3723, %v3883
      %v3885 = vpop.f32.mrb[0].mxu0
      %3886 = vmatprep.mubr.bf16.mxu0 0
      %3887 = vmatmul.mubr.bf16.gmra.mrb[0].mxu0 %v3368
      %v3888 = vpop.f32.mrb[0].mxu0
      %v3889 = vadd.f32 %v3728, %v3888
      %v3890 = vpop.f32.mrb[0].mxu0
      %v3891 = vpop.f32.mrb[0].mxu0
      %v3892 = vadd.f32 %v3731, %v3891
      %v3893 = vpop.f32.mrb[0].mxu0
      %3894 = vmatprep.mubr.bf16.mxu0 0
      %3895 = vmatmul.mubr.bf16.gmra.mrb[0].mxu0 %v3371
      %v3896 = vpop.f32.mrb[0].mxu0
      %v3897 = vadd.f32 %v3736, %v3896
      %v3898 = vpop.f32.mrb[0].mxu0
      %v3899 = vpop.f32.mrb[0].mxu0
      %v3900 = vadd.f32 %v3739, %v3899
      %v3901 = vpop.f32.mrb[0].mxu0
      %3902 = vdwg.mxu0
      %v3903 = vadd.f32 %v2733, %v3777
      %v3904 = vadd.f32 %v2736, %v3780
      %v3905 = vadd.f32 %v2741, %v3785
      %v3906 = vadd.f32 %v2744, %v3788
      %v3907 = vadd.f32 %v2749, %v3793
      %v3908 = vadd.f32 %v2752, %v3796
      %v3909 = vadd.f32 %v2757, %v3801
      %v3910 = vadd.f32 %v2760, %v3804
      %v3911 = vadd.f32 %v2765, %v3809
      %v3912 = vadd.f32 %v2768, %v3812
      %v3913 = vadd.f32 %v2773, %v3817
      %v3914 = vadd.f32 %v2776, %v3820
      %v3915 = vadd.f32 %v2781, %v3825
      %v3916 = vadd.f32 %v2784, %v3828
      %v3917 = vadd.f32 %v2789, %v3833
      %v3918 = vadd.f32 %v2792, %v3836
      %v3919 = vadd.f32 %v2797, %v3841
      %v3920 = vadd.f32 %v2800, %v3844
      %v3921 = vadd.f32 %v2805, %v3849
      %v3922 = vadd.f32 %v2808, %v3852
      %v3923 = vadd.f32 %v2813, %v3857
      %v3924 = vadd.f32 %v2816, %v3860
      %v3925 = vadd.f32 %v2821, %v3865
      %v3926 = vadd.f32 %v2824, %v3868
      %v3927 = vadd.f32 %v2829, %v3873
      %v3928 = vadd.f32 %v2832, %v3876
      %v3929 = vadd.f32 %v2837, %v3881
      %v3930 = vadd.f32 %v2840, %v3884
      %v3931 = vadd.f32 %v2845, %v3889
      %v3932 = vadd.f32 %v2848, %v3892
      %v3933 = vadd.f32 %v2853, %v3897
      %v3934 = vadd.f32 %v2856, %v3900
      %v3935 = vpack.c.bf16 %v3904, %v3903
      %v3936 = vpack.c.bf16 %v3906, %v3905
      %v3937 = vpack.c.bf16 %v3908, %v3907
      %v3938 = vpack.c.bf16 %v3910, %v3909
      %v3939 = vpack.c.bf16 %v3912, %v3911
      %v3940 = vpack.c.bf16 %v3914, %v3913
      %v3941 = vpack.c.bf16 %v3916, %v3915
      %v3942 = vpack.c.bf16 %v3918, %v3917
      %v3943 = vpack.c.bf16 %v3920, %v3919
      %v3944 = vpack.c.bf16 %v3922, %v3921
      %v3945 = vpack.c.bf16 %v3924, %v3923
      %v3946 = vpack.c.bf16 %v3926, %v3925
      %v3947 = vpack.c.bf16 %v3928, %v3927
      %v3948 = vpack.c.bf16 %v3930, %v3929
      %v3949 = vpack.c.bf16 %v3932, %v3931
      %v3950 = vpack.c.bf16 %v3934, %v3933
      %v3967 = vunpack.c.l.b16 %v3935
      %v3968 = vunpack.c.h.b16 %v3935
      %v3969 = vunpack.c.l.b16 %v3936
      %v3970 = vunpack.c.h.b16 %v3936
      %v3971 = vunpack.c.l.b16 %v3937
      %v3972 = vunpack.c.h.b16 %v3937
      %v3973 = vunpack.c.l.b16 %v3938
      %v3974 = vunpack.c.h.b16 %v3938
      %v3975 = vunpack.c.l.b16 %v3939
      %v3976 = vunpack.c.h.b16 %v3939
      %v3977 = vunpack.c.l.b16 %v3940
      %v3978 = vunpack.c.h.b16 %v3940
      %v3979 = vunpack.c.l.b16 %v3941
      %v3980 = vunpack.c.h.b16 %v3941
      %v3981 = vunpack.c.l.b16 %v3942
      %v3982 = vunpack.c.h.b16 %v3942
      %v3983 = vunpack.c.l.b16 %v3943
      %v3984 = vunpack.c.h.b16 %v3943
      %v3985 = vunpack.c.l.b16 %v3944
      %v3986 = vunpack.c.h.b16 %v3944
      %v3987 = vunpack.c.l.b16 %v3945
      %v3988 = vunpack.c.h.b16 %v3945
      %v3989 = vunpack.c.l.b16 %v3946
      %v3990 = vunpack.c.h.b16 %v3946
      %v3991 = vunpack.c.l.b16 %v3947
      %v3992 = vunpack.c.h.b16 %v3947
      %v3993 = vunpack.c.l.b16 %v3948
      %v3994 = vunpack.c.h.b16 %v3948
      %v3995 = vunpack.c.l.b16 %v3949
      %v3996 = vunpack.c.h.b16 %v3949
      %v3997 = vunpack.c.l.b16 %v3950
      %v3998 = vunpack.c.h.b16 %v3950
      %v3999 = vpack.c.b16 %v3967, %v3967
      %v4000 = vpack.c.b16 %v3968, %v3968
      %v4001 = vpack.c.b16 %v3969, %v3969
      %v4002 = vpack.c.b16 %v3970, %v3970
      %v4003 = vpack.c.b16 %v3971, %v3971
      %v4004 = vpack.c.b16 %v3972, %v3972
      %v4005 = vpack.c.b16 %v3973, %v3973
      %v4006 = vpack.c.b16 %v3974, %v3974
      %v4007 = vpack.c.b16 %v3975, %v3975
      %v4008 = vpack.c.b16 %v3976, %v3976
      %v4009 = vpack.c.b16 %v3977, %v3977
      %v4010 = vpack.c.b16 %v3978, %v3978
      %v4011 = vpack.c.b16 %v3979, %v3979
      %v4012 = vpack.c.b16 %v3980, %v3980
      %v4013 = vpack.c.b16 %v3981, %v3981
      %v4014 = vpack.c.b16 %v3982, %v3982
      %v4015 = vpack.c.b16 %v3983, %v3983
      %v4016 = vpack.c.b16 %v3984, %v3984
      %v4017 = vpack.c.b16 %v3985, %v3985
      %v4018 = vpack.c.b16 %v3986, %v3986
      %v4019 = vpack.c.b16 %v3987, %v3987
      %v4020 = vpack.c.b16 %v3988, %v3988
      %v4021 = vpack.c.b16 %v3989, %v3989
      %v4022 = vpack.c.b16 %v3990, %v3990
      %v4023 = vpack.c.b16 %v3991, %v3991
      %v4024 = vpack.c.b16 %v3992, %v3992
      %v4025 = vpack.c.b16 %v3993, %v3993
      %v4026 = vpack.c.b16 %v3994, %v3994
      %v4027 = vpack.c.b16 %v3995, %v3995
      %v4028 = vpack.c.b16 %v3996, %v3996
      %v4029 = vpack.c.b16 %v3997, %v3997
      %v4030 = vpack.c.b16 %v3998, %v3998
      %4063 = vst [vmem:[%s177] sm:$0xf] %v3999
      %4064 = vst [vmem:[%s177 + $0x4] sm:$0xf] %v4000
      %4065 = vst [vmem:[%s177 + $0x8] sm:$0xf] %v4001
      %4066 = vst [vmem:[%s177 + $0xc] sm:$0xf] %v4002
      %4067 = vst [vmem:[%s177 + $0x10] sm:$0xf] %v4003
      %4068 = vst [vmem:[%s177 + $0x14] sm:$0xf] %v4004
      %4069 = vst [vmem:[%s177 + $0x18] sm:$0xf] %v4005
      %4070 = vst [vmem:[%s177 + $0x1c] sm:$0xf] %v4006
      %4071 = vst [vmem:[%s177 + $0x20] sm:$0xf] %v4007
      %4072 = vst [vmem:[%s177 + $0x24] sm:$0xf] %v4008
      %4073 = vst [vmem:[%s177 + $0x28] sm:$0xf] %v4009
      %4074 = vst [vmem:[%s177 + $0x2c] sm:$0xf] %v4010
      %4075 = vst [vmem:[%s177 + $0x30] sm:$0xf] %v4011
      %4076 = vst [vmem:[%s177 + $0x34] sm:$0xf] %v4012
      %4077 = vst [vmem:[%s177 + $0x38] sm:$0xf] %v4013
      %4078 = vst [vmem:[%s177 + $0x3c] sm:$0xf] %v4014
      %4079 = vst [vmem:[%s177 + $0x40] sm:$0xf] %v4015
      %4080 = vst [vmem:[%s177 + $0x44] sm:$0xf] %v4016
      %4081 = vst [vmem:[%s177 + $0x48] sm:$0xf] %v4017
      %4082 = vst [vmem:[%s177 + $0x4c] sm:$0xf] %v4018
      %4083 = vst [vmem:[%s177 + $0x50] sm:$0xf] %v4019
      %4084 = vst [vmem:[%s177 + $0x54] sm:$0xf] %v4020
      %4085 = vst [vmem:[%s177 + $0x58] sm:$0xf] %v4021
      %4086 = vst [vmem:[%s177 + $0x5c] sm:$0xf] %v4022
      %4087 = vst [vmem:[%s177 + $0x60] sm:$0xf] %v4023
      %4088 = vst [vmem:[%s177 + $0x64] sm:$0xf] %v4024
      %4089 = vst [vmem:[%s177 + $0x68] sm:$0xf] %v4025
      %4090 = vst [vmem:[%s177 + $0x6c] sm:$0xf] %v4026
      %4091 = vst [vmem:[%s177 + $0x70] sm:$0xf] %v4027
      %4092 = vst [vmem:[%s177 + $0x74] sm:$0xf] %v4028
      %4093 = vst [vmem:[%s177 + $0x78] sm:$0xf] %v4029
      %4094 = vst [vmem:[%s177 + $0x7c] sm:$0xf] %v4030
      %v4095 = vadd.f32 %v3903, %v3904
      %v4096 = vadd.f32 %v4095, %v3905
      %v4097 = vadd.f32 %v4096, %v3906
      %v4098 = vadd.f32 %v4097, %v3907
      %v4099 = vadd.f32 %v4098, %v3908
      %v4100 = vadd.f32 %v4099, %v3909
      %v4101 = vadd.f32 %v4100, %v3910
      %v4102 = vadd.f32 %v4101, %v3911
      %v4103 = vadd.f32 %v4102, %v3912
      %v4104 = vadd.f32 %v4103, %v3913
      %v4105 = vadd.f32 %v4104, %v3914
      %v4106 = vadd.f32 %v4105, %v3915
      %v4107 = vadd.f32 %v4106, %v3916
      %v4108 = vadd.f32 %v4107, %v3917
      %v4109 = vadd.f32 %v4108, %v3918
      %v4110 = vadd.f32 %v4109, %v3919
      %v4111 = vadd.f32 %v4110, %v3920
      %v4112 = vadd.f32 %v4111, %v3921
      %v4113 = vadd.f32 %v4112, %v3922
      %v4114 = vadd.f32 %v4113, %v3923
      %v4115 = vadd.f32 %v4114, %v3924
      %v4116 = vadd.f32 %v4115, %v3925
      %v4117 = vadd.f32 %v4116, %v3926
      %v4118 = vadd.f32 %v4117, %v3927
      %v4119 = vadd.f32 %v4118, %v3928
      %v4120 = vadd.f32 %v4119, %v3929
      %v4121 = vadd.f32 %v4120, %v3930
      %v4122 = vadd.f32 %v4121, %v3931
      %v4123 = vadd.f32 %v4122, %v3932
      %v4124 = vadd.f32 %v4123, %v3933
      %v4125 = vadd.f32 %v4124, %v3934
      %v4126 = vrot.slane %v4125, 4
      %v4127 = vadd.f32 %v4125, %v4126
      %v4128 = vrot.slane %v4127, 2
      %v4129 = vadd.f32 %v4127, %v4128
      %v4130 = vrot.slane %v4129, 1
      %v4131 = vadd.f32 %v4129, %v4130
      %4132 = vst [vmem:[%s181] sm:$0x1] %v4131
      %v4133 = vmul.f32 %v3903, %v3903
      %v4134 = vmul.f32 %v3904, %v3904
      %v4135 = vmul.f32 %v3905, %v3905
      %v4136 = vmul.f32 %v3906, %v3906
      %v4137 = vmul.f32 %v3907, %v3907
      %v4138 = vmul.f32 %v3908, %v3908
      %v4139 = vmul.f32 %v3909, %v3909
      %v4140 = vmul.f32 %v3910, %v3910
      %v4141 = vmul.f32 %v3911, %v3911
      %v4142 = vmul.f32 %v3912, %v3912
      %v4143 = vmul.f32 %v3913, %v3913
      %v4144 = vmul.f32 %v3914, %v3914
      %v4145 = vmul.f32 %v3915, %v3915
      %v4146 = vmul.f32 %v3916, %v3916
      %v4147 = vmul.f32 %v3917, %v3917
      %v4148 = vmul.f32 %v3918, %v3918
      %v4149 = vmul.f32 %v3919, %v3919
      %v4150 = vmul.f32 %v3920, %v3920
      %v4151 = vmul.f32 %v3921, %v3921
      %v4152 = vmul.f32 %v3922, %v3922
      %v4153 = vmul.f32 %v3923, %v3923
      %v4154 = vmul.f32 %v3924, %v3924
      %v4155 = vmul.f32 %v3925, %v3925
      %v4156 = vmul.f32 %v3926, %v3926
      %v4157 = vmul.f32 %v3927, %v3927
      %v4158 = vmul.f32 %v3928, %v3928
      %v4159 = vmul.f32 %v3929, %v3929
      %v4160 = vmul.f32 %v3930, %v3930
      %v4161 = vmul.f32 %v3931, %v3931
      %v4162 = vmul.f32 %v3932, %v3932
      %v4163 = vmul.f32 %v3933, %v3933
      %v4164 = vmul.f32 %v3934, %v3934
      %v4165 = vadd.f32 %v4133, %v4134
      %v4166 = vadd.f32 %v4165, %v4135
      %v4167 = vadd.f32 %v4166, %v4136
      %v4168 = vadd.f32 %v4167, %v4137
      %v4169 = vadd.f32 %v4168, %v4138
      %v4170 = vadd.f32 %v4169, %v4139
      %v4171 = vadd.f32 %v4170, %v4140
      %v4172 = vadd.f32 %v4171, %v4141
      %v4173 = vadd.f32 %v4172, %v4142
      %v4174 = vadd.f32 %v4173, %v4143
      %v4175 = vadd.f32 %v4174, %v4144
      %v4176 = vadd.f32 %v4175, %v4145
      %v4177 = vadd.f32 %v4176, %v4146
      %v4178 = vadd.f32 %v4177, %v4147
      %v4179 = vadd.f32 %v4178, %v4148
      %v4180 = vadd.f32 %v4179, %v4149
      %v4181 = vadd.f32 %v4180, %v4150
      %v4182 = vadd.f32 %v4181, %v4151
      %v4183 = vadd.f32 %v4182, %v4152
      %v4184 = vadd.f32 %v4183, %v4153
      %v4185 = vadd.f32 %v4184, %v4154
      %v4186 = vadd.f32 %v4185, %v4155
      %v4187 = vadd.f32 %v4186, %v4156
      %v4188 = vadd.f32 %v4187, %v4157
      %v4189 = vadd.f32 %v4188, %v4158
      %v4190 = vadd.f32 %v4189, %v4159
      %v4191 = vadd.f32 %v4190, %v4160
      %v4192 = vadd.f32 %v4191, %v4161
      %v4193 = vadd.f32 %v4192, %v4162
      %v4194 = vadd.f32 %v4193, %v4163
      %v4195 = vadd.f32 %v4194, %v4164
      %v4196 = vrot.slane %v4195, 4
      %v4197 = vadd.f32 %v4195, %v4196
      %v4198 = vrot.slane %v4197, 2
      %v4199 = vadd.f32 %v4197, %v4198
      %v4200 = vrot.slane %v4199, 1
      %v4201 = vadd.f32 %v4199, %v4200
      %4202 = vst [vmem:[%s181 + $0x1] sm:$0x1] %v4201
      %p4203 = scmp.lt.s32.totalorder %s15, 1
      %s4204 = scalar_select %p4203, %s15, 1
      %s4205 = smul.addr %s4204, 32
      %s4206 = smul.addr %s4205, 4
      %s4207 = scalar_lea.vmem %s2, %s4206
      %p4208 = scmp.lt.s32.totalorder %s15, 1
      %s4209 = scalar_select %p4208, %s15, 1
      %s4210 = smul.addr %s4209, 2
      %s4211 = scalar_lea.vmem %s3, %s4210
      // Predicated region
      $region29: #{double_conv_forward.3} parent=27 // pred_check
        %p4212 = pneg %p80
      $region30: #{double_conv_forward.3} parent=27 // pred_check_branch
        %4214 = sbr.rel (%p4212) target = $region32
      $region31: #{double_conv_forward.3} parent=27 // pred_region
        _
      $region32: #{double_conv_forward.3} parent=27 // pred_fallthru
        _
      // Predicated region
      $region33: #{double_conv_forward.3} parent=27 // pred_check
        %p4215 = pneg %p106
      $region34: #{double_conv_forward.3} parent=27 // pred_check_branch
        %4217 = sbr.rel (%p4215) target = $region36
      $region35: #{double_conv_forward.3} parent=27 // pred_region
        _
      $region36: #{double_conv_forward.3} parent=27 // pred_fallthru
        _
    $region28: #{double_conv_forward.3} parent=5 // pred_fallthru
      _
    %p4218 = scmp.le.s32.totalorder 2, %s10
    // Predicated region
    $region37: #{double_conv_forward.3} parent=5 // pred_check
      %p4219 = pneg %p4218
    $region38: #{double_conv_forward.3} parent=5 // pred_check_branch
      %4221 = sbr.rel (%p4219) target = $region40
    $region39: #{double_conv_forward.3} parent=5 // pred_region
      %s4222 = ssub.s32 %s10, 2
      // Predicated region
      $region41: #{double_conv_forward.3} parent=39 // pred_check
        %p4223 = pneg %p86
      $region42: #{double_conv_forward.3} parent=39 // pred_check_branch
        %4225 = sbr.rel (%p4223) target = $region44
      $region43: #{double_conv_forward.3} parent=39 // pred_region
        %p4226 = scmp.lt.s32.totalorder %s16, 1
        %s4227 = scalar_select %p4226, %s16, 1
        %s4228 = smul.addr %s4227, 32
        %s4229 = smul.addr %s4228, 4
        %s4230 = scalar_lea.vmem %s2, %s4229
      $region44: #{double_conv_forward.3} parent=39 // pred_fallthru
        _
      // Predicated region
      $region45: #{double_conv_forward.3} parent=39 // pred_check
        %p4231 = pneg %p112
      $region46: #{double_conv_forward.3} parent=39 // pred_check_branch
        %4233 = sbr.rel (%p4231) target = $region48
      $region47: #{double_conv_forward.3} parent=39 // pred_region
        %p4234 = scmp.lt.s32.totalorder %s16, 1
        %s4235 = scalar_select %p4234, %s16, 1
        %s4236 = smul.addr %s4235, 2
        %s4237 = scalar_lea.vmem %s3, %s4236
      $region48: #{double_conv_forward.3} parent=39 // pred_fallthru
        _
    $region40: #{double_conv_forward.3} parent=5 // pred_fallthru
      _
  $region6: #{double_conv_forward.3} parent=0 // loop_footer
    %s14 = sadd.s32 1, %s10
  $region7: #{double_conv_forward.3} parent=0 // loop_footer_branch
    %9 = sbr.rel target = $region3
  $region8: #{double_conv_forward.3} parent=0 // loop_exit
    _

// kernel: double_conv_forward.4
$region0: #{double_conv_forward.4}
  #allocation0 [shape = 'u32[]', space=smem, size = 0x4, offset = 0x4, fixed_abs, tag = 'smem constant byte address 0x4 - core index']
  #allocation1 [shape = 'u32[144,128]{1,0:T(1,128)}', space=vmem, size = 0x12000, scoped, tag = 'internal scratch']
  #allocation2 [shape = 'bf16[18,18,128]{2,1,0:T(8,128)(2,1)}', space=vmem, size = 0x1b000, scoped, tag = 'scratch operand']
  %s0 = inlined_call_operand.vmem [shape: bf16[2,16,16,128], index: 0, kind: input, shape index: {}]
  %s1 = inlined_call_operand.vmem [shape: bf16[3,384,128], index: 1, kind: input, shape index: {}]
  %s2 = inlined_call_operand.vmem [shape: f32[1,128], index: 2, kind: input, shape index: {}]
  %s3 = inlined_call_operand.vmem [shape: f32[1,128], index: 3, kind: input, shape index: {}]
  %s4 = inlined_call_operand.vmem [shape: bf16[2,16,16,128], index: 4, kind: output, shape index: {0}]
  %s5 = inlined_call_operand.vmem [shape: f32[2,2,128], index: 5, kind: output, shape index: {1}]
  %6 = xla_tuple %s4, %s5
  %s7 = sld [smem:[#allocation0]]
  $region57: #{double_conv_forward.4} parent=0
    _
  %s9 = ssub.s32 1, %s7
  %s10 = scalar_select 0, %s9, %s7
  loop: start=0, step=1, limit=4
  $region2: #{double_conv_forward.4} parent=0 // loop_pre_header
    _
  $region3: #{double_conv_forward.4} parent=0 // loop_header
    %s12 = sphi 0, %s16
    %p13 = scmp.ge.s32.totalorder %s12, 4
    %s22 = sphi 0, %s24
    %s25 = sphi 0, %s22
    %s26 = sphi 0, %s25
    %s42 = sphi 0, %s26
    %s46 = sphi 0, %s46
    %s48 = sphi 0, %s46
    %s49 = sphi 0, %s48
    %s63 = sphi 0, %s49
    %s67 = sphi 0, %s67
    %s69 = sphi 0, %s67
    %s70 = sphi 0, %s69
    %s84 = sphi 0, %s70
    %s88 = sphi 0, %s88
    %s90 = sphi 0, %s88
    %s91 = sphi 0, %s90
    %s105 = sphi 0, %s91
    %s111 = sphi 0, %s113
    %s114 = sphi 0, %s111
    %s115 = sphi 0, %s114
    %s131 = sphi 0, %s115
    %s137 = sphi 0, %s139
    %s140 = sphi 0, %s137
    %s141 = sphi 0, %s140
    %s157 = sphi 0, %s141
  $region4: #{double_conv_forward.4} parent=0 // loop_header_branch
    %15 = sbr.rel (%p13) target = $region8
  $region5: #{double_conv_forward.4} parent=0 // loop_body
    %s17 = ssub.s32 %s12, 1
    %s18 = ssub.s32 %s12, 2
    %s19 = sadd.s32 %s12, 1
    %s20 = ssub.s32 %s12, %s19
    %p21 = scmp.eq.s32.totalorder %s20, 0
    %s23 = sadd.s32 %s22, 1
    %s24 = scalar_select %p21, %s22, %s23
    %p27 = pneg %p21
    %p28 = scmp.eq.s32.totalorder %s12, 1
    %p29 = por %p27, %p28
    %p30 = scmp.ne.s32.totalorder %s22, %s25
    %p31 = scmp.eq.s32.totalorder %s12, 0
    %p32 = por %p30, %p31
    %p33 = scmp.ne.s32.totalorder %s22, %s25
    %p34 = scmp.eq.s32.totalorder %s17, 1
    %p35 = por %p33, %p34
    %p36 = scmp.ne.s32.totalorder %s25, %s26
    %p37 = scmp.eq.s32.totalorder %s17, 0
    %p38 = por %p36, %p37
    %p39 = scmp.ne.s32.totalorder %s25, %s26
    %p40 = scmp.eq.s32.totalorder %s18, 1
    %p41 = por %p39, %p40
    %p43 = scmp.ne.s32.totalorder %s26, %s42
    %p44 = scmp.eq.s32.totalorder %s18, 0
    %p45 = por %p43, %p44
    %s47 = sadd.s32 %s46, 1
    %p50 = scmp.eq.s32.totalorder %s12, 1
    %p51 = scmp.ne.s32.totalorder %s46, %s48
    %p52 = scmp.eq.s32.totalorder %s12, 0
    %p53 = por %p51, %p52
    %p54 = scmp.ne.s32.totalorder %s46, %s48
    %p55 = scmp.eq.s32.totalorder %s17, 1
    %p56 = por %p54, %p55
    %p57 = scmp.ne.s32.totalorder %s48, %s49
    %p58 = scmp.eq.s32.totalorder %s17, 0
    %p59 = por %p57, %p58
    %p60 = scmp.ne.s32.totalorder %s48, %s49
    %p61 = scmp.eq.s32.totalorder %s18, 1
    %p62 = por %p60, %p61
    %p64 = scmp.ne.s32.totalorder %s49, %s63
    %p65 = scmp.eq.s32.totalorder %s18, 0
    %p66 = por %p64, %p65
    %s68 = sadd.s32 %s67, 1
    %p71 = scmp.eq.s32.totalorder %s12, 1
    %p72 = scmp.ne.s32.totalorder %s67, %s69
    %p73 = scmp.eq.s32.totalorder %s12, 0
    %p74 = por %p72, %p73
    %p75 = scmp.ne.s32.totalorder %s67, %s69
    %p76 = scmp.eq.s32.totalorder %s17, 1
    %p77 = por %p75, %p76
    %p78 = scmp.ne.s32.totalorder %s69, %s70
    %p79 = scmp.eq.s32.totalorder %s17, 0
    %p80 = por %p78, %p79
    %p81 = scmp.ne.s32.totalorder %s69, %s70
    %p82 = scmp.eq.s32.totalorder %s18, 1
    %p83 = por %p81, %p82
    %p85 = scmp.ne.s32.totalorder %s70, %s84
    %p86 = scmp.eq.s32.totalorder %s18, 0
    %p87 = por %p85, %p86
    %s89 = sadd.s32 %s88, 1
    %p92 = scmp.eq.s32.totalorder %s12, 1
    %p93 = scmp.ne.s32.totalorder %s88, %s90
    %p94 = scmp.eq.s32.totalorder %s12, 0
    %p95 = por %p93, %p94
    %p96 = scmp.ne.s32.totalorder %s88, %s90
    %p97 = scmp.eq.s32.totalorder %s17, 1
    %p98 = por %p96, %p97
    %p99 = scmp.ne.s32.totalorder %s90, %s91
    %p100 = scmp.eq.s32.totalorder %s17, 0
    %p101 = por %p99, %p100
    %p102 = scmp.ne.s32.totalorder %s90, %s91
    %p103 = scmp.eq.s32.totalorder %s18, 1
    %p104 = por %p102, %p103
    %p106 = scmp.ne.s32.totalorder %s91, %s105
    %p107 = scmp.eq.s32.totalorder %s18, 0
    %p108 = por %p106, %p107
    %s109 = ssub.s32 %s12, %s19
    %p110 = scmp.eq.s32.totalorder %s109, 0
    %s112 = sadd.s32 %s111, 1
    %s113 = scalar_select %p110, %s111, %s112
    %p116 = pneg %p110
    %p117 = scmp.eq.s32.totalorder %s12, 1
    %p118 = por %p116, %p117
    %p119 = scmp.ne.s32.totalorder %s111, %s114
    %p120 = scmp.eq.s32.totalorder %s12, 0
    %p121 = por %p119, %p120
    %p122 = scmp.ne.s32.totalorder %s111, %s114
    %p123 = scmp.eq.s32.totalorder %s17, 1
    %p124 = por %p122, %p123
    %p125 = scmp.ne.s32.totalorder %s114, %s115
    %p126 = scmp.eq.s32.totalorder %s17, 0
    %p127 = por %p125, %p126
    %p128 = scmp.ne.s32.totalorder %s114, %s115
    %p129 = scmp.eq.s32.totalorder %s18, 1
    %p130 = por %p128, %p129
    %p132 = scmp.ne.s32.totalorder %s115, %s131
    %p133 = scmp.eq.s32.totalorder %s18, 0
    %p134 = por %p132, %p133
    %s135 = ssub.s32 %s12, %s19
    %p136 = scmp.eq.s32.totalorder %s135, 0
    %s138 = sadd.s32 %s137, 1
    %s139 = scalar_select %p136, %s137, %s138
    %p142 = pneg %p136
    %p143 = scmp.eq.s32.totalorder %s12, 1
    %p144 = por %p142, %p143
    %p145 = scmp.ne.s32.totalorder %s137, %s140
    %p146 = scmp.eq.s32.totalorder %s12, 0
    %p147 = por %p145, %p146
    %p148 = scmp.ne.s32.totalorder %s137, %s140
    %p149 = scmp.eq.s32.totalorder %s17, 1
    %p150 = por %p148, %p149
    %p151 = scmp.ne.s32.totalorder %s140, %s141
    %p152 = scmp.eq.s32.totalorder %s17, 0
    %p153 = por %p151, %p152
    %p154 = scmp.ne.s32.totalorder %s140, %s141
    %p155 = scmp.eq.s32.totalorder %s18, 1
    %p156 = por %p154, %p155
    %p158 = scmp.ne.s32.totalorder %s141, %s157
    %p159 = scmp.eq.s32.totalorder %s18, 0
    %p160 = por %p158, %p159
    %p161 = scmp.le.s32.totalorder 1, %s12
    %p162 = scmp.lt.s32.totalorder %s12, 3
    %p163 = pnand %p161, %p162
    %p164 = pneg %p163
    // Predicated region
    $region9: #{double_conv_forward.4} parent=5 // pred_check
      _
    $region10: #{double_conv_forward.4} parent=5 // pred_check_branch
      %166 = sbr.rel (%p163) target = $region12
    $region11: #{double_conv_forward.4} parent=5 // pred_region
      %s167 = ssub.s32 %s12, 1
      // Predicated region
      $region13: #{double_conv_forward.4} parent=11 // pred_check
        %p168 = pneg %p59
      $region14: #{double_conv_forward.4} parent=11 // pred_check_branch
        %170 = sbr.rel (%p168) target = $region16
      $region15: #{double_conv_forward.4} parent=11 // pred_region
        _
      $region16: #{double_conv_forward.4} parent=11 // pred_fallthru
        _
      // Predicated region
      $region17: #{double_conv_forward.4} parent=11 // pred_check
        %p171 = pneg %p80
      $region18: #{double_conv_forward.4} parent=11 // pred_check_branch
        %173 = sbr.rel (%p171) target = $region20
      $region19: #{double_conv_forward.4} parent=11 // pred_region
        _
      $region20: #{double_conv_forward.4} parent=11 // pred_fallthru
        _
      // Predicated region
      $region21: #{double_conv_forward.4} parent=11 // pred_check
        %p174 = pneg %p101
      $region22: #{double_conv_forward.4} parent=11 // pred_check_branch
        %176 = sbr.rel (%p174) target = $region24
      $region23: #{double_conv_forward.4} parent=11 // pred_region
        _
      $region24: #{double_conv_forward.4} parent=11 // pred_fallthru
        _
    $region12: #{double_conv_forward.4} parent=5 // pred_fallthru
      _
    %p177 = scmp.lt.s32.totalorder %s12, 2
    // Predicated region
    $region25: #{double_conv_forward.4} parent=5 // pred_check
      %p178 = pneg %p177
    $region26: #{double_conv_forward.4} parent=5 // pred_check_branch
      %180 = sbr.rel (%p178) target = $region28
    $region27: #{double_conv_forward.4} parent=5 // pred_region
      // Predicated region
      $region29: #{double_conv_forward.4} parent=27 // pred_check
        %p181 = pneg %p32
      $region30: #{double_conv_forward.4} parent=27 // pred_check_branch
        %183 = sbr.rel (%p181) target = $region32
      $region31: #{double_conv_forward.4} parent=27 // pred_region
        %p184 = scmp.lt.s32.totalorder %s12, 1
        %s185 = scalar_select %p184, %s12, 1
        %s186 = smul.addr %s185, 32
        %s187 = smul.addr %s186, 4
        %s188 = scalar_lea.vmem %s0, %s187
      $region32: #{double_conv_forward.4} parent=27 // pred_fallthru
        _
    $region28: #{double_conv_forward.4} parent=5 // pred_fallthru
      _
    %p189 = scmp.le.s32.totalorder 1, %s12
    %p190 = scmp.lt.s32.totalorder %s12, 3
    %p191 = pnand %p189, %p190
    %p192 = pneg %p191
    // Predicated region
    $region33: #{double_conv_forward.4} parent=5 // pred_check
      _
    $region34: #{double_conv_forward.4} parent=5 // pred_check_branch
      %194 = sbr.rel (%p191) target = $region36
    $region35: #{double_conv_forward.4} parent=5 // pred_region
      %s195 = ssub.s32 %s12, 1
      %p196 = scmp.lt.s32.totalorder %s17, 1
      %s197 = scalar_select %p196, %s17, 1
      %s198 = smul.addr %s197, 32
      %s199 = smul.addr %s198, 4
      %s200 = scalar_lea.vmem %s0, %s199
      %p201 = pneg %p38
      %p202 = pneg %p35
      %p203 = pneg %p59
      %p204 = pneg %p56
      %p205 = pneg %p80
      %p206 = pneg %p77
      %p207 = pneg %p101
      %p208 = pneg %p98
      %p209 = pneg %p127
      %p210 = pneg %p124
      %p211 = scmp.lt.s32.totalorder %s17, 1
      %s212 = scalar_select %p211, %s17, 1
      %s213 = smul.addr %s212, 32
      %s214 = smul.addr %s213, 4
      %s215 = scalar_lea.vmem %s4, %s214
      %p216 = pneg %p153
      %p217 = pneg %p150
      %p218 = scmp.lt.s32.totalorder %s17, 1
      %s219 = scalar_select %p218, %s17, 1
      %s220 = smul.addr %s219, 2
      %s221 = scalar_lea.vmem %s5, %s220
      %p222 = scmp.lt.s32.totalorder %s17, 1
      %s223 = scalar_select %p222, %s17, 1
      %s224 = smul.addr %s223, 32
      %s225 = smul.addr %s224, 4
      %s226 = scalar_lea.vmem %s0, %s225
      %p227 = scmp.lt.s32.totalorder %s17, 1
      %s228 = scalar_select %p227, %s17, 1
      %s229 = smul.addr %s228, 32
      %s230 = smul.addr %s229, 4
      %s231 = scalar_lea.vmem %s4, %s230
      %p232 = scmp.lt.s32.totalorder %s17, 1
      %s233 = scalar_select %p232, %s17, 1
      %s234 = smul.addr %s233, 2
      %s235 = scalar_lea.vmem %s5, %s234
      %237 = vst [vmem:[#allocation2] sm:$0xf] 0
      %238 = vst [vmem:[#allocation2 + $0x4] sm:$0xf] 0
      %239 = vst [vmem:[#allocation2 + $0x8] sm:$0x1] 0
      %s240 = scalar_lea.vmem [#allocation2], 204
      %241 = vst [vmem:[%s240] sm:$0xf] 0
      %242 = vst [vmem:[%s240 + $0x4] sm:$0xf] 0
      %243 = vst [vmem:[%s240 + $0x8] sm:$0x1] 0
      %vm244 = vcmask 1040384
      %vm245 = vsmask.f32 256
      %vm246 = vmand %vm244, %vm245
      %v247 = vld [vmem:[#allocation2] sm:$0x1]
      %v248 = vsel %vm246, 0, %v247
      %249 = vst [vmem:[#allocation2] sm:$0x1] %v248
      %v250 = vld [vmem:[#allocation2 + $0xc] sm:$0x1]
      %v251 = vsel %vm246, 0, %v250
      %252 = vst [vmem:[#allocation2 + $0xc] sm:$0x1] %v251
      %v253 = vld [vmem:[#allocation2 + $0x18] sm:$0x1]
      %v254 = vsel %vm246, 0, %v253
      %255 = vst [vmem:[#allocation2 + $0x18] sm:$0x1] %v254
      %v256 = vld [vmem:[#allocation2 + $0x24] sm:$0x1]
      %v257 = vsel %vm246, 0, %v256
      %258 = vst [vmem:[#allocation2 + $0x24] sm:$0x1] %v257
      %v259 = vld [vmem:[#allocation2 + $0x30] sm:$0x1]
      %v260 = vsel %vm246, 0, %v259
      %261 = vst [vmem:[#allocation2 + $0x30] sm:$0x1] %v260
      %v262 = vld [vmem:[#allocation2 + $0x3c] sm:$0x1]
      %v263 = vsel %vm246, 0, %v262
      %264 = vst [vmem:[#allocation2 + $0x3c] sm:$0x1] %v263
      %v265 = vld [vmem:[#allocation2 + $0x48] sm:$0x1]
      %v266 = vsel %vm246, 0, %v265
      %267 = vst [vmem:[#allocation2 + $0x48] sm:$0x1] %v266
      %v268 = vld [vmem:[#allocation2 + $0x54] sm:$0x1]
      %v269 = vsel %vm246, 0, %v268
      %270 = vst [vmem:[#allocation2 + $0x54] sm:$0x1] %v269
      %v271 = vld [vmem:[#allocation2 + $0x60] sm:$0x1]
      %v272 = vsel %vm246, 0, %v271
      %273 = vst [vmem:[#allocation2 + $0x60] sm:$0x1] %v272
      %v274 = vld [vmem:[#allocation2 + $0x6c] sm:$0x1]
      %v275 = vsel %vm246, 0, %v274
      %276 = vst [vmem:[#allocation2 + $0x6c] sm:$0x1] %v275
      %v277 = vld [vmem:[#allocation2 + $0x78] sm:$0x1]
      %v278 = vsel %vm246, 0, %v277
      %279 = vst [vmem:[#allocation2 + $0x78] sm:$0x1] %v278
      %v280 = vld [vmem:[#allocation2 + $0x84] sm:$0x1]
      %v281 = vsel %vm246, 0, %v280
      %282 = vst [vmem:[#allocation2 + $0x84] sm:$0x1] %v281
      %v283 = vld [vmem:[#allocation2 + $0x90] sm:$0x1]
      %v284 = vsel %vm246, 0, %v283
      %285 = vst [vmem:[#allocation2 + $0x90] sm:$0x1] %v284
      %v286 = vld [vmem:[#allocation2 + $0x9c] sm:$0x1]
      %v287 = vsel %vm246, 0, %v286
      %288 = vst [vmem:[#allocation2 + $0x9c] sm:$0x1] %v287
      %v289 = vld [vmem:[#allocation2 + $0xa8] sm:$0x1]
      %v290 = vsel %vm246, 0, %v289
      %291 = vst [vmem:[#allocation2 + $0xa8] sm:$0x1] %v290
      %v292 = vld [vmem:[#allocation2 + $0xb4] sm:$0x1]
      %v293 = vsel %vm246, 0, %v292
      %294 = vst [vmem:[#allocation2 + $0xb4] sm:$0x1] %v293
      %v295 = vld [vmem:[#allocation2 + $0xc0] sm:$0x1]
      %v296 = vsel %vm246, 0, %v295
      %297 = vst [vmem:[#allocation2 + $0xc0] sm:$0x1] %v296
      %v298 = vld [vmem:[#allocation2 + $0xcc] sm:$0x1]
      %v299 = vsel %vm246, 0, %v298
      %300 = vst [vmem:[#allocation2 + $0xcc] sm:$0x1] %v299
      %vm301 = vsmask.f32 7938
      %vm302 = vmand %vm244, %vm301
      %v303 = vld [vmem:[#allocation2 + $0x8] sm:$0x1]
      %v304 = vsel %vm302, 0, %v303
      %305 = vst [vmem:[#allocation2 + $0x8] sm:$0x1] %v304
      %v306 = vld [vmem:[#allocation2 + $0x14] sm:$0x1]
      %v307 = vsel %vm302, 0, %v306
      %308 = vst [vmem:[#allocation2 + $0x14] sm:$0x1] %v307
      %v309 = vld [vmem:[#allocation2 + $0x20] sm:$0x1]
      %v310 = vsel %vm302, 0, %v309
      %311 = vst [vmem:[#allocation2 + $0x20] sm:$0x1] %v310
      %v312 = vld [vmem:[#allocation2 + $0x2c] sm:$0x1]
      %v313 = vsel %vm302, 0, %v312
      %314 = vst [vmem:[#allocation2 + $0x2c] sm:$0x1] %v313
      %v315 = vld [vmem:[#allocation2 + $0x38] sm:$0x1]
      %v316 = vsel %vm302, 0, %v315
      %317 = vst [vmem:[#allocation2 + $0x38] sm:$0x1] %v316
      %v318 = vld [vmem:[#allocation2 + $0x44] sm:$0x1]
      %v319 = vsel %vm302, 0, %v318
      %320 = vst [vmem:[#allocation2 + $0x44] sm:$0x1] %v319
      %v321 = vld [vmem:[#allocation2 + $0x50] sm:$0x1]
      %v322 = vsel %vm302, 0, %v321
      %323 = vst [vmem:[#allocation2 + $0x50] sm:$0x1] %v322
      %v324 = vld [vmem:[#allocation2 + $0x5c] sm:$0x1]
      %v325 = vsel %vm302, 0, %v324
      %326 = vst [vmem:[#allocation2 + $0x5c] sm:$0x1] %v325
      %v327 = vld [vmem:[#allocation2 + $0x68] sm:$0x1]
      %v328 = vsel %vm302, 0, %v327
      %329 = vst [vmem:[#allocation2 + $0x68] sm:$0x1] %v328
      %v330 = vld [vmem:[#allocation2 + $0x74] sm:$0x1]
      %v331 = vsel %vm302, 0, %v330
      %332 = vst [vmem:[#allocation2 + $0x74] sm:$0x1] %v331
      %v333 = vld [vmem:[#allocation2 + $0x80] sm:$0x1]
      %v334 = vsel %vm302, 0, %v333
      %335 = vst [vmem:[#allocation2 + $0x80] sm:$0x1] %v334
      %v336 = vld [vmem:[#allocation2 + $0x8c] sm:$0x1]
      %v337 = vsel %vm302, 0, %v336
      %338 = vst [vmem:[#allocation2 + $0x8c] sm:$0x1] %v337
      %v339 = vld [vmem:[#allocation2 + $0x98] sm:$0x1]
      %v340 = vsel %vm302, 0, %v339
      %341 = vst [vmem:[#allocation2 + $0x98] sm:$0x1] %v340
      %v342 = vld [vmem:[#allocation2 + $0xa4] sm:$0x1]
      %v343 = vsel %vm302, 0, %v342
      %344 = vst [vmem:[#allocation2 + $0xa4] sm:$0x1] %v343
      %v345 = vld [vmem:[#allocation2 + $0xb0] sm:$0x1]
      %v346 = vsel %vm302, 0, %v345
      %347 = vst [vmem:[#allocation2 + $0xb0] sm:$0x1] %v346
      %v348 = vld [vmem:[#allocation2 + $0xbc] sm:$0x1]
      %v349 = vsel %vm302, 0, %v348
      %350 = vst [vmem:[#allocation2 + $0xbc] sm:$0x1] %v349
      %v351 = vld [vmem:[#allocation2 + $0xc8] sm:$0x1]
      %v352 = vsel %vm302, 0, %v351
      %353 = vst [vmem:[#allocation2 + $0xc8] sm:$0x1] %v352
      %v354 = vld [vmem:[#allocation2 + $0xd4] sm:$0x1]
      %v355 = vsel %vm302, 0, %v354
      %356 = vst [vmem:[#allocation2 + $0xd4] sm:$0x1] %v355
      %v357 = vld [vmem:[%s226] sm:$0xf]
      %v358 = vld [vmem:[%s226 + $0x4] sm:$0xf]
      %v359 = vld [vmem:[%s226 + $0x8] sm:$0xf]
      %v360 = vld [vmem:[%s226 + $0xc] sm:$0xf]
      %v361 = vld [vmem:[%s226 + $0x10] sm:$0xf]
      %v362 = vld [vmem:[%s226 + $0x14] sm:$0xf]
      %v363 = vld [vmem:[%s226 + $0x18] sm:$0xf]
      %v364 = vld [vmem:[%s226 + $0x1c] sm:$0xf]
      %v365 = vld [vmem:[%s226 + $0x20] sm:$0xf]
      %v366 = vld [vmem:[%s226 + $0x24] sm:$0xf]
      %v367 = vld [vmem:[%s226 + $0x28] sm:$0xf]
      %v368 = vld [vmem:[%s226 + $0x2c] sm:$0xf]
      %v369 = vld [vmem:[%s226 + $0x30] sm:$0xf]
      %v370 = vld [vmem:[%s226 + $0x34] sm:$0xf]
      %v371 = vld [vmem:[%s226 + $0x38] sm:$0xf]
      %v372 = vld [vmem:[%s226 + $0x3c] sm:$0xf]
      %v373 = vld [vmem:[%s226 + $0x40] sm:$0xf]
      %v374 = vld [vmem:[%s226 + $0x44] sm:$0xf]
      %v375 = vld [vmem:[%s226 + $0x48] sm:$0xf]
      %v376 = vld [vmem:[%s226 + $0x4c] sm:$0xf]
      %v377 = vld [vmem:[%s226 + $0x50] sm:$0xf]
      %v378 = vld [vmem:[%s226 + $0x54] sm:$0xf]
      %v379 = vld [vmem:[%s226 + $0x58] sm:$0xf]
      %v380 = vld [vmem:[%s226 + $0x5c] sm:$0xf]
      %v381 = vld [vmem:[%s226 + $0x60] sm:$0xf]
      %v382 = vld [vmem:[%s226 + $0x64] sm:$0xf]
      %v383 = vld [vmem:[%s226 + $0x68] sm:$0xf]
      %v384 = vld [vmem:[%s226 + $0x6c] sm:$0xf]
      %v385 = vld [vmem:[%s226 + $0x70] sm:$0xf]
      %v386 = vld [vmem:[%s226 + $0x74] sm:$0xf]
      %v387 = vld [vmem:[%s226 + $0x78] sm:$0xf]
      %v388 = vld [vmem:[%s226 + $0x7c] sm:$0xf]
      %v389 = vld [vmem:[%s2] sm:$0x1]
      %v390 = vld [vmem:[%s3] sm:$0x1]
      %v391 = vunpack.c.l.bf16 %v357
      %v392 = vunpack.c.l.bf16 %v358
      %v393 = vunpack.c.l.bf16 %v359
      %v394 = vunpack.c.l.bf16 %v360
      %v395 = vunpack.c.l.bf16 %v361
      %v396 = vunpack.c.l.bf16 %v362
      %v397 = vunpack.c.l.bf16 %v363
      %v398 = vunpack.c.l.bf16 %v364
      %v399 = vunpack.c.l.bf16 %v365
      %v400 = vunpack.c.l.bf16 %v366
      %v401 = vunpack.c.l.bf16 %v367
      %v402 = vunpack.c.l.bf16 %v368
      %v403 = vunpack.c.l.bf16 %v369
      %v404 = vunpack.c.l.bf16 %v370
      %v405 = vunpack.c.l.bf16 %v371
      %v406 = vunpack.c.l.bf16 %v372
      %v407 = vunpack.c.l.bf16 %v373
      %v408 = vunpack.c.l.bf16 %v374
      %v409 = vunpack.c.l.bf16 %v375
      %v410 = vunpack.c.l.bf16 %v376
      %v411 = vunpack.c.l.bf16 %v377
      %v412 = vunpack.c.l.bf16 %v378
      %v413 = vunpack.c.l.bf16 %v379
      %v414 = vunpack.c.l.bf16 %v380
      %v415 = vunpack.c.l.bf16 %v381
      %v416 = vunpack.c.l.bf16 %v382
      %v417 = vunpack.c.l.bf16 %v383
      %v418 = vunpack.c.l.bf16 %v384
      %v419 = vunpack.c.l.bf16 %v385
      %v420 = vunpack.c.l.bf16 %v386
      %v421 = vunpack.c.l.bf16 %v387
      %v422 = vunpack.c.l.bf16 %v388
      %v424 = vlaneseq
      %v425 = vshrl.u32 %v424, 7
      %v426 = vsub.s32 0, %v425
      %v427 = vrot.slane %v389, %v426
      %v429 = vmul.f32 %v391, %v427
      %v430 = vmul.f32 %v392, %v427
      %v431 = vmul.f32 %v393, %v427
      %v432 = vmul.f32 %v394, %v427
      %v433 = vmul.f32 %v395, %v427
      %v434 = vmul.f32 %v396, %v427
      %v435 = vmul.f32 %v397, %v427
      %v436 = vmul.f32 %v398, %v427
      %v437 = vmul.f32 %v399, %v427
      %v438 = vmul.f32 %v400, %v427
      %v439 = vmul.f32 %v401, %v427
      %v440 = vmul.f32 %v402, %v427
      %v441 = vmul.f32 %v403, %v427
      %v442 = vmul.f32 %v404, %v427
      %v443 = vmul.f32 %v405, %v427
      %v444 = vmul.f32 %v406, %v427
      %v445 = vmul.f32 %v407, %v427
      %v446 = vmul.f32 %v408, %v427
      %v447 = vmul.f32 %v409, %v427
      %v448 = vmul.f32 %v410, %v427
      %v449 = vmul.f32 %v411, %v427
      %v450 = vmul.f32 %v412, %v427
      %v451 = vmul.f32 %v413, %v427
      %v452 = vmul.f32 %v414, %v427
      %v453 = vmul.f32 %v415, %v427
      %v454 = vmul.f32 %v416, %v427
      %v455 = vmul.f32 %v417, %v427
      %v456 = vmul.f32 %v418, %v427
      %v457 = vmul.f32 %v419, %v427
      %v458 = vmul.f32 %v420, %v427
      %v459 = vmul.f32 %v421, %v427
      %v460 = vmul.f32 %v422, %v427
      %v462 = vlaneseq
      %v463 = vshrl.u32 %v462, 7
      %v464 = vsub.s32 0, %v463
      %v465 = vrot.slane %v390, %v464
      %v467 = vadd.f32 %v429, %v465
      %v468 = vadd.f32 %v430, %v465
      %v469 = vadd.f32 %v431, %v465
      %v470 = vadd.f32 %v432, %v465
      %v471 = vadd.f32 %v433, %v465
      %v472 = vadd.f32 %v434, %v465
      %v473 = vadd.f32 %v435, %v465
      %v474 = vadd.f32 %v436, %v465
      %v475 = vadd.f32 %v437, %v465
      %v476 = vadd.f32 %v438, %v465
      %v477 = vadd.f32 %v439, %v465
      %v478 = vadd.f32 %v440, %v465
      %v479 = vadd.f32 %v441, %v465
      %v480 = vadd.f32 %v442, %v465
      %v481 = vadd.f32 %v443, %v465
      %v482 = vadd.f32 %v444, %v465
      %v483 = vadd.f32 %v445, %v465
      %v484 = vadd.f32 %v446, %v465
      %v485 = vadd.f32 %v447, %v465
      %v486 = vadd.f32 %v448, %v465
      %v487 = vadd.f32 %v449, %v465
      %v488 = vadd.f32 %v450, %v465
      %v489 = vadd.f32 %v451, %v465
      %v490 = vadd.f32 %v452, %v465
      %v491 = vadd.f32 %v453, %v465
      %v492 = vadd.f32 %v454, %v465
      %v493 = vadd.f32 %v455, %v465
      %v494 = vadd.f32 %v456, %v465
      %v495 = vadd.f32 %v457, %v465
      %v496 = vadd.f32 %v458, %v465
      %v497 = vadd.f32 %v459, %v465
      %v498 = vadd.f32 %v460, %v465
      %v499 = vmax.f32 %v467, 0.0
      %v500 = vmax.f32 %v468, 0.0
      %v501 = vmax.f32 %v469, 0.0
      %v502 = vmax.f32 %v470, 0.0
      %v503 = vmax.f32 %v471, 0.0
      %v504 = vmax.f32 %v472, 0.0
      %v505 = vmax.f32 %v473, 0.0
      %v506 = vmax.f32 %v474, 0.0
      %v507 = vmax.f32 %v475, 0.0
      %v508 = vmax.f32 %v476, 0.0
      %v509 = vmax.f32 %v477, 0.0
      %v510 = vmax.f32 %v478, 0.0
      %v511 = vmax.f32 %v479, 0.0
      %v512 = vmax.f32 %v480, 0.0
      %v513 = vmax.f32 %v481, 0.0
      %v514 = vmax.f32 %v482, 0.0
      %v515 = vmax.f32 %v483, 0.0
      %v516 = vmax.f32 %v484, 0.0
      %v517 = vmax.f32 %v485, 0.0
      %v518 = vmax.f32 %v486, 0.0
      %v519 = vmax.f32 %v487, 0.0
      %v520 = vmax.f32 %v488, 0.0
      %v521 = vmax.f32 %v489, 0.0
      %v522 = vmax.f32 %v490, 0.0
      %v523 = vmax.f32 %v491, 0.0
      %v524 = vmax.f32 %v492, 0.0
      %v525 = vmax.f32 %v493, 0.0
      %v526 = vmax.f32 %v494, 0.0
      %v527 = vmax.f32 %v495, 0.0
      %v528 = vmax.f32 %v496, 0.0
      %v529 = vmax.f32 %v497, 0.0
      %v530 = vmax.f32 %v498, 0.0
      %v531 = vpack.c.bf16 %v500, %v499
      %v532 = vpack.c.bf16 %v502, %v501
      %v533 = vpack.c.bf16 %v504, %v503
      %v534 = vpack.c.bf16 %v506, %v505
      %v535 = vpack.c.bf16 %v508, %v507
      %v536 = vpack.c.bf16 %v510, %v509
      %v537 = vpack.c.bf16 %v512, %v511
      %v538 = vpack.c.bf16 %v514, %v513
      %v539 = vpack.c.bf16 %v516, %v515
      %v540 = vpack.c.bf16 %v518, %v517
      %v541 = vpack.c.bf16 %v520, %v519
      %v542 = vpack.c.bf16 %v522, %v521
      %v543 = vpack.c.bf16 %v524, %v523
      %v544 = vpack.c.bf16 %v526, %v525
      %v545 = vpack.c.bf16 %v528, %v527
      %v546 = vpack.c.bf16 %v530, %v529
      %v563 = vunpack.c.l.b16 %v531
      %v564 = vunpack.c.h.b16 %v531
      %v565 = vunpack.c.l.b16 %v532
      %v566 = vunpack.c.h.b16 %v532
      %v567 = vunpack.c.l.b16 %v533
      %v568 = vunpack.c.h.b16 %v533
      %v569 = vunpack.c.l.b16 %v534
      %v570 = vunpack.c.h.b16 %v534
      %v571 = vunpack.c.l.b16 %v535
      %v572 = vunpack.c.h.b16 %v535
      %v573 = vunpack.c.l.b16 %v536
      %v574 = vunpack.c.h.b16 %v536
      %v575 = vunpack.c.l.b16 %v537
      %v576 = vunpack.c.h.b16 %v537
      %v577 = vunpack.c.l.b16 %v538
      %v578 = vunpack.c.h.b16 %v538
      %v579 = vunpack.c.l.b16 %v539
      %v580 = vunpack.c.h.b16 %v539
      %v581 = vunpack.c.l.b16 %v540
      %v582 = vunpack.c.h.b16 %v540
      %v583 = vunpack.c.l.b16 %v541
      %v584 = vunpack.c.h.b16 %v541
      %v585 = vunpack.c.l.b16 %v542
      %v586 = vunpack.c.h.b16 %v542
      %v587 = vunpack.c.l.b16 %v543
      %v588 = vunpack.c.h.b16 %v543
      %v589 = vunpack.c.l.b16 %v544
      %v590 = vunpack.c.h.b16 %v544
      %v591 = vunpack.c.l.b16 %v545
      %v592 = vunpack.c.h.b16 %v545
      %v593 = vunpack.c.l.b16 %v546
      %v594 = vunpack.c.h.b16 %v546
      %v595 = vpack.c.b16 %v563, %v563
      %v596 = vpack.c.b16 %v564, %v564
      %v597 = vpack.c.b16 %v565, %v565
      %v598 = vpack.c.b16 %v566, %v566
      %v599 = vpack.c.b16 %v567, %v567
      %v600 = vpack.c.b16 %v568, %v568
      %v601 = vpack.c.b16 %v569, %v569
      %v602 = vpack.c.b16 %v570, %v570
      %v603 = vpack.c.b16 %v571, %v571
      %v604 = vpack.c.b16 %v572, %v572
      %v605 = vpack.c.b16 %v573, %v573
      %v606 = vpack.c.b16 %v574, %v574
      %v607 = vpack.c.b16 %v575, %v575
      %v608 = vpack.c.b16 %v576, %v576
      %v609 = vpack.c.b16 %v577, %v577
      %v610 = vpack.c.b16 %v578, %v578
      %v611 = vpack.c.b16 %v579, %v579
      %v612 = vpack.c.b16 %v580, %v580
      %v613 = vpack.c.b16 %v581, %v581
      %v614 = vpack.c.b16 %v582, %v582
      %v615 = vpack.c.b16 %v583, %v583
      %v616 = vpack.c.b16 %v584, %v584
      %v617 = vpack.c.b16 %v585, %v585
      %v618 = vpack.c.b16 %v586, %v586
      %v619 = vpack.c.b16 %v587, %v587
      %v620 = vpack.c.b16 %v588, %v588
      %v621 = vpack.c.b16 %v589, %v589
      %v622 = vpack.c.b16 %v590, %v590
      %v623 = vpack.c.b16 %v591, %v591
      %v624 = vpack.c.b16 %v592, %v592
      %v625 = vpack.c.b16 %v593, %v593
      %v626 = vpack.c.b16 %v594, %v594
      %vm627 = vsmask.f32 4368
      %vm628 = vmor %vm245, %vm627
      %v630 = vshrl.u32 %v595, 16
      %v632 = vrot.slane %v630, 7
      %v633 = vshll.u32 %v595, 16
      %v635 = vor.u32 %v632, %v633
      %v636 = vrot.slane %v632, 4
      %v638 = vshrl.u32 %v596, 16
      %v640 = vrot.slane %v638, 7
      %v641 = vshll.u32 %v596, 16
      %v643 = vor.u32 %v640, %v641
      %v644 = vsel %vm628, %v636, %v643
      %v645 = vrot.slane %v640, 4
      %v647 = vshrl.u32 %v597, 16
      %v649 = vrot.slane %v647, 7
      %v650 = vshll.u32 %v597, 16
      %v652 = vor.u32 %v649, %v650
      %v653 = vrot.slane %v649, 4
      %v655 = vshrl.u32 %v598, 16
      %v657 = vrot.slane %v655, 7
      %v658 = vshll.u32 %v598, 16
      %v660 = vor.u32 %v657, %v658
      %v661 = vsel %vm628, %v653, %v660
      %v662 = vrot.slane %v657, 4
      %v664 = vshrl.u32 %v599, 16
      %v666 = vrot.slane %v664, 7
      %v667 = vshll.u32 %v599, 16
      %v669 = vor.u32 %v666, %v667
      %v670 = vrot.slane %v666, 4
      %v672 = vshrl.u32 %v600, 16
      %v674 = vrot.slane %v672, 7
      %v675 = vshll.u32 %v600, 16
      %v677 = vor.u32 %v674, %v675
      %v678 = vsel %vm628, %v670, %v677
      %v679 = vrot.slane %v674, 4
      %v681 = vshrl.u32 %v601, 16
      %v683 = vrot.slane %v681, 7
      %v684 = vshll.u32 %v601, 16
      %v686 = vor.u32 %v683, %v684
      %v687 = vrot.slane %v683, 4
      %v689 = vshrl.u32 %v602, 16
      %v691 = vrot.slane %v689, 7
      %v692 = vshll.u32 %v602, 16
      %v694 = vor.u32 %v691, %v692
      %v695 = vsel %vm628, %v687, %v694
      %v696 = vrot.slane %v691, 4
      %v698 = vshrl.u32 %v603, 16
      %v700 = vrot.slane %v698, 7
      %v701 = vshll.u32 %v603, 16
      %v703 = vor.u32 %v700, %v701
      %v704 = vrot.slane %v700, 4
      %v706 = vshrl.u32 %v604, 16
      %v708 = vrot.slane %v706, 7
      %v709 = vshll.u32 %v604, 16
      %v711 = vor.u32 %v708, %v709
      %v712 = vsel %vm628, %v704, %v711
      %v713 = vrot.slane %v708, 4
      %v715 = vshrl.u32 %v605, 16
      %v717 = vrot.slane %v715, 7
      %v718 = vshll.u32 %v605, 16
      %v720 = vor.u32 %v717, %v718
      %v721 = vrot.slane %v717, 4
      %v723 = vshrl.u32 %v606, 16
      %v725 = vrot.slane %v723, 7
      %v726 = vshll.u32 %v606, 16
      %v728 = vor.u32 %v725, %v726
      %v729 = vsel %vm628, %v721, %v728
      %v730 = vrot.slane %v725, 4
      %v732 = vshrl.u32 %v607, 16
      %v734 = vrot.slane %v732, 7
      %v735 = vshll.u32 %v607, 16
      %v737 = vor.u32 %v734, %v735
      %v738 = vrot.slane %v734, 4
      %v740 = vshrl.u32 %v608, 16
      %v742 = vrot.slane %v740, 7
      %v743 = vshll.u32 %v608, 16
      %v745 = vor.u32 %v742, %v743
      %v746 = vsel %vm628, %v738, %v745
      %v747 = vrot.slane %v742, 4
      %v749 = vshrl.u32 %v609, 16
      %v751 = vrot.slane %v749, 7
      %v752 = vshll.u32 %v609, 16
      %v754 = vor.u32 %v751, %v752
      %v755 = vrot.slane %v751, 4
      %v757 = vshrl.u32 %v610, 16
      %v759 = vrot.slane %v757, 7
      %v760 = vshll.u32 %v610, 16
      %v762 = vor.u32 %v759, %v760
      %v763 = vsel %vm628, %v755, %v762
      %v764 = vrot.slane %v759, 4
      %v766 = vshrl.u32 %v611, 16
      %v768 = vrot.slane %v766, 7
      %v769 = vshll.u32 %v611, 16
      %v771 = vor.u32 %v768, %v769
      %v772 = vrot.slane %v768, 4
      %v774 = vshrl.u32 %v612, 16
      %v776 = vrot.slane %v774, 7
      %v777 = vshll.u32 %v612, 16
      %v779 = vor.u32 %v776, %v777
      %v780 = vsel %vm628, %v772, %v779
      %v781 = vrot.slane %v776, 4
      %v783 = vshrl.u32 %v613, 16
      %v785 = vrot.slane %v783, 7
      %v786 = vshll.u32 %v613, 16
      %v788 = vor.u32 %v785, %v786
      %v789 = vrot.slane %v785, 4
      %v791 = vshrl.u32 %v614, 16
      %v793 = vrot.slane %v791, 7
      %v794 = vshll.u32 %v614, 16
      %v796 = vor.u32 %v793, %v794
      %v797 = vsel %vm628, %v789, %v796
      %v798 = vrot.slane %v793, 4
      %v800 = vshrl.u32 %v615, 16
      %v802 = vrot.slane %v800, 7
      %v803 = vshll.u32 %v615, 16
      %v805 = vor.u32 %v802, %v803
      %v806 = vrot.slane %v802, 4
      %v808 = vshrl.u32 %v616, 16
      %v810 = vrot.slane %v808, 7
      %v811 = vshll.u32 %v616, 16
      %v813 = vor.u32 %v810, %v811
      %v814 = vsel %vm628, %v806, %v813
      %v815 = vrot.slane %v810, 4
      %v817 = vshrl.u32 %v617, 16
      %v819 = vrot.slane %v817, 7
      %v820 = vshll.u32 %v617, 16
      %v822 = vor.u32 %v819, %v820
      %v823 = vrot.slane %v819, 4
      %v825 = vshrl.u32 %v618, 16
      %v827 = vrot.slane %v825, 7
      %v828 = vshll.u32 %v618, 16
      %v830 = vor.u32 %v827, %v828
      %v831 = vsel %vm628, %v823, %v830
      %v832 = vrot.slane %v827, 4
      %v834 = vshrl.u32 %v619, 16
      %v836 = vrot.slane %v834, 7
      %v837 = vshll.u32 %v619, 16
      %v839 = vor.u32 %v836, %v837
      %v840 = vrot.slane %v836, 4
      %v842 = vshrl.u32 %v620, 16
      %v844 = vrot.slane %v842, 7
      %v845 = vshll.u32 %v620, 16
      %v847 = vor.u32 %v844, %v845
      %v848 = vsel %vm628, %v840, %v847
      %v849 = vrot.slane %v844, 4
      %v851 = vshrl.u32 %v621, 16
      %v853 = vrot.slane %v851, 7
      %v854 = vshll.u32 %v621, 16
      %v856 = vor.u32 %v853, %v854
      %v857 = vrot.slane %v853, 4
      %v859 = vshrl.u32 %v622, 16
      %v861 = vrot.slane %v859, 7
      %v862 = vshll.u32 %v622, 16
      %v864 = vor.u32 %v861, %v862
      %v865 = vsel %vm628, %v857, %v864
      %v866 = vrot.slane %v861, 4
      %v868 = vshrl.u32 %v623, 16
      %v870 = vrot.slane %v868, 7
      %v871 = vshll.u32 %v623, 16
      %v873 = vor.u32 %v870, %v871
      %v874 = vrot.slane %v870, 4
      %v876 = vshrl.u32 %v624, 16
      %v878 = vrot.slane %v876, 7
      %v879 = vshll.u32 %v624, 16
      %v881 = vor.u32 %v878, %v879
      %v882 = vsel %vm628, %v874, %v881
      %v883 = vrot.slane %v878, 4
      %v885 = vshrl.u32 %v625, 16
      %v887 = vrot.slane %v885, 7
      %v888 = vshll.u32 %v625, 16
      %v890 = vor.u32 %v887, %v888
      %v891 = vrot.slane %v887, 4
      %v893 = vshrl.u32 %v626, 16
      %v895 = vrot.slane %v893, 7
      %v896 = vshll.u32 %v626, 16
      %v898 = vor.u32 %v895, %v896
      %v899 = vsel %vm628, %v891, %v898
      %v900 = vrot.slane %v895, 4
      %s949 = scalar_lea.vmem [#allocation2], 12
      %vm950 = vcmask 1043456
      %vm951 = vmand %vm950, %vm301
      %v952 = vld [vmem:[%s949] sm:$0xf]
      %v953 = vsel %vm951, %v635, %v952
      %954 = vst [vmem:[%s949] sm:$0xf] %v953
      %955 = vst [vmem:[%s949 + $0x4] sm:$0xf] %v644
      %v956 = vld [vmem:[%s949 + $0x8] sm:$0x1]
      %v957 = vsel %vm246, %v645, %v956
      %958 = vst [vmem:[%s949 + $0x8] sm:$0x1] %v957
      %v959 = vld [vmem:[%s949 + $0xc] sm:$0xf]
      %v960 = vsel %vm951, %v652, %v959
      %961 = vst [vmem:[%s949 + $0xc] sm:$0xf] %v960
      %962 = vst [vmem:[%s949 + $0x10] sm:$0xf] %v661
      %v963 = vld [vmem:[%s949 + $0x14] sm:$0x1]
      %v964 = vsel %vm246, %v662, %v963
      %965 = vst [vmem:[%s949 + $0x14] sm:$0x1] %v964
      %v966 = vld [vmem:[%s949 + $0x18] sm:$0xf]
      %v967 = vsel %vm951, %v669, %v966
      %968 = vst [vmem:[%s949 + $0x18] sm:$0xf] %v967
      %969 = vst [vmem:[%s949 + $0x1c] sm:$0xf] %v678
      %v970 = vld [vmem:[%s949 + $0x20] sm:$0x1]
      %v971 = vsel %vm246, %v679, %v970
      %972 = vst [vmem:[%s949 + $0x20] sm:$0x1] %v971
      %v973 = vld [vmem:[%s949 + $0x24] sm:$0xf]
      %v974 = vsel %vm951, %v686, %v973
      %975 = vst [vmem:[%s949 + $0x24] sm:$0xf] %v974
      %976 = vst [vmem:[%s949 + $0x28] sm:$0xf] %v695
      %v977 = vld [vmem:[%s949 + $0x2c] sm:$0x1]
      %v978 = vsel %vm246, %v696, %v977
      %979 = vst [vmem:[%s949 + $0x2c] sm:$0x1] %v978
      %v980 = vld [vmem:[%s949 + $0x30] sm:$0xf]
      %v981 = vsel %vm951, %v703, %v980
      %982 = vst [vmem:[%s949 + $0x30] sm:$0xf] %v981
      %983 = vst [vmem:[%s949 + $0x34] sm:$0xf] %v712
      %v984 = vld [vmem:[%s949 + $0x38] sm:$0x1]
      %v985 = vsel %vm246, %v713, %v984
      %986 = vst [vmem:[%s949 + $0x38] sm:$0x1] %v985
      %v987 = vld [vmem:[%s949 + $0x3c] sm:$0xf]
      %v988 = vsel %vm951, %v720, %v987
      %989 = vst [vmem:[%s949 + $0x3c] sm:$0xf] %v988
      %990 = vst [vmem:[%s949 + $0x40] sm:$0xf] %v729
      %v991 = vld [vmem:[%s949 + $0x44] sm:$0x1]
      %v992 = vsel %vm246, %v730, %v991
      %993 = vst [vmem:[%s949 + $0x44] sm:$0x1] %v992
      %v994 = vld [vmem:[%s949 + $0x48] sm:$0xf]
      %v995 = vsel %vm951, %v737, %v994
      %996 = vst [vmem:[%s949 + $0x48] sm:$0xf] %v995
      %997 = vst [vmem:[%s949 + $0x4c] sm:$0xf] %v746
      %v998 = vld [vmem:[%s949 + $0x50] sm:$0x1]
      %v999 = vsel %vm246, %v747, %v998
      %1000 = vst [vmem:[%s949 + $0x50] sm:$0x1] %v999
      %v1001 = vld [vmem:[%s949 + $0x54] sm:$0xf]
      %v1002 = vsel %vm951, %v754, %v1001
      %1003 = vst [vmem:[%s949 + $0x54] sm:$0xf] %v1002
      %1004 = vst [vmem:[%s949 + $0x58] sm:$0xf] %v763
      %v1005 = vld [vmem:[%s949 + $0x5c] sm:$0x1]
      %v1006 = vsel %vm246, %v764, %v1005
      %1007 = vst [vmem:[%s949 + $0x5c] sm:$0x1] %v1006
      %v1008 = vld [vmem:[%s949 + $0x60] sm:$0xf]
      %v1009 = vsel %vm951, %v771, %v1008
      %1010 = vst [vmem:[%s949 + $0x60] sm:$0xf] %v1009
      %1011 = vst [vmem:[%s949 + $0x64] sm:$0xf] %v780
      %v1012 = vld [vmem:[%s949 + $0x68] sm:$0x1]
      %v1013 = vsel %vm246, %v781, %v1012
      %1014 = vst [vmem:[%s949 + $0x68] sm:$0x1] %v1013
      %v1015 = vld [vmem:[%s949 + $0x6c] sm:$0xf]
      %v1016 = vsel %vm951, %v788, %v1015
      %1017 = vst [vmem:[%s949 + $0x6c] sm:$0xf] %v1016
      %1018 = vst [vmem:[%s949 + $0x70] sm:$0xf] %v797
      %v1019 = vld [vmem:[%s949 + $0x74] sm:$0x1]
      %v1020 = vsel %vm246, %v798, %v1019
      %1021 = vst [vmem:[%s949 + $0x74] sm:$0x1] %v1020
      %v1022 = vld [vmem:[%s949 + $0x78] sm:$0xf]
      %v1023 = vsel %vm951, %v805, %v1022
      %1024 = vst [vmem:[%s949 + $0x78] sm:$0xf] %v1023
      %1025 = vst [vmem:[%s949 + $0x7c] sm:$0xf] %v814
      %v1026 = vld [vmem:[%s949 + $0x80] sm:$0x1]
      %v1027 = vsel %vm246, %v815, %v1026
      %1028 = vst [vmem:[%s949 + $0x80] sm:$0x1] %v1027
      %v1029 = vld [vmem:[%s949 + $0x84] sm:$0xf]
      %v1030 = vsel %vm951, %v822, %v1029
      %1031 = vst [vmem:[%s949 + $0x84] sm:$0xf] %v1030
      %1032 = vst [vmem:[%s949 + $0x88] sm:$0xf] %v831
      %v1033 = vld [vmem:[%s949 + $0x8c] sm:$0x1]
      %v1034 = vsel %vm246, %v832, %v1033
      %1035 = vst [vmem:[%s949 + $0x8c] sm:$0x1] %v1034
      %v1036 = vld [vmem:[%s949 + $0x90] sm:$0xf]
      %v1037 = vsel %vm951, %v839, %v1036
      %1038 = vst [vmem:[%s949 + $0x90] sm:$0xf] %v1037
      %1039 = vst [vmem:[%s949 + $0x94] sm:$0xf] %v848
      %v1040 = vld [vmem:[%s949 + $0x98] sm:$0x1]
      %v1041 = vsel %vm246, %v849, %v1040
      %1042 = vst [vmem:[%s949 + $0x98] sm:$0x1] %v1041
      %v1043 = vld [vmem:[%s949 + $0x9c] sm:$0xf]
      %v1044 = vsel %vm951, %v856, %v1043
      %1045 = vst [vmem:[%s949 + $0x9c] sm:$0xf] %v1044
      %1046 = vst [vmem:[%s949 + $0xa0] sm:$0xf] %v865
      %v1047 = vld [vmem:[%s949 + $0xa4] sm:$0x1]
      %v1048 = vsel %vm246, %v866, %v1047
      %1049 = vst [vmem:[%s949 + $0xa4] sm:$0x1] %v1048
      %v1050 = vld [vmem:[%s949 + $0xa8] sm:$0xf]
      %v1051 = vsel %vm951, %v873, %v1050
      %1052 = vst [vmem:[%s949 + $0xa8] sm:$0xf] %v1051
      %1053 = vst [vmem:[%s949 + $0xac] sm:$0xf] %v882
      %v1054 = vld [vmem:[%s949 + $0xb0] sm:$0x1]
      %v1055 = vsel %vm246, %v883, %v1054
      %1056 = vst [vmem:[%s949 + $0xb0] sm:$0x1] %v1055
      %v1057 = vld [vmem:[%s949 + $0xb4] sm:$0xf]
      %v1058 = vsel %vm951, %v890, %v1057
      %1059 = vst [vmem:[%s949 + $0xb4] sm:$0xf] %v1058
      %1060 = vst [vmem:[%s949 + $0xb8] sm:$0xf] %v899
      %v1061 = vld [vmem:[%s949 + $0xbc] sm:$0x1]
      %v1062 = vsel %vm246, %v900, %v1061
      %1063 = vst [vmem:[%s949 + $0xbc] sm:$0x1] %v1062
      %v1064 = vld [vmem:[#allocation2] sm:$0xf]
      %v1065 = vld [vmem:[#allocation2 + $0x4] sm:$0xf]
      %v1066 = vld [vmem:[#allocation2 + $0xc] sm:$0xf]
      %v1067 = vld [vmem:[#allocation2 + $0x10] sm:$0xf]
      %v1068 = vld [vmem:[#allocation2 + $0x18] sm:$0xf]
      %v1069 = vld [vmem:[#allocation2 + $0x1c] sm:$0xf]
      %v1070 = vld [vmem:[#allocation2 + $0x24] sm:$0xf]
      %v1071 = vld [vmem:[#allocation2 + $0x28] sm:$0xf]
      %v1072 = vld [vmem:[#allocation2 + $0x30] sm:$0xf]
      %v1073 = vld [vmem:[#allocation2 + $0x34] sm:$0xf]
      %v1074 = vld [vmem:[#allocation2 + $0x3c] sm:$0xf]
      %v1075 = vld [vmem:[#allocation2 + $0x40] sm:$0xf]
      %v1076 = vld [vmem:[#allocation2 + $0x48] sm:$0xf]
      %v1077 = vld [vmem:[#allocation2 + $0x4c] sm:$0xf]
      %v1078 = vld [vmem:[#allocation2 + $0x54] sm:$0xf]
      %v1079 = vld [vmem:[#allocation2 + $0x58] sm:$0xf]
      %v1080 = vld [vmem:[#allocation2 + $0x60] sm:$0xf]
      %v1081 = vld [vmem:[#allocation2 + $0x64] sm:$0xf]
      %v1082 = vld [vmem:[#allocation2 + $0x6c] sm:$0xf]
      %v1083 = vld [vmem:[#allocation2 + $0x70] sm:$0xf]
      %v1084 = vld [vmem:[#allocation2 + $0x78] sm:$0xf]
      %v1085 = vld [vmem:[#allocation2 + $0x7c] sm:$0xf]
      %v1086 = vld [vmem:[#allocation2 + $0x84] sm:$0xf]
      %v1087 = vld [vmem:[#allocation2 + $0x88] sm:$0xf]
      %v1088 = vld [vmem:[#allocation2 + $0x90] sm:$0xf]
      %v1089 = vld [vmem:[#allocation2 + $0x94] sm:$0xf]
      %v1090 = vld [vmem:[#allocation2 + $0x9c] sm:$0xf]
      %v1091 = vld [vmem:[#allocation2 + $0xa0] sm:$0xf]
      %v1092 = vld [vmem:[#allocation2 + $0xa8] sm:$0xf]
      %v1093 = vld [vmem:[#allocation2 + $0xac] sm:$0xf]
      %v1094 = vld [vmem:[#allocation2 + $0xb4] sm:$0xf]
      %v1095 = vld [vmem:[#allocation2 + $0xb8] sm:$0xf]
      %v1096 = vld [vmem:[#allocation2 + $0x8] sm:$0x1]
      %v1097 = vld [vmem:[#allocation2 + $0x14] sm:$0x1]
      %v1098 = vld [vmem:[#allocation2 + $0x20] sm:$0x1]
      %v1099 = vld [vmem:[#allocation2 + $0x2c] sm:$0x1]
      %v1100 = vld [vmem:[#allocation2 + $0x38] sm:$0x1]
      %v1101 = vld [vmem:[#allocation2 + $0x44] sm:$0x1]
      %v1102 = vld [vmem:[#allocation2 + $0x50] sm:$0x1]
      %v1103 = vld [vmem:[#allocation2 + $0x5c] sm:$0x1]
      %v1104 = vld [vmem:[#allocation2 + $0x68] sm:$0x1]
      %v1105 = vld [vmem:[#allocation2 + $0x74] sm:$0x1]
      %v1106 = vld [vmem:[#allocation2 + $0x80] sm:$0x1]
      %v1107 = vld [vmem:[#allocation2 + $0x8c] sm:$0x1]
      %v1108 = vld [vmem:[#allocation2 + $0x98] sm:$0x1]
      %v1109 = vld [vmem:[#allocation2 + $0xa4] sm:$0x1]
      %v1110 = vld [vmem:[#allocation2 + $0xb0] sm:$0x1]
      %v1111 = vld [vmem:[#allocation2 + $0xbc] sm:$0x1]
      %v1112 = vld [vmem:[#allocation2] sm:$0xe]
      %v1113 = vld [vmem:[#allocation2 + $0xc] sm:$0xe]
      %v1114 = vld [vmem:[#allocation2 + $0x18] sm:$0xe]
      %v1115 = vld [vmem:[#allocation2 + $0x24] sm:$0xe]
      %v1116 = vld [vmem:[#allocation2 + $0x30] sm:$0xe]
      %v1117 = vld [vmem:[#allocation2 + $0x3c] sm:$0xe]
      %v1118 = vld [vmem:[#allocation2 + $0x48] sm:$0xe]
      %v1119 = vld [vmem:[#allocation2 + $0x54] sm:$0xe]
      %v1120 = vld [vmem:[#allocation2 + $0x60] sm:$0xe]
      %v1121 = vld [vmem:[#allocation2 + $0x6c] sm:$0xe]
      %v1122 = vld [vmem:[#allocation2 + $0x78] sm:$0xe]
      %v1123 = vld [vmem:[#allocation2 + $0x84] sm:$0xe]
      %v1124 = vld [vmem:[#allocation2 + $0x90] sm:$0xe]
      %v1125 = vld [vmem:[#allocation2 + $0x9c] sm:$0xe]
      %v1126 = vld [vmem:[#allocation2 + $0xa8] sm:$0xe]
      %v1127 = vld [vmem:[#allocation2 + $0xb4] sm:$0xe]
      %v1160 = vunpack.c.l.b16 %v1064
      %v1161 = vunpack.c.l.b16 %v1065
      %v1162 = vunpack.c.l.b16 %v1066
      %v1163 = vunpack.c.l.b16 %v1067
      %v1164 = vunpack.c.l.b16 %v1068
      %v1165 = vunpack.c.l.b16 %v1069
      %v1166 = vunpack.c.l.b16 %v1070
      %v1167 = vunpack.c.l.b16 %v1071
      %v1168 = vunpack.c.l.b16 %v1072
      %v1169 = vunpack.c.l.b16 %v1073
      %v1170 = vunpack.c.l.b16 %v1074
      %v1171 = vunpack.c.l.b16 %v1075
      %v1172 = vunpack.c.l.b16 %v1076
      %v1173 = vunpack.c.l.b16 %v1077
      %v1174 = vunpack.c.l.b16 %v1078
      %v1175 = vunpack.c.l.b16 %v1079
      %v1176 = vunpack.c.l.b16 %v1080
      %v1177 = vunpack.c.l.b16 %v1081
      %v1178 = vunpack.c.l.b16 %v1082
      %v1179 = vunpack.c.l.b16 %v1083
      %v1180 = vunpack.c.l.b16 %v1084
      %v1181 = vunpack.c.l.b16 %v1085
      %v1182 = vunpack.c.l.b16 %v1086
      %v1183 = vunpack.c.l.b16 %v1087
      %v1184 = vunpack.c.l.b16 %v1088
      %v1185 = vunpack.c.l.b16 %v1089
      %v1186 = vunpack.c.l.b16 %v1090
      %v1187 = vunpack.c.l.b16 %v1091
      %v1188 = vunpack.c.l.b16 %v1092
      %v1189 = vunpack.c.l.b16 %v1093
      %v1190 = vunpack.c.l.b16 %v1094
      %v1191 = vunpack.c.l.b16 %v1095
      %v1192 = vpack.c.b16 %v1161, %v1160
      %v1193 = vpack.c.b16 %v1163, %v1162
      %v1194 = vpack.c.b16 %v1165, %v1164
      %v1195 = vpack.c.b16 %v1167, %v1166
      %v1196 = vpack.c.b16 %v1169, %v1168
      %v1197 = vpack.c.b16 %v1171, %v1170
      %v1198 = vpack.c.b16 %v1173, %v1172
      %v1199 = vpack.c.b16 %v1175, %v1174
      %v1200 = vpack.c.b16 %v1177, %v1176
      %v1201 = vpack.c.b16 %v1179, %v1178
      %v1202 = vpack.c.b16 %v1181, %v1180
      %v1203 = vpack.c.b16 %v1183, %v1182
      %v1204 = vpack.c.b16 %v1185, %v1184
      %v1205 = vpack.c.b16 %v1187, %v1186
      %v1206 = vpack.c.b16 %v1189, %v1188
      %v1207 = vpack.c.b16 %v1191, %v1190
      %v1240 = vunpack.c.l.b16 %v1096
      %v1241 = vunpack.c.l.b16 %v1097
      %v1242 = vunpack.c.l.b16 %v1098
      %v1243 = vunpack.c.l.b16 %v1099
      %v1244 = vunpack.c.l.b16 %v1100
      %v1245 = vunpack.c.l.b16 %v1101
      %v1246 = vunpack.c.l.b16 %v1102
      %v1247 = vunpack.c.l.b16 %v1103
      %v1248 = vunpack.c.l.b16 %v1104
      %v1249 = vunpack.c.l.b16 %v1105
      %v1250 = vunpack.c.l.b16 %v1106
      %v1251 = vunpack.c.l.b16 %v1107
      %v1252 = vunpack.c.l.b16 %v1108
      %v1253 = vunpack.c.l.b16 %v1109
      %v1254 = vunpack.c.l.b16 %v1110
      %v1255 = vunpack.c.l.b16 %v1111
      %v1256 = vpack.c.b16 %v1240, %v1240
      %v1257 = vpack.c.b16 %v1241, %v1241
      %v1258 = vpack.c.b16 %v1242, %v1242
      %v1259 = vpack.c.b16 %v1243, %v1243
      %v1260 = vpack.c.b16 %v1244, %v1244
      %v1261 = vpack.c.b16 %v1245, %v1245
      %v1262 = vpack.c.b16 %v1246, %v1246
      %v1263 = vpack.c.b16 %v1247, %v1247
      %v1264 = vpack.c.b16 %v1248, %v1248
      %v1265 = vpack.c.b16 %v1249, %v1249
      %v1266 = vpack.c.b16 %v1250, %v1250
      %v1267 = vpack.c.b16 %v1251, %v1251
      %v1268 = vpack.c.b16 %v1252, %v1252
      %v1269 = vpack.c.b16 %v1253, %v1253
      %v1270 = vpack.c.b16 %v1254, %v1254
      %v1271 = vpack.c.b16 %v1255, %v1255
      %vm1272 = vsmask.f32 7424
      %v1274 = vshrl.u32 %v1192, 16
      %v1276 = vshll.u32 %v1192, 16
      %v1278 = vrot.slane %v1276, 1
      %v1279 = vor.u32 %v1274, %v1278
      %v1281 = vshll.u32 %v1256, 16
      %v1283 = vrot.slane %v1281, 1
      %v1284 = vsel %vm1272, %v1279, %v1283
      %v1286 = vshrl.u32 %v1193, 16
      %v1288 = vshll.u32 %v1193, 16
      %v1290 = vrot.slane %v1288, 1
      %v1291 = vor.u32 %v1286, %v1290
      %v1293 = vshll.u32 %v1257, 16
      %v1295 = vrot.slane %v1293, 1
      %v1296 = vsel %vm1272, %v1291, %v1295
      %v1298 = vshrl.u32 %v1194, 16
      %v1300 = vshll.u32 %v1194, 16
      %v1302 = vrot.slane %v1300, 1
      %v1303 = vor.u32 %v1298, %v1302
      %v1305 = vshll.u32 %v1258, 16
      %v1307 = vrot.slane %v1305, 1
      %v1308 = vsel %vm1272, %v1303, %v1307
      %v1310 = vshrl.u32 %v1195, 16
      %v1312 = vshll.u32 %v1195, 16
      %v1314 = vrot.slane %v1312, 1
      %v1315 = vor.u32 %v1310, %v1314
      %v1317 = vshll.u32 %v1259, 16
      %v1319 = vrot.slane %v1317, 1
      %v1320 = vsel %vm1272, %v1315, %v1319
      %v1322 = vshrl.u32 %v1196, 16
      %v1324 = vshll.u32 %v1196, 16
      %v1326 = vrot.slane %v1324, 1
      %v1327 = vor.u32 %v1322, %v1326
      %v1329 = vshll.u32 %v1260, 16
      %v1331 = vrot.slane %v1329, 1
      %v1332 = vsel %vm1272, %v1327, %v1331
      %v1334 = vshrl.u32 %v1197, 16
      %v1336 = vshll.u32 %v1197, 16
      %v1338 = vrot.slane %v1336, 1
      %v1339 = vor.u32 %v1334, %v1338
      %v1341 = vshll.u32 %v1261, 16
      %v1343 = vrot.slane %v1341, 1
      %v1344 = vsel %vm1272, %v1339, %v1343
      %v1346 = vshrl.u32 %v1198, 16
      %v1348 = vshll.u32 %v1198, 16
      %v1350 = vrot.slane %v1348, 1
      %v1351 = vor.u32 %v1346, %v1350
      %v1353 = vshll.u32 %v1262, 16
      %v1355 = vrot.slane %v1353, 1
      %v1356 = vsel %vm1272, %v1351, %v1355
      %v1358 = vshrl.u32 %v1199, 16
      %v1360 = vshll.u32 %v1199, 16
      %v1362 = vrot.slane %v1360, 1
      %v1363 = vor.u32 %v1358, %v1362
      %v1365 = vshll.u32 %v1263, 16
      %v1367 = vrot.slane %v1365, 1
      %v1368 = vsel %vm1272, %v1363, %v1367
      %v1370 = vshrl.u32 %v1200, 16
      %v1372 = vshll.u32 %v1200, 16
      %v1374 = vrot.slane %v1372, 1
      %v1375 = vor.u32 %v1370, %v1374
      %v1377 = vshll.u32 %v1264, 16
      %v1379 = vrot.slane %v1377, 1
      %v1380 = vsel %vm1272, %v1375, %v1379
      %v1382 = vshrl.u32 %v1201, 16
      %v1384 = vshll.u32 %v1201, 16
      %v1386 = vrot.slane %v1384, 1
      %v1387 = vor.u32 %v1382, %v1386
      %v1389 = vshll.u32 %v1265, 16
      %v1391 = vrot.slane %v1389, 1
      %v1392 = vsel %vm1272, %v1387, %v1391
      %v1394 = vshrl.u32 %v1202, 16
      %v1396 = vshll.u32 %v1202, 16
      %v1398 = vrot.slane %v1396, 1
      %v1399 = vor.u32 %v1394, %v1398
      %v1401 = vshll.u32 %v1266, 16
      %v1403 = vrot.slane %v1401, 1
      %v1404 = vsel %vm1272, %v1399, %v1403
      %v1406 = vshrl.u32 %v1203, 16
      %v1408 = vshll.u32 %v1203, 16
      %v1410 = vrot.slane %v1408, 1
      %v1411 = vor.u32 %v1406, %v1410
      %v1413 = vshll.u32 %v1267, 16
      %v1415 = vrot.slane %v1413, 1
      %v1416 = vsel %vm1272, %v1411, %v1415
      %v1418 = vshrl.u32 %v1204, 16
      %v1420 = vshll.u32 %v1204, 16
      %v1422 = vrot.slane %v1420, 1
      %v1423 = vor.u32 %v1418, %v1422
      %v1425 = vshll.u32 %v1268, 16
      %v1427 = vrot.slane %v1425, 1
      %v1428 = vsel %vm1272, %v1423, %v1427
      %v1430 = vshrl.u32 %v1205, 16
      %v1432 = vshll.u32 %v1205, 16
      %v1434 = vrot.slane %v1432, 1
      %v1435 = vor.u32 %v1430, %v1434
      %v1437 = vshll.u32 %v1269, 16
      %v1439 = vrot.slane %v1437, 1
      %v1440 = vsel %vm1272, %v1435, %v1439
      %v1442 = vshrl.u32 %v1206, 16
      %v1444 = vshll.u32 %v1206, 16
      %v1446 = vrot.slane %v1444, 1
      %v1447 = vor.u32 %v1442, %v1446
      %v1449 = vshll.u32 %v1270, 16
      %v1451 = vrot.slane %v1449, 1
      %v1452 = vsel %vm1272, %v1447, %v1451
      %v1454 = vshrl.u32 %v1207, 16
      %v1456 = vshll.u32 %v1207, 16
      %v1458 = vrot.slane %v1456, 1
      %v1459 = vor.u32 %v1454, %v1458
      %v1461 = vshll.u32 %v1271, 16
      %v1463 = vrot.slane %v1461, 1
      %v1464 = vsel %vm1272, %v1459, %v1463
      %v1497 = vunpack.c.l.b16 %v1112
      %v1498 = vunpack.c.l.b16 %v1113
      %v1499 = vunpack.c.l.b16 %v1114
      %v1500 = vunpack.c.l.b16 %v1115
      %v1501 = vunpack.c.l.b16 %v1116
      %v1502 = vunpack.c.l.b16 %v1117
      %v1503 = vunpack.c.l.b16 %v1118
      %v1504 = vunpack.c.l.b16 %v1119
      %v1505 = vunpack.c.l.b16 %v1120
      %v1506 = vunpack.c.l.b16 %v1121
      %v1507 = vunpack.c.l.b16 %v1122
      %v1508 = vunpack.c.l.b16 %v1123
      %v1509 = vunpack.c.l.b16 %v1124
      %v1510 = vunpack.c.l.b16 %v1125
      %v1511 = vunpack.c.l.b16 %v1126
      %v1512 = vunpack.c.l.b16 %v1127
      %v1513 = vpack.c.b16 %v1161, %v1497
      %v1514 = vpack.c.b16 %v1163, %v1498
      %v1515 = vpack.c.b16 %v1165, %v1499
      %v1516 = vpack.c.b16 %v1167, %v1500
      %v1517 = vpack.c.b16 %v1169, %v1501
      %v1518 = vpack.c.b16 %v1171, %v1502
      %v1519 = vpack.c.b16 %v1173, %v1503
      %v1520 = vpack.c.b16 %v1175, %v1504
      %v1521 = vpack.c.b16 %v1177, %v1505
      %v1522 = vpack.c.b16 %v1179, %v1506
      %v1523 = vpack.c.b16 %v1181, %v1507
      %v1524 = vpack.c.b16 %v1183, %v1508
      %v1525 = vpack.c.b16 %v1185, %v1509
      %v1526 = vpack.c.b16 %v1187, %v1510
      %v1527 = vpack.c.b16 %v1189, %v1511
      %v1528 = vpack.c.b16 %v1191, %v1512
      %vm1529 = vcmask 1046528
      %v1530 = vrot.slane %v1513, 1
      %v1531 = vrot.slane %v1256, 1
      %v1532 = vsel %vm1529, %v1530, %v1531
      %v1533 = vrot.slane %v1514, 1
      %v1534 = vrot.slane %v1257, 1
      %v1535 = vsel %vm1529, %v1533, %v1534
      %v1536 = vrot.slane %v1515, 1
      %v1537 = vrot.slane %v1258, 1
      %v1538 = vsel %vm1529, %v1536, %v1537
      %v1539 = vrot.slane %v1516, 1
      %v1540 = vrot.slane %v1259, 1
      %v1541 = vsel %vm1529, %v1539, %v1540
      %v1542 = vrot.slane %v1517, 1
      %v1543 = vrot.slane %v1260, 1
      %v1544 = vsel %vm1529, %v1542, %v1543
      %v1545 = vrot.slane %v1518, 1
      %v1546 = vrot.slane %v1261, 1
      %v1547 = vsel %vm1529, %v1545, %v1546
      %v1548 = vrot.slane %v1519, 1
      %v1549 = vrot.slane %v1262, 1
      %v1550 = vsel %vm1529, %v1548, %v1549
      %v1551 = vrot.slane %v1520, 1
      %v1552 = vrot.slane %v1263, 1
      %v1553 = vsel %vm1529, %v1551, %v1552
      %v1554 = vrot.slane %v1521, 1
      %v1555 = vrot.slane %v1264, 1
      %v1556 = vsel %vm1529, %v1554, %v1555
      %v1557 = vrot.slane %v1522, 1
      %v1558 = vrot.slane %v1265, 1
      %v1559 = vsel %vm1529, %v1557, %v1558
      %v1560 = vrot.slane %v1523, 1
      %v1561 = vrot.slane %v1266, 1
      %v1562 = vsel %vm1529, %v1560, %v1561
      %v1563 = vrot.slane %v1524, 1
      %v1564 = vrot.slane %v1267, 1
      %v1565 = vsel %vm1529, %v1563, %v1564
      %v1566 = vrot.slane %v1525, 1
      %v1567 = vrot.slane %v1268, 1
      %v1568 = vsel %vm1529, %v1566, %v1567
      %v1569 = vrot.slane %v1526, 1
      %v1570 = vrot.slane %v1269, 1
      %v1571 = vsel %vm1529, %v1569, %v1570
      %v1572 = vrot.slane %v1527, 1
      %v1573 = vrot.slane %v1270, 1
      %v1574 = vsel %vm1529, %v1572, %v1573
      %v1575 = vrot.slane %v1528, 1
      %v1576 = vrot.slane %v1271, 1
      %v1577 = vsel %vm1529, %v1575, %v1576
      %v1594 = vld [vmem:[%s1] sm:$0xf]
      %v1595 = vld [vmem:[%s1 + $0x4] sm:$0xf]
      %v1596 = vld [vmem:[%s1 + $0x8] sm:$0xf]
      %v1597 = vld [vmem:[%s1 + $0xc] sm:$0xf]
      %v1598 = vld [vmem:[%s1 + $0x10] sm:$0xf]
      %v1599 = vld [vmem:[%s1 + $0x14] sm:$0xf]
      %v1600 = vld [vmem:[%s1 + $0x18] sm:$0xf]
      %v1601 = vld [vmem:[%s1 + $0x1c] sm:$0xf]
      %v1602 = vld [vmem:[%s1 + $0x20] sm:$0xf]
      %v1603 = vld [vmem:[%s1 + $0x24] sm:$0xf]
      %v1604 = vld [vmem:[%s1 + $0x28] sm:$0xf]
      %v1605 = vld [vmem:[%s1 + $0x2c] sm:$0xf]
      %v1606 = vld [vmem:[%s1 + $0x30] sm:$0xf]
      %v1607 = vld [vmem:[%s1 + $0x34] sm:$0xf]
      %v1608 = vld [vmem:[%s1 + $0x38] sm:$0xf]
      %v1609 = vld [vmem:[%s1 + $0x3c] sm:$0xf]
      %v1610 = vld [vmem:[%s1 + $0x40] sm:$0xf]
      %v1611 = vld [vmem:[%s1 + $0x44] sm:$0xf]
      %v1612 = vld [vmem:[%s1 + $0x48] sm:$0xf]
      %v1613 = vld [vmem:[%s1 + $0x4c] sm:$0xf]
      %v1614 = vld [vmem:[%s1 + $0x50] sm:$0xf]
      %v1615 = vld [vmem:[%s1 + $0x54] sm:$0xf]
      %v1616 = vld [vmem:[%s1 + $0x58] sm:$0xf]
      %v1617 = vld [vmem:[%s1 + $0x5c] sm:$0xf]
      %v1618 = vld [vmem:[%s1 + $0x60] sm:$0xf]
      %v1619 = vld [vmem:[%s1 + $0x64] sm:$0xf]
      %v1620 = vld [vmem:[%s1 + $0x68] sm:$0xf]
      %v1621 = vld [vmem:[%s1 + $0x6c] sm:$0xf]
      %v1622 = vld [vmem:[%s1 + $0x70] sm:$0xf]
      %v1623 = vld [vmem:[%s1 + $0x74] sm:$0xf]
      %v1624 = vld [vmem:[%s1 + $0x78] sm:$0xf]
      %v1625 = vld [vmem:[%s1 + $0x7c] sm:$0xf]
      %v1626 = vld [vmem:[%s1 + $0x80] sm:$0xf]
      %v1627 = vld [vmem:[%s1 + $0x84] sm:$0xf]
      %v1628 = vld [vmem:[%s1 + $0x88] sm:$0xf]
      %v1629 = vld [vmem:[%s1 + $0x8c] sm:$0xf]
      %v1630 = vld [vmem:[%s1 + $0x90] sm:$0xf]
      %v1631 = vld [vmem:[%s1 + $0x94] sm:$0xf]
      %v1632 = vld [vmem:[%s1 + $0x98] sm:$0xf]
      %v1633 = vld [vmem:[%s1 + $0x9c] sm:$0xf]
      %v1634 = vld [vmem:[%s1 + $0xa0] sm:$0xf]
      %v1635 = vld [vmem:[%s1 + $0xa4] sm:$0xf]
      %v1636 = vld [vmem:[%s1 + $0xa8] sm:$0xf]
      %v1637 = vld [vmem:[%s1 + $0xac] sm:$0xf]
      %v1638 = vld [vmem:[%s1 + $0xb0] sm:$0xf]
      %v1639 = vld [vmem:[%s1 + $0xb4] sm:$0xf]
      %v1640 = vld [vmem:[%s1 + $0xb8] sm:$0xf]
      %v1641 = vld [vmem:[%s1 + $0xbc] sm:$0xf]
      %v1642 = vld [vmem:[%s949] sm:$0xf]
      %v1643 = vld [vmem:[%s949 + $0x4] sm:$0xf]
      %v1644 = vld [vmem:[%s949 + $0xc] sm:$0xf]
      %v1645 = vld [vmem:[%s949 + $0x10] sm:$0xf]
      %v1646 = vld [vmem:[%s949 + $0x18] sm:$0xf]
      %v1647 = vld [vmem:[%s949 + $0x1c] sm:$0xf]
      %v1648 = vld [vmem:[%s949 + $0x24] sm:$0xf]
      %v1649 = vld [vmem:[%s949 + $0x28] sm:$0xf]
      %v1650 = vld [vmem:[%s949 + $0x30] sm:$0xf]
      %v1651 = vld [vmem:[%s949 + $0x34] sm:$0xf]
      %v1652 = vld [vmem:[%s949 + $0x3c] sm:$0xf]
      %v1653 = vld [vmem:[%s949 + $0x40] sm:$0xf]
      %v1654 = vld [vmem:[%s949 + $0x48] sm:$0xf]
      %v1655 = vld [vmem:[%s949 + $0x4c] sm:$0xf]
      %v1656 = vld [vmem:[%s949 + $0x54] sm:$0xf]
      %v1657 = vld [vmem:[%s949 + $0x58] sm:$0xf]
      %v1658 = vld [vmem:[%s949 + $0x60] sm:$0xf]
      %v1659 = vld [vmem:[%s949 + $0x64] sm:$0xf]
      %v1660 = vld [vmem:[%s949 + $0x6c] sm:$0xf]
      %v1661 = vld [vmem:[%s949 + $0x70] sm:$0xf]
      %v1662 = vld [vmem:[%s949 + $0x78] sm:$0xf]
      %v1663 = vld [vmem:[%s949 + $0x7c] sm:$0xf]
      %v1664 = vld [vmem:[%s949 + $0x84] sm:$0xf]
      %v1665 = vld [vmem:[%s949 + $0x88] sm:$0xf]
      %v1666 = vld [vmem:[%s949 + $0x90] sm:$0xf]
      %v1667 = vld [vmem:[%s949 + $0x94] sm:$0xf]
      %v1668 = vld [vmem:[%s949 + $0x9c] sm:$0xf]
      %v1669 = vld [vmem:[%s949 + $0xa0] sm:$0xf]
      %v1670 = vld [vmem:[%s949 + $0xa8] sm:$0xf]
      %v1671 = vld [vmem:[%s949 + $0xac] sm:$0xf]
      %v1672 = vld [vmem:[%s949 + $0xb4] sm:$0xf]
      %v1673 = vld [vmem:[%s949 + $0xb8] sm:$0xf]
      %v1674 = vld [vmem:[%s949 + $0x8] sm:$0x1]
      %v1675 = vld [vmem:[%s949 + $0x14] sm:$0x1]
      %v1676 = vld [vmem:[%s949 + $0x20] sm:$0x1]
      %v1677 = vld [vmem:[%s949 + $0x2c] sm:$0x1]
      %v1678 = vld [vmem:[%s949 + $0x38] sm:$0x1]
      %v1679 = vld [vmem:[%s949 + $0x44] sm:$0x1]
      %v1680 = vld [vmem:[%s949 + $0x50] sm:$0x1]
      %v1681 = vld [vmem:[%s949 + $0x5c] sm:$0x1]
      %v1682 = vld [vmem:[%s949 + $0x68] sm:$0x1]
      %v1683 = vld [vmem:[%s949 + $0x74] sm:$0x1]
      %v1684 = vld [vmem:[%s949 + $0x80] sm:$0x1]
      %v1685 = vld [vmem:[%s949 + $0x8c] sm:$0x1]
      %v1686 = vld [vmem:[%s949 + $0x98] sm:$0x1]
      %v1687 = vld [vmem:[%s949 + $0xa4] sm:$0x1]
      %v1688 = vld [vmem:[%s949 + $0xb0] sm:$0x1]
      %v1689 = vld [vmem:[%s949 + $0xbc] sm:$0x1]
      %v1690 = vld [vmem:[%s949] sm:$0xe]
      %v1691 = vld [vmem:[%s949 + $0xc] sm:$0xe]
      %v1692 = vld [vmem:[%s949 + $0x18] sm:$0xe]
      %v1693 = vld [vmem:[%s949 + $0x24] sm:$0xe]
      %v1694 = vld [vmem:[%s949 + $0x30] sm:$0xe]
      %v1695 = vld [vmem:[%s949 + $0x3c] sm:$0xe]
      %v1696 = vld [vmem:[%s949 + $0x48] sm:$0xe]
      %v1697 = vld [vmem:[%s949 + $0x54] sm:$0xe]
      %v1698 = vld [vmem:[%s949 + $0x60] sm:$0xe]
      %v1699 = vld [vmem:[%s949 + $0x6c] sm:$0xe]
      %v1700 = vld [vmem:[%s949 + $0x78] sm:$0xe]
      %v1701 = vld [vmem:[%s949 + $0x84] sm:$0xe]
      %v1702 = vld [vmem:[%s949 + $0x90] sm:$0xe]
      %v1703 = vld [vmem:[%s949 + $0x9c] sm:$0xe]
      %v1704 = vld [vmem:[%s949 + $0xa8] sm:$0xe]
      %v1705 = vld [vmem:[%s949 + $0xb4] sm:$0xe]
      %v1738 = vunpack.c.l.b16 %v1642
      %v1739 = vunpack.c.l.b16 %v1643
      %v1740 = vunpack.c.l.b16 %v1644
      %v1741 = vunpack.c.l.b16 %v1645
      %v1742 = vunpack.c.l.b16 %v1646
      %v1743 = vunpack.c.l.b16 %v1647
      %v1744 = vunpack.c.l.b16 %v1648
      %v1745 = vunpack.c.l.b16 %v1649
      %v1746 = vunpack.c.l.b16 %v1650
      %v1747 = vunpack.c.l.b16 %v1651
      %v1748 = vunpack.c.l.b16 %v1652
      %v1749 = vunpack.c.l.b16 %v1653
      %v1750 = vunpack.c.l.b16 %v1654
      %v1751 = vunpack.c.l.b16 %v1655
      %v1752 = vunpack.c.l.b16 %v1656
      %v1753 = vunpack.c.l.b16 %v1657
      %v1754 = vunpack.c.l.b16 %v1658
      %v1755 = vunpack.c.l.b16 %v1659
      %v1756 = vunpack.c.l.b16 %v1660
      %v1757 = vunpack.c.l.b16 %v1661
      %v1758 = vunpack.c.l.b16 %v1662
      %v1759 = vunpack.c.l.b16 %v1663
      %v1760 = vunpack.c.l.b16 %v1664
      %v1761 = vunpack.c.l.b16 %v1665
      %v1762 = vunpack.c.l.b16 %v1666
      %v1763 = vunpack.c.l.b16 %v1667
      %v1764 = vunpack.c.l.b16 %v1668
      %v1765 = vunpack.c.l.b16 %v1669
      %v1766 = vunpack.c.l.b16 %v1670
      %v1767 = vunpack.c.l.b16 %v1671
      %v1768 = vunpack.c.l.b16 %v1672
      %v1769 = vunpack.c.l.b16 %v1673
      %v1770 = vpack.c.b16 %v1739, %v1738
      %v1771 = vpack.c.b16 %v1741, %v1740
      %v1772 = vpack.c.b16 %v1743, %v1742
      %v1773 = vpack.c.b16 %v1745, %v1744
      %v1774 = vpack.c.b16 %v1747, %v1746
      %v1775 = vpack.c.b16 %v1749, %v1748
      %v1776 = vpack.c.b16 %v1751, %v1750
      %v1777 = vpack.c.b16 %v1753, %v1752
      %v1778 = vpack.c.b16 %v1755, %v1754
      %v1779 = vpack.c.b16 %v1757, %v1756
      %v1780 = vpack.c.b16 %v1759, %v1758
      %v1781 = vpack.c.b16 %v1761, %v1760
      %v1782 = vpack.c.b16 %v1763, %v1762
      %v1783 = vpack.c.b16 %v1765, %v1764
      %v1784 = vpack.c.b16 %v1767, %v1766
      %v1785 = vpack.c.b16 %v1769, %v1768
      %v1818 = vunpack.c.l.b16 %v1674
      %v1819 = vunpack.c.l.b16 %v1675
      %v1820 = vunpack.c.l.b16 %v1676
      %v1821 = vunpack.c.l.b16 %v1677
      %v1822 = vunpack.c.l.b16 %v1678
      %v1823 = vunpack.c.l.b16 %v1679
      %v1824 = vunpack.c.l.b16 %v1680
      %v1825 = vunpack.c.l.b16 %v1681
      %v1826 = vunpack.c.l.b16 %v1682
      %v1827 = vunpack.c.l.b16 %v1683
      %v1828 = vunpack.c.l.b16 %v1684
      %v1829 = vunpack.c.l.b16 %v1685
      %v1830 = vunpack.c.l.b16 %v1686
      %v1831 = vunpack.c.l.b16 %v1687
      %v1832 = vunpack.c.l.b16 %v1688
      %v1833 = vunpack.c.l.b16 %v1689
      %v1834 = vpack.c.b16 %v1818, %v1818
      %v1835 = vpack.c.b16 %v1819, %v1819
      %v1836 = vpack.c.b16 %v1820, %v1820
      %v1837 = vpack.c.b16 %v1821, %v1821
      %v1838 = vpack.c.b16 %v1822, %v1822
      %v1839 = vpack.c.b16 %v1823, %v1823
      %v1840 = vpack.c.b16 %v1824, %v1824
      %v1841 = vpack.c.b16 %v1825, %v1825
      %v1842 = vpack.c.b16 %v1826, %v1826
      %v1843 = vpack.c.b16 %v1827, %v1827
      %v1844 = vpack.c.b16 %v1828, %v1828
      %v1845 = vpack.c.b16 %v1829, %v1829
      %v1846 = vpack.c.b16 %v1830, %v1830
      %v1847 = vpack.c.b16 %v1831, %v1831
      %v1848 = vpack.c.b16 %v1832, %v1832
      %v1849 = vpack.c.b16 %v1833, %v1833
      %v1851 = vshrl.u32 %v1770, 16
      %v1853 = vshll.u32 %v1770, 16
      %v1855 = vrot.slane %v1853, 1
      %v1856 = vor.u32 %v1851, %v1855
      %v1858 = vshll.u32 %v1834, 16
      %v1860 = vrot.slane %v1858, 1
      %v1861 = vsel %vm1272, %v1856, %v1860
      %v1863 = vshrl.u32 %v1771, 16
      %v1865 = vshll.u32 %v1771, 16
      %v1867 = vrot.slane %v1865, 1
      %v1868 = vor.u32 %v1863, %v1867
      %v1870 = vshll.u32 %v1835, 16
      %v1872 = vrot.slane %v1870, 1
      %v1873 = vsel %vm1272, %v1868, %v1872
      %v1875 = vshrl.u32 %v1772, 16
      %v1877 = vshll.u32 %v1772, 16
      %v1879 = vrot.slane %v1877, 1
      %v1880 = vor.u32 %v1875, %v1879
      %v1882 = vshll.u32 %v1836, 16
      %v1884 = vrot.slane %v1882, 1
      %v1885 = vsel %vm1272, %v1880, %v1884
      %v1887 = vshrl.u32 %v1773, 16
      %v1889 = vshll.u32 %v1773, 16
      %v1891 = vrot.slane %v1889, 1
      %v1892 = vor.u32 %v1887, %v1891
      %v1894 = vshll.u32 %v1837, 16
      %v1896 = vrot.slane %v1894, 1
      %v1897 = vsel %vm1272, %v1892, %v1896
      %v1899 = vshrl.u32 %v1774, 16
      %v1901 = vshll.u32 %v1774, 16
      %v1903 = vrot.slane %v1901, 1
      %v1904 = vor.u32 %v1899, %v1903
      %v1906 = vshll.u32 %v1838, 16
      %v1908 = vrot.slane %v1906, 1
      %v1909 = vsel %vm1272, %v1904, %v1908
      %v1911 = vshrl.u32 %v1775, 16
      %v1913 = vshll.u32 %v1775, 16
      %v1915 = vrot.slane %v1913, 1
      %v1916 = vor.u32 %v1911, %v1915
      %v1918 = vshll.u32 %v1839, 16
      %v1920 = vrot.slane %v1918, 1
      %v1921 = vsel %vm1272, %v1916, %v1920
      %v1923 = vshrl.u32 %v1776, 16
      %v1925 = vshll.u32 %v1776, 16
      %v1927 = vrot.slane %v1925, 1
      %v1928 = vor.u32 %v1923, %v1927
      %v1930 = vshll.u32 %v1840, 16
      %v1932 = vrot.slane %v1930, 1
      %v1933 = vsel %vm1272, %v1928, %v1932
      %v1935 = vshrl.u32 %v1777, 16
      %v1937 = vshll.u32 %v1777, 16
      %v1939 = vrot.slane %v1937, 1
      %v1940 = vor.u32 %v1935, %v1939
      %v1942 = vshll.u32 %v1841, 16
      %v1944 = vrot.slane %v1942, 1
      %v1945 = vsel %vm1272, %v1940, %v1944
      %v1947 = vshrl.u32 %v1778, 16
      %v1949 = vshll.u32 %v1778, 16
      %v1951 = vrot.slane %v1949, 1
      %v1952 = vor.u32 %v1947, %v1951
      %v1954 = vshll.u32 %v1842, 16
      %v1956 = vrot.slane %v1954, 1
      %v1957 = vsel %vm1272, %v1952, %v1956
      %v1959 = vshrl.u32 %v1779, 16
      %v1961 = vshll.u32 %v1779, 16
      %v1963 = vrot.slane %v1961, 1
      %v1964 = vor.u32 %v1959, %v1963
      %v1966 = vshll.u32 %v1843, 16
      %v1968 = vrot.slane %v1966, 1
      %v1969 = vsel %vm1272, %v1964, %v1968
      %v1971 = vshrl.u32 %v1780, 16
      %v1973 = vshll.u32 %v1780, 16
      %v1975 = vrot.slane %v1973, 1
      %v1976 = vor.u32 %v1971, %v1975
      %v1978 = vshll.u32 %v1844, 16
      %v1980 = vrot.slane %v1978, 1
      %v1981 = vsel %vm1272, %v1976, %v1980
      %v1983 = vshrl.u32 %v1781, 16
      %v1985 = vshll.u32 %v1781, 16
      %v1987 = vrot.slane %v1985, 1
      %v1988 = vor.u32 %v1983, %v1987
      %v1990 = vshll.u32 %v1845, 16
      %v1992 = vrot.slane %v1990, 1
      %v1993 = vsel %vm1272, %v1988, %v1992
      %v1995 = vshrl.u32 %v1782, 16
      %v1997 = vshll.u32 %v1782, 16
      %v1999 = vrot.slane %v1997, 1
      %v2000 = vor.u32 %v1995, %v1999
      %v2002 = vshll.u32 %v1846, 16
      %v2004 = vrot.slane %v2002, 1
      %v2005 = vsel %vm1272, %v2000, %v2004
      %v2007 = vshrl.u32 %v1783, 16
      %v2009 = vshll.u32 %v1783, 16
      %v2011 = vrot.slane %v2009, 1
      %v2012 = vor.u32 %v2007, %v2011
      %v2014 = vshll.u32 %v1847, 16
      %v2016 = vrot.slane %v2014, 1
      %v2017 = vsel %vm1272, %v2012, %v2016
      %v2019 = vshrl.u32 %v1784, 16
      %v2021 = vshll.u32 %v1784, 16
      %v2023 = vrot.slane %v2021, 1
      %v2024 = vor.u32 %v2019, %v2023
      %v2026 = vshll.u32 %v1848, 16
      %v2028 = vrot.slane %v2026, 1
      %v2029 = vsel %vm1272, %v2024, %v2028
      %v2031 = vshrl.u32 %v1785, 16
      %v2033 = vshll.u32 %v1785, 16
      %v2035 = vrot.slane %v2033, 1
      %v2036 = vor.u32 %v2031, %v2035
      %v2038 = vshll.u32 %v1849, 16
      %v2040 = vrot.slane %v2038, 1
      %v2041 = vsel %vm1272, %v2036, %v2040
      %v2074 = vunpack.c.l.b16 %v1690
      %v2075 = vunpack.c.l.b16 %v1691
      %v2076 = vunpack.c.l.b16 %v1692
      %v2077 = vunpack.c.l.b16 %v1693
      %v2078 = vunpack.c.l.b16 %v1694
      %v2079 = vunpack.c.l.b16 %v1695
      %v2080 = vunpack.c.l.b16 %v1696
      %v2081 = vunpack.c.l.b16 %v1697
      %v2082 = vunpack.c.l.b16 %v1698
      %v2083 = vunpack.c.l.b16 %v1699
      %v2084 = vunpack.c.l.b16 %v1700
      %v2085 = vunpack.c.l.b16 %v1701
      %v2086 = vunpack.c.l.b16 %v1702
      %v2087 = vunpack.c.l.b16 %v1703
      %v2088 = vunpack.c.l.b16 %v1704
      %v2089 = vunpack.c.l.b16 %v1705
      %v2090 = vpack.c.b16 %v1739, %v2074
      %v2091 = vpack.c.b16 %v1741, %v2075
      %v2092 = vpack.c.b16 %v1743, %v2076
      %v2093 = vpack.c.b16 %v1745, %v2077
      %v2094 = vpack.c.b16 %v1747, %v2078
      %v2095 = vpack.c.b16 %v1749, %v2079
      %v2096 = vpack.c.b16 %v1751, %v2080
      %v2097 = vpack.c.b16 %v1753, %v2081
      %v2098 = vpack.c.b16 %v1755, %v2082
      %v2099 = vpack.c.b16 %v1757, %v2083
      %v2100 = vpack.c.b16 %v1759, %v2084
      %v2101 = vpack.c.b16 %v1761, %v2085
      %v2102 = vpack.c.b16 %v1763, %v2086
      %v2103 = vpack.c.b16 %v1765, %v2087
      %v2104 = vpack.c.b16 %v1767, %v2088
      %v2105 = vpack.c.b16 %v1769, %v2089
      %v2106 = vrot.slane %v2090, 1
      %v2107 = vrot.slane %v1834, 1
      %v2108 = vsel %vm1529, %v2106, %v2107
      %v2109 = vrot.slane %v2091, 1
      %v2110 = vrot.slane %v1835, 1
      %v2111 = vsel %vm1529, %v2109, %v2110
      %v2112 = vrot.slane %v2092, 1
      %v2113 = vrot.slane %v1836, 1
      %v2114 = vsel %vm1529, %v2112, %v2113
      %v2115 = vrot.slane %v2093, 1
      %v2116 = vrot.slane %v1837, 1
      %v2117 = vsel %vm1529, %v2115, %v2116
      %v2118 = vrot.slane %v2094, 1
      %v2119 = vrot.slane %v1838, 1
      %v2120 = vsel %vm1529, %v2118, %v2119
      %v2121 = vrot.slane %v2095, 1
      %v2122 = vrot.slane %v1839, 1
      %v2123 = vsel %vm1529, %v2121, %v2122
      %v2124 = vrot.slane %v2096, 1
      %v2125 = vrot.slane %v1840, 1
      %v2126 = vsel %vm1529, %v2124, %v2125
      %v2127 = vrot.slane %v2097, 1
      %v2128 = vrot.slane %v1841, 1
      %v2129 = vsel %vm1529, %v2127, %v2128
      %v2130 = vrot.slane %v2098, 1
      %v2131 = vrot.slane %v1842, 1
      %v2132 = vsel %vm1529, %v2130, %v2131
      %v2133 = vrot.slane %v2099, 1
      %v2134 = vrot.slane %v1843, 1
      %v2135 = vsel %vm1529, %v2133, %v2134
      %v2136 = vrot.slane %v2100, 1
      %v2137 = vrot.slane %v1844, 1
      %v2138 = vsel %vm1529, %v2136, %v2137
      %v2139 = vrot.slane %v2101, 1
      %v2140 = vrot.slane %v1845, 1
      %v2141 = vsel %vm1529, %v2139, %v2140
      %v2142 = vrot.slane %v2102, 1
      %v2143 = vrot.slane %v1846, 1
      %v2144 = vsel %vm1529, %v2142, %v2143
      %v2145 = vrot.slane %v2103, 1
      %v2146 = vrot.slane %v1847, 1
      %v2147 = vsel %vm1529, %v2145, %v2146
      %v2148 = vrot.slane %v2104, 1
      %v2149 = vrot.slane %v1848, 1
      %v2150 = vsel %vm1529, %v2148, %v2149
      %v2151 = vrot.slane %v2105, 1
      %v2152 = vrot.slane %v1849, 1
      %v2153 = vsel %vm1529, %v2151, %v2152
      %s2170 = scalar_lea.vmem %s1, 192
      %v2171 = vld [vmem:[%s2170] sm:$0xf]
      %v2172 = vld [vmem:[%s2170 + $0x4] sm:$0xf]
      %v2173 = vld [vmem:[%s2170 + $0x8] sm:$0xf]
      %v2174 = vld [vmem:[%s2170 + $0xc] sm:$0xf]
      %v2175 = vld [vmem:[%s2170 + $0x10] sm:$0xf]
      %v2176 = vld [vmem:[%s2170 + $0x14] sm:$0xf]
      %v2177 = vld [vmem:[%s2170 + $0x18] sm:$0xf]
      %v2178 = vld [vmem:[%s2170 + $0x1c] sm:$0xf]
      %v2179 = vld [vmem:[%s2170 + $0x20] sm:$0xf]
      %v2180 = vld [vmem:[%s2170 + $0x24] sm:$0xf]
      %v2181 = vld [vmem:[%s2170 + $0x28] sm:$0xf]
      %v2182 = vld [vmem:[%s2170 + $0x2c] sm:$0xf]
      %v2183 = vld [vmem:[%s2170 + $0x30] sm:$0xf]
      %v2184 = vld [vmem:[%s2170 + $0x34] sm:$0xf]
      %v2185 = vld [vmem:[%s2170 + $0x38] sm:$0xf]
      %v2186 = vld [vmem:[%s2170 + $0x3c] sm:$0xf]
      %v2187 = vld [vmem:[%s2170 + $0x40] sm:$0xf]
      %v2188 = vld [vmem:[%s2170 + $0x44] sm:$0xf]
      %v2189 = vld [vmem:[%s2170 + $0x48] sm:$0xf]
      %v2190 = vld [vmem:[%s2170 + $0x4c] sm:$0xf]
      %v2191 = vld [vmem:[%s2170 + $0x50] sm:$0xf]
      %v2192 = vld [vmem:[%s2170 + $0x54] sm:$0xf]
      %v2193 = vld [vmem:[%s2170 + $0x58] sm:$0xf]
      %v2194 = vld [vmem:[%s2170 + $0x5c] sm:$0xf]
      %v2195 = vld [vmem:[%s2170 + $0x60] sm:$0xf]
      %v2196 = vld [vmem:[%s2170 + $0x64] sm:$0xf]
      %v2197 = vld [vmem:[%s2170 + $0x68] sm:$0xf]
      %v2198 = vld [vmem:[%s2170 + $0x6c] sm:$0xf]
      %v2199 = vld [vmem:[%s2170 + $0x70] sm:$0xf]
      %v2200 = vld [vmem:[%s2170 + $0x74] sm:$0xf]
      %v2201 = vld [vmem:[%s2170 + $0x78] sm:$0xf]
      %v2202 = vld [vmem:[%s2170 + $0x7c] sm:$0xf]
      %v2203 = vld [vmem:[%s2170 + $0x80] sm:$0xf]
      %v2204 = vld [vmem:[%s2170 + $0x84] sm:$0xf]
      %v2205 = vld [vmem:[%s2170 + $0x88] sm:$0xf]
      %v2206 = vld [vmem:[%s2170 + $0x8c] sm:$0xf]
      %v2207 = vld [vmem:[%s2170 + $0x90] sm:$0xf]
      %v2208 = vld [vmem:[%s2170 + $0x94] sm:$0xf]
      %v2209 = vld [vmem:[%s2170 + $0x98] sm:$0xf]
      %v2210 = vld [vmem:[%s2170 + $0x9c] sm:$0xf]
      %v2211 = vld [vmem:[%s2170 + $0xa0] sm:$0xf]
      %v2212 = vld [vmem:[%s2170 + $0xa4] sm:$0xf]
      %v2213 = vld [vmem:[%s2170 + $0xa8] sm:$0xf]
      %v2214 = vld [vmem:[%s2170 + $0xac] sm:$0xf]
      %v2215 = vld [vmem:[%s2170 + $0xb0] sm:$0xf]
      %v2216 = vld [vmem:[%s2170 + $0xb4] sm:$0xf]
      %v2217 = vld [vmem:[%s2170 + $0xb8] sm:$0xf]
      %v2218 = vld [vmem:[%s2170 + $0xbc] sm:$0xf]
      %v2267 = vunpack.c.l.b16 %v2171
      %v2268 = vunpack.c.l.b16 %v2172
      %v2269 = vunpack.c.l.b16 %v2173
      %v2270 = vunpack.c.l.b16 %v2174
      %v2271 = vunpack.c.l.b16 %v2175
      %v2272 = vunpack.c.l.b16 %v2176
      %v2273 = vunpack.c.l.b16 %v2177
      %v2274 = vunpack.c.l.b16 %v2178
      %v2275 = vunpack.c.l.b16 %v2179
      %v2276 = vunpack.c.l.b16 %v2180
      %v2277 = vunpack.c.l.b16 %v2181
      %v2278 = vunpack.c.l.b16 %v2182
      %v2279 = vunpack.c.l.b16 %v2183
      %v2280 = vunpack.c.l.b16 %v2184
      %v2281 = vunpack.c.l.b16 %v2185
      %v2282 = vunpack.c.l.b16 %v2186
      %v2283 = vunpack.c.l.b16 %v2187
      %v2284 = vunpack.c.l.b16 %v2188
      %v2285 = vunpack.c.l.b16 %v2189
      %v2286 = vunpack.c.l.b16 %v2190
      %v2287 = vunpack.c.l.b16 %v2191
      %v2288 = vunpack.c.l.b16 %v2192
      %v2289 = vunpack.c.l.b16 %v2193
      %v2290 = vunpack.c.l.b16 %v2194
      %v2291 = vunpack.c.l.b16 %v2195
      %v2292 = vunpack.c.l.b16 %v2196
      %v2293 = vunpack.c.l.b16 %v2197
      %v2294 = vunpack.c.l.b16 %v2198
      %v2295 = vunpack.c.l.b16 %v2199
      %v2296 = vunpack.c.l.b16 %v2200
      %v2297 = vunpack.c.l.b16 %v2201
      %v2298 = vunpack.c.l.b16 %v2202
      %v2299 = vunpack.c.l.b16 %v2203
      %v2300 = vunpack.c.l.b16 %v2204
      %v2301 = vunpack.c.l.b16 %v2205
      %v2302 = vunpack.c.l.b16 %v2206
      %v2303 = vunpack.c.l.b16 %v2207
      %v2304 = vunpack.c.l.b16 %v2208
      %v2305 = vunpack.c.l.b16 %v2209
      %v2306 = vunpack.c.l.b16 %v2210
      %v2307 = vunpack.c.l.b16 %v2211
      %v2308 = vunpack.c.l.b16 %v2212
      %v2309 = vunpack.c.l.b16 %v2213
      %v2310 = vunpack.c.l.b16 %v2214
      %v2311 = vunpack.c.l.b16 %v2215
      %v2312 = vunpack.c.l.b16 %v2216
      %v2313 = vunpack.c.l.b16 %v2217
      %v2314 = vunpack.c.l.b16 %v2218
      %v2315 = vpack.c.b16 %v2268, %v2267
      %v2316 = vpack.c.b16 %v2270, %v2269
      %v2317 = vpack.c.b16 %v2272, %v2271
      %v2318 = vpack.c.b16 %v2274, %v2273
      %v2319 = vpack.c.b16 %v2276, %v2275
      %v2320 = vpack.c.b16 %v2278, %v2277
      %v2321 = vpack.c.b16 %v2280, %v2279
      %v2322 = vpack.c.b16 %v2282, %v2281
      %v2323 = vpack.c.b16 %v2284, %v2283
      %v2324 = vpack.c.b16 %v2286, %v2285
      %v2325 = vpack.c.b16 %v2288, %v2287
      %v2326 = vpack.c.b16 %v2290, %v2289
      %v2327 = vpack.c.b16 %v2292, %v2291
      %v2328 = vpack.c.b16 %v2294, %v2293
      %v2329 = vpack.c.b16 %v2296, %v2295
      %v2330 = vpack.c.b16 %v2298, %v2297
      %v2331 = vpack.c.b16 %v2300, %v2299
      %v2332 = vpack.c.b16 %v2302, %v2301
      %v2333 = vpack.c.b16 %v2304, %v2303
      %v2334 = vpack.c.b16 %v2306, %v2305
      %v2335 = vpack.c.b16 %v2308, %v2307
      %v2336 = vpack.c.b16 %v2310, %v2309
      %v2337 = vpack.c.b16 %v2312, %v2311
      %v2338 = vpack.c.b16 %v2314, %v2313
      %2363 = vmatprep.subr.bf16.mxu0 0
      %2364 = vmatpush1.bf16.msra.mxu0 %v2315
      %2365 = vmatprep.subr.bf16.mxu0 0
      %2366 = vmatpush1.bf16.msra.mxu0 %v2316
      %2367 = vmatprep.subr.bf16.mxu0 0
      %2368 = vmatpush1.bf16.msra.mxu0 %v2317
      %2369 = vmatprep.subr.bf16.mxu0 0
      %2370 = vmatpush1.bf16.msra.mxu0 %v2318
      %2371 = vmatprep.subr.bf16.mxu0 0
      %2372 = vmatpush1.bf16.msra.mxu0 %v2319
      %2373 = vmatprep.subr.bf16.mxu0 0
      %2374 = vmatpush1.bf16.msra.mxu0 %v2320
      %2375 = vmatprep.subr.bf16.mxu0 0
      %2376 = vmatpush1.bf16.msra.mxu0 %v2321
      %2377 = vmatprep.subr.bf16.mxu0 0
      %2378 = vmatpush1.bf16.msra.mxu0 %v2322
      %2379 = vmatprep.subr.bf16.mxu0 0
      %2380 = vmatpush1.bf16.msra.mxu0 %v2323
      %2381 = vmatprep.subr.bf16.mxu0 0
      %2382 = vmatpush1.bf16.msra.mxu0 %v2324
      %2383 = vmatprep.subr.bf16.mxu0 0
      %2384 = vmatpush1.bf16.msra.mxu0 %v2325
      %2385 = vmatprep.subr.bf16.mxu0 0
      %2386 = vmatpush1.bf16.msra.mxu0 %v2326
      %2387 = vmatprep.subr.bf16.mxu0 0
      %2388 = vmatpush1.bf16.msra.mxu0 %v2327
      %2389 = vmatprep.subr.bf16.mxu0 0
      %2390 = vmatpush1.bf16.msra.mxu0 %v2328
      %2391 = vmatprep.subr.bf16.mxu0 0
      %2392 = vmatpush1.bf16.msra.mxu0 %v2329
      %2393 = vmatprep.subr.bf16.mxu0 0
      %2394 = vmatpush1.bf16.msra.mxu0 %v2330
      %2395 = vmatprep.mubr.bf16.mxu0 %v1861
      %2396 = vmatmul.mubr.bf16.gmra.mrb[0].mxu0 %v1770
      %v2397 = vpop.f32.mrb[0].mxu0
      %v2398 = vadd.f32 0.0, %v2397
      %v2399 = vpop.f32.mrb[0].mxu0
      %v2400 = vpop.f32.mrb[0].mxu0
      %v2401 = vadd.f32 0.0, %v2400
      %v2402 = vpop.f32.mrb[0].mxu0
      %2403 = vmatprep.mubr.bf16.mxu0 %v1873
      %2404 = vmatmul.mubr.bf16.gmra.mrb[0].mxu0 %v1771
      %v2405 = vpop.f32.mrb[0].mxu0
      %v2406 = vadd.f32 0.0, %v2405
      %v2407 = vpop.f32.mrb[0].mxu0
      %v2408 = vpop.f32.mrb[0].mxu0
      %v2409 = vadd.f32 0.0, %v2408
      %v2410 = vpop.f32.mrb[0].mxu0
      %2411 = vmatprep.mubr.bf16.mxu0 %v1885
      %2412 = vmatmul.mubr.bf16.gmra.mrb[0].mxu0 %v1772
      %v2413 = vpop.f32.mrb[0].mxu0
      %v2414 = vadd.f32 0.0, %v2413
      %v2415 = vpop.f32.mrb[0].mxu0
      %v2416 = vpop.f32.mrb[0].mxu0
      %v2417 = vadd.f32 0.0, %v2416
      %v2418 = vpop.f32.mrb[0].mxu0
      %2419 = vmatprep.mubr.bf16.mxu0 %v1897
      %2420 = vmatmul.mubr.bf16.gmra.mrb[0].mxu0 %v1773
      %v2421 = vpop.f32.mrb[0].mxu0
      %v2422 = vadd.f32 0.0, %v2421
      %v2423 = vpop.f32.mrb[0].mxu0
      %v2424 = vpop.f32.mrb[0].mxu0
      %v2425 = vadd.f32 0.0, %v2424
      %v2426 = vpop.f32.mrb[0].mxu0
      %2427 = vmatprep.mubr.bf16.mxu0 %v1909
      %2428 = vmatmul.mubr.bf16.gmra.mrb[0].mxu0 %v1774
      %v2429 = vpop.f32.mrb[0].mxu0
      %v2430 = vadd.f32 0.0, %v2429
      %v2431 = vpop.f32.mrb[0].mxu0
      %v2432 = vpop.f32.mrb[0].mxu0
      %v2433 = vadd.f32 0.0, %v2432
      %v2434 = vpop.f32.mrb[0].mxu0
      %2435 = vmatprep.mubr.bf16.mxu0 %v1921
      %2436 = vmatmul.mubr.bf16.gmra.mrb[0].mxu0 %v1775
      %v2437 = vpop.f32.mrb[0].mxu0
      %v2438 = vadd.f32 0.0, %v2437
      %v2439 = vpop.f32.mrb[0].mxu0
      %v2440 = vpop.f32.mrb[0].mxu0
      %v2441 = vadd.f32 0.0, %v2440
      %v2442 = vpop.f32.mrb[0].mxu0
      %2443 = vmatprep.mubr.bf16.mxu0 %v1933
      %2444 = vmatmul.mubr.bf16.gmra.mrb[0].mxu0 %v1776
      %v2445 = vpop.f32.mrb[0].mxu0
      %v2446 = vadd.f32 0.0, %v2445
      %v2447 = vpop.f32.mrb[0].mxu0
      %v2448 = vpop.f32.mrb[0].mxu0
      %v2449 = vadd.f32 0.0, %v2448
      %v2450 = vpop.f32.mrb[0].mxu0
      %2451 = vmatprep.mubr.bf16.mxu0 %v1945
      %2452 = vmatmul.mubr.bf16.gmra.mrb[0].mxu0 %v1777
      %v2453 = vpop.f32.mrb[0].mxu0
      %v2454 = vadd.f32 0.0, %v2453
      %v2455 = vpop.f32.mrb[0].mxu0
      %v2456 = vpop.f32.mrb[0].mxu0
      %v2457 = vadd.f32 0.0, %v2456
      %v2458 = vpop.f32.mrb[0].mxu0
      %2459 = vmatprep.mubr.bf16.mxu0 %v1957
      %2460 = vmatmul.mubr.bf16.gmra.mrb[0].mxu0 %v1778
      %v2461 = vpop.f32.mrb[0].mxu0
      %v2462 = vadd.f32 0.0, %v2461
      %v2463 = vpop.f32.mrb[0].mxu0
      %v2464 = vpop.f32.mrb[0].mxu0
      %v2465 = vadd.f32 0.0, %v2464
      %v2466 = vpop.f32.mrb[0].mxu0
      %2467 = vmatprep.mubr.bf16.mxu0 %v1969
      %2468 = vmatmul.mubr.bf16.gmra.mrb[0].mxu0 %v1779
      %v2469 = vpop.f32.mrb[0].mxu0
      %v2470 = vadd.f32 0.0, %v2469
      %v2471 = vpop.f32.mrb[0].mxu0
      %v2472 = vpop.f32.mrb[0].mxu0
      %v2473 = vadd.f32 0.0, %v2472
      %v2474 = vpop.f32.mrb[0].mxu0
      %2475 = vmatprep.mubr.bf16.mxu0 %v1981
      %2476 = vmatmul.mubr.bf16.gmra.mrb[0].mxu0 %v1780
      %v2477 = vpop.f32.mrb[0].mxu0
      %v2478 = vadd.f32 0.0, %v2477
      %v2479 = vpop.f32.mrb[0].mxu0
      %v2480 = vpop.f32.mrb[0].mxu0
      %v2481 = vadd.f32 0.0, %v2480
      %v2482 = vpop.f32.mrb[0].mxu0
      %2483 = vmatprep.mubr.bf16.mxu0 %v1993
      %2484 = vmatmul.mubr.bf16.gmra.mrb[0].mxu0 %v1781
      %v2485 = vpop.f32.mrb[0].mxu0
      %v2486 = vadd.f32 0.0, %v2485
      %v2487 = vpop.f32.mrb[0].mxu0
      %v2488 = vpop.f32.mrb[0].mxu0
      %v2489 = vadd.f32 0.0, %v2488
      %v2490 = vpop.f32.mrb[0].mxu0
      %2491 = vmatprep.mubr.bf16.mxu0 %v2005
      %2492 = vmatmul.mubr.bf16.gmra.mrb[0].mxu0 %v1782
      %v2493 = vpop.f32.mrb[0].mxu0
      %v2494 = vadd.f32 0.0, %v2493
      %v2495 = vpop.f32.mrb[0].mxu0
      %v2496 = vpop.f32.mrb[0].mxu0
      %v2497 = vadd.f32 0.0, %v2496
      %v2498 = vpop.f32.mrb[0].mxu0
      %2499 = vmatprep.mubr.bf16.mxu0 %v2017
      %2500 = vmatmul.mubr.bf16.gmra.mrb[0].mxu0 %v1783
      %v2501 = vpop.f32.mrb[0].mxu0
      %v2502 = vadd.f32 0.0, %v2501
      %v2503 = vpop.f32.mrb[0].mxu0
      %v2504 = vpop.f32.mrb[0].mxu0
      %v2505 = vadd.f32 0.0, %v2504
      %v2506 = vpop.f32.mrb[0].mxu0
      %2507 = vmatprep.mubr.bf16.mxu0 %v2029
      %2508 = vmatmul.mubr.bf16.gmra.mrb[0].mxu0 %v1784
      %v2509 = vpop.f32.mrb[0].mxu0
      %v2510 = vadd.f32 0.0, %v2509
      %v2511 = vpop.f32.mrb[0].mxu0
      %v2512 = vpop.f32.mrb[0].mxu0
      %v2513 = vadd.f32 0.0, %v2512
      %v2514 = vpop.f32.mrb[0].mxu0
      %2515 = vmatprep.mubr.bf16.mxu0 %v2041
      %2516 = vmatmul.mubr.bf16.gmra.mrb[0].mxu0 %v1785
      %v2517 = vpop.f32.mrb[0].mxu0
      %v2518 = vadd.f32 0.0, %v2517
      %v2519 = vpop.f32.mrb[0].mxu0
      %v2520 = vpop.f32.mrb[0].mxu0
      %v2521 = vadd.f32 0.0, %v2520
      %v2522 = vpop.f32.mrb[0].mxu0
      %2523 = vdwg.mxu0
      %2524 = vmatprep.subr.bf16.mxu0 0
      %2525 = vmatpush1.bf16.msra.mxu0 %v2331
      %2526 = vmatprep.subr.bf16.mxu0 0
      %2527 = vmatpush1.bf16.msra.mxu0 %v2332
      %2528 = vmatprep.subr.bf16.mxu0 0
      %2529 = vmatpush1.bf16.msra.mxu0 %v2333
      %2530 = vmatprep.subr.bf16.mxu0 0
      %2531 = vmatpush1.bf16.msra.mxu0 %v2334
      %2532 = vmatprep.subr.bf16.mxu0 0
      %2533 = vmatpush1.bf16.msra.mxu0 %v2335
      %2534 = vmatprep.subr.bf16.mxu0 0
      %2535 = vmatpush1.bf16.msra.mxu0 %v2336
      %2536 = vmatprep.subr.bf16.mxu0 0
      %2537 = vmatpush1.bf16.msra.mxu0 %v2337
      %2538 = vmatprep.subr.bf16.mxu0 0
      %2539 = vmatpush1.bf16.msra.mxu0 %v2338
      %2540 = vmatprep.subr.bf16.mxu0 0
      %2541 = vmatpush1.bf16.msra.mxu0 0
      %2542 = vmatprep.subr.bf16.mxu0 0
      %2543 = vmatpush1.bf16.msra.mxu0 0
      %2544 = vmatprep.subr.bf16.mxu0 0
      %2545 = vmatpush1.bf16.msra.mxu0 0
      %2546 = vmatprep.subr.bf16.mxu0 0
      %2547 = vmatpush1.bf16.msra.mxu0 0
      %2548 = vmatprep.subr.bf16.mxu0 0
      %2549 = vmatpush1.bf16.msra.mxu0 0
      %2550 = vmatprep.subr.bf16.mxu0 0
      %2551 = vmatpush1.bf16.msra.mxu0 0
      %2552 = vmatprep.subr.bf16.mxu0 0
      %2553 = vmatpush1.bf16.msra.mxu0 0
      %2554 = vmatprep.subr.bf16.mxu0 0
      %2555 = vmatpush1.bf16.msra.mxu0 0
      %2556 = vmatprep.mubr.bf16.mxu0 0
      %2557 = vmatmul.mubr.bf16.gmra.mrb[0].mxu0 %v2108
      %v2558 = vpop.f32.mrb[0].mxu0
      %v2559 = vadd.f32 %v2398, %v2558
      %v2560 = vpop.f32.mrb[0].mxu0
      %v2561 = vpop.f32.mrb[0].mxu0
      %v2562 = vadd.f32 %v2401, %v2561
      %v2563 = vpop.f32.mrb[0].mxu0
      %2564 = vmatprep.mubr.bf16.mxu0 0
      %2565 = vmatmul.mubr.bf16.gmra.mrb[0].mxu0 %v2111
      %v2566 = vpop.f32.mrb[0].mxu0
      %v2567 = vadd.f32 %v2406, %v2566
      %v2568 = vpop.f32.mrb[0].mxu0
      %v2569 = vpop.f32.mrb[0].mxu0
      %v2570 = vadd.f32 %v2409, %v2569
      %v2571 = vpop.f32.mrb[0].mxu0
      %2572 = vmatprep.mubr.bf16.mxu0 0
      %2573 = vmatmul.mubr.bf16.gmra.mrb[0].mxu0 %v2114
      %v2574 = vpop.f32.mrb[0].mxu0
      %v2575 = vadd.f32 %v2414, %v2574
      %v2576 = vpop.f32.mrb[0].mxu0
      %v2577 = vpop.f32.mrb[0].mxu0
      %v2578 = vadd.f32 %v2417, %v2577
      %v2579 = vpop.f32.mrb[0].mxu0
      %2580 = vmatprep.mubr.bf16.mxu0 0
      %2581 = vmatmul.mubr.bf16.gmra.mrb[0].mxu0 %v2117
      %v2582 = vpop.f32.mrb[0].mxu0
      %v2583 = vadd.f32 %v2422, %v2582
      %v2584 = vpop.f32.mrb[0].mxu0
      %v2585 = vpop.f32.mrb[0].mxu0
      %v2586 = vadd.f32 %v2425, %v2585
      %v2587 = vpop.f32.mrb[0].mxu0
      %2588 = vmatprep.mubr.bf16.mxu0 0
      %2589 = vmatmul.mubr.bf16.gmra.mrb[0].mxu0 %v2120
      %v2590 = vpop.f32.mrb[0].mxu0
      %v2591 = vadd.f32 %v2430, %v2590
      %v2592 = vpop.f32.mrb[0].mxu0
      %v2593 = vpop.f32.mrb[0].mxu0
      %v2594 = vadd.f32 %v2433, %v2593
      %v2595 = vpop.f32.mrb[0].mxu0
      %2596 = vmatprep.mubr.bf16.mxu0 0
      %2597 = vmatmul.mubr.bf16.gmra.mrb[0].mxu0 %v2123
      %v2598 = vpop.f32.mrb[0].mxu0
      %v2599 = vadd.f32 %v2438, %v2598
      %v2600 = vpop.f32.mrb[0].mxu0
      %v2601 = vpop.f32.mrb[0].mxu0
      %v2602 = vadd.f32 %v2441, %v2601
      %v2603 = vpop.f32.mrb[0].mxu0
      %2604 = vmatprep.mubr.bf16.mxu0 0
      %2605 = vmatmul.mubr.bf16.gmra.mrb[0].mxu0 %v2126
      %v2606 = vpop.f32.mrb[0].mxu0
      %v2607 = vadd.f32 %v2446, %v2606
      %v2608 = vpop.f32.mrb[0].mxu0
      %v2609 = vpop.f32.mrb[0].mxu0
      %v2610 = vadd.f32 %v2449, %v2609
      %v2611 = vpop.f32.mrb[0].mxu0
      %2612 = vmatprep.mubr.bf16.mxu0 0
      %2613 = vmatmul.mubr.bf16.gmra.mrb[0].mxu0 %v2129
      %v2614 = vpop.f32.mrb[0].mxu0
      %v2615 = vadd.f32 %v2454, %v2614
      %v2616 = vpop.f32.mrb[0].mxu0
      %v2617 = vpop.f32.mrb[0].mxu0
      %v2618 = vadd.f32 %v2457, %v2617
      %v2619 = vpop.f32.mrb[0].mxu0
      %2620 = vmatprep.mubr.bf16.mxu0 0
      %2621 = vmatmul.mubr.bf16.gmra.mrb[0].mxu0 %v2132
      %v2622 = vpop.f32.mrb[0].mxu0
      %v2623 = vadd.f32 %v2462, %v2622
      %v2624 = vpop.f32.mrb[0].mxu0
      %v2625 = vpop.f32.mrb[0].mxu0
      %v2626 = vadd.f32 %v2465, %v2625
      %v2627 = vpop.f32.mrb[0].mxu0
      %2628 = vmatprep.mubr.bf16.mxu0 0
      %2629 = vmatmul.mubr.bf16.gmra.mrb[0].mxu0 %v2135
      %v2630 = vpop.f32.mrb[0].mxu0
      %v2631 = vadd.f32 %v2470, %v2630
      %v2632 = vpop.f32.mrb[0].mxu0
      %v2633 = vpop.f32.mrb[0].mxu0
      %v2634 = vadd.f32 %v2473, %v2633
      %v2635 = vpop.f32.mrb[0].mxu0
      %2636 = vmatprep.mubr.bf16.mxu0 0
      %2637 = vmatmul.mubr.bf16.gmra.mrb[0].mxu0 %v2138
      %v2638 = vpop.f32.mrb[0].mxu0
      %v2639 = vadd.f32 %v2478, %v2638
      %v2640 = vpop.f32.mrb[0].mxu0
      %v2641 = vpop.f32.mrb[0].mxu0
      %v2642 = vadd.f32 %v2481, %v2641
      %v2643 = vpop.f32.mrb[0].mxu0
      %2644 = vmatprep.mubr.bf16.mxu0 0
      %2645 = vmatmul.mubr.bf16.gmra.mrb[0].mxu0 %v2141
      %v2646 = vpop.f32.mrb[0].mxu0
      %v2647 = vadd.f32 %v2486, %v2646
      %v2648 = vpop.f32.mrb[0].mxu0
      %v2649 = vpop.f32.mrb[0].mxu0
      %v2650 = vadd.f32 %v2489, %v2649
      %v2651 = vpop.f32.mrb[0].mxu0
      %2652 = vmatprep.mubr.bf16.mxu0 0
      %2653 = vmatmul.mubr.bf16.gmra.mrb[0].mxu0 %v2144
      %v2654 = vpop.f32.mrb[0].mxu0
      %v2655 = vadd.f32 %v2494, %v2654
      %v2656 = vpop.f32.mrb[0].mxu0
      %v2657 = vpop.f32.mrb[0].mxu0
      %v2658 = vadd.f32 %v2497, %v2657
      %v2659 = vpop.f32.mrb[0].mxu0
      %2660 = vmatprep.mubr.bf16.mxu0 0
      %2661 = vmatmul.mubr.bf16.gmra.mrb[0].mxu0 %v2147
      %v2662 = vpop.f32.mrb[0].mxu0
      %v2663 = vadd.f32 %v2502, %v2662
      %v2664 = vpop.f32.mrb[0].mxu0
      %v2665 = vpop.f32.mrb[0].mxu0
      %v2666 = vadd.f32 %v2505, %v2665
      %v2667 = vpop.f32.mrb[0].mxu0
      %2668 = vmatprep.mubr.bf16.mxu0 0
      %2669 = vmatmul.mubr.bf16.gmra.mrb[0].mxu0 %v2150
      %v2670 = vpop.f32.mrb[0].mxu0
      %v2671 = vadd.f32 %v2510, %v2670
      %v2672 = vpop.f32.mrb[0].mxu0
      %v2673 = vpop.f32.mrb[0].mxu0
      %v2674 = vadd.f32 %v2513, %v2673
      %v2675 = vpop.f32.mrb[0].mxu0
      %2676 = vmatprep.mubr.bf16.mxu0 0
      %2677 = vmatmul.mubr.bf16.gmra.mrb[0].mxu0 %v2153
      %v2678 = vpop.f32.mrb[0].mxu0
      %v2679 = vadd.f32 %v2518, %v2678
      %v2680 = vpop.f32.mrb[0].mxu0
      %v2681 = vpop.f32.mrb[0].mxu0
      %v2682 = vadd.f32 %v2521, %v2681
      %v2683 = vpop.f32.mrb[0].mxu0
      %2684 = vdwg.mxu0
      %v2733 = vunpack.c.l.b16 %v1594
      %v2734 = vunpack.c.l.b16 %v1595
      %v2735 = vunpack.c.l.b16 %v1596
      %v2736 = vunpack.c.l.b16 %v1597
      %v2737 = vunpack.c.l.b16 %v1598
      %v2738 = vunpack.c.l.b16 %v1599
      %v2739 = vunpack.c.l.b16 %v1600
      %v2740 = vunpack.c.l.b16 %v1601
      %v2741 = vunpack.c.l.b16 %v1602
      %v2742 = vunpack.c.l.b16 %v1603
      %v2743 = vunpack.c.l.b16 %v1604
      %v2744 = vunpack.c.l.b16 %v1605
      %v2745 = vunpack.c.l.b16 %v1606
      %v2746 = vunpack.c.l.b16 %v1607
      %v2747 = vunpack.c.l.b16 %v1608
      %v2748 = vunpack.c.l.b16 %v1609
      %v2749 = vunpack.c.l.b16 %v1610
      %v2750 = vunpack.c.l.b16 %v1611
      %v2751 = vunpack.c.l.b16 %v1612
      %v2752 = vunpack.c.l.b16 %v1613
      %v2753 = vunpack.c.l.b16 %v1614
      %v2754 = vunpack.c.l.b16 %v1615
      %v2755 = vunpack.c.l.b16 %v1616
      %v2756 = vunpack.c.l.b16 %v1617
      %v2757 = vunpack.c.l.b16 %v1618
      %v2758 = vunpack.c.l.b16 %v1619
      %v2759 = vunpack.c.l.b16 %v1620
      %v2760 = vunpack.c.l.b16 %v1621
      %v2761 = vunpack.c.l.b16 %v1622
      %v2762 = vunpack.c.l.b16 %v1623
      %v2763 = vunpack.c.l.b16 %v1624
      %v2764 = vunpack.c.l.b16 %v1625
      %v2765 = vunpack.c.l.b16 %v1626
      %v2766 = vunpack.c.l.b16 %v1627
      %v2767 = vunpack.c.l.b16 %v1628
      %v2768 = vunpack.c.l.b16 %v1629
      %v2769 = vunpack.c.l.b16 %v1630
      %v2770 = vunpack.c.l.b16 %v1631
      %v2771 = vunpack.c.l.b16 %v1632
      %v2772 = vunpack.c.l.b16 %v1633
      %v2773 = vunpack.c.l.b16 %v1634
      %v2774 = vunpack.c.l.b16 %v1635
      %v2775 = vunpack.c.l.b16 %v1636
      %v2776 = vunpack.c.l.b16 %v1637
      %v2777 = vunpack.c.l.b16 %v1638
      %v2778 = vunpack.c.l.b16 %v1639
      %v2779 = vunpack.c.l.b16 %v1640
      %v2780 = vunpack.c.l.b16 %v1641
      %v2781 = vpack.c.b16 %v2734, %v2733
      %v2782 = vpack.c.b16 %v2736, %v2735
      %v2783 = vpack.c.b16 %v2738, %v2737
      %v2784 = vpack.c.b16 %v2740, %v2739
      %v2785 = vpack.c.b16 %v2742, %v2741
      %v2786 = vpack.c.b16 %v2744, %v2743
      %v2787 = vpack.c.b16 %v2746, %v2745
      %v2788 = vpack.c.b16 %v2748, %v2747
      %v2789 = vpack.c.b16 %v2750, %v2749
      %v2790 = vpack.c.b16 %v2752, %v2751
      %v2791 = vpack.c.b16 %v2754, %v2753
      %v2792 = vpack.c.b16 %v2756, %v2755
      %v2793 = vpack.c.b16 %v2758, %v2757
      %v2794 = vpack.c.b16 %v2760, %v2759
      %v2795 = vpack.c.b16 %v2762, %v2761
      %v2796 = vpack.c.b16 %v2764, %v2763
      %v2797 = vpack.c.b16 %v2766, %v2765
      %v2798 = vpack.c.b16 %v2768, %v2767
      %v2799 = vpack.c.b16 %v2770, %v2769
      %v2800 = vpack.c.b16 %v2772, %v2771
      %v2801 = vpack.c.b16 %v2774, %v2773
      %v2802 = vpack.c.b16 %v2776, %v2775
      %v2803 = vpack.c.b16 %v2778, %v2777
      %v2804 = vpack.c.b16 %v2780, %v2779
      %2829 = vmatprep.subr.bf16.mxu0 0
      %2830 = vmatpush1.bf16.msra.mxu0 %v2781
      %2831 = vmatprep.subr.bf16.mxu0 0
      %2832 = vmatpush1.bf16.msra.mxu0 %v2782
      %2833 = vmatprep.subr.bf16.mxu0 0
      %2834 = vmatpush1.bf16.msra.mxu0 %v2783
      %2835 = vmatprep.subr.bf16.mxu0 0
      %2836 = vmatpush1.bf16.msra.mxu0 %v2784
      %2837 = vmatprep.subr.bf16.mxu0 0
      %2838 = vmatpush1.bf16.msra.mxu0 %v2785
      %2839 = vmatprep.subr.bf16.mxu0 0
      %2840 = vmatpush1.bf16.msra.mxu0 %v2786
      %2841 = vmatprep.subr.bf16.mxu0 0
      %2842 = vmatpush1.bf16.msra.mxu0 %v2787
      %2843 = vmatprep.subr.bf16.mxu0 0
      %2844 = vmatpush1.bf16.msra.mxu0 %v2788
      %2845 = vmatprep.subr.bf16.mxu0 0
      %2846 = vmatpush1.bf16.msra.mxu0 %v2789
      %2847 = vmatprep.subr.bf16.mxu0 0
      %2848 = vmatpush1.bf16.msra.mxu0 %v2790
      %2849 = vmatprep.subr.bf16.mxu0 0
      %2850 = vmatpush1.bf16.msra.mxu0 %v2791
      %2851 = vmatprep.subr.bf16.mxu0 0
      %2852 = vmatpush1.bf16.msra.mxu0 %v2792
      %2853 = vmatprep.subr.bf16.mxu0 0
      %2854 = vmatpush1.bf16.msra.mxu0 %v2793
      %2855 = vmatprep.subr.bf16.mxu0 0
      %2856 = vmatpush1.bf16.msra.mxu0 %v2794
      %2857 = vmatprep.subr.bf16.mxu0 0
      %2858 = vmatpush1.bf16.msra.mxu0 %v2795
      %2859 = vmatprep.subr.bf16.mxu0 0
      %2860 = vmatpush1.bf16.msra.mxu0 %v2796
      %2861 = vmatprep.mubr.bf16.mxu0 %v1284
      %2862 = vmatmul.mubr.bf16.gmra.mrb[0].mxu0 %v1192
      %v2863 = vpop.f32.mrb[0].mxu0
      %v2864 = vadd.f32 %v2559, %v2863
      %v2865 = vpop.f32.mrb[0].mxu0
      %v2866 = vpop.f32.mrb[0].mxu0
      %v2867 = vadd.f32 %v2562, %v2866
      %v2868 = vpop.f32.mrb[0].mxu0
      %2869 = vmatprep.mubr.bf16.mxu0 %v1296
      %2870 = vmatmul.mubr.bf16.gmra.mrb[0].mxu0 %v1193
      %v2871 = vpop.f32.mrb[0].mxu0
      %v2872 = vadd.f32 %v2567, %v2871
      %v2873 = vpop.f32.mrb[0].mxu0
      %v2874 = vpop.f32.mrb[0].mxu0
      %v2875 = vadd.f32 %v2570, %v2874
      %v2876 = vpop.f32.mrb[0].mxu0
      %2877 = vmatprep.mubr.bf16.mxu0 %v1308
      %2878 = vmatmul.mubr.bf16.gmra.mrb[0].mxu0 %v1194
      %v2879 = vpop.f32.mrb[0].mxu0
      %v2880 = vadd.f32 %v2575, %v2879
      %v2881 = vpop.f32.mrb[0].mxu0
      %v2882 = vpop.f32.mrb[0].mxu0
      %v2883 = vadd.f32 %v2578, %v2882
      %v2884 = vpop.f32.mrb[0].mxu0
      %2885 = vmatprep.mubr.bf16.mxu0 %v1320
      %2886 = vmatmul.mubr.bf16.gmra.mrb[0].mxu0 %v1195
      %v2887 = vpop.f32.mrb[0].mxu0
      %v2888 = vadd.f32 %v2583, %v2887
      %v2889 = vpop.f32.mrb[0].mxu0
      %v2890 = vpop.f32.mrb[0].mxu0
      %v2891 = vadd.f32 %v2586, %v2890
      %v2892 = vpop.f32.mrb[0].mxu0
      %2893 = vmatprep.mubr.bf16.mxu0 %v1332
      %2894 = vmatmul.mubr.bf16.gmra.mrb[0].mxu0 %v1196
      %v2895 = vpop.f32.mrb[0].mxu0
      %v2896 = vadd.f32 %v2591, %v2895
      %v2897 = vpop.f32.mrb[0].mxu0
      %v2898 = vpop.f32.mrb[0].mxu0
      %v2899 = vadd.f32 %v2594, %v2898
      %v2900 = vpop.f32.mrb[0].mxu0
      %2901 = vmatprep.mubr.bf16.mxu0 %v1344
      %2902 = vmatmul.mubr.bf16.gmra.mrb[0].mxu0 %v1197
      %v2903 = vpop.f32.mrb[0].mxu0
      %v2904 = vadd.f32 %v2599, %v2903
      %v2905 = vpop.f32.mrb[0].mxu0
      %v2906 = vpop.f32.mrb[0].mxu0
      %v2907 = vadd.f32 %v2602, %v2906
      %v2908 = vpop.f32.mrb[0].mxu0
      %2909 = vmatprep.mubr.bf16.mxu0 %v1356
      %2910 = vmatmul.mubr.bf16.gmra.mrb[0].mxu0 %v1198
      %v2911 = vpop.f32.mrb[0].mxu0
      %v2912 = vadd.f32 %v2607, %v2911
      %v2913 = vpop.f32.mrb[0].mxu0
      %v2914 = vpop.f32.mrb[0].mxu0
      %v2915 = vadd.f32 %v2610, %v2914
      %v2916 = vpop.f32.mrb[0].mxu0
      %2917 = vmatprep.mubr.bf16.mxu0 %v1368
      %2918 = vmatmul.mubr.bf16.gmra.mrb[0].mxu0 %v1199
      %v2919 = vpop.f32.mrb[0].mxu0
      %v2920 = vadd.f32 %v2615, %v2919
      %v2921 = vpop.f32.mrb[0].mxu0
      %v2922 = vpop.f32.mrb[0].mxu0
      %v2923 = vadd.f32 %v2618, %v2922
      %v2924 = vpop.f32.mrb[0].mxu0
      %2925 = vmatprep.mubr.bf16.mxu0 %v1380
      %2926 = vmatmul.mubr.bf16.gmra.mrb[0].mxu0 %v1200
      %v2927 = vpop.f32.mrb[0].mxu0
      %v2928 = vadd.f32 %v2623, %v2927
      %v2929 = vpop.f32.mrb[0].mxu0
      %v2930 = vpop.f32.mrb[0].mxu0
      %v2931 = vadd.f32 %v2626, %v2930
      %v2932 = vpop.f32.mrb[0].mxu0
      %2933 = vmatprep.mubr.bf16.mxu0 %v1392
      %2934 = vmatmul.mubr.bf16.gmra.mrb[0].mxu0 %v1201
      %v2935 = vpop.f32.mrb[0].mxu0
      %v2936 = vadd.f32 %v2631, %v2935
      %v2937 = vpop.f32.mrb[0].mxu0
      %v2938 = vpop.f32.mrb[0].mxu0
      %v2939 = vadd.f32 %v2634, %v2938
      %v2940 = vpop.f32.mrb[0].mxu0
      %2941 = vmatprep.mubr.bf16.mxu0 %v1404
      %2942 = vmatmul.mubr.bf16.gmra.mrb[0].mxu0 %v1202
      %v2943 = vpop.f32.mrb[0].mxu0
      %v2944 = vadd.f32 %v2639, %v2943
      %v2945 = vpop.f32.mrb[0].mxu0
      %v2946 = vpop.f32.mrb[0].mxu0
      %v2947 = vadd.f32 %v2642, %v2946
      %v2948 = vpop.f32.mrb[0].mxu0
      %2949 = vmatprep.mubr.bf16.mxu0 %v1416
      %2950 = vmatmul.mubr.bf16.gmra.mrb[0].mxu0 %v1203
      %v2951 = vpop.f32.mrb[0].mxu0
      %v2952 = vadd.f32 %v2647, %v2951
      %v2953 = vpop.f32.mrb[0].mxu0
      %v2954 = vpop.f32.mrb[0].mxu0
      %v2955 = vadd.f32 %v2650, %v2954
      %v2956 = vpop.f32.mrb[0].mxu0
      %2957 = vmatprep.mubr.bf16.mxu0 %v1428
      %2958 = vmatmul.mubr.bf16.gmra.mrb[0].mxu0 %v1204
      %v2959 = vpop.f32.mrb[0].mxu0
      %v2960 = vadd.f32 %v2655, %v2959
      %v2961 = vpop.f32.mrb[0].mxu0
      %v2962 = vpop.f32.mrb[0].mxu0
      %v2963 = vadd.f32 %v2658, %v2962
      %v2964 = vpop.f32.mrb[0].mxu0
      %2965 = vmatprep.mubr.bf16.mxu0 %v1440
      %2966 = vmatmul.mubr.bf16.gmra.mrb[0].mxu0 %v1205
      %v2967 = vpop.f32.mrb[0].mxu0
      %v2968 = vadd.f32 %v2663, %v2967
      %v2969 = vpop.f32.mrb[0].mxu0
      %v2970 = vpop.f32.mrb[0].mxu0
      %v2971 = vadd.f32 %v2666, %v2970
      %v2972 = vpop.f32.mrb[0].mxu0
      %2973 = vmatprep.mubr.bf16.mxu0 %v1452
      %2974 = vmatmul.mubr.bf16.gmra.mrb[0].mxu0 %v1206
      %v2975 = vpop.f32.mrb[0].mxu0
      %v2976 = vadd.f32 %v2671, %v2975
      %v2977 = vpop.f32.mrb[0].mxu0
      %v2978 = vpop.f32.mrb[0].mxu0
      %v2979 = vadd.f32 %v2674, %v2978
      %v2980 = vpop.f32.mrb[0].mxu0
      %2981 = vmatprep.mubr.bf16.mxu0 %v1464
      %2982 = vmatmul.mubr.bf16.gmra.mrb[0].mxu0 %v1207
      %v2983 = vpop.f32.mrb[0].mxu0
      %v2984 = vadd.f32 %v2679, %v2983
      %v2985 = vpop.f32.mrb[0].mxu0
      %v2986 = vpop.f32.mrb[0].mxu0
      %v2987 = vadd.f32 %v2682, %v2986
      %v2988 = vpop.f32.mrb[0].mxu0
      %2989 = vdwg.mxu0
      %2990 = vmatprep.subr.bf16.mxu0 0
      %2991 = vmatpush1.bf16.msra.mxu0 %v2797
      %2992 = vmatprep.subr.bf16.mxu0 0
      %2993 = vmatpush1.bf16.msra.mxu0 %v2798
      %2994 = vmatprep.subr.bf16.mxu0 0
      %2995 = vmatpush1.bf16.msra.mxu0 %v2799
      %2996 = vmatprep.subr.bf16.mxu0 0
      %2997 = vmatpush1.bf16.msra.mxu0 %v2800
      %2998 = vmatprep.subr.bf16.mxu0 0
      %2999 = vmatpush1.bf16.msra.mxu0 %v2801
      %3000 = vmatprep.subr.bf16.mxu0 0
      %3001 = vmatpush1.bf16.msra.mxu0 %v2802
      %3002 = vmatprep.subr.bf16.mxu0 0
      %3003 = vmatpush1.bf16.msra.mxu0 %v2803
      %3004 = vmatprep.subr.bf16.mxu0 0
      %3005 = vmatpush1.bf16.msra.mxu0 %v2804
      %3006 = vmatprep.subr.bf16.mxu0 0
      %3007 = vmatpush1.bf16.msra.mxu0 0
      %3008 = vmatprep.subr.bf16.mxu0 0
      %3009 = vmatpush1.bf16.msra.mxu0 0
      %3010 = vmatprep.subr.bf16.mxu0 0
      %3011 = vmatpush1.bf16.msra.mxu0 0
      %3012 = vmatprep.subr.bf16.mxu0 0
      %3013 = vmatpush1.bf16.msra.mxu0 0
      %3014 = vmatprep.subr.bf16.mxu0 0
      %3015 = vmatpush1.bf16.msra.mxu0 0
      %3016 = vmatprep.subr.bf16.mxu0 0
      %3017 = vmatpush1.bf16.msra.mxu0 0
      %3018 = vmatprep.subr.bf16.mxu0 0
      %3019 = vmatpush1.bf16.msra.mxu0 0
      %3020 = vmatprep.subr.bf16.mxu0 0
      %3021 = vmatpush1.bf16.msra.mxu0 0
      %3022 = vmatprep.mubr.bf16.mxu0 0
      %3023 = vmatmul.mubr.bf16.gmra.mrb[0].mxu0 %v1532
      %v3024 = vpop.f32.mrb[0].mxu0
      %v3025 = vadd.f32 %v2864, %v3024
      %v3026 = vpop.f32.mrb[0].mxu0
      %v3027 = vpop.f32.mrb[0].mxu0
      %v3028 = vadd.f32 %v2867, %v3027
      %v3029 = vpop.f32.mrb[0].mxu0
      %3030 = vmatprep.mubr.bf16.mxu0 0
      %3031 = vmatmul.mubr.bf16.gmra.mrb[0].mxu0 %v1535
      %v3032 = vpop.f32.mrb[0].mxu0
      %v3033 = vadd.f32 %v2872, %v3032
      %v3034 = vpop.f32.mrb[0].mxu0
      %v3035 = vpop.f32.mrb[0].mxu0
      %v3036 = vadd.f32 %v2875, %v3035
      %v3037 = vpop.f32.mrb[0].mxu0
      %3038 = vmatprep.mubr.bf16.mxu0 0
      %3039 = vmatmul.mubr.bf16.gmra.mrb[0].mxu0 %v1538
      %v3040 = vpop.f32.mrb[0].mxu0
      %v3041 = vadd.f32 %v2880, %v3040
      %v3042 = vpop.f32.mrb[0].mxu0
      %v3043 = vpop.f32.mrb[0].mxu0
      %v3044 = vadd.f32 %v2883, %v3043
      %v3045 = vpop.f32.mrb[0].mxu0
      %3046 = vmatprep.mubr.bf16.mxu0 0
      %3047 = vmatmul.mubr.bf16.gmra.mrb[0].mxu0 %v1541
      %v3048 = vpop.f32.mrb[0].mxu0
      %v3049 = vadd.f32 %v2888, %v3048
      %v3050 = vpop.f32.mrb[0].mxu0
      %v3051 = vpop.f32.mrb[0].mxu0
      %v3052 = vadd.f32 %v2891, %v3051
      %v3053 = vpop.f32.mrb[0].mxu0
      %3054 = vmatprep.mubr.bf16.mxu0 0
      %3055 = vmatmul.mubr.bf16.gmra.mrb[0].mxu0 %v1544
      %v3056 = vpop.f32.mrb[0].mxu0
      %v3057 = vadd.f32 %v2896, %v3056
      %v3058 = vpop.f32.mrb[0].mxu0
      %v3059 = vpop.f32.mrb[0].mxu0
      %v3060 = vadd.f32 %v2899, %v3059
      %v3061 = vpop.f32.mrb[0].mxu0
      %3062 = vmatprep.mubr.bf16.mxu0 0
      %3063 = vmatmul.mubr.bf16.gmra.mrb[0].mxu0 %v1547
      %v3064 = vpop.f32.mrb[0].mxu0
      %v3065 = vadd.f32 %v2904, %v3064
      %v3066 = vpop.f32.mrb[0].mxu0
      %v3067 = vpop.f32.mrb[0].mxu0
      %v3068 = vadd.f32 %v2907, %v3067
      %v3069 = vpop.f32.mrb[0].mxu0
      %3070 = vmatprep.mubr.bf16.mxu0 0
      %3071 = vmatmul.mubr.bf16.gmra.mrb[0].mxu0 %v1550
      %v3072 = vpop.f32.mrb[0].mxu0
      %v3073 = vadd.f32 %v2912, %v3072
      %v3074 = vpop.f32.mrb[0].mxu0
      %v3075 = vpop.f32.mrb[0].mxu0
      %v3076 = vadd.f32 %v2915, %v3075
      %v3077 = vpop.f32.mrb[0].mxu0
      %3078 = vmatprep.mubr.bf16.mxu0 0
      %3079 = vmatmul.mubr.bf16.gmra.mrb[0].mxu0 %v1553
      %v3080 = vpop.f32.mrb[0].mxu0
      %v3081 = vadd.f32 %v2920, %v3080
      %v3082 = vpop.f32.mrb[0].mxu0
      %v3083 = vpop.f32.mrb[0].mxu0
      %v3084 = vadd.f32 %v2923, %v3083
      %v3085 = vpop.f32.mrb[0].mxu0
      %3086 = vmatprep.mubr.bf16.mxu0 0
      %3087 = vmatmul.mubr.bf16.gmra.mrb[0].mxu0 %v1556
      %v3088 = vpop.f32.mrb[0].mxu0
      %v3089 = vadd.f32 %v2928, %v3088
      %v3090 = vpop.f32.mrb[0].mxu0
      %v3091 = vpop.f32.mrb[0].mxu0
      %v3092 = vadd.f32 %v2931, %v3091
      %v3093 = vpop.f32.mrb[0].mxu0
      %3094 = vmatprep.mubr.bf16.mxu0 0
      %3095 = vmatmul.mubr.bf16.gmra.mrb[0].mxu0 %v1559
      %v3096 = vpop.f32.mrb[0].mxu0
      %v3097 = vadd.f32 %v2936, %v3096
      %v3098 = vpop.f32.mrb[0].mxu0
      %v3099 = vpop.f32.mrb[0].mxu0
      %v3100 = vadd.f32 %v2939, %v3099
      %v3101 = vpop.f32.mrb[0].mxu0
      %3102 = vmatprep.mubr.bf16.mxu0 0
      %3103 = vmatmul.mubr.bf16.gmra.mrb[0].mxu0 %v1562
      %v3104 = vpop.f32.mrb[0].mxu0
      %v3105 = vadd.f32 %v2944, %v3104
      %v3106 = vpop.f32.mrb[0].mxu0
      %v3107 = vpop.f32.mrb[0].mxu0
      %v3108 = vadd.f32 %v2947, %v3107
      %v3109 = vpop.f32.mrb[0].mxu0
      %3110 = vmatprep.mubr.bf16.mxu0 0
      %3111 = vmatmul.mubr.bf16.gmra.mrb[0].mxu0 %v1565
      %v3112 = vpop.f32.mrb[0].mxu0
      %v3113 = vadd.f32 %v2952, %v3112
      %v3114 = vpop.f32.mrb[0].mxu0
      %v3115 = vpop.f32.mrb[0].mxu0
      %v3116 = vadd.f32 %v2955, %v3115
      %v3117 = vpop.f32.mrb[0].mxu0
      %3118 = vmatprep.mubr.bf16.mxu0 0
      %3119 = vmatmul.mubr.bf16.gmra.mrb[0].mxu0 %v1568
      %v3120 = vpop.f32.mrb[0].mxu0
      %v3121 = vadd.f32 %v2960, %v3120
      %v3122 = vpop.f32.mrb[0].mxu0
      %v3123 = vpop.f32.mrb[0].mxu0
      %v3124 = vadd.f32 %v2963, %v3123
      %v3125 = vpop.f32.mrb[0].mxu0
      %3126 = vmatprep.mubr.bf16.mxu0 0
      %3127 = vmatmul.mubr.bf16.gmra.mrb[0].mxu0 %v1571
      %v3128 = vpop.f32.mrb[0].mxu0
      %v3129 = vadd.f32 %v2968, %v3128
      %v3130 = vpop.f32.mrb[0].mxu0
      %v3131 = vpop.f32.mrb[0].mxu0
      %v3132 = vadd.f32 %v2971, %v3131
      %v3133 = vpop.f32.mrb[0].mxu0
      %3134 = vmatprep.mubr.bf16.mxu0 0
      %3135 = vmatmul.mubr.bf16.gmra.mrb[0].mxu0 %v1574
      %v3136 = vpop.f32.mrb[0].mxu0
      %v3137 = vadd.f32 %v2976, %v3136
      %v3138 = vpop.f32.mrb[0].mxu0
      %v3139 = vpop.f32.mrb[0].mxu0
      %v3140 = vadd.f32 %v2979, %v3139
      %v3141 = vpop.f32.mrb[0].mxu0
      %3142 = vmatprep.mubr.bf16.mxu0 0
      %3143 = vmatmul.mubr.bf16.gmra.mrb[0].mxu0 %v1577
      %v3144 = vpop.f32.mrb[0].mxu0
      %v3145 = vadd.f32 %v2984, %v3144
      %v3146 = vpop.f32.mrb[0].mxu0
      %v3147 = vpop.f32.mrb[0].mxu0
      %v3148 = vadd.f32 %v2987, %v3147
      %v3149 = vpop.f32.mrb[0].mxu0
      %3150 = vdwg.mxu0
      %s3151 = scalar_lea.vmem [#allocation2], 24
      %v3152 = vld [vmem:[%s3151] sm:$0xf]
      %v3153 = vld [vmem:[%s3151 + $0x4] sm:$0xf]
      %v3154 = vld [vmem:[%s3151 + $0xc] sm:$0xf]
      %v3155 = vld [vmem:[%s3151 + $0x10] sm:$0xf]
      %v3156 = vld [vmem:[%s3151 + $0x18] sm:$0xf]
      %v3157 = vld [vmem:[%s3151 + $0x1c] sm:$0xf]
      %v3158 = vld [vmem:[%s3151 + $0x24] sm:$0xf]
      %v3159 = vld [vmem:[%s3151 + $0x28] sm:$0xf]
      %v3160 = vld [vmem:[%s3151 + $0x30] sm:$0xf]
      %v3161 = vld [vmem:[%s3151 + $0x34] sm:$0xf]
      %v3162 = vld [vmem:[%s3151 + $0x3c] sm:$0xf]
      %v3163 = vld [vmem:[%s3151 + $0x40] sm:$0xf]
      %v3164 = vld [vmem:[%s3151 + $0x48] sm:$0xf]
      %v3165 = vld [vmem:[%s3151 + $0x4c] sm:$0xf]
      %v3166 = vld [vmem:[%s3151 + $0x54] sm:$0xf]
      %v3167 = vld [vmem:[%s3151 + $0x58] sm:$0xf]
      %v3168 = vld [vmem:[%s3151 + $0x60] sm:$0xf]
      %v3169 = vld [vmem:[%s3151 + $0x64] sm:$0xf]
      %v3170 = vld [vmem:[%s3151 + $0x6c] sm:$0xf]
      %v3171 = vld [vmem:[%s3151 + $0x70] sm:$0xf]
      %v3172 = vld [vmem:[%s3151 + $0x78] sm:$0xf]
      %v3173 = vld [vmem:[%s3151 + $0x7c] sm:$0xf]
      %v3174 = vld [vmem:[%s3151 + $0x84] sm:$0xf]
      %v3175 = vld [vmem:[%s3151 + $0x88] sm:$0xf]
      %v3176 = vld [vmem:[%s3151 + $0x90] sm:$0xf]
      %v3177 = vld [vmem:[%s3151 + $0x94] sm:$0xf]
      %v3178 = vld [vmem:[%s3151 + $0x9c] sm:$0xf]
      %v3179 = vld [vmem:[%s3151 + $0xa0] sm:$0xf]
      %v3180 = vld [vmem:[%s3151 + $0xa8] sm:$0xf]
      %v3181 = vld [vmem:[%s3151 + $0xac] sm:$0xf]
      %v3182 = vld [vmem:[%s3151 + $0xb4] sm:$0xf]
      %v3183 = vld [vmem:[%s3151 + $0xb8] sm:$0xf]
      %v3184 = vld [vmem:[%s3151 + $0x8] sm:$0x1]
      %v3185 = vld [vmem:[%s3151 + $0x14] sm:$0x1]
      %v3186 = vld [vmem:[%s3151 + $0x20] sm:$0x1]
      %v3187 = vld [vmem:[%s3151 + $0x2c] sm:$0x1]
      %v3188 = vld [vmem:[%s3151 + $0x38] sm:$0x1]
      %v3189 = vld [vmem:[%s3151 + $0x44] sm:$0x1]
      %v3190 = vld [vmem:[%s3151 + $0x50] sm:$0x1]
      %v3191 = vld [vmem:[%s3151 + $0x5c] sm:$0x1]
      %v3192 = vld [vmem:[%s3151 + $0x68] sm:$0x1]
      %v3193 = vld [vmem:[%s3151 + $0x74] sm:$0x1]
      %v3194 = vld [vmem:[%s3151 + $0x80] sm:$0x1]
      %v3195 = vld [vmem:[%s3151 + $0x8c] sm:$0x1]
      %v3196 = vld [vmem:[%s3151 + $0x98] sm:$0x1]
      %v3197 = vld [vmem:[%s3151 + $0xa4] sm:$0x1]
      %v3198 = vld [vmem:[%s3151 + $0xb0] sm:$0x1]
      %v3199 = vld [vmem:[%s3151 + $0xbc] sm:$0x1]
      %v3200 = vld [vmem:[%s3151] sm:$0xe]
      %v3201 = vld [vmem:[%s3151 + $0xc] sm:$0xe]
      %v3202 = vld [vmem:[%s3151 + $0x18] sm:$0xe]
      %v3203 = vld [vmem:[%s3151 + $0x24] sm:$0xe]
      %v3204 = vld [vmem:[%s3151 + $0x30] sm:$0xe]
      %v3205 = vld [vmem:[%s3151 + $0x3c] sm:$0xe]
      %v3206 = vld [vmem:[%s3151 + $0x48] sm:$0xe]
      %v3207 = vld [vmem:[%s3151 + $0x54] sm:$0xe]
      %v3208 = vld [vmem:[%s3151 + $0x60] sm:$0xe]
      %v3209 = vld [vmem:[%s3151 + $0x6c] sm:$0xe]
      %v3210 = vld [vmem:[%s3151 + $0x78] sm:$0xe]
      %v3211 = vld [vmem:[%s3151 + $0x84] sm:$0xe]
      %v3212 = vld [vmem:[%s3151 + $0x90] sm:$0xe]
      %v3213 = vld [vmem:[%s3151 + $0x9c] sm:$0xe]
      %v3214 = vld [vmem:[%s3151 + $0xa8] sm:$0xe]
      %v3215 = vld [vmem:[%s3151 + $0xb4] sm:$0xe]
      %v3248 = vunpack.c.l.b16 %v3152
      %v3249 = vunpack.c.l.b16 %v3153
      %v3250 = vunpack.c.l.b16 %v3154
      %v3251 = vunpack.c.l.b16 %v3155
      %v3252 = vunpack.c.l.b16 %v3156
      %v3253 = vunpack.c.l.b16 %v3157
      %v3254 = vunpack.c.l.b16 %v3158
      %v3255 = vunpack.c.l.b16 %v3159
      %v3256 = vunpack.c.l.b16 %v3160
      %v3257 = vunpack.c.l.b16 %v3161
      %v3258 = vunpack.c.l.b16 %v3162
      %v3259 = vunpack.c.l.b16 %v3163
      %v3260 = vunpack.c.l.b16 %v3164
      %v3261 = vunpack.c.l.b16 %v3165
      %v3262 = vunpack.c.l.b16 %v3166
      %v3263 = vunpack.c.l.b16 %v3167
      %v3264 = vunpack.c.l.b16 %v3168
      %v3265 = vunpack.c.l.b16 %v3169
      %v3266 = vunpack.c.l.b16 %v3170
      %v3267 = vunpack.c.l.b16 %v3171
      %v3268 = vunpack.c.l.b16 %v3172
      %v3269 = vunpack.c.l.b16 %v3173
      %v3270 = vunpack.c.l.b16 %v3174
      %v3271 = vunpack.c.l.b16 %v3175
      %v3272 = vunpack.c.l.b16 %v3176
      %v3273 = vunpack.c.l.b16 %v3177
      %v3274 = vunpack.c.l.b16 %v3178
      %v3275 = vunpack.c.l.b16 %v3179
      %v3276 = vunpack.c.l.b16 %v3180
      %v3277 = vunpack.c.l.b16 %v3181
      %v3278 = vunpack.c.l.b16 %v3182
      %v3279 = vunpack.c.l.b16 %v3183
      %v3280 = vpack.c.b16 %v3249, %v3248
      %v3281 = vpack.c.b16 %v3251, %v3250
      %v3282 = vpack.c.b16 %v3253, %v3252
      %v3283 = vpack.c.b16 %v3255, %v3254
      %v3284 = vpack.c.b16 %v3257, %v3256
      %v3285 = vpack.c.b16 %v3259, %v3258
      %v3286 = vpack.c.b16 %v3261, %v3260
      %v3287 = vpack.c.b16 %v3263, %v3262
      %v3288 = vpack.c.b16 %v3265, %v3264
      %v3289 = vpack.c.b16 %v3267, %v3266
      %v3290 = vpack.c.b16 %v3269, %v3268
      %v3291 = vpack.c.b16 %v3271, %v3270
      %v3292 = vpack.c.b16 %v3273, %v3272
      %v3293 = vpack.c.b16 %v3275, %v3274
      %v3294 = vpack.c.b16 %v3277, %v3276
      %v3295 = vpack.c.b16 %v3279, %v3278
      %v3328 = vunpack.c.l.b16 %v3184
      %v3329 = vunpack.c.l.b16 %v3185
      %v3330 = vunpack.c.l.b16 %v3186
      %v3331 = vunpack.c.l.b16 %v3187
      %v3332 = vunpack.c.l.b16 %v3188
      %v3333 = vunpack.c.l.b16 %v3189
      %v3334 = vunpack.c.l.b16 %v3190
      %v3335 = vunpack.c.l.b16 %v3191
      %v3336 = vunpack.c.l.b16 %v3192
      %v3337 = vunpack.c.l.b16 %v3193
      %v3338 = vunpack.c.l.b16 %v3194
      %v3339 = vunpack.c.l.b16 %v3195
      %v3340 = vunpack.c.l.b16 %v3196
      %v3341 = vunpack.c.l.b16 %v3197
      %v3342 = vunpack.c.l.b16 %v3198
      %v3343 = vunpack.c.l.b16 %v3199
      %v3344 = vpack.c.b16 %v3328, %v3328
      %v3345 = vpack.c.b16 %v3329, %v3329
      %v3346 = vpack.c.b16 %v3330, %v3330
      %v3347 = vpack.c.b16 %v3331, %v3331
      %v3348 = vpack.c.b16 %v3332, %v3332
      %v3349 = vpack.c.b16 %v3333, %v3333
      %v3350 = vpack.c.b16 %v3334, %v3334
      %v3351 = vpack.c.b16 %v3335, %v3335
      %v3352 = vpack.c.b16 %v3336, %v3336
      %v3353 = vpack.c.b16 %v3337, %v3337
      %v3354 = vpack.c.b16 %v3338, %v3338
      %v3355 = vpack.c.b16 %v3339, %v3339
      %v3356 = vpack.c.b16 %v3340, %v3340
      %v3357 = vpack.c.b16 %v3341, %v3341
      %v3358 = vpack.c.b16 %v3342, %v3342
      %v3359 = vpack.c.b16 %v3343, %v3343
      %v3361 = vshrl.u32 %v3280, 16
      %v3363 = vshll.u32 %v3280, 16
      %v3365 = vrot.slane %v3363, 1
      %v3366 = vor.u32 %v3361, %v3365
      %v3368 = vshll.u32 %v3344, 16
      %v3370 = vrot.slane %v3368, 1
      %v3371 = vsel %vm1272, %v3366, %v3370
      %v3373 = vshrl.u32 %v3281, 16
      %v3375 = vshll.u32 %v3281, 16
      %v3377 = vrot.slane %v3375, 1
      %v3378 = vor.u32 %v3373, %v3377
      %v3380 = vshll.u32 %v3345, 16
      %v3382 = vrot.slane %v3380, 1
      %v3383 = vsel %vm1272, %v3378, %v3382
      %v3385 = vshrl.u32 %v3282, 16
      %v3387 = vshll.u32 %v3282, 16
      %v3389 = vrot.slane %v3387, 1
      %v3390 = vor.u32 %v3385, %v3389
      %v3392 = vshll.u32 %v3346, 16
      %v3394 = vrot.slane %v3392, 1
      %v3395 = vsel %vm1272, %v3390, %v3394
      %v3397 = vshrl.u32 %v3283, 16
      %v3399 = vshll.u32 %v3283, 16
      %v3401 = vrot.slane %v3399, 1
      %v3402 = vor.u32 %v3397, %v3401
      %v3404 = vshll.u32 %v3347, 16
      %v3406 = vrot.slane %v3404, 1
      %v3407 = vsel %vm1272, %v3402, %v3406
      %v3409 = vshrl.u32 %v3284, 16
      %v3411 = vshll.u32 %v3284, 16
      %v3413 = vrot.slane %v3411, 1
      %v3414 = vor.u32 %v3409, %v3413
      %v3416 = vshll.u32 %v3348, 16
      %v3418 = vrot.slane %v3416, 1
      %v3419 = vsel %vm1272, %v3414, %v3418
      %v3421 = vshrl.u32 %v3285, 16
      %v3423 = vshll.u32 %v3285, 16
      %v3425 = vrot.slane %v3423, 1
      %v3426 = vor.u32 %v3421, %v3425
      %v3428 = vshll.u32 %v3349, 16
      %v3430 = vrot.slane %v3428, 1
      %v3431 = vsel %vm1272, %v3426, %v3430
      %v3433 = vshrl.u32 %v3286, 16
      %v3435 = vshll.u32 %v3286, 16
      %v3437 = vrot.slane %v3435, 1
      %v3438 = vor.u32 %v3433, %v3437
      %v3440 = vshll.u32 %v3350, 16
      %v3442 = vrot.slane %v3440, 1
      %v3443 = vsel %vm1272, %v3438, %v3442
      %v3445 = vshrl.u32 %v3287, 16
      %v3447 = vshll.u32 %v3287, 16
      %v3449 = vrot.slane %v3447, 1
      %v3450 = vor.u32 %v3445, %v3449
      %v3452 = vshll.u32 %v3351, 16
      %v3454 = vrot.slane %v3452, 1
      %v3455 = vsel %vm1272, %v3450, %v3454
      %v3457 = vshrl.u32 %v3288, 16
      %v3459 = vshll.u32 %v3288, 16
      %v3461 = vrot.slane %v3459, 1
      %v3462 = vor.u32 %v3457, %v3461
      %v3464 = vshll.u32 %v3352, 16
      %v3466 = vrot.slane %v3464, 1
      %v3467 = vsel %vm1272, %v3462, %v3466
      %v3469 = vshrl.u32 %v3289, 16
      %v3471 = vshll.u32 %v3289, 16
      %v3473 = vrot.slane %v3471, 1
      %v3474 = vor.u32 %v3469, %v3473
      %v3476 = vshll.u32 %v3353, 16
      %v3478 = vrot.slane %v3476, 1
      %v3479 = vsel %vm1272, %v3474, %v3478
      %v3481 = vshrl.u32 %v3290, 16
      %v3483 = vshll.u32 %v3290, 16
      %v3485 = vrot.slane %v3483, 1
      %v3486 = vor.u32 %v3481, %v3485
      %v3488 = vshll.u32 %v3354, 16
      %v3490 = vrot.slane %v3488, 1
      %v3491 = vsel %vm1272, %v3486, %v3490
      %v3493 = vshrl.u32 %v3291, 16
      %v3495 = vshll.u32 %v3291, 16
      %v3497 = vrot.slane %v3495, 1
      %v3498 = vor.u32 %v3493, %v3497
      %v3500 = vshll.u32 %v3355, 16
      %v3502 = vrot.slane %v3500, 1
      %v3503 = vsel %vm1272, %v3498, %v3502
      %v3505 = vshrl.u32 %v3292, 16
      %v3507 = vshll.u32 %v3292, 16
      %v3509 = vrot.slane %v3507, 1
      %v3510 = vor.u32 %v3505, %v3509
      %v3512 = vshll.u32 %v3356, 16
      %v3514 = vrot.slane %v3512, 1
      %v3515 = vsel %vm1272, %v3510, %v3514
      %v3517 = vshrl.u32 %v3293, 16
      %v3519 = vshll.u32 %v3293, 16
      %v3521 = vrot.slane %v3519, 1
      %v3522 = vor.u32 %v3517, %v3521
      %v3524 = vshll.u32 %v3357, 16
      %v3526 = vrot.slane %v3524, 1
      %v3527 = vsel %vm1272, %v3522, %v3526
      %v3529 = vshrl.u32 %v3294, 16
      %v3531 = vshll.u32 %v3294, 16
      %v3533 = vrot.slane %v3531, 1
      %v3534 = vor.u32 %v3529, %v3533
      %v3536 = vshll.u32 %v3358, 16
      %v3538 = vrot.slane %v3536, 1
      %v3539 = vsel %vm1272, %v3534, %v3538
      %v3541 = vshrl.u32 %v3295, 16
      %v3543 = vshll.u32 %v3295, 16
      %v3545 = vrot.slane %v3543, 1
      %v3546 = vor.u32 %v3541, %v3545
      %v3548 = vshll.u32 %v3359, 16
      %v3550 = vrot.slane %v3548, 1
      %v3551 = vsel %vm1272, %v3546, %v3550
      %v3584 = vunpack.c.l.b16 %v3200
      %v3585 = vunpack.c.l.b16 %v3201
      %v3586 = vunpack.c.l.b16 %v3202
      %v3587 = vunpack.c.l.b16 %v3203
      %v3588 = vunpack.c.l.b16 %v3204
      %v3589 = vunpack.c.l.b16 %v3205
      %v3590 = vunpack.c.l.b16 %v3206
      %v3591 = vunpack.c.l.b16 %v3207
      %v3592 = vunpack.c.l.b16 %v3208
      %v3593 = vunpack.c.l.b16 %v3209
      %v3594 = vunpack.c.l.b16 %v3210
      %v3595 = vunpack.c.l.b16 %v3211
      %v3596 = vunpack.c.l.b16 %v3212
      %v3597 = vunpack.c.l.b16 %v3213
      %v3598 = vunpack.c.l.b16 %v3214
      %v3599 = vunpack.c.l.b16 %v3215
      %v3600 = vpack.c.b16 %v3249, %v3584
      %v3601 = vpack.c.b16 %v3251, %v3585
      %v3602 = vpack.c.b16 %v3253, %v3586
      %v3603 = vpack.c.b16 %v3255, %v3587
      %v3604 = vpack.c.b16 %v3257, %v3588
      %v3605 = vpack.c.b16 %v3259, %v3589
      %v3606 = vpack.c.b16 %v3261, %v3590
      %v3607 = vpack.c.b16 %v3263, %v3591
      %v3608 = vpack.c.b16 %v3265, %v3592
      %v3609 = vpack.c.b16 %v3267, %v3593
      %v3610 = vpack.c.b16 %v3269, %v3594
      %v3611 = vpack.c.b16 %v3271, %v3595
      %v3612 = vpack.c.b16 %v3273, %v3596
      %v3613 = vpack.c.b16 %v3275, %v3597
      %v3614 = vpack.c.b16 %v3277, %v3598
      %v3615 = vpack.c.b16 %v3279, %v3599
      %v3616 = vrot.slane %v3600, 1
      %v3617 = vrot.slane %v3344, 1
      %v3618 = vsel %vm1529, %v3616, %v3617
      %v3619 = vrot.slane %v3601, 1
      %v3620 = vrot.slane %v3345, 1
      %v3621 = vsel %vm1529, %v3619, %v3620
      %v3622 = vrot.slane %v3602, 1
      %v3623 = vrot.slane %v3346, 1
      %v3624 = vsel %vm1529, %v3622, %v3623
      %v3625 = vrot.slane %v3603, 1
      %v3626 = vrot.slane %v3347, 1
      %v3627 = vsel %vm1529, %v3625, %v3626
      %v3628 = vrot.slane %v3604, 1
      %v3629 = vrot.slane %v3348, 1
      %v3630 = vsel %vm1529, %v3628, %v3629
      %v3631 = vrot.slane %v3605, 1
      %v3632 = vrot.slane %v3349, 1
      %v3633 = vsel %vm1529, %v3631, %v3632
      %v3634 = vrot.slane %v3606, 1
      %v3635 = vrot.slane %v3350, 1
      %v3636 = vsel %vm1529, %v3634, %v3635
      %v3637 = vrot.slane %v3607, 1
      %v3638 = vrot.slane %v3351, 1
      %v3639 = vsel %vm1529, %v3637, %v3638
      %v3640 = vrot.slane %v3608, 1
      %v3641 = vrot.slane %v3352, 1
      %v3642 = vsel %vm1529, %v3640, %v3641
      %v3643 = vrot.slane %v3609, 1
      %v3644 = vrot.slane %v3353, 1
      %v3645 = vsel %vm1529, %v3643, %v3644
      %v3646 = vrot.slane %v3610, 1
      %v3647 = vrot.slane %v3354, 1
      %v3648 = vsel %vm1529, %v3646, %v3647
      %v3649 = vrot.slane %v3611, 1
      %v3650 = vrot.slane %v3355, 1
      %v3651 = vsel %vm1529, %v3649, %v3650
      %v3652 = vrot.slane %v3612, 1
      %v3653 = vrot.slane %v3356, 1
      %v3654 = vsel %vm1529, %v3652, %v3653
      %v3655 = vrot.slane %v3613, 1
      %v3656 = vrot.slane %v3357, 1
      %v3657 = vsel %vm1529, %v3655, %v3656
      %v3658 = vrot.slane %v3614, 1
      %v3659 = vrot.slane %v3358, 1
      %v3660 = vsel %vm1529, %v3658, %v3659
      %v3661 = vrot.slane %v3615, 1
      %v3662 = vrot.slane %v3359, 1
      %v3663 = vsel %vm1529, %v3661, %v3662
      %s3680 = scalar_lea.vmem %s1, 384
      %v3681 = vld [vmem:[%s3680] sm:$0xf]
      %v3682 = vld [vmem:[%s3680 + $0x4] sm:$0xf]
      %v3683 = vld [vmem:[%s3680 + $0x8] sm:$0xf]
      %v3684 = vld [vmem:[%s3680 + $0xc] sm:$0xf]
      %v3685 = vld [vmem:[%s3680 + $0x10] sm:$0xf]
      %v3686 = vld [vmem:[%s3680 + $0x14] sm:$0xf]
      %v3687 = vld [vmem:[%s3680 + $0x18] sm:$0xf]
      %v3688 = vld [vmem:[%s3680 + $0x1c] sm:$0xf]
      %v3689 = vld [vmem:[%s3680 + $0x20] sm:$0xf]
      %v3690 = vld [vmem:[%s3680 + $0x24] sm:$0xf]
      %v3691 = vld [vmem:[%s3680 + $0x28] sm:$0xf]
      %v3692 = vld [vmem:[%s3680 + $0x2c] sm:$0xf]
      %v3693 = vld [vmem:[%s3680 + $0x30] sm:$0xf]
      %v3694 = vld [vmem:[%s3680 + $0x34] sm:$0xf]
      %v3695 = vld [vmem:[%s3680 + $0x38] sm:$0xf]
      %v3696 = vld [vmem:[%s3680 + $0x3c] sm:$0xf]
      %v3697 = vld [vmem:[%s3680 + $0x40] sm:$0xf]
      %v3698 = vld [vmem:[%s3680 + $0x44] sm:$0xf]
      %v3699 = vld [vmem:[%s3680 + $0x48] sm:$0xf]
      %v3700 = vld [vmem:[%s3680 + $0x4c] sm:$0xf]
      %v3701 = vld [vmem:[%s3680 + $0x50] sm:$0xf]
      %v3702 = vld [vmem:[%s3680 + $0x54] sm:$0xf]
      %v3703 = vld [vmem:[%s3680 + $0x58] sm:$0xf]
      %v3704 = vld [vmem:[%s3680 + $0x5c] sm:$0xf]
      %v3705 = vld [vmem:[%s3680 + $0x60] sm:$0xf]
      %v3706 = vld [vmem:[%s3680 + $0x64] sm:$0xf]
      %v3707 = vld [vmem:[%s3680 + $0x68] sm:$0xf]
      %v3708 = vld [vmem:[%s3680 + $0x6c] sm:$0xf]
      %v3709 = vld [vmem:[%s3680 + $0x70] sm:$0xf]
      %v3710 = vld [vmem:[%s3680 + $0x74] sm:$0xf]
      %v3711 = vld [vmem:[%s3680 + $0x78] sm:$0xf]
      %v3712 = vld [vmem:[%s3680 + $0x7c] sm:$0xf]
      %v3713 = vld [vmem:[%s3680 + $0x80] sm:$0xf]
      %v3714 = vld [vmem:[%s3680 + $0x84] sm:$0xf]
      %v3715 = vld [vmem:[%s3680 + $0x88] sm:$0xf]
      %v3716 = vld [vmem:[%s3680 + $0x8c] sm:$0xf]
      %v3717 = vld [vmem:[%s3680 + $0x90] sm:$0xf]
      %v3718 = vld [vmem:[%s3680 + $0x94] sm:$0xf]
      %v3719 = vld [vmem:[%s3680 + $0x98] sm:$0xf]
      %v3720 = vld [vmem:[%s3680 + $0x9c] sm:$0xf]
      %v3721 = vld [vmem:[%s3680 + $0xa0] sm:$0xf]
      %v3722 = vld [vmem:[%s3680 + $0xa4] sm:$0xf]
      %v3723 = vld [vmem:[%s3680 + $0xa8] sm:$0xf]
      %v3724 = vld [vmem:[%s3680 + $0xac] sm:$0xf]
      %v3725 = vld [vmem:[%s3680 + $0xb0] sm:$0xf]
      %v3726 = vld [vmem:[%s3680 + $0xb4] sm:$0xf]
      %v3727 = vld [vmem:[%s3680 + $0xb8] sm:$0xf]
      %v3728 = vld [vmem:[%s3680 + $0xbc] sm:$0xf]
      %v3777 = vunpack.c.l.b16 %v3681
      %v3778 = vunpack.c.l.b16 %v3682
      %v3779 = vunpack.c.l.b16 %v3683
      %v3780 = vunpack.c.l.b16 %v3684
      %v3781 = vunpack.c.l.b16 %v3685
      %v3782 = vunpack.c.l.b16 %v3686
      %v3783 = vunpack.c.l.b16 %v3687
      %v3784 = vunpack.c.l.b16 %v3688
      %v3785 = vunpack.c.l.b16 %v3689
      %v3786 = vunpack.c.l.b16 %v3690
      %v3787 = vunpack.c.l.b16 %v3691
      %v3788 = vunpack.c.l.b16 %v3692
      %v3789 = vunpack.c.l.b16 %v3693
      %v3790 = vunpack.c.l.b16 %v3694
      %v3791 = vunpack.c.l.b16 %v3695
      %v3792 = vunpack.c.l.b16 %v3696
      %v3793 = vunpack.c.l.b16 %v3697
      %v3794 = vunpack.c.l.b16 %v3698
      %v3795 = vunpack.c.l.b16 %v3699
      %v3796 = vunpack.c.l.b16 %v3700
      %v3797 = vunpack.c.l.b16 %v3701
      %v3798 = vunpack.c.l.b16 %v3702
      %v3799 = vunpack.c.l.b16 %v3703
      %v3800 = vunpack.c.l.b16 %v3704
      %v3801 = vunpack.c.l.b16 %v3705
      %v3802 = vunpack.c.l.b16 %v3706
      %v3803 = vunpack.c.l.b16 %v3707
      %v3804 = vunpack.c.l.b16 %v3708
      %v3805 = vunpack.c.l.b16 %v3709
      %v3806 = vunpack.c.l.b16 %v3710
      %v3807 = vunpack.c.l.b16 %v3711
      %v3808 = vunpack.c.l.b16 %v3712
      %v3809 = vunpack.c.l.b16 %v3713
      %v3810 = vunpack.c.l.b16 %v3714
      %v3811 = vunpack.c.l.b16 %v3715
      %v3812 = vunpack.c.l.b16 %v3716
      %v3813 = vunpack.c.l.b16 %v3717
      %v3814 = vunpack.c.l.b16 %v3718
      %v3815 = vunpack.c.l.b16 %v3719
      %v3816 = vunpack.c.l.b16 %v3720
      %v3817 = vunpack.c.l.b16 %v3721
      %v3818 = vunpack.c.l.b16 %v3722
      %v3819 = vunpack.c.l.b16 %v3723
      %v3820 = vunpack.c.l.b16 %v3724
      %v3821 = vunpack.c.l.b16 %v3725
      %v3822 = vunpack.c.l.b16 %v3726
      %v3823 = vunpack.c.l.b16 %v3727
      %v3824 = vunpack.c.l.b16 %v3728
      %v3825 = vpack.c.b16 %v3778, %v3777
      %v3826 = vpack.c.b16 %v3780, %v3779
      %v3827 = vpack.c.b16 %v3782, %v3781
      %v3828 = vpack.c.b16 %v3784, %v3783
      %v3829 = vpack.c.b16 %v3786, %v3785
      %v3830 = vpack.c.b16 %v3788, %v3787
      %v3831 = vpack.c.b16 %v3790, %v3789
      %v3832 = vpack.c.b16 %v3792, %v3791
      %v3833 = vpack.c.b16 %v3794, %v3793
      %v3834 = vpack.c.b16 %v3796, %v3795
      %v3835 = vpack.c.b16 %v3798, %v3797
      %v3836 = vpack.c.b16 %v3800, %v3799
      %v3837 = vpack.c.b16 %v3802, %v3801
      %v3838 = vpack.c.b16 %v3804, %v3803
      %v3839 = vpack.c.b16 %v3806, %v3805
      %v3840 = vpack.c.b16 %v3808, %v3807
      %v3841 = vpack.c.b16 %v3810, %v3809
      %v3842 = vpack.c.b16 %v3812, %v3811
      %v3843 = vpack.c.b16 %v3814, %v3813
      %v3844 = vpack.c.b16 %v3816, %v3815
      %v3845 = vpack.c.b16 %v3818, %v3817
      %v3846 = vpack.c.b16 %v3820, %v3819
      %v3847 = vpack.c.b16 %v3822, %v3821
      %v3848 = vpack.c.b16 %v3824, %v3823
      %3873 = vmatprep.subr.bf16.mxu0 0
      %3874 = vmatpush1.bf16.msra.mxu0 %v3825
      %3875 = vmatprep.subr.bf16.mxu0 0
      %3876 = vmatpush1.bf16.msra.mxu0 %v3826
      %3877 = vmatprep.subr.bf16.mxu0 0
      %3878 = vmatpush1.bf16.msra.mxu0 %v3827
      %3879 = vmatprep.subr.bf16.mxu0 0
      %3880 = vmatpush1.bf16.msra.mxu0 %v3828
      %3881 = vmatprep.subr.bf16.mxu0 0
      %3882 = vmatpush1.bf16.msra.mxu0 %v3829
      %3883 = vmatprep.subr.bf16.mxu0 0
      %3884 = vmatpush1.bf16.msra.mxu0 %v3830
      %3885 = vmatprep.subr.bf16.mxu0 0
      %3886 = vmatpush1.bf16.msra.mxu0 %v3831
      %3887 = vmatprep.subr.bf16.mxu0 0
      %3888 = vmatpush1.bf16.msra.mxu0 %v3832
      %3889 = vmatprep.subr.bf16.mxu0 0
      %3890 = vmatpush1.bf16.msra.mxu0 %v3833
      %3891 = vmatprep.subr.bf16.mxu0 0
      %3892 = vmatpush1.bf16.msra.mxu0 %v3834
      %3893 = vmatprep.subr.bf16.mxu0 0
      %3894 = vmatpush1.bf16.msra.mxu0 %v3835
      %3895 = vmatprep.subr.bf16.mxu0 0
      %3896 = vmatpush1.bf16.msra.mxu0 %v3836
      %3897 = vmatprep.subr.bf16.mxu0 0
      %3898 = vmatpush1.bf16.msra.mxu0 %v3837
      %3899 = vmatprep.subr.bf16.mxu0 0
      %3900 = vmatpush1.bf16.msra.mxu0 %v3838
      %3901 = vmatprep.subr.bf16.mxu0 0
      %3902 = vmatpush1.bf16.msra.mxu0 %v3839
      %3903 = vmatprep.subr.bf16.mxu0 0
      %3904 = vmatpush1.bf16.msra.mxu0 %v3840
      %3905 = vmatprep.mubr.bf16.mxu0 %v3371
      %3906 = vmatmul.mubr.bf16.gmra.mrb[0].mxu0 %v3280
      %v3907 = vpop.f32.mrb[0].mxu0
      %v3908 = vadd.f32 0.0, %v3907
      %v3909 = vpop.f32.mrb[0].mxu0
      %v3910 = vpop.f32.mrb[0].mxu0
      %v3911 = vadd.f32 0.0, %v3910
      %v3912 = vpop.f32.mrb[0].mxu0
      %3913 = vmatprep.mubr.bf16.mxu0 %v3383
      %3914 = vmatmul.mubr.bf16.gmra.mrb[0].mxu0 %v3281
      %v3915 = vpop.f32.mrb[0].mxu0
      %v3916 = vadd.f32 0.0, %v3915
      %v3917 = vpop.f32.mrb[0].mxu0
      %v3918 = vpop.f32.mrb[0].mxu0
      %v3919 = vadd.f32 0.0, %v3918
      %v3920 = vpop.f32.mrb[0].mxu0
      %3921 = vmatprep.mubr.bf16.mxu0 %v3395
      %3922 = vmatmul.mubr.bf16.gmra.mrb[0].mxu0 %v3282
      %v3923 = vpop.f32.mrb[0].mxu0
      %v3924 = vadd.f32 0.0, %v3923
      %v3925 = vpop.f32.mrb[0].mxu0
      %v3926 = vpop.f32.mrb[0].mxu0
      %v3927 = vadd.f32 0.0, %v3926
      %v3928 = vpop.f32.mrb[0].mxu0
      %3929 = vmatprep.mubr.bf16.mxu0 %v3407
      %3930 = vmatmul.mubr.bf16.gmra.mrb[0].mxu0 %v3283
      %v3931 = vpop.f32.mrb[0].mxu0
      %v3932 = vadd.f32 0.0, %v3931
      %v3933 = vpop.f32.mrb[0].mxu0
      %v3934 = vpop.f32.mrb[0].mxu0
      %v3935 = vadd.f32 0.0, %v3934
      %v3936 = vpop.f32.mrb[0].mxu0
      %3937 = vmatprep.mubr.bf16.mxu0 %v3419
      %3938 = vmatmul.mubr.bf16.gmra.mrb[0].mxu0 %v3284
      %v3939 = vpop.f32.mrb[0].mxu0
      %v3940 = vadd.f32 0.0, %v3939
      %v3941 = vpop.f32.mrb[0].mxu0
      %v3942 = vpop.f32.mrb[0].mxu0
      %v3943 = vadd.f32 0.0, %v3942
      %v3944 = vpop.f32.mrb[0].mxu0
      %3945 = vmatprep.mubr.bf16.mxu0 %v3431
      %3946 = vmatmul.mubr.bf16.gmra.mrb[0].mxu0 %v3285
      %v3947 = vpop.f32.mrb[0].mxu0
      %v3948 = vadd.f32 0.0, %v3947
      %v3949 = vpop.f32.mrb[0].mxu0
      %v3950 = vpop.f32.mrb[0].mxu0
      %v3951 = vadd.f32 0.0, %v3950
      %v3952 = vpop.f32.mrb[0].mxu0
      %3953 = vmatprep.mubr.bf16.mxu0 %v3443
      %3954 = vmatmul.mubr.bf16.gmra.mrb[0].mxu0 %v3286
      %v3955 = vpop.f32.mrb[0].mxu0
      %v3956 = vadd.f32 0.0, %v3955
      %v3957 = vpop.f32.mrb[0].mxu0
      %v3958 = vpop.f32.mrb[0].mxu0
      %v3959 = vadd.f32 0.0, %v3958
      %v3960 = vpop.f32.mrb[0].mxu0
      %3961 = vmatprep.mubr.bf16.mxu0 %v3455
      %3962 = vmatmul.mubr.bf16.gmra.mrb[0].mxu0 %v3287
      %v3963 = vpop.f32.mrb[0].mxu0
      %v3964 = vadd.f32 0.0, %v3963
      %v3965 = vpop.f32.mrb[0].mxu0
      %v3966 = vpop.f32.mrb[0].mxu0
      %v3967 = vadd.f32 0.0, %v3966
      %v3968 = vpop.f32.mrb[0].mxu0
      %3969 = vmatprep.mubr.bf16.mxu0 %v3467
      %3970 = vmatmul.mubr.bf16.gmra.mrb[0].mxu0 %v3288
      %v3971 = vpop.f32.mrb[0].mxu0
      %v3972 = vadd.f32 0.0, %v3971
      %v3973 = vpop.f32.mrb[0].mxu0
      %v3974 = vpop.f32.mrb[0].mxu0
      %v3975 = vadd.f32 0.0, %v3974
      %v3976 = vpop.f32.mrb[0].mxu0
      %3977 = vmatprep.mubr.bf16.mxu0 %v3479
      %3978 = vmatmul.mubr.bf16.gmra.mrb[0].mxu0 %v3289
      %v3979 = vpop.f32.mrb[0].mxu0
      %v3980 = vadd.f32 0.0, %v3979
      %v3981 = vpop.f32.mrb[0].mxu0
      %v3982 = vpop.f32.mrb[0].mxu0
      %v3983 = vadd.f32 0.0, %v3982
      %v3984 = vpop.f32.mrb[0].mxu0
      %3985 = vmatprep.mubr.bf16.mxu0 %v3491
      %3986 = vmatmul.mubr.bf16.gmra.mrb[0].mxu0 %v3290
      %v3987 = vpop.f32.mrb[0].mxu0
      %v3988 = vadd.f32 0.0, %v3987
      %v3989 = vpop.f32.mrb[0].mxu0
      %v3990 = vpop.f32.mrb[0].mxu0
      %v3991 = vadd.f32 0.0, %v3990
      %v3992 = vpop.f32.mrb[0].mxu0
      %3993 = vmatprep.mubr.bf16.mxu0 %v3503
      %3994 = vmatmul.mubr.bf16.gmra.mrb[0].mxu0 %v3291
      %v3995 = vpop.f32.mrb[0].mxu0
      %v3996 = vadd.f32 0.0, %v3995
      %v3997 = vpop.f32.mrb[0].mxu0
      %v3998 = vpop.f32.mrb[0].mxu0
      %v3999 = vadd.f32 0.0, %v3998
      %v4000 = vpop.f32.mrb[0].mxu0
      %4001 = vmatprep.mubr.bf16.mxu0 %v3515
      %4002 = vmatmul.mubr.bf16.gmra.mrb[0].mxu0 %v3292
      %v4003 = vpop.f32.mrb[0].mxu0
      %v4004 = vadd.f32 0.0, %v4003
      %v4005 = vpop.f32.mrb[0].mxu0
      %v4006 = vpop.f32.mrb[0].mxu0
      %v4007 = vadd.f32 0.0, %v4006
      %v4008 = vpop.f32.mrb[0].mxu0
      %4009 = vmatprep.mubr.bf16.mxu0 %v3527
      %4010 = vmatmul.mubr.bf16.gmra.mrb[0].mxu0 %v3293
      %v4011 = vpop.f32.mrb[0].mxu0
      %v4012 = vadd.f32 0.0, %v4011
      %v4013 = vpop.f32.mrb[0].mxu0
      %v4014 = vpop.f32.mrb[0].mxu0
      %v4015 = vadd.f32 0.0, %v4014
      %v4016 = vpop.f32.mrb[0].mxu0
      %4017 = vmatprep.mubr.bf16.mxu0 %v3539
      %4018 = vmatmul.mubr.bf16.gmra.mrb[0].mxu0 %v3294
      %v4019 = vpop.f32.mrb[0].mxu0
      %v4020 = vadd.f32 0.0, %v4019
      %v4021 = vpop.f32.mrb[0].mxu0
      %v4022 = vpop.f32.mrb[0].mxu0
      %v4023 = vadd.f32 0.0, %v4022
      %v4024 = vpop.f32.mrb[0].mxu0
      %4025 = vmatprep.mubr.bf16.mxu0 %v3551
      %4026 = vmatmul.mubr.bf16.gmra.mrb[0].mxu0 %v3295
      %v4027 = vpop.f32.mrb[0].mxu0
      %v4028 = vadd.f32 0.0, %v4027
      %v4029 = vpop.f32.mrb[0].mxu0
      %v4030 = vpop.f32.mrb[0].mxu0
      %v4031 = vadd.f32 0.0, %v4030
      %v4032 = vpop.f32.mrb[0].mxu0
      %4033 = vdwg.mxu0
      %4034 = vmatprep.subr.bf16.mxu0 0
      %4035 = vmatpush1.bf16.msra.mxu0 %v3841
      %4036 = vmatprep.subr.bf16.mxu0 0
      %4037 = vmatpush1.bf16.msra.mxu0 %v3842
      %4038 = vmatprep.subr.bf16.mxu0 0
      %4039 = vmatpush1.bf16.msra.mxu0 %v3843
      %4040 = vmatprep.subr.bf16.mxu0 0
      %4041 = vmatpush1.bf16.msra.mxu0 %v3844
      %4042 = vmatprep.subr.bf16.mxu0 0
      %4043 = vmatpush1.bf16.msra.mxu0 %v3845
      %4044 = vmatprep.subr.bf16.mxu0 0
      %4045 = vmatpush1.bf16.msra.mxu0 %v3846
      %4046 = vmatprep.subr.bf16.mxu0 0
      %4047 = vmatpush1.bf16.msra.mxu0 %v3847
      %4048 = vmatprep.subr.bf16.mxu0 0
      %4049 = vmatpush1.bf16.msra.mxu0 %v3848
      %4050 = vmatprep.subr.bf16.mxu0 0
      %4051 = vmatpush1.bf16.msra.mxu0 0
      %4052 = vmatprep.subr.bf16.mxu0 0
      %4053 = vmatpush1.bf16.msra.mxu0 0
      %4054 = vmatprep.subr.bf16.mxu0 0
      %4055 = vmatpush1.bf16.msra.mxu0 0
      %4056 = vmatprep.subr.bf16.mxu0 0
      %4057 = vmatpush1.bf16.msra.mxu0 0
      %4058 = vmatprep.subr.bf16.mxu0 0
      %4059 = vmatpush1.bf16.msra.mxu0 0
      %4060 = vmatprep.subr.bf16.mxu0 0
      %4061 = vmatpush1.bf16.msra.mxu0 0
      %4062 = vmatprep.subr.bf16.mxu0 0
      %4063 = vmatpush1.bf16.msra.mxu0 0
      %4064 = vmatprep.subr.bf16.mxu0 0
      %4065 = vmatpush1.bf16.msra.mxu0 0
      %4066 = vmatprep.mubr.bf16.mxu0 0
      %4067 = vmatmul.mubr.bf16.gmra.mrb[0].mxu0 %v3618
      %v4068 = vpop.f32.mrb[0].mxu0
      %v4069 = vadd.f32 %v3908, %v4068
      %v4070 = vpop.f32.mrb[0].mxu0
      %v4071 = vpop.f32.mrb[0].mxu0
      %v4072 = vadd.f32 %v3911, %v4071
      %v4073 = vpop.f32.mrb[0].mxu0
      %4074 = vmatprep.mubr.bf16.mxu0 0
      %4075 = vmatmul.mubr.bf16.gmra.mrb[0].mxu0 %v3621
      %v4076 = vpop.f32.mrb[0].mxu0
      %v4077 = vadd.f32 %v3916, %v4076
      %v4078 = vpop.f32.mrb[0].mxu0
      %v4079 = vpop.f32.mrb[0].mxu0
      %v4080 = vadd.f32 %v3919, %v4079
      %v4081 = vpop.f32.mrb[0].mxu0
      %4082 = vmatprep.mubr.bf16.mxu0 0
      %4083 = vmatmul.mubr.bf16.gmra.mrb[0].mxu0 %v3624
      %v4084 = vpop.f32.mrb[0].mxu0
      %v4085 = vadd.f32 %v3924, %v4084
      %v4086 = vpop.f32.mrb[0].mxu0
      %v4087 = vpop.f32.mrb[0].mxu0
      %v4088 = vadd.f32 %v3927, %v4087
      %v4089 = vpop.f32.mrb[0].mxu0
      %4090 = vmatprep.mubr.bf16.mxu0 0
      %4091 = vmatmul.mubr.bf16.gmra.mrb[0].mxu0 %v3627
      %v4092 = vpop.f32.mrb[0].mxu0
      %v4093 = vadd.f32 %v3932, %v4092
      %v4094 = vpop.f32.mrb[0].mxu0
      %v4095 = vpop.f32.mrb[0].mxu0
      %v4096 = vadd.f32 %v3935, %v4095
      %v4097 = vpop.f32.mrb[0].mxu0
      %4098 = vmatprep.mubr.bf16.mxu0 0
      %4099 = vmatmul.mubr.bf16.gmra.mrb[0].mxu0 %v3630
      %v4100 = vpop.f32.mrb[0].mxu0
      %v4101 = vadd.f32 %v3940, %v4100
      %v4102 = vpop.f32.mrb[0].mxu0
      %v4103 = vpop.f32.mrb[0].mxu0
      %v4104 = vadd.f32 %v3943, %v4103
      %v4105 = vpop.f32.mrb[0].mxu0
      %4106 = vmatprep.mubr.bf16.mxu0 0
      %4107 = vmatmul.mubr.bf16.gmra.mrb[0].mxu0 %v3633
      %v4108 = vpop.f32.mrb[0].mxu0
      %v4109 = vadd.f32 %v3948, %v4108
      %v4110 = vpop.f32.mrb[0].mxu0
      %v4111 = vpop.f32.mrb[0].mxu0
      %v4112 = vadd.f32 %v3951, %v4111
      %v4113 = vpop.f32.mrb[0].mxu0
      %4114 = vmatprep.mubr.bf16.mxu0 0
      %4115 = vmatmul.mubr.bf16.gmra.mrb[0].mxu0 %v3636
      %v4116 = vpop.f32.mrb[0].mxu0
      %v4117 = vadd.f32 %v3956, %v4116
      %v4118 = vpop.f32.mrb[0].mxu0
      %v4119 = vpop.f32.mrb[0].mxu0
      %v4120 = vadd.f32 %v3959, %v4119
      %v4121 = vpop.f32.mrb[0].mxu0
      %4122 = vmatprep.mubr.bf16.mxu0 0
      %4123 = vmatmul.mubr.bf16.gmra.mrb[0].mxu0 %v3639
      %v4124 = vpop.f32.mrb[0].mxu0
      %v4125 = vadd.f32 %v3964, %v4124
      %v4126 = vpop.f32.mrb[0].mxu0
      %v4127 = vpop.f32.mrb[0].mxu0
      %v4128 = vadd.f32 %v3967, %v4127
      %v4129 = vpop.f32.mrb[0].mxu0
      %4130 = vmatprep.mubr.bf16.mxu0 0
      %4131 = vmatmul.mubr.bf16.gmra.mrb[0].mxu0 %v3642
      %v4132 = vpop.f32.mrb[0].mxu0
      %v4133 = vadd.f32 %v3972, %v4132
      %v4134 = vpop.f32.mrb[0].mxu0
      %v4135 = vpop.f32.mrb[0].mxu0
      %v4136 = vadd.f32 %v3975, %v4135
      %v4137 = vpop.f32.mrb[0].mxu0
      %4138 = vmatprep.mubr.bf16.mxu0 0
      %4139 = vmatmul.mubr.bf16.gmra.mrb[0].mxu0 %v3645
      %v4140 = vpop.f32.mrb[0].mxu0
      %v4141 = vadd.f32 %v3980, %v4140
      %v4142 = vpop.f32.mrb[0].mxu0
      %v4143 = vpop.f32.mrb[0].mxu0
      %v4144 = vadd.f32 %v3983, %v4143
      %v4145 = vpop.f32.mrb[0].mxu0
      %4146 = vmatprep.mubr.bf16.mxu0 0
      %4147 = vmatmul.mubr.bf16.gmra.mrb[0].mxu0 %v3648
      %v4148 = vpop.f32.mrb[0].mxu0
      %v4149 = vadd.f32 %v3988, %v4148
      %v4150 = vpop.f32.mrb[0].mxu0
      %v4151 = vpop.f32.mrb[0].mxu0
      %v4152 = vadd.f32 %v3991, %v4151
      %v4153 = vpop.f32.mrb[0].mxu0
      %4154 = vmatprep.mubr.bf16.mxu0 0
      %4155 = vmatmul.mubr.bf16.gmra.mrb[0].mxu0 %v3651
      %v4156 = vpop.f32.mrb[0].mxu0
      %v4157 = vadd.f32 %v3996, %v4156
      %v4158 = vpop.f32.mrb[0].mxu0
      %v4159 = vpop.f32.mrb[0].mxu0
      %v4160 = vadd.f32 %v3999, %v4159
      %v4161 = vpop.f32.mrb[0].mxu0
      %4162 = vmatprep.mubr.bf16.mxu0 0
      %4163 = vmatmul.mubr.bf16.gmra.mrb[0].mxu0 %v3654
      %v4164 = vpop.f32.mrb[0].mxu0
      %v4165 = vadd.f32 %v4004, %v4164
      %v4166 = vpop.f32.mrb[0].mxu0
      %v4167 = vpop.f32.mrb[0].mxu0
      %v4168 = vadd.f32 %v4007, %v4167
      %v4169 = vpop.f32.mrb[0].mxu0
      %4170 = vmatprep.mubr.bf16.mxu0 0
      %4171 = vmatmul.mubr.bf16.gmra.mrb[0].mxu0 %v3657
      %v4172 = vpop.f32.mrb[0].mxu0
      %v4173 = vadd.f32 %v4012, %v4172
      %v4174 = vpop.f32.mrb[0].mxu0
      %v4175 = vpop.f32.mrb[0].mxu0
      %v4176 = vadd.f32 %v4015, %v4175
      %v4177 = vpop.f32.mrb[0].mxu0
      %4178 = vmatprep.mubr.bf16.mxu0 0
      %4179 = vmatmul.mubr.bf16.gmra.mrb[0].mxu0 %v3660
      %v4180 = vpop.f32.mrb[0].mxu0
      %v4181 = vadd.f32 %v4020, %v4180
      %v4182 = vpop.f32.mrb[0].mxu0
      %v4183 = vpop.f32.mrb[0].mxu0
      %v4184 = vadd.f32 %v4023, %v4183
      %v4185 = vpop.f32.mrb[0].mxu0
      %4186 = vmatprep.mubr.bf16.mxu0 0
      %4187 = vmatmul.mubr.bf16.gmra.mrb[0].mxu0 %v3663
      %v4188 = vpop.f32.mrb[0].mxu0
      %v4189 = vadd.f32 %v4028, %v4188
      %v4190 = vpop.f32.mrb[0].mxu0
      %v4191 = vpop.f32.mrb[0].mxu0
      %v4192 = vadd.f32 %v4031, %v4191
      %v4193 = vpop.f32.mrb[0].mxu0
      %4194 = vdwg.mxu0
      %v4195 = vadd.f32 %v3025, %v4069
      %v4196 = vadd.f32 %v3028, %v4072
      %v4197 = vadd.f32 %v3033, %v4077
      %v4198 = vadd.f32 %v3036, %v4080
      %v4199 = vadd.f32 %v3041, %v4085
      %v4200 = vadd.f32 %v3044, %v4088
      %v4201 = vadd.f32 %v3049, %v4093
      %v4202 = vadd.f32 %v3052, %v4096
      %v4203 = vadd.f32 %v3057, %v4101
      %v4204 = vadd.f32 %v3060, %v4104
      %v4205 = vadd.f32 %v3065, %v4109
      %v4206 = vadd.f32 %v3068, %v4112
      %v4207 = vadd.f32 %v3073, %v4117
      %v4208 = vadd.f32 %v3076, %v4120
      %v4209 = vadd.f32 %v3081, %v4125
      %v4210 = vadd.f32 %v3084, %v4128
      %v4211 = vadd.f32 %v3089, %v4133
      %v4212 = vadd.f32 %v3092, %v4136
      %v4213 = vadd.f32 %v3097, %v4141
      %v4214 = vadd.f32 %v3100, %v4144
      %v4215 = vadd.f32 %v3105, %v4149
      %v4216 = vadd.f32 %v3108, %v4152
      %v4217 = vadd.f32 %v3113, %v4157
      %v4218 = vadd.f32 %v3116, %v4160
      %v4219 = vadd.f32 %v3121, %v4165
      %v4220 = vadd.f32 %v3124, %v4168
      %v4221 = vadd.f32 %v3129, %v4173
      %v4222 = vadd.f32 %v3132, %v4176
      %v4223 = vadd.f32 %v3137, %v4181
      %v4224 = vadd.f32 %v3140, %v4184
      %v4225 = vadd.f32 %v3145, %v4189
      %v4226 = vadd.f32 %v3148, %v4192
      %v4227 = vpack.c.bf16 %v4196, %v4195
      %v4228 = vpack.c.bf16 %v4198, %v4197
      %v4229 = vpack.c.bf16 %v4200, %v4199
      %v4230 = vpack.c.bf16 %v4202, %v4201
      %v4231 = vpack.c.bf16 %v4204, %v4203
      %v4232 = vpack.c.bf16 %v4206, %v4205
      %v4233 = vpack.c.bf16 %v4208, %v4207
      %v4234 = vpack.c.bf16 %v4210, %v4209
      %v4235 = vpack.c.bf16 %v4212, %v4211
      %v4236 = vpack.c.bf16 %v4214, %v4213
      %v4237 = vpack.c.bf16 %v4216, %v4215
      %v4238 = vpack.c.bf16 %v4218, %v4217
      %v4239 = vpack.c.bf16 %v4220, %v4219
      %v4240 = vpack.c.bf16 %v4222, %v4221
      %v4241 = vpack.c.bf16 %v4224, %v4223
      %v4242 = vpack.c.bf16 %v4226, %v4225
      %v4259 = vunpack.c.l.b16 %v4227
      %v4260 = vunpack.c.h.b16 %v4227
      %v4261 = vunpack.c.l.b16 %v4228
      %v4262 = vunpack.c.h.b16 %v4228
      %v4263 = vunpack.c.l.b16 %v4229
      %v4264 = vunpack.c.h.b16 %v4229
      %v4265 = vunpack.c.l.b16 %v4230
      %v4266 = vunpack.c.h.b16 %v4230
      %v4267 = vunpack.c.l.b16 %v4231
      %v4268 = vunpack.c.h.b16 %v4231
      %v4269 = vunpack.c.l.b16 %v4232
      %v4270 = vunpack.c.h.b16 %v4232
      %v4271 = vunpack.c.l.b16 %v4233
      %v4272 = vunpack.c.h.b16 %v4233
      %v4273 = vunpack.c.l.b16 %v4234
      %v4274 = vunpack.c.h.b16 %v4234
      %v4275 = vunpack.c.l.b16 %v4235
      %v4276 = vunpack.c.h.b16 %v4235
      %v4277 = vunpack.c.l.b16 %v4236
      %v4278 = vunpack.c.h.b16 %v4236
      %v4279 = vunpack.c.l.b16 %v4237
      %v4280 = vunpack.c.h.b16 %v4237
      %v4281 = vunpack.c.l.b16 %v4238
      %v4282 = vunpack.c.h.b16 %v4238
      %v4283 = vunpack.c.l.b16 %v4239
      %v4284 = vunpack.c.h.b16 %v4239
      %v4285 = vunpack.c.l.b16 %v4240
      %v4286 = vunpack.c.h.b16 %v4240
      %v4287 = vunpack.c.l.b16 %v4241
      %v4288 = vunpack.c.h.b16 %v4241
      %v4289 = vunpack.c.l.b16 %v4242
      %v4290 = vunpack.c.h.b16 %v4242
      %v4291 = vpack.c.b16 %v4259, %v4259
      %v4292 = vpack.c.b16 %v4260, %v4260
      %v4293 = vpack.c.b16 %v4261, %v4261
      %v4294 = vpack.c.b16 %v4262, %v4262
      %v4295 = vpack.c.b16 %v4263, %v4263
      %v4296 = vpack.c.b16 %v4264, %v4264
      %v4297 = vpack.c.b16 %v4265, %v4265
      %v4298 = vpack.c.b16 %v4266, %v4266
      %v4299 = vpack.c.b16 %v4267, %v4267
      %v4300 = vpack.c.b16 %v4268, %v4268
      %v4301 = vpack.c.b16 %v4269, %v4269
      %v4302 = vpack.c.b16 %v4270, %v4270
      %v4303 = vpack.c.b16 %v4271, %v4271
      %v4304 = vpack.c.b16 %v4272, %v4272
      %v4305 = vpack.c.b16 %v4273, %v4273
      %v4306 = vpack.c.b16 %v4274, %v4274
      %v4307 = vpack.c.b16 %v4275, %v4275
      %v4308 = vpack.c.b16 %v4276, %v4276
      %v4309 = vpack.c.b16 %v4277, %v4277
      %v4310 = vpack.c.b16 %v4278, %v4278
      %v4311 = vpack.c.b16 %v4279, %v4279
      %v4312 = vpack.c.b16 %v4280, %v4280
      %v4313 = vpack.c.b16 %v4281, %v4281
      %v4314 = vpack.c.b16 %v4282, %v4282
      %v4315 = vpack.c.b16 %v4283, %v4283
      %v4316 = vpack.c.b16 %v4284, %v4284
      %v4317 = vpack.c.b16 %v4285, %v4285
      %v4318 = vpack.c.b16 %v4286, %v4286
      %v4319 = vpack.c.b16 %v4287, %v4287
      %v4320 = vpack.c.b16 %v4288, %v4288
      %v4321 = vpack.c.b16 %v4289, %v4289
      %v4322 = vpack.c.b16 %v4290, %v4290
      %4355 = vst [vmem:[%s231] sm:$0xf] %v4291
      %4356 = vst [vmem:[%s231 + $0x4] sm:$0xf] %v4292
      %4357 = vst [vmem:[%s231 + $0x8] sm:$0xf] %v4293
      %4358 = vst [vmem:[%s231 + $0xc] sm:$0xf] %v4294
      %4359 = vst [vmem:[%s231 + $0x10] sm:$0xf] %v4295
      %4360 = vst [vmem:[%s231 + $0x14] sm:$0xf] %v4296
      %4361 = vst [vmem:[%s231 + $0x18] sm:$0xf] %v4297
      %4362 = vst [vmem:[%s231 + $0x1c] sm:$0xf] %v4298
      %4363 = vst [vmem:[%s231 + $0x20] sm:$0xf] %v4299
      %4364 = vst [vmem:[%s231 + $0x24] sm:$0xf] %v4300
      %4365 = vst [vmem:[%s231 + $0x28] sm:$0xf] %v4301
      %4366 = vst [vmem:[%s231 + $0x2c] sm:$0xf] %v4302
      %4367 = vst [vmem:[%s231 + $0x30] sm:$0xf] %v4303
      %4368 = vst [vmem:[%s231 + $0x34] sm:$0xf] %v4304
      %4369 = vst [vmem:[%s231 + $0x38] sm:$0xf] %v4305
      %4370 = vst [vmem:[%s231 + $0x3c] sm:$0xf] %v4306
      %4371 = vst [vmem:[%s231 + $0x40] sm:$0xf] %v4307
      %4372 = vst [vmem:[%s231 + $0x44] sm:$0xf] %v4308
      %4373 = vst [vmem:[%s231 + $0x48] sm:$0xf] %v4309
      %4374 = vst [vmem:[%s231 + $0x4c] sm:$0xf] %v4310
      %4375 = vst [vmem:[%s231 + $0x50] sm:$0xf] %v4311
      %4376 = vst [vmem:[%s231 + $0x54] sm:$0xf] %v4312
      %4377 = vst [vmem:[%s231 + $0x58] sm:$0xf] %v4313
      %4378 = vst [vmem:[%s231 + $0x5c] sm:$0xf] %v4314
      %4379 = vst [vmem:[%s231 + $0x60] sm:$0xf] %v4315
      %4380 = vst [vmem:[%s231 + $0x64] sm:$0xf] %v4316
      %4381 = vst [vmem:[%s231 + $0x68] sm:$0xf] %v4317
      %4382 = vst [vmem:[%s231 + $0x6c] sm:$0xf] %v4318
      %4383 = vst [vmem:[%s231 + $0x70] sm:$0xf] %v4319
      %4384 = vst [vmem:[%s231 + $0x74] sm:$0xf] %v4320
      %4385 = vst [vmem:[%s231 + $0x78] sm:$0xf] %v4321
      %4386 = vst [vmem:[%s231 + $0x7c] sm:$0xf] %v4322
      %v4387 = vadd.f32 %v4195, %v4196
      %v4388 = vadd.f32 %v4387, %v4197
      %v4389 = vadd.f32 %v4388, %v4198
      %v4390 = vadd.f32 %v4389, %v4199
      %v4391 = vadd.f32 %v4390, %v4200
      %v4392 = vadd.f32 %v4391, %v4201
      %v4393 = vadd.f32 %v4392, %v4202
      %v4394 = vadd.f32 %v4393, %v4203
      %v4395 = vadd.f32 %v4394, %v4204
      %v4396 = vadd.f32 %v4395, %v4205
      %v4397 = vadd.f32 %v4396, %v4206
      %v4398 = vadd.f32 %v4397, %v4207
      %v4399 = vadd.f32 %v4398, %v4208
      %v4400 = vadd.f32 %v4399, %v4209
      %v4401 = vadd.f32 %v4400, %v4210
      %v4402 = vadd.f32 %v4401, %v4211
      %v4403 = vadd.f32 %v4402, %v4212
      %v4404 = vadd.f32 %v4403, %v4213
      %v4405 = vadd.f32 %v4404, %v4214
      %v4406 = vadd.f32 %v4405, %v4215
      %v4407 = vadd.f32 %v4406, %v4216
      %v4408 = vadd.f32 %v4407, %v4217
      %v4409 = vadd.f32 %v4408, %v4218
      %v4410 = vadd.f32 %v4409, %v4219
      %v4411 = vadd.f32 %v4410, %v4220
      %v4412 = vadd.f32 %v4411, %v4221
      %v4413 = vadd.f32 %v4412, %v4222
      %v4414 = vadd.f32 %v4413, %v4223
      %v4415 = vadd.f32 %v4414, %v4224
      %v4416 = vadd.f32 %v4415, %v4225
      %v4417 = vadd.f32 %v4416, %v4226
      %v4418 = vrot.slane %v4417, 4
      %v4419 = vadd.f32 %v4417, %v4418
      %v4420 = vrot.slane %v4419, 2
      %v4421 = vadd.f32 %v4419, %v4420
      %v4422 = vrot.slane %v4421, 1
      %v4423 = vadd.f32 %v4421, %v4422
      %4424 = vst [vmem:[%s235] sm:$0x1] %v4423
      %v4425 = vmul.f32 %v4195, %v4195
      %v4426 = vmul.f32 %v4196, %v4196
      %v4427 = vmul.f32 %v4197, %v4197
      %v4428 = vmul.f32 %v4198, %v4198
      %v4429 = vmul.f32 %v4199, %v4199
      %v4430 = vmul.f32 %v4200, %v4200
      %v4431 = vmul.f32 %v4201, %v4201
      %v4432 = vmul.f32 %v4202, %v4202
      %v4433 = vmul.f32 %v4203, %v4203
      %v4434 = vmul.f32 %v4204, %v4204
      %v4435 = vmul.f32 %v4205, %v4205
      %v4436 = vmul.f32 %v4206, %v4206
      %v4437 = vmul.f32 %v4207, %v4207
      %v4438 = vmul.f32 %v4208, %v4208
      %v4439 = vmul.f32 %v4209, %v4209
      %v4440 = vmul.f32 %v4210, %v4210
      %v4441 = vmul.f32 %v4211, %v4211
      %v4442 = vmul.f32 %v4212, %v4212
      %v4443 = vmul.f32 %v4213, %v4213
      %v4444 = vmul.f32 %v4214, %v4214
      %v4445 = vmul.f32 %v4215, %v4215
      %v4446 = vmul.f32 %v4216, %v4216
      %v4447 = vmul.f32 %v4217, %v4217
      %v4448 = vmul.f32 %v4218, %v4218
      %v4449 = vmul.f32 %v4219, %v4219
      %v4450 = vmul.f32 %v4220, %v4220
      %v4451 = vmul.f32 %v4221, %v4221
      %v4452 = vmul.f32 %v4222, %v4222
      %v4453 = vmul.f32 %v4223, %v4223
      %v4454 = vmul.f32 %v4224, %v4224
      %v4455 = vmul.f32 %v4225, %v4225
      %v4456 = vmul.f32 %v4226, %v4226
      %v4457 = vadd.f32 %v4425, %v4426
      %v4458 = vadd.f32 %v4457, %v4427
      %v4459 = vadd.f32 %v4458, %v4428
      %v4460 = vadd.f32 %v4459, %v4429
      %v4461 = vadd.f32 %v4460, %v4430
      %v4462 = vadd.f32 %v4461, %v4431
      %v4463 = vadd.f32 %v4462, %v4432
      %v4464 = vadd.f32 %v4463, %v4433
      %v4465 = vadd.f32 %v4464, %v4434
      %v4466 = vadd.f32 %v4465, %v4435
      %v4467 = vadd.f32 %v4466, %v4436
      %v4468 = vadd.f32 %v4467, %v4437
      %v4469 = vadd.f32 %v4468, %v4438
      %v4470 = vadd.f32 %v4469, %v4439
      %v4471 = vadd.f32 %v4470, %v4440
      %v4472 = vadd.f32 %v4471, %v4441
      %v4473 = vadd.f32 %v4472, %v4442
      %v4474 = vadd.f32 %v4473, %v4443
      %v4475 = vadd.f32 %v4474, %v4444
      %v4476 = vadd.f32 %v4475, %v4445
      %v4477 = vadd.f32 %v4476, %v4446
      %v4478 = vadd.f32 %v4477, %v4447
      %v4479 = vadd.f32 %v4478, %v4448
      %v4480 = vadd.f32 %v4479, %v4449
      %v4481 = vadd.f32 %v4480, %v4450
      %v4482 = vadd.f32 %v4481, %v4451
      %v4483 = vadd.f32 %v4482, %v4452
      %v4484 = vadd.f32 %v4483, %v4453
      %v4485 = vadd.f32 %v4484, %v4454
      %v4486 = vadd.f32 %v4485, %v4455
      %v4487 = vadd.f32 %v4486, %v4456
      %v4488 = vrot.slane %v4487, 4
      %v4489 = vadd.f32 %v4487, %v4488
      %v4490 = vrot.slane %v4489, 2
      %v4491 = vadd.f32 %v4489, %v4490
      %v4492 = vrot.slane %v4491, 1
      %v4493 = vadd.f32 %v4491, %v4492
      %4494 = vst [vmem:[%s235 + $0x1] sm:$0x1] %v4493
      %p4495 = scmp.lt.s32.totalorder %s17, 1
      %s4496 = scalar_select %p4495, %s17, 1
      %s4497 = smul.addr %s4496, 32
      %s4498 = smul.addr %s4497, 4
      %s4499 = scalar_lea.vmem %s4, %s4498
      %p4500 = scmp.lt.s32.totalorder %s17, 1
      %s4501 = scalar_select %p4500, %s17, 1
      %s4502 = smul.addr %s4501, 2
      %s4503 = scalar_lea.vmem %s5, %s4502
      // Predicated region
      $region37: #{double_conv_forward.4} parent=35 // pred_check
        %p4504 = pneg %p124
      $region38: #{double_conv_forward.4} parent=35 // pred_check_branch
        %4506 = sbr.rel (%p4504) target = $region40
      $region39: #{double_conv_forward.4} parent=35 // pred_region
        _
      $region40: #{double_conv_forward.4} parent=35 // pred_fallthru
        _
      // Predicated region
      $region41: #{double_conv_forward.4} parent=35 // pred_check
        %p4507 = pneg %p150
      $region42: #{double_conv_forward.4} parent=35 // pred_check_branch
        %4509 = sbr.rel (%p4507) target = $region44
      $region43: #{double_conv_forward.4} parent=35 // pred_region
        _
      $region44: #{double_conv_forward.4} parent=35 // pred_fallthru
        _
    $region36: #{double_conv_forward.4} parent=5 // pred_fallthru
      _
    %p4510 = scmp.le.s32.totalorder 2, %s12
    // Predicated region
    $region45: #{double_conv_forward.4} parent=5 // pred_check
      %p4511 = pneg %p4510
    $region46: #{double_conv_forward.4} parent=5 // pred_check_branch
      %4513 = sbr.rel (%p4511) target = $region48
    $region47: #{double_conv_forward.4} parent=5 // pred_region
      %s4514 = ssub.s32 %s12, 2
      // Predicated region
      $region49: #{double_conv_forward.4} parent=47 // pred_check
        %p4515 = pneg %p130
      $region50: #{double_conv_forward.4} parent=47 // pred_check_branch
        %4517 = sbr.rel (%p4515) target = $region52
      $region51: #{double_conv_forward.4} parent=47 // pred_region
        %p4518 = scmp.lt.s32.totalorder %s18, 1
        %s4519 = scalar_select %p4518, %s18, 1
        %s4520 = smul.addr %s4519, 32
        %s4521 = smul.addr %s4520, 4
        %s4522 = scalar_lea.vmem %s4, %s4521
      $region52: #{double_conv_forward.4} parent=47 // pred_fallthru
        _
      // Predicated region
      $region53: #{double_conv_forward.4} parent=47 // pred_check
        %p4523 = pneg %p156
      $region54: #{double_conv_forward.4} parent=47 // pred_check_branch
        %4525 = sbr.rel (%p4523) target = $region56
      $region55: #{double_conv_forward.4} parent=47 // pred_region
        %p4526 = scmp.lt.s32.totalorder %s18, 1
        %s4527 = scalar_select %p4526, %s18, 1
        %s4528 = smul.addr %s4527, 2
        %s4529 = scalar_lea.vmem %s5, %s4528
      $region56: #{double_conv_forward.4} parent=47 // pred_fallthru
        _
    $region48: #{double_conv_forward.4} parent=5 // pred_fallthru
      _
  $region6: #{double_conv_forward.4} parent=0 // loop_footer
    %s16 = sadd.s32 1, %s12
  $region7: #{double_conv_forward.4} parent=0 // loop_footer_branch
    %11 = sbr.rel target = $region3
  $region8: #{double_conv_forward.4} parent=0 // loop_exit
    _

</llo_original>
